<compile_context>
chip_gen: v5e
topology: v5e:2x2
jax: 0.10.0
libtpu: 0.0.40
codegen_flags: <defaults>
</compile_context>

<pallas_src>
import functools

import jax
import jax.numpy as jnp
import numpy as np
from jax.experimental import pallas as pl
from jax.experimental.pallas import tpu as pltpu


def rcab_kernel(x_ref, w12_ref, slab_ref, out_ref,
                xpad_ref, col_ref, h1_ref, h2_ref, *, W, PAD, Cr):
    B, C, HW = x_ref.shape

    # --- w-boundary lane masks, built in-kernel (2 vregs of VPU work) ---------
    wpos = jax.lax.broadcasted_iota(jnp.int32, (1, HW), 1) % W
    lmask = (wpos != 0).astype(jnp.bfloat16)        # 0.0 where w == 0     (dx=-1 taps)
    rmask = (wpos != W - 1).astype(jnp.bfloat16)    # 0.0 where w == W - 1 (dx=+1 taps)

    # --- unpack the tiny packed params (all static slices) --------------------
    b1 = slab_ref[:, 0:1]                           # (C, 1)
    b2 = slab_ref[:, 1:2]                           # (C, 1)
    bu = slab_ref[:, 2:3]                           # (C, 1)
    wd = slab_ref[:, 3:3 + Cr]                      # (C, Cr)
    wuT = slab_ref[:, 3 + Cr:3 + 2 * Cr]            # (C, Cr) == wu^T
    bd = slab_ref[0:1, 3 + 2 * Cr:3 + 3 * Cr]       # (1, Cr)

    # --- zero halo strips (unconditional: safe under megacore grid splitting) -
    xpad_ref[:, 0:PAD] = jnp.zeros((C, PAD), xpad_ref.dtype)
    xpad_ref[:, PAD + HW:2 * PAD + HW] = jnp.zeros((C, PAD), xpad_ref.dtype)

    def stage_image(b):
        # Slice the 9 shifted taps of the current xpad interior into im2col
        # stripe b.  xpad is already bf16, so no per-slice cast; the two
        # boundary-masked columns are one bf16 VPU multiply each.
        for dy in range(3):
            for dx in range(3):
                k = dy * 3 + dx
                off = PAD + (dy - 1) * W + (dx - 1)
                sl = xpad_ref[:, off:off + HW]      # (C, HW) bf16, static slice
                if dx == 0:
                    sl = sl * lmask
                elif dx == 2:
                    sl = sl * rmask
                col_ref[k * C:(k + 1) * C, b * HW:(b + 1) * HW] = sl

    # --- conv1 (3x3, SAME, bias) + ReLU: one K=288 bf16 MXU matmul over B*HW ---
    for b in range(B):
        xpad_ref[:, PAD:PAD + HW] = x_ref[b].astype(jnp.bfloat16)
        stage_image(b)
    w1 = w12_ref[0:C, :]                            # (C, 9C) bf16
    h1_ref[...] = jnp.maximum(
        jnp.dot(w1, col_ref[...], preferred_element_type=jnp.float32) + b1,
        0.0).astype(jnp.bfloat16)

    # --- conv2 (3x3, SAME, bias): reuse halo buffer (borders stay 0) ----------
    for b in range(B):
        xpad_ref[:, PAD:PAD + HW] = h1_ref[:, b * HW:(b + 1) * HW]
        stage_image(b)
    w2 = w12_ref[C:2 * C, :]                        # (C, 9C) bf16
    h2_ref[...] = jnp.dot(w2, col_ref[...],
                          preferred_element_type=jnp.float32) + b2

    # --- CALayer (avg pool -> 1x1 -> ReLU -> 1x1 -> sigmoid) + residual -------
    # Per-image scalar path on VPU/XLU; no M=1 MXU matmuls.
    for b in range(B):
        h2b = h2_ref[:, b * HW:(b + 1) * HW]                                 # (C, HW)
        y = jnp.mean(h2b, axis=1, keepdims=True)                             # (C, 1)
        z = jnp.maximum(jnp.sum(wd * y, axis=0, keepdims=True) + bd, 0.0)    # (1, Cr)
        s = jax.nn.sigmoid(jnp.sum(wuT * z, axis=1, keepdims=True) + bu)     # (C, 1)
        out_ref[b] = h2b * s + x_ref[b]             # lane-dense unmasked store


def prepare_rcab_params(params):
    """One-time weight repack (hoisted out of the per-call path)."""
    w1, b1, w2, b2, wd, bd, wu, bu = params
    C = w1.shape[2]
    Cr = wd.shape[1]
    # HWIO (3,3,Cin,Cout) -> (Cout, 9*Cin); K index = (dy*3+dx)*Cin + ci matches
    # the kernel's im2col row order.  Both convs packed into one bf16 operand.
    w1k = jnp.transpose(w1, (3, 0, 1, 2)).reshape(C, 9 * C)
    w2k = jnp.transpose(w2, (3, 0, 1, 2)).reshape(C, 9 * C)
    w12 = jnp.concatenate([w1k, w2k], axis=0).astype(jnp.bfloat16)   # (2C, 9C)
    # All small params packed into a single lane-dense f32 slab.
    slab = jnp.zeros((C, 3 + 3 * Cr), jnp.float32)
    slab = slab.at[:, 0].set(b1.astype(jnp.float32))
    slab = slab.at[:, 1].set(b2.astype(jnp.float32))
    slab = slab.at[:, 2].set(bu.astype(jnp.float32))
    slab = slab.at[:, 3:3 + Cr].set(wd.astype(jnp.float32))
    slab = slab.at[:, 3 + Cr:3 + 2 * Cr].set(jnp.transpose(wu).astype(jnp.float32))
    slab = slab.at[0, 3 + 2 * Cr:3 + 3 * Cr].set(bd.astype(jnp.float32))
    return (w12, slab, Cr)


def rcab_pallas(x_nchw, kparams, images_per_step=None):
    w12, slab, Cr = kparams
    N, C, H, W = x_nchw.shape
    HW = H * W
    PAD = -(-(W + 1) // 128) * 128        # lane-aligned halo, >= W+1

    if images_per_step is None:
        # Batch as much as possible while keeping >= 2 grid steps for v7x's
        # two TensorCores (on v5e/v6e there is a single TC; 2 steps is cheap).
        images_per_step = max(1, N // 2)
    B = int(min(images_per_step, N))
    steps = (N + B - 1) // B
    Npad = steps * B

    x_flat = x_nchw.reshape(N, C, HW).astype(jnp.float32)       # free NCHW reshape
    if Npad != N:
        x_flat = jnp.concatenate(
            [x_flat, jnp.zeros((Npad - N, C, HW), jnp.float32)], axis=0)

    kernel = functools.partial(rcab_kernel, W=W, PAD=PAD, Cr=Cr)

    out = pl.pallas_call(
        kernel,
        out_shape=jax.ShapeDtypeStruct((Npad, C, HW), jnp.float32),
        grid_spec=pltpu.PrefetchScalarGridSpec(
            num_scalar_prefetch=0,
            grid=(steps,),
            in_specs=[
                pl.BlockSpec((B, C, HW), lambda n: (n, 0, 0)),      # x (lane-dense)
                pl.BlockSpec((2 * C, 9 * C), lambda n: (0, 0)),     # [w1; w2] bf16
                pl.BlockSpec((C, 3 + 3 * Cr), lambda n: (0, 0)),    # packed params
            ],
            out_specs=pl.BlockSpec((B, C, HW), lambda n: (n, 0, 0)),
            scratch_shapes=[
                pltpu.VMEM((C, 2 * PAD + HW), jnp.bfloat16),        # zero-haloed img
                pltpu.VMEM((9 * C, B * HW), jnp.bfloat16),          # im2col (K=288)
                pltpu.VMEM((C, B * HW), jnp.bfloat16),              # h1 (conv1 out)
                pltpu.VMEM((C, B * HW), jnp.float32),               # h2 (conv2 out)
            ],
        ),
        compiler_params=pltpu.CompilerParams(
            dimension_semantics=("parallel",)),                      # 2 TCs on v7x
    )(x_flat, w12, slab)

    return out[:N].reshape(N, C, H, W)                              # free reshape


def rcab_reference(x_nchw, params):
    """Pure-JAX reference of the PyTorch RCAB forward (NCHW in/out)."""
    w1, b1, w2, b2, wd, bd, wu, bu = params
    x = jnp.transpose(x_nchw, (0, 2, 3, 1)).astype(jnp.float32)
    dn = ('NHWC', 'HWIO', 'NHWC')
    h1 = jax.lax.conv_general_dilated(x, w1, (1, 1), 'SAME', dimension_numbers=dn) + b1
    h1 = jnp.maximum(h1, 0.0)
    h2 = jax.lax.conv_general_dilated(h1, w2, (1, 1), 'SAME', dimension_numbers=dn) + b2
    y = jnp.mean(h2, axis=(1, 2), keepdims=True)                 # AdaptiveAvgPool2d(1)
    z = jnp.maximum(jnp.einsum('nhwc,cr->nhwr', y, wd) + bd, 0.0)
    s = jax.nn.sigmoid(jnp.einsum('nhwr,rc->nhwc', z, wu) + bu)
    out = h2 * s + x
    return jnp.transpose(out, (0, 3, 1, 2))


if __name__ == "__main__":
    # RCAB(n_feat=32, kernel_size=3, reduction=16) on x: [N=8, C=32, H=16, W=16]
    # (N=8 so the default batching gives 2 grid steps of 4 images each.)
    N, C, H, W = 8, 32, 16, 16
    RED = 16
    Cr = C // RED

    key = jax.random.PRNGKey(0)
    ks = jax.random.split(key, 9)
    x = jax.random.normal(ks[0], (N, C, H, W), jnp.float32)

    # Synthetic parameters (conv1/conv2 weights HWIO; CALayer 1x1 convs as matrices).
    w1 = jax.random.normal(ks[1], (3, 3, C, C), jnp.float32) * 0.05
    b1 = jax.random.normal(ks[2], (C,), jnp.float32) * 0.05
    w2 = jax.random.normal(ks[3], (3, 3, C, C), jnp.float32) * 0.05
    b2 = jax.random.normal(ks[4], (C,), jnp.float32) * 0.05
    wd = jax.random.normal(ks[5], (C, Cr), jnp.float32) * 0.1
    bd = jax.random.normal(ks[6], (Cr,), jnp.float32) * 0.1
    wu = jax.random.normal(ks[7], (Cr, C), jnp.float32) * 0.1
    bu = jax.random.normal(ks[8], (C,), jnp.float32) * 0.1
    params = (w1, b1, w2, b2, wd, bd, wu, bu)

    kparams = prepare_rcab_params(params)             # one-time weight repack
    out = jax.block_until_ready(rcab_pallas(x, kparams))
    ref = jax.block_until_ready(rcab_reference(x, params))

    # bf16 matmul inputs with f32 accumulation -> slightly looser tolerance.
    np.testing.assert_allclose(np.asarray(out), np.asarray(ref), rtol=3e-2, atol=3e-2)
    print("KERNEL_OK")
</pallas_src>

<mosaic_0001>
module attributes {stable_mosaic.version = 11 : i64} {
  func.func @rcab_kernel(%arg0: i32, %arg1: memref<4x32x256xf32, #tpu.memory_space<vmem>>, %arg2: memref<64x288xbf16, #tpu.memory_space<vmem>>, %arg3: memref<32x9xf32, #tpu.memory_space<vmem>>, %arg4: memref<4x32x256xf32, #tpu.memory_space<vmem>>, %arg5: memref<32x512xbf16, #tpu.memory_space<vmem>>, %arg6: memref<288x1024xbf16, #tpu.memory_space<vmem>>, %arg7: memref<32x1024xbf16, #tpu.memory_space<vmem>>, %arg8: memref<32x1024xf32, #tpu.memory_space<vmem>>) attributes {dimension_semantics = [#tpu.dimension_semantics<parallel>], iteration_bounds = array<i64: 2>, scalar_prefetch = 0 : i64, scratch_operands = 4 : i64, tpu.core_type = #tpu.core_type<tc>, window_params = [{transform_indices = @transform_0, window_bounds = array<i64: 4, 32, 256>}, {pipeline_mode = #tpu.pipeline_mode<synchronous>, transform_indices = @transform_1, window_bounds = array<i64: 64, 288>}, {pipeline_mode = #tpu.pipeline_mode<synchronous>, transform_indices = @transform_2, window_bounds = array<i64: 32, 9>}, {transform_indices = @transform_3, window_bounds = array<i64: 4, 32, 256>}]} {
    %0 = tpu.iota {dimensions = array<i32: 1>} : vector<1x256xi32>
    %c16_i32 = arith.constant 16 : i32
    %c0_i32 = arith.constant 0 : i32
    %1 = arith.cmpi eq, %c16_i32, %c0_i32 : i32
    %c1_i32 = arith.constant 1 : i32
    %2 = arith.select %1, %c1_i32, %c16_i32 : i32
    %3 = vector.broadcast %2 : i32 to vector<1x256xi32>
    %4 = arith.remsi %0, %3 : vector<1x256xi32>
    %c0_i32_0 = arith.constant 0 : i32
    %5 = vector.broadcast %c0_i32_0 : i32 to vector<1x256xi32>
    %6 = arith.cmpi ne, %4, %5 : vector<1x256xi32>
    %c0_i32_1 = arith.constant 0 : i32
    %7 = vector.broadcast %c0_i32_1 : i32 to vector<1x256xi32>
    %8 = arith.cmpi slt, %4, %7 : vector<1x256xi32>
    %c0_i32_2 = arith.constant 0 : i32
    %9 = arith.cmpi slt, %2, %c0_i32_2 : i32
    %10 = vector.broadcast %9 : i1 to vector<1x256xi1>
    %11 = vector.broadcast %10 : vector<1x256xi1> to vector<1x256xi1>
    %12 = arith.xori %8, %11 : vector<1x256xi1>
    %13 = arith.andi %12, %6 : vector<1x256xi1>
    %14 = vector.broadcast %2 : i32 to vector<1x256xi32>
    %15 = arith.addi %4, %14 : vector<1x256xi32>
    %16 = arith.select %13, %15, %4 : vector<1x256xi1>, vector<1x256xi32>
    %c0_i32_3 = arith.constant 0 : i32
    %17 = vector.broadcast %c0_i32_3 : i32 to vector<1x256xi32>
    %18 = arith.cmpi ne, %16, %17 : vector<1x256xi32>
    %19 = arith.extui %18 : vector<1x256xi1> to vector<1x256xi32>
    %20 = arith.sitofp %19 : vector<1x256xi32> to vector<1x256xf32>
    %21 = arith.truncf %20 : vector<1x256xf32> to vector<1x256xbf16>
    %c15_i32 = arith.constant 15 : i32
    %22 = vector.broadcast %c15_i32 : i32 to vector<1x256xi32>
    %23 = arith.cmpi ne, %16, %22 : vector<1x256xi32>
    %24 = arith.extui %23 : vector<1x256xi1> to vector<1x256xi32>
    %25 = arith.sitofp %24 : vector<1x256xi32> to vector<1x256xf32>
    %26 = arith.truncf %25 : vector<1x256xf32> to vector<1x256xbf16>
    %c0 = arith.constant 0 : index
    %c0_4 = arith.constant 0 : index
    %27 = vector.load %arg3[%c0, %c0_4] : memref<32x9xf32, #tpu.memory_space<vmem>>, vector<32x1xf32>
    %c0_5 = arith.constant 0 : index
    %c1 = arith.constant 1 : index
    %28 = vector.load %arg3[%c0_5, %c1] : memref<32x9xf32, #tpu.memory_space<vmem>>, vector<32x1xf32>
    %c0_6 = arith.constant 0 : index
    %c2 = arith.constant 2 : index
    %29 = vector.load %arg3[%c0_6, %c2] : memref<32x9xf32, #tpu.memory_space<vmem>>, vector<32x1xf32>
    %c0_7 = arith.constant 0 : index
    %c3 = arith.constant 3 : index
    %30 = vector.load %arg3[%c0_7, %c3] : memref<32x9xf32, #tpu.memory_space<vmem>>, vector<32x2xf32>
    %c0_8 = arith.constant 0 : index
    %c5 = arith.constant 5 : index
    %31 = vector.load %arg3[%c0_8, %c5] : memref<32x9xf32, #tpu.memory_space<vmem>>, vector<32x2xf32>
    %c0_9 = arith.constant 0 : index
    %c7 = arith.constant 7 : index
    %32 = vector.load %arg3[%c0_9, %c7] : memref<32x9xf32, #tpu.memory_space<vmem>>, vector<1x2xf32>
    %cst = arith.constant 0.000000e+00 : bf16
    %33 = vector.broadcast %cst : bf16 to vector<32x128xbf16>
    %c0_10 = arith.constant 0 : index
    %c0_11 = arith.constant 0 : index
    %34 = vector.load %arg5[%c0_10, %c0_11] : memref<32x512xbf16, #tpu.memory_space<vmem>>, vector<32x128xbf16>
    tpu.vector_store %arg5[%c0_10, %c0_11], %33 {strides = array<i32>} : memref<32x512xbf16, #tpu.memory_space<vmem>>, vector<32x128xbf16>,
    %cst_12 = arith.constant 0.000000e+00 : bf16
    %35 = vector.broadcast %cst_12 : bf16 to vector<32x128xbf16>
    %c0_13 = arith.constant 0 : index
    %c384 = arith.constant 384 : index
    %36 = vector.load %arg5[%c0_13, %c384] : memref<32x512xbf16, #tpu.memory_space<vmem>>, vector<32x128xbf16>
    tpu.vector_store %arg5[%c0_13, %c384], %35 {strides = array<i32>} : memref<32x512xbf16, #tpu.memory_space<vmem>>, vector<32x128xbf16>,
    %c0_14 = arith.constant 0 : index
    %c0_15 = arith.constant 0 : index
    %c0_16 = arith.constant 0 : index
    %37 = vector.load %arg1[%c0_14, %c0_15, %c0_16] : memref<4x32x256xf32, #tpu.memory_space<vmem>>, vector<1x32x256xf32>
    %38 = vector.shape_cast %37 : vector<1x32x256xf32> to vector<32x256xf32>
    %39 = arith.truncf %38 : vector<32x256xf32> to vector<32x256xbf16>
    %c0_17 = arith.constant 0 : index
    %c128 = arith.constant 128 : index
    %40 = vector.load %arg5[%c0_17, %c128] : memref<32x512xbf16, #tpu.memory_space<vmem>>, vector<32x256xbf16>
    tpu.vector_store %arg5[%c0_17, %c128], %39 {strides = array<i32>} : memref<32x512xbf16, #tpu.memory_space<vmem>>, vector<32x256xbf16>,
    %c0_18 = arith.constant 0 : index
    %c111 = arith.constant 111 : index
    %41 = vector.load %arg5[%c0_18, %c111] : memref<32x512xbf16, #tpu.memory_space<vmem>>, vector<32x256xbf16>
    %42 = vector.broadcast %21 : vector<1x256xbf16> to vector<32x256xbf16>
    %43 = arith.mulf %41, %42 : vector<32x256xbf16>
    %c0_19 = arith.constant 0 : index
    %c0_20 = arith.constant 0 : index
    %44 = vector.load %arg6[%c0_19, %c0_20] : memref<288x1024xbf16, #tpu.memory_space<vmem>>, vector<32x256xbf16>
    tpu.vector_store %arg6[%c0_19, %c0_20], %43 {strides = array<i32>} : memref<288x1024xbf16, #tpu.memory_space<vmem>>, vector<32x256xbf16>,
    %c0_21 = arith.constant 0 : index
    %c112 = arith.constant 112 : index
    %45 = vector.load %arg5[%c0_21, %c112] : memref<32x512xbf16, #tpu.memory_space<vmem>>, vector<32x256xbf16>
    %c32 = arith.constant 32 : index
    %c0_22 = arith.constant 0 : index
    %46 = vector.load %arg6[%c32, %c0_22] : memref<288x1024xbf16, #tpu.memory_space<vmem>>, vector<32x256xbf16>
    tpu.vector_store %arg6[%c32, %c0_22], %45 {strides = array<i32>} : memref<288x1024xbf16, #tpu.memory_space<vmem>>, vector<32x256xbf16>,
    %c0_23 = arith.constant 0 : index
    %c113 = arith.constant 113 : index
    %47 = vector.load %arg5[%c0_23, %c113] : memref<32x512xbf16, #tpu.memory_space<vmem>>, vector<32x256xbf16>
    %48 = vector.broadcast %26 : vector<1x256xbf16> to vector<32x256xbf16>
    %49 = arith.mulf %47, %48 : vector<32x256xbf16>
    %c64 = arith.constant 64 : index
    %c0_24 = arith.constant 0 : index
    %50 = vector.load %arg6[%c64, %c0_24] : memref<288x1024xbf16, #tpu.memory_space<vmem>>, vector<32x256xbf16>
    tpu.vector_store %arg6[%c64, %c0_24], %49 {strides = array<i32>} : memref<288x1024xbf16, #tpu.memory_space<vmem>>, vector<32x256xbf16>,
    %c0_25 = arith.constant 0 : index
    %c127 = arith.constant 127 : index
    %51 = vector.load %arg5[%c0_25, %c127] : memref<32x512xbf16, #tpu.memory_space<vmem>>, vector<32x256xbf16>
    %52 = vector.broadcast %21 : vector<1x256xbf16> to vector<32x256xbf16>
    %53 = arith.mulf %51, %52 : vector<32x256xbf16>
    %c96 = arith.constant 96 : index
    %c0_26 = arith.constant 0 : index
    %54 = vector.load %arg6[%c96, %c0_26] : memref<288x1024xbf16, #tpu.memory_space<vmem>>, vector<32x256xbf16>
    tpu.vector_store %arg6[%c96, %c0_26], %53 {strides = array<i32>} : memref<288x1024xbf16, #tpu.memory_space<vmem>>, vector<32x256xbf16>,
    %c0_27 = arith.constant 0 : index
    %c128_28 = arith.constant 128 : index
    %55 = vector.load %arg5[%c0_27, %c128_28] : memref<32x512xbf16, #tpu.memory_space<vmem>>, vector<32x256xbf16>
    %c128_29 = arith.constant 128 : index
    %c0_30 = arith.constant 0 : index
    %56 = vector.load %arg6[%c128_29, %c0_30] : memref<288x1024xbf16, #tpu.memory_space<vmem>>, vector<32x256xbf16>
    tpu.vector_store %arg6[%c128_29, %c0_30], %55 {strides = array<i32>} : memref<288x1024xbf16, #tpu.memory_space<vmem>>, vector<32x256xbf16>,
    %c0_31 = arith.constant 0 : index
    %c129 = arith.constant 129 : index
    %57 = vector.load %arg5[%c0_31, %c129] : memref<32x512xbf16, #tpu.memory_space<vmem>>, vector<32x256xbf16>
    %58 = vector.broadcast %26 : vector<1x256xbf16> to vector<32x256xbf16>
    %59 = arith.mulf %57, %58 : vector<32x256xbf16>
    %c160 = arith.constant 160 : index
    %c0_32 = arith.constant 0 : index
    %60 = vector.load %arg6[%c160, %c0_32] : memref<288x1024xbf16, #tpu.memory_space<vmem>>, vector<32x256xbf16>
    tpu.vector_store %arg6[%c160, %c0_32], %59 {strides = array<i32>} : memref<288x1024xbf16, #tpu.memory_space<vmem>>, vector<32x256xbf16>,
    %c0_33 = arith.constant 0 : index
    %c143 = arith.constant 143 : index
    %61 = vector.load %arg5[%c0_33, %c143] : memref<32x512xbf16, #tpu.memory_space<vmem>>, vector<32x256xbf16>
    %62 = vector.broadcast %21 : vector<1x256xbf16> to vector<32x256xbf16>
    %63 = arith.mulf %61, %62 : vector<32x256xbf16>
    %c192 = arith.constant 192 : index
    %c0_34 = arith.constant 0 : index
    %64 = vector.load %arg6[%c192, %c0_34] : memref<288x1024xbf16, #tpu.memory_space<vmem>>, vector<32x256xbf16>
    tpu.vector_store %arg6[%c192, %c0_34], %63 {strides = array<i32>} : memref<288x1024xbf16, #tpu.memory_space<vmem>>, vector<32x256xbf16>,
    %c0_35 = arith.constant 0 : index
    %c144 = arith.constant 144 : index
    %65 = vector.load %arg5[%c0_35, %c144] : memref<32x512xbf16, #tpu.memory_space<vmem>>, vector<32x256xbf16>
    %c224 = arith.constant 224 : index
    %c0_36 = arith.constant 0 : index
    %66 = vector.load %arg6[%c224, %c0_36] : memref<288x1024xbf16, #tpu.memory_space<vmem>>, vector<32x256xbf16>
    tpu.vector_store %arg6[%c224, %c0_36], %65 {strides = array<i32>} : memref<288x1024xbf16, #tpu.memory_space<vmem>>, vector<32x256xbf16>,
    %c0_37 = arith.constant 0 : index
    %c145 = arith.constant 145 : index
    %67 = vector.load %arg5[%c0_37, %c145] : memref<32x512xbf16, #tpu.memory_space<vmem>>, vector<32x256xbf16>
    %68 = vector.broadcast %26 : vector<1x256xbf16> to vector<32x256xbf16>
    %69 = arith.mulf %67, %68 : vector<32x256xbf16>
    %c256 = arith.constant 256 : index
    %c0_38 = arith.constant 0 : index
    %70 = vector.load %arg6[%c256, %c0_38] : memref<288x1024xbf16, #tpu.memory_space<vmem>>, vector<32x256xbf16>
    tpu.vector_store %arg6[%c256, %c0_38], %69 {strides = array<i32>} : memref<288x1024xbf16, #tpu.memory_space<vmem>>, vector<32x256xbf16>,
    %c1_39 = arith.constant 1 : index
    %c0_40 = arith.constant 0 : index
    %c0_41 = arith.constant 0 : index
    %71 = vector.load %arg1[%c1_39, %c0_40, %c0_41] : memref<4x32x256xf32, #tpu.memory_space<vmem>>, vector<1x32x256xf32>
    %72 = vector.shape_cast %71 : vector<1x32x256xf32> to vector<32x256xf32>
    %73 = arith.truncf %72 : vector<32x256xf32> to vector<32x256xbf16>
    %c0_42 = arith.constant 0 : index
    %c128_43 = arith.constant 128 : index
    %74 = vector.load %arg5[%c0_42, %c128_43] : memref<32x512xbf16, #tpu.memory_space<vmem>>, vector<32x256xbf16>
    tpu.vector_store %arg5[%c0_42, %c128_43], %73 {strides = array<i32>} : memref<32x512xbf16, #tpu.memory_space<vmem>>, vector<32x256xbf16>,
    %c0_44 = arith.constant 0 : index
    %c111_45 = arith.constant 111 : index
    %75 = vector.load %arg5[%c0_44, %c111_45] : memref<32x512xbf16, #tpu.memory_space<vmem>>, vector<32x256xbf16>
    %76 = vector.broadcast %21 : vector<1x256xbf16> to vector<32x256xbf16>
    %77 = arith.mulf %75, %76 : vector<32x256xbf16>
    %c0_46 = arith.constant 0 : index
    %c256_47 = arith.constant 256 : index
    %78 = vector.load %arg6[%c0_46, %c256_47] : memref<288x1024xbf16, #tpu.memory_space<vmem>>, vector<32x256xbf16>
    tpu.vector_store %arg6[%c0_46, %c256_47], %77 {strides = array<i32>} : memref<288x1024xbf16, #tpu.memory_space<vmem>>, vector<32x256xbf16>,
    %c0_48 = arith.constant 0 : index
    %c112_49 = arith.constant 112 : index
    %79 = vector.load %arg5[%c0_48, %c112_49] : memref<32x512xbf16, #tpu.memory_space<vmem>>, vector<32x256xbf16>
    %c32_50 = arith.constant 32 : index
    %c256_51 = arith.constant 256 : index
    %80 = vector.load %arg6[%c32_50, %c256_51] : memref<288x1024xbf16, #tpu.memory_space<vmem>>, vector<32x256xbf16>
    tpu.vector_store %arg6[%c32_50, %c256_51], %79 {strides = array<i32>} : memref<288x1024xbf16, #tpu.memory_space<vmem>>, vector<32x256xbf16>,
    %c0_52 = arith.constant 0 : index
    %c113_53 = arith.constant 113 : index
    %81 = vector.load %arg5[%c0_52, %c113_53] : memref<32x512xbf16, #tpu.memory_space<vmem>>, vector<32x256xbf16>
    %82 = vector.broadcast %26 : vector<1x256xbf16> to vector<32x256xbf16>
    %83 = arith.mulf %81, %82 : vector<32x256xbf16>
    %c64_54 = arith.constant 64 : index
    %c256_55 = arith.constant 256 : index
    %84 = vector.load %arg6[%c64_54, %c256_55] : memref<288x1024xbf16, #tpu.memory_space<vmem>>, vector<32x256xbf16>
    tpu.vector_store %arg6[%c64_54, %c256_55], %83 {strides = array<i32>} : memref<288x1024xbf16, #tpu.memory_space<vmem>>, vector<32x256xbf16>,
    %c0_56 = arith.constant 0 : index
    %c127_57 = arith.constant 127 : index
    %85 = vector.load %arg5[%c0_56, %c127_57] : memref<32x512xbf16, #tpu.memory_space<vmem>>, vector<32x256xbf16>
    %86 = vector.broadcast %21 : vector<1x256xbf16> to vector<32x256xbf16>
    %87 = arith.mulf %85, %86 : vector<32x256xbf16>
    %c96_58 = arith.constant 96 : index
    %c256_59 = arith.constant 256 : index
    %88 = vector.load %arg6[%c96_58, %c256_59] : memref<288x1024xbf16, #tpu.memory_space<vmem>>, vector<32x256xbf16>
    tpu.vector_store %arg6[%c96_58, %c256_59], %87 {strides = array<i32>} : memref<288x1024xbf16, #tpu.memory_space<vmem>>, vector<32x256xbf16>,
    %c0_60 = arith.constant 0 : index
    %c128_61 = arith.constant 128 : index
    %89 = vector.load %arg5[%c0_60, %c128_61] : memref<32x512xbf16, #tpu.memory_space<vmem>>, vector<32x256xbf16>
    %c128_62 = arith.constant 128 : index
    %c256_63 = arith.constant 256 : index
    %90 = vector.load %arg6[%c128_62, %c256_63] : memref<288x1024xbf16, #tpu.memory_space<vmem>>, vector<32x256xbf16>
    tpu.vector_store %arg6[%c128_62, %c256_63], %89 {strides = array<i32>} : memref<288x1024xbf16, #tpu.memory_space<vmem>>, vector<32x256xbf16>,
    %c0_64 = arith.constant 0 : index
    %c129_65 = arith.constant 129 : index
    %91 = vector.load %arg5[%c0_64, %c129_65] : memref<32x512xbf16, #tpu.memory_space<vmem>>, vector<32x256xbf16>
    %92 = vector.broadcast %26 : vector<1x256xbf16> to vector<32x256xbf16>
    %93 = arith.mulf %91, %92 : vector<32x256xbf16>
    %c160_66 = arith.constant 160 : index
    %c256_67 = arith.constant 256 : index
    %94 = vector.load %arg6[%c160_66, %c256_67] : memref<288x1024xbf16, #tpu.memory_space<vmem>>, vector<32x256xbf16>
    tpu.vector_store %arg6[%c160_66, %c256_67], %93 {strides = array<i32>} : memref<288x1024xbf16, #tpu.memory_space<vmem>>, vector<32x256xbf16>,
    %c0_68 = arith.constant 0 : index
    %c143_69 = arith.constant 143 : index
    %95 = vector.load %arg5[%c0_68, %c143_69] : memref<32x512xbf16, #tpu.memory_space<vmem>>, vector<32x256xbf16>
    %96 = vector.broadcast %21 : vector<1x256xbf16> to vector<32x256xbf16>
    %97 = arith.mulf %95, %96 : vector<32x256xbf16>
    %c192_70 = arith.constant 192 : index
    %c256_71 = arith.constant 256 : index
    %98 = vector.load %arg6[%c192_70, %c256_71] : memref<288x1024xbf16, #tpu.memory_space<vmem>>, vector<32x256xbf16>
    tpu.vector_store %arg6[%c192_70, %c256_71], %97 {strides = array<i32>} : memref<288x1024xbf16, #tpu.memory_space<vmem>>, vector<32x256xbf16>,
    %c0_72 = arith.constant 0 : index
    %c144_73 = arith.constant 144 : index
    %99 = vector.load %arg5[%c0_72, %c144_73] : memref<32x512xbf16, #tpu.memory_space<vmem>>, vector<32x256xbf16>
    %c224_74 = arith.constant 224 : index
    %c256_75 = arith.constant 256 : index
    %100 = vector.load %arg6[%c224_74, %c256_75] : memref<288x1024xbf16, #tpu.memory_space<vmem>>, vector<32x256xbf16>
    tpu.vector_store %arg6[%c224_74, %c256_75], %99 {strides = array<i32>} : memref<288x1024xbf16, #tpu.memory_space<vmem>>, vector<32x256xbf16>,
    %c0_76 = arith.constant 0 : index
    %c145_77 = arith.constant 145 : index
    %101 = vector.load %arg5[%c0_76, %c145_77] : memref<32x512xbf16, #tpu.memory_space<vmem>>, vector<32x256xbf16>
    %102 = vector.broadcast %26 : vector<1x256xbf16> to vector<32x256xbf16>
    %103 = arith.mulf %101, %102 : vector<32x256xbf16>
    %c256_78 = arith.constant 256 : index
    %c256_79 = arith.constant 256 : index
    %104 = vector.load %arg6[%c256_78, %c256_79] : memref<288x1024xbf16, #tpu.memory_space<vmem>>, vector<32x256xbf16>
    tpu.vector_store %arg6[%c256_78, %c256_79], %103 {strides = array<i32>} : memref<288x1024xbf16, #tpu.memory_space<vmem>>, vector<32x256xbf16>,
    %c2_80 = arith.constant 2 : index
    %c0_81 = arith.constant 0 : index
    %c0_82 = arith.constant 0 : index
    %105 = vector.load %arg1[%c2_80, %c0_81, %c0_82] : memref<4x32x256xf32, #tpu.memory_space<vmem>>, vector<1x32x256xf32>
    %106 = vector.shape_cast %105 : vector<1x32x256xf32> to vector<32x256xf32>
    %107 = arith.truncf %106 : vector<32x256xf32> to vector<32x256xbf16>
    %c0_83 = arith.constant 0 : index
    %c128_84 = arith.constant 128 : index
    %108 = vector.load %arg5[%c0_83, %c128_84] : memref<32x512xbf16, #tpu.memory_space<vmem>>, vector<32x256xbf16>
    tpu.vector_store %arg5[%c0_83, %c128_84], %107 {strides = array<i32>} : memref<32x512xbf16, #tpu.memory_space<vmem>>, vector<32x256xbf16>,
    %c0_85 = arith.constant 0 : index
    %c111_86 = arith.constant 111 : index
    %109 = vector.load %arg5[%c0_85, %c111_86] : memref<32x512xbf16, #tpu.memory_space<vmem>>, vector<32x256xbf16>
    %110 = vector.broadcast %21 : vector<1x256xbf16> to vector<32x256xbf16>
    %111 = arith.mulf %109, %110 : vector<32x256xbf16>
    %c0_87 = arith.constant 0 : index
    %c512 = arith.constant 512 : index
    %112 = vector.load %arg6[%c0_87, %c512] : memref<288x1024xbf16, #tpu.memory_space<vmem>>, vector<32x256xbf16>
    tpu.vector_store %arg6[%c0_87, %c512], %111 {strides = array<i32>} : memref<288x1024xbf16, #tpu.memory_space<vmem>>, vector<32x256xbf16>,
    %c0_88 = arith.constant 0 : index
    %c112_89 = arith.constant 112 : index
    %113 = vector.load %arg5[%c0_88, %c112_89] : memref<32x512xbf16, #tpu.memory_space<vmem>>, vector<32x256xbf16>
    %c32_90 = arith.constant 32 : index
    %c512_91 = arith.constant 512 : index
    %114 = vector.load %arg6[%c32_90, %c512_91] : memref<288x1024xbf16, #tpu.memory_space<vmem>>, vector<32x256xbf16>
    tpu.vector_store %arg6[%c32_90, %c512_91], %113 {strides = array<i32>} : memref<288x1024xbf16, #tpu.memory_space<vmem>>, vector<32x256xbf16>,
    %c0_92 = arith.constant 0 : index
    %c113_93 = arith.constant 113 : index
    %115 = vector.load %arg5[%c0_92, %c113_93] : memref<32x512xbf16, #tpu.memory_space<vmem>>, vector<32x256xbf16>
    %116 = vector.broadcast %26 : vector<1x256xbf16> to vector<32x256xbf16>
    %117 = arith.mulf %115, %116 : vector<32x256xbf16>
    %c64_94 = arith.constant 64 : index
    %c512_95 = arith.constant 512 : index
    %118 = vector.load %arg6[%c64_94, %c512_95] : memref<288x1024xbf16, #tpu.memory_space<vmem>>, vector<32x256xbf16>
    tpu.vector_store %arg6[%c64_94, %c512_95], %117 {strides = array<i32>} : memref<288x1024xbf16, #tpu.memory_space<vmem>>, vector<32x256xbf16>,
    %c0_96 = arith.constant 0 : index
    %c127_97 = arith.constant 127 : index
    %119 = vector.load %arg5[%c0_96, %c127_97] : memref<32x512xbf16, #tpu.memory_space<vmem>>, vector<32x256xbf16>
    %120 = vector.broadcast %21 : vector<1x256xbf16> to vector<32x256xbf16>
    %121 = arith.mulf %119, %120 : vector<32x256xbf16>
    %c96_98 = arith.constant 96 : index
    %c512_99 = arith.constant 512 : index
    %122 = vector.load %arg6[%c96_98, %c512_99] : memref<288x1024xbf16, #tpu.memory_space<vmem>>, vector<32x256xbf16>
    tpu.vector_store %arg6[%c96_98, %c512_99], %121 {strides = array<i32>} : memref<288x1024xbf16, #tpu.memory_space<vmem>>, vector<32x256xbf16>,
    %c0_100 = arith.constant 0 : index
    %c128_101 = arith.constant 128 : index
    %123 = vector.load %arg5[%c0_100, %c128_101] : memref<32x512xbf16, #tpu.memory_space<vmem>>, vector<32x256xbf16>
    %c128_102 = arith.constant 128 : index
    %c512_103 = arith.constant 512 : index
    %124 = vector.load %arg6[%c128_102, %c512_103] : memref<288x1024xbf16, #tpu.memory_space<vmem>>, vector<32x256xbf16>
    tpu.vector_store %arg6[%c128_102, %c512_103], %123 {strides = array<i32>} : memref<288x1024xbf16, #tpu.memory_space<vmem>>, vector<32x256xbf16>,
    %c0_104 = arith.constant 0 : index
    %c129_105 = arith.constant 129 : index
    %125 = vector.load %arg5[%c0_104, %c129_105] : memref<32x512xbf16, #tpu.memory_space<vmem>>, vector<32x256xbf16>
    %126 = vector.broadcast %26 : vector<1x256xbf16> to vector<32x256xbf16>
    %127 = arith.mulf %125, %126 : vector<32x256xbf16>
    %c160_106 = arith.constant 160 : index
    %c512_107 = arith.constant 512 : index
    %128 = vector.load %arg6[%c160_106, %c512_107] : memref<288x1024xbf16, #tpu.memory_space<vmem>>, vector<32x256xbf16>
    tpu.vector_store %arg6[%c160_106, %c512_107], %127 {strides = array<i32>} : memref<288x1024xbf16, #tpu.memory_space<vmem>>, vector<32x256xbf16>,
    %c0_108 = arith.constant 0 : index
    %c143_109 = arith.constant 143 : index
    %129 = vector.load %arg5[%c0_108, %c143_109] : memref<32x512xbf16, #tpu.memory_space<vmem>>, vector<32x256xbf16>
    %130 = vector.broadcast %21 : vector<1x256xbf16> to vector<32x256xbf16>
    %131 = arith.mulf %129, %130 : vector<32x256xbf16>
    %c192_110 = arith.constant 192 : index
    %c512_111 = arith.constant 512 : index
    %132 = vector.load %arg6[%c192_110, %c512_111] : memref<288x1024xbf16, #tpu.memory_space<vmem>>, vector<32x256xbf16>
    tpu.vector_store %arg6[%c192_110, %c512_111], %131 {strides = array<i32>} : memref<288x1024xbf16, #tpu.memory_space<vmem>>, vector<32x256xbf16>,
    %c0_112 = arith.constant 0 : index
    %c144_113 = arith.constant 144 : index
    %133 = vector.load %arg5[%c0_112, %c144_113] : memref<32x512xbf16, #tpu.memory_space<vmem>>, vector<32x256xbf16>
    %c224_114 = arith.constant 224 : index
    %c512_115 = arith.constant 512 : index
    %134 = vector.load %arg6[%c224_114, %c512_115] : memref<288x1024xbf16, #tpu.memory_space<vmem>>, vector<32x256xbf16>
    tpu.vector_store %arg6[%c224_114, %c512_115], %133 {strides = array<i32>} : memref<288x1024xbf16, #tpu.memory_space<vmem>>, vector<32x256xbf16>,
    %c0_116 = arith.constant 0 : index
    %c145_117 = arith.constant 145 : index
    %135 = vector.load %arg5[%c0_116, %c145_117] : memref<32x512xbf16, #tpu.memory_space<vmem>>, vector<32x256xbf16>
    %136 = vector.broadcast %26 : vector<1x256xbf16> to vector<32x256xbf16>
    %137 = arith.mulf %135, %136 : vector<32x256xbf16>
    %c256_118 = arith.constant 256 : index
    %c512_119 = arith.constant 512 : index
    %138 = vector.load %arg6[%c256_118, %c512_119] : memref<288x1024xbf16, #tpu.memory_space<vmem>>, vector<32x256xbf16>
    tpu.vector_store %arg6[%c256_118, %c512_119], %137 {strides = array<i32>} : memref<288x1024xbf16, #tpu.memory_space<vmem>>, vector<32x256xbf16>,
    %c3_120 = arith.constant 3 : index
    %c0_121 = arith.constant 0 : index
    %c0_122 = arith.constant 0 : index
    %139 = vector.load %arg1[%c3_120, %c0_121, %c0_122] : memref<4x32x256xf32, #tpu.memory_space<vmem>>, vector<1x32x256xf32>
    %140 = vector.shape_cast %139 : vector<1x32x256xf32> to vector<32x256xf32>
    %141 = arith.truncf %140 : vector<32x256xf32> to vector<32x256xbf16>
    %c0_123 = arith.constant 0 : index
    %c128_124 = arith.constant 128 : index
    %142 = vector.load %arg5[%c0_123, %c128_124] : memref<32x512xbf16, #tpu.memory_space<vmem>>, vector<32x256xbf16>
    tpu.vector_store %arg5[%c0_123, %c128_124], %141 {strides = array<i32>} : memref<32x512xbf16, #tpu.memory_space<vmem>>, vector<32x256xbf16>,
    %c0_125 = arith.constant 0 : index
    %c111_126 = arith.constant 111 : index
    %143 = vector.load %arg5[%c0_125, %c111_126] : memref<32x512xbf16, #tpu.memory_space<vmem>>, vector<32x256xbf16>
    %144 = vector.broadcast %21 : vector<1x256xbf16> to vector<32x256xbf16>
    %145 = arith.mulf %143, %144 : vector<32x256xbf16>
    %c0_127 = arith.constant 0 : index
    %c768 = arith.constant 768 : index
    %146 = vector.load %arg6[%c0_127, %c768] : memref<288x1024xbf16, #tpu.memory_space<vmem>>, vector<32x256xbf16>
    tpu.vector_store %arg6[%c0_127, %c768], %145 {strides = array<i32>} : memref<288x1024xbf16, #tpu.memory_space<vmem>>, vector<32x256xbf16>,
    %c0_128 = arith.constant 0 : index
    %c112_129 = arith.constant 112 : index
    %147 = vector.load %arg5[%c0_128, %c112_129] : memref<32x512xbf16, #tpu.memory_space<vmem>>, vector<32x256xbf16>
    %c32_130 = arith.constant 32 : index
    %c768_131 = arith.constant 768 : index
    %148 = vector.load %arg6[%c32_130, %c768_131] : memref<288x1024xbf16, #tpu.memory_space<vmem>>, vector<32x256xbf16>
    tpu.vector_store %arg6[%c32_130, %c768_131], %147 {strides = array<i32>} : memref<288x1024xbf16, #tpu.memory_space<vmem>>, vector<32x256xbf16>,
    %c0_132 = arith.constant 0 : index
    %c113_133 = arith.constant 113 : index
    %149 = vector.load %arg5[%c0_132, %c113_133] : memref<32x512xbf16, #tpu.memory_space<vmem>>, vector<32x256xbf16>
    %150 = vector.broadcast %26 : vector<1x256xbf16> to vector<32x256xbf16>
    %151 = arith.mulf %149, %150 : vector<32x256xbf16>
    %c64_134 = arith.constant 64 : index
    %c768_135 = arith.constant 768 : index
    %152 = vector.load %arg6[%c64_134, %c768_135] : memref<288x1024xbf16, #tpu.memory_space<vmem>>, vector<32x256xbf16>
    tpu.vector_store %arg6[%c64_134, %c768_135], %151 {strides = array<i32>} : memref<288x1024xbf16, #tpu.memory_space<vmem>>, vector<32x256xbf16>,
    %c0_136 = arith.constant 0 : index
    %c127_137 = arith.constant 127 : index
    %153 = vector.load %arg5[%c0_136, %c127_137] : memref<32x512xbf16, #tpu.memory_space<vmem>>, vector<32x256xbf16>
    %154 = vector.broadcast %21 : vector<1x256xbf16> to vector<32x256xbf16>
    %155 = arith.mulf %153, %154 : vector<32x256xbf16>
    %c96_138 = arith.constant 96 : index
    %c768_139 = arith.constant 768 : index
    %156 = vector.load %arg6[%c96_138, %c768_139] : memref<288x1024xbf16, #tpu.memory_space<vmem>>, vector<32x256xbf16>
    tpu.vector_store %arg6[%c96_138, %c768_139], %155 {strides = array<i32>} : memref<288x1024xbf16, #tpu.memory_space<vmem>>, vector<32x256xbf16>,
    %c0_140 = arith.constant 0 : index
    %c128_141 = arith.constant 128 : index
    %157 = vector.load %arg5[%c0_140, %c128_141] : memref<32x512xbf16, #tpu.memory_space<vmem>>, vector<32x256xbf16>
    %c128_142 = arith.constant 128 : index
    %c768_143 = arith.constant 768 : index
    %158 = vector.load %arg6[%c128_142, %c768_143] : memref<288x1024xbf16, #tpu.memory_space<vmem>>, vector<32x256xbf16>
    tpu.vector_store %arg6[%c128_142, %c768_143], %157 {strides = array<i32>} : memref<288x1024xbf16, #tpu.memory_space<vmem>>, vector<32x256xbf16>,
    %c0_144 = arith.constant 0 : index
    %c129_145 = arith.constant 129 : index
    %159 = vector.load %arg5[%c0_144, %c129_145] : memref<32x512xbf16, #tpu.memory_space<vmem>>, vector<32x256xbf16>
    %160 = vector.broadcast %26 : vector<1x256xbf16> to vector<32x256xbf16>
    %161 = arith.mulf %159, %160 : vector<32x256xbf16>
    %c160_146 = arith.constant 160 : index
    %c768_147 = arith.constant 768 : index
    %162 = vector.load %arg6[%c160_146, %c768_147] : memref<288x1024xbf16, #tpu.memory_space<vmem>>, vector<32x256xbf16>
    tpu.vector_store %arg6[%c160_146, %c768_147], %161 {strides = array<i32>} : memref<288x1024xbf16, #tpu.memory_space<vmem>>, vector<32x256xbf16>,
    %c0_148 = arith.constant 0 : index
    %c143_149 = arith.constant 143 : index
    %163 = vector.load %arg5[%c0_148, %c143_149] : memref<32x512xbf16, #tpu.memory_space<vmem>>, vector<32x256xbf16>
    %164 = vector.broadcast %21 : vector<1x256xbf16> to vector<32x256xbf16>
    %165 = arith.mulf %163, %164 : vector<32x256xbf16>
    %c192_150 = arith.constant 192 : index
    %c768_151 = arith.constant 768 : index
    %166 = vector.load %arg6[%c192_150, %c768_151] : memref<288x1024xbf16, #tpu.memory_space<vmem>>, vector<32x256xbf16>
    tpu.vector_store %arg6[%c192_150, %c768_151], %165 {strides = array<i32>} : memref<288x1024xbf16, #tpu.memory_space<vmem>>, vector<32x256xbf16>,
    %c0_152 = arith.constant 0 : index
    %c144_153 = arith.constant 144 : index
    %167 = vector.load %arg5[%c0_152, %c144_153] : memref<32x512xbf16, #tpu.memory_space<vmem>>, vector<32x256xbf16>
    %c224_154 = arith.constant 224 : index
    %c768_155 = arith.constant 768 : index
    %168 = vector.load %arg6[%c224_154, %c768_155] : memref<288x1024xbf16, #tpu.memory_space<vmem>>, vector<32x256xbf16>
    tpu.vector_store %arg6[%c224_154, %c768_155], %167 {strides = array<i32>} : memref<288x1024xbf16, #tpu.memory_space<vmem>>, vector<32x256xbf16>,
    %c0_156 = arith.constant 0 : index
    %c145_157 = arith.constant 145 : index
    %169 = vector.load %arg5[%c0_156, %c145_157] : memref<32x512xbf16, #tpu.memory_space<vmem>>, vector<32x256xbf16>
    %170 = vector.broadcast %26 : vector<1x256xbf16> to vector<32x256xbf16>
    %171 = arith.mulf %169, %170 : vector<32x256xbf16>
    %c256_158 = arith.constant 256 : index
    %c768_159 = arith.constant 768 : index
    %172 = vector.load %arg6[%c256_158, %c768_159] : memref<288x1024xbf16, #tpu.memory_space<vmem>>, vector<32x256xbf16>
    tpu.vector_store %arg6[%c256_158, %c768_159], %171 {strides = array<i32>} : memref<288x1024xbf16, #tpu.memory_space<vmem>>, vector<32x256xbf16>,
    %c0_160 = arith.constant 0 : index
    %c0_161 = arith.constant 0 : index
    %173 = vector.load %arg2[%c0_160, %c0_161] : memref<64x288xbf16, #tpu.memory_space<vmem>>, vector<32x288xbf16>
    %c0_162 = arith.constant 0 : index
    %c0_163 = arith.constant 0 : index
    %174 = vector.load %arg6[%c0_162, %c0_163] : memref<288x1024xbf16, #tpu.memory_space<vmem>>, vector<288x1024xbf16>
    %cst_164 = arith.constant dense<0.000000e+00> : vector<32x1024xf32>
    %175 = tpu.matmul %173, %174, %cst_164 {dimension_numbers = #tpu.dot_dimension_numbers<[1], [0], [0], [1], [0, 0, 1, 1], [], []>} : vector<32x288xbf16>, vector<288x1024xbf16>, vector<32x1024xf32> -> vector<32x1024xf32>
    %176 = vector.broadcast %27 : vector<32x1xf32> to vector<32x1024xf32>
    %177 = arith.addf %175, %176 : vector<32x1024xf32>
    %cst_165 = arith.constant 0.000000e+00 : f32
    %178 = vector.broadcast %cst_165 : f32 to vector<32x1024xf32>
    %179 = arith.maximumf %177, %178 : vector<32x1024xf32>
    %180 = arith.truncf %179 : vector<32x1024xf32> to vector<32x1024xbf16>
    %c0_166 = arith.constant 0 : index
    %c0_167 = arith.constant 0 : index
    %181 = vector.load %arg7[%c0_166, %c0_167] : memref<32x1024xbf16, #tpu.memory_space<vmem>>, vector<32x1024xbf16>
    tpu.vector_store %arg7[%c0_166, %c0_167], %180 {strides = array<i32>} : memref<32x1024xbf16, #tpu.memory_space<vmem>>, vector<32x1024xbf16>,
    %c0_168 = arith.constant 0 : index
    %c0_169 = arith.constant 0 : index
    %182 = vector.load %arg7[%c0_168, %c0_169] : memref<32x1024xbf16, #tpu.memory_space<vmem>>, vector<32x256xbf16>
    %c0_170 = arith.constant 0 : index
    %c128_171 = arith.constant 128 : index
    %183 = vector.load %arg5[%c0_170, %c128_171] : memref<32x512xbf16, #tpu.memory_space<vmem>>, vector<32x256xbf16>
    tpu.vector_store %arg5[%c0_170, %c128_171], %182 {strides = array<i32>} : memref<32x512xbf16, #tpu.memory_space<vmem>>, vector<32x256xbf16>,
    %c0_172 = arith.constant 0 : index
    %c111_173 = arith.constant 111 : index
    %184 = vector.load %arg5[%c0_172, %c111_173] : memref<32x512xbf16, #tpu.memory_space<vmem>>, vector<32x256xbf16>
    %185 = vector.broadcast %21 : vector<1x256xbf16> to vector<32x256xbf16>
    %186 = arith.mulf %184, %185 : vector<32x256xbf16>
    %c0_174 = arith.constant 0 : index
    %c0_175 = arith.constant 0 : index
    %187 = vector.load %arg6[%c0_174, %c0_175] : memref<288x1024xbf16, #tpu.memory_space<vmem>>, vector<32x256xbf16>
    tpu.vector_store %arg6[%c0_174, %c0_175], %186 {strides = array<i32>} : memref<288x1024xbf16, #tpu.memory_space<vmem>>, vector<32x256xbf16>,
    %c0_176 = arith.constant 0 : index
    %c112_177 = arith.constant 112 : index
    %188 = vector.load %arg5[%c0_176, %c112_177] : memref<32x512xbf16, #tpu.memory_space<vmem>>, vector<32x256xbf16>
    %c32_178 = arith.constant 32 : index
    %c0_179 = arith.constant 0 : index
    %189 = vector.load %arg6[%c32_178, %c0_179] : memref<288x1024xbf16, #tpu.memory_space<vmem>>, vector<32x256xbf16>
    tpu.vector_store %arg6[%c32_178, %c0_179], %188 {strides = array<i32>} : memref<288x1024xbf16, #tpu.memory_space<vmem>>, vector<32x256xbf16>,
    %c0_180 = arith.constant 0 : index
    %c113_181 = arith.constant 113 : index
    %190 = vector.load %arg5[%c0_180, %c113_181] : memref<32x512xbf16, #tpu.memory_space<vmem>>, vector<32x256xbf16>
    %191 = vector.broadcast %26 : vector<1x256xbf16> to vector<32x256xbf16>
    %192 = arith.mulf %190, %191 : vector<32x256xbf16>
    %c64_182 = arith.constant 64 : index
    %c0_183 = arith.constant 0 : index
    %193 = vector.load %arg6[%c64_182, %c0_183] : memref<288x1024xbf16, #tpu.memory_space<vmem>>, vector<32x256xbf16>
    tpu.vector_store %arg6[%c64_182, %c0_183], %192 {strides = array<i32>} : memref<288x1024xbf16, #tpu.memory_space<vmem>>, vector<32x256xbf16>,
    %c0_184 = arith.constant 0 : index
    %c127_185 = arith.constant 127 : index
    %194 = vector.load %arg5[%c0_184, %c127_185] : memref<32x512xbf16, #tpu.memory_space<vmem>>, vector<32x256xbf16>
    %195 = vector.broadcast %21 : vector<1x256xbf16> to vector<32x256xbf16>
    %196 = arith.mulf %194, %195 : vector<32x256xbf16>
    %c96_186 = arith.constant 96 : index
    %c0_187 = arith.constant 0 : index
    %197 = vector.load %arg6[%c96_186, %c0_187] : memref<288x1024xbf16, #tpu.memory_space<vmem>>, vector<32x256xbf16>
    tpu.vector_store %arg6[%c96_186, %c0_187], %196 {strides = array<i32>} : memref<288x1024xbf16, #tpu.memory_space<vmem>>, vector<32x256xbf16>,
    %c0_188 = arith.constant 0 : index
    %c128_189 = arith.constant 128 : index
    %198 = vector.load %arg5[%c0_188, %c128_189] : memref<32x512xbf16, #tpu.memory_space<vmem>>, vector<32x256xbf16>
    %c128_190 = arith.constant 128 : index
    %c0_191 = arith.constant 0 : index
    %199 = vector.load %arg6[%c128_190, %c0_191] : memref<288x1024xbf16, #tpu.memory_space<vmem>>, vector<32x256xbf16>
    tpu.vector_store %arg6[%c128_190, %c0_191], %198 {strides = array<i32>} : memref<288x1024xbf16, #tpu.memory_space<vmem>>, vector<32x256xbf16>,
    %c0_192 = arith.constant 0 : index
    %c129_193 = arith.constant 129 : index
    %200 = vector.load %arg5[%c0_192, %c129_193] : memref<32x512xbf16, #tpu.memory_space<vmem>>, vector<32x256xbf16>
    %201 = vector.broadcast %26 : vector<1x256xbf16> to vector<32x256xbf16>
    %202 = arith.mulf %200, %201 : vector<32x256xbf16>
    %c160_194 = arith.constant 160 : index
    %c0_195 = arith.constant 0 : index
    %203 = vector.load %arg6[%c160_194, %c0_195] : memref<288x1024xbf16, #tpu.memory_space<vmem>>, vector<32x256xbf16>
    tpu.vector_store %arg6[%c160_194, %c0_195], %202 {strides = array<i32>} : memref<288x1024xbf16, #tpu.memory_space<vmem>>, vector<32x256xbf16>,
    %c0_196 = arith.constant 0 : index
    %c143_197 = arith.constant 143 : index
    %204 = vector.load %arg5[%c0_196, %c143_197] : memref<32x512xbf16, #tpu.memory_space<vmem>>, vector<32x256xbf16>
    %205 = vector.broadcast %21 : vector<1x256xbf16> to vector<32x256xbf16>
    %206 = arith.mulf %204, %205 : vector<32x256xbf16>
    %c192_198 = arith.constant 192 : index
    %c0_199 = arith.constant 0 : index
    %207 = vector.load %arg6[%c192_198, %c0_199] : memref<288x1024xbf16, #tpu.memory_space<vmem>>, vector<32x256xbf16>
    tpu.vector_store %arg6[%c192_198, %c0_199], %206 {strides = array<i32>} : memref<288x1024xbf16, #tpu.memory_space<vmem>>, vector<32x256xbf16>,
    %c0_200 = arith.constant 0 : index
    %c144_201 = arith.constant 144 : index
    %208 = vector.load %arg5[%c0_200, %c144_201] : memref<32x512xbf16, #tpu.memory_space<vmem>>, vector<32x256xbf16>
    %c224_202 = arith.constant 224 : index
    %c0_203 = arith.constant 0 : index
    %209 = vector.load %arg6[%c224_202, %c0_203] : memref<288x1024xbf16, #tpu.memory_space<vmem>>, vector<32x256xbf16>
    tpu.vector_store %arg6[%c224_202, %c0_203], %208 {strides = array<i32>} : memref<288x1024xbf16, #tpu.memory_space<vmem>>, vector<32x256xbf16>,
    %c0_204 = arith.constant 0 : index
    %c145_205 = arith.constant 145 : index
    %210 = vector.load %arg5[%c0_204, %c145_205] : memref<32x512xbf16, #tpu.memory_space<vmem>>, vector<32x256xbf16>
    %211 = vector.broadcast %26 : vector<1x256xbf16> to vector<32x256xbf16>
    %212 = arith.mulf %210, %211 : vector<32x256xbf16>
    %c256_206 = arith.constant 256 : index
    %c0_207 = arith.constant 0 : index
    %213 = vector.load %arg6[%c256_206, %c0_207] : memref<288x1024xbf16, #tpu.memory_space<vmem>>, vector<32x256xbf16>
    tpu.vector_store %arg6[%c256_206, %c0_207], %212 {strides = array<i32>} : memref<288x1024xbf16, #tpu.memory_space<vmem>>, vector<32x256xbf16>,
    %c0_208 = arith.constant 0 : index
    %c256_209 = arith.constant 256 : index
    %214 = vector.load %arg7[%c0_208, %c256_209] : memref<32x1024xbf16, #tpu.memory_space<vmem>>, vector<32x256xbf16>
    %c0_210 = arith.constant 0 : index
    %c128_211 = arith.constant 128 : index
    %215 = vector.load %arg5[%c0_210, %c128_211] : memref<32x512xbf16, #tpu.memory_space<vmem>>, vector<32x256xbf16>
    tpu.vector_store %arg5[%c0_210, %c128_211], %214 {strides = array<i32>} : memref<32x512xbf16, #tpu.memory_space<vmem>>, vector<32x256xbf16>,
    %c0_212 = arith.constant 0 : index
    %c111_213 = arith.constant 111 : index
    %216 = vector.load %arg5[%c0_212, %c111_213] : memref<32x512xbf16, #tpu.memory_space<vmem>>, vector<32x256xbf16>
    %217 = vector.broadcast %21 : vector<1x256xbf16> to vector<32x256xbf16>
    %218 = arith.mulf %216, %217 : vector<32x256xbf16>
    %c0_214 = arith.constant 0 : index
    %c256_215 = arith.constant 256 : index
    %219 = vector.load %arg6[%c0_214, %c256_215] : memref<288x1024xbf16, #tpu.memory_space<vmem>>, vector<32x256xbf16>
    tpu.vector_store %arg6[%c0_214, %c256_215], %218 {strides = array<i32>} : memref<288x1024xbf16, #tpu.memory_space<vmem>>, vector<32x256xbf16>,
    %c0_216 = arith.constant 0 : index
    %c112_217 = arith.constant 112 : index
    %220 = vector.load %arg5[%c0_216, %c112_217] : memref<32x512xbf16, #tpu.memory_space<vmem>>, vector<32x256xbf16>
    %c32_218 = arith.constant 32 : index
    %c256_219 = arith.constant 256 : index
    %221 = vector.load %arg6[%c32_218, %c256_219] : memref<288x1024xbf16, #tpu.memory_space<vmem>>, vector<32x256xbf16>
    tpu.vector_store %arg6[%c32_218, %c256_219], %220 {strides = array<i32>} : memref<288x1024xbf16, #tpu.memory_space<vmem>>, vector<32x256xbf16>,
    %c0_220 = arith.constant 0 : index
    %c113_221 = arith.constant 113 : index
    %222 = vector.load %arg5[%c0_220, %c113_221] : memref<32x512xbf16, #tpu.memory_space<vmem>>, vector<32x256xbf16>
    %223 = vector.broadcast %26 : vector<1x256xbf16> to vector<32x256xbf16>
    %224 = arith.mulf %222, %223 : vector<32x256xbf16>
    %c64_222 = arith.constant 64 : index
    %c256_223 = arith.constant 256 : index
    %225 = vector.load %arg6[%c64_222, %c256_223] : memref<288x1024xbf16, #tpu.memory_space<vmem>>, vector<32x256xbf16>
    tpu.vector_store %arg6[%c64_222, %c256_223], %224 {strides = array<i32>} : memref<288x1024xbf16, #tpu.memory_space<vmem>>, vector<32x256xbf16>,
    %c0_224 = arith.constant 0 : index
    %c127_225 = arith.constant 127 : index
    %226 = vector.load %arg5[%c0_224, %c127_225] : memref<32x512xbf16, #tpu.memory_space<vmem>>, vector<32x256xbf16>
    %227 = vector.broadcast %21 : vector<1x256xbf16> to vector<32x256xbf16>
    %228 = arith.mulf %226, %227 : vector<32x256xbf16>
    %c96_226 = arith.constant 96 : index
    %c256_227 = arith.constant 256 : index
    %229 = vector.load %arg6[%c96_226, %c256_227] : memref<288x1024xbf16, #tpu.memory_space<vmem>>, vector<32x256xbf16>
    tpu.vector_store %arg6[%c96_226, %c256_227], %228 {strides = array<i32>} : memref<288x1024xbf16, #tpu.memory_space<vmem>>, vector<32x256xbf16>,
    %c0_228 = arith.constant 0 : index
    %c128_229 = arith.constant 128 : index
    %230 = vector.load %arg5[%c0_228, %c128_229] : memref<32x512xbf16, #tpu.memory_space<vmem>>, vector<32x256xbf16>
    %c128_230 = arith.constant 128 : index
    %c256_231 = arith.constant 256 : index
    %231 = vector.load %arg6[%c128_230, %c256_231] : memref<288x1024xbf16, #tpu.memory_space<vmem>>, vector<32x256xbf16>
    tpu.vector_store %arg6[%c128_230, %c256_231], %230 {strides = array<i32>} : memref<288x1024xbf16, #tpu.memory_space<vmem>>, vector<32x256xbf16>,
    %c0_232 = arith.constant 0 : index
    %c129_233 = arith.constant 129 : index
    %232 = vector.load %arg5[%c0_232, %c129_233] : memref<32x512xbf16, #tpu.memory_space<vmem>>, vector<32x256xbf16>
    %233 = vector.broadcast %26 : vector<1x256xbf16> to vector<32x256xbf16>
    %234 = arith.mulf %232, %233 : vector<32x256xbf16>
    %c160_234 = arith.constant 160 : index
    %c256_235 = arith.constant 256 : index
    %235 = vector.load %arg6[%c160_234, %c256_235] : memref<288x1024xbf16, #tpu.memory_space<vmem>>, vector<32x256xbf16>
    tpu.vector_store %arg6[%c160_234, %c256_235], %234 {strides = array<i32>} : memref<288x1024xbf16, #tpu.memory_space<vmem>>, vector<32x256xbf16>,
    %c0_236 = arith.constant 0 : index
    %c143_237 = arith.constant 143 : index
    %236 = vector.load %arg5[%c0_236, %c143_237] : memref<32x512xbf16, #tpu.memory_space<vmem>>, vector<32x256xbf16>
    %237 = vector.broadcast %21 : vector<1x256xbf16> to vector<32x256xbf16>
    %238 = arith.mulf %236, %237 : vector<32x256xbf16>
    %c192_238 = arith.constant 192 : index
    %c256_239 = arith.constant 256 : index
    %239 = vector.load %arg6[%c192_238, %c256_239] : memref<288x1024xbf16, #tpu.memory_space<vmem>>, vector<32x256xbf16>
    tpu.vector_store %arg6[%c192_238, %c256_239], %238 {strides = array<i32>} : memref<288x1024xbf16, #tpu.memory_space<vmem>>, vector<32x256xbf16>,
    %c0_240 = arith.constant 0 : index
    %c144_241 = arith.constant 144 : index
    %240 = vector.load %arg5[%c0_240, %c144_241] : memref<32x512xbf16, #tpu.memory_space<vmem>>, vector<32x256xbf16>
    %c224_242 = arith.constant 224 : index
    %c256_243 = arith.constant 256 : index
    %241 = vector.load %arg6[%c224_242, %c256_243] : memref<288x1024xbf16, #tpu.memory_space<vmem>>, vector<32x256xbf16>
    tpu.vector_store %arg6[%c224_242, %c256_243], %240 {strides = array<i32>} : memref<288x1024xbf16, #tpu.memory_space<vmem>>, vector<32x256xbf16>,
    %c0_244 = arith.constant 0 : index
    %c145_245 = arith.constant 145 : index
    %242 = vector.load %arg5[%c0_244, %c145_245] : memref<32x512xbf16, #tpu.memory_space<vmem>>, vector<32x256xbf16>
    %243 = vector.broadcast %26 : vector<1x256xbf16> to vector<32x256xbf16>
    %244 = arith.mulf %242, %243 : vector<32x256xbf16>
    %c256_246 = arith.constant 256 : index
    %c256_247 = arith.constant 256 : index
    %245 = vector.load %arg6[%c256_246, %c256_247] : memref<288x1024xbf16, #tpu.memory_space<vmem>>, vector<32x256xbf16>
    tpu.vector_store %arg6[%c256_246, %c256_247], %244 {strides = array<i32>} : memref<288x1024xbf16, #tpu.memory_space<vmem>>, vector<32x256xbf16>,
    %c0_248 = arith.constant 0 : index
    %c512_249 = arith.constant 512 : index
    %246 = vector.load %arg7[%c0_248, %c512_249] : memref<32x1024xbf16, #tpu.memory_space<vmem>>, vector<32x256xbf16>
    %c0_250 = arith.constant 0 : index
    %c128_251 = arith.constant 128 : index
    %247 = vector.load %arg5[%c0_250, %c128_251] : memref<32x512xbf16, #tpu.memory_space<vmem>>, vector<32x256xbf16>
    tpu.vector_store %arg5[%c0_250, %c128_251], %246 {strides = array<i32>} : memref<32x512xbf16, #tpu.memory_space<vmem>>, vector<32x256xbf16>,
    %c0_252 = arith.constant 0 : index
    %c111_253 = arith.constant 111 : index
    %248 = vector.load %arg5[%c0_252, %c111_253] : memref<32x512xbf16, #tpu.memory_space<vmem>>, vector<32x256xbf16>
    %249 = vector.broadcast %21 : vector<1x256xbf16> to vector<32x256xbf16>
    %250 = arith.mulf %248, %249 : vector<32x256xbf16>
    %c0_254 = arith.constant 0 : index
    %c512_255 = arith.constant 512 : index
    %251 = vector.load %arg6[%c0_254, %c512_255] : memref<288x1024xbf16, #tpu.memory_space<vmem>>, vector<32x256xbf16>
    tpu.vector_store %arg6[%c0_254, %c512_255], %250 {strides = array<i32>} : memref<288x1024xbf16, #tpu.memory_space<vmem>>, vector<32x256xbf16>,
    %c0_256 = arith.constant 0 : index
    %c112_257 = arith.constant 112 : index
    %252 = vector.load %arg5[%c0_256, %c112_257] : memref<32x512xbf16, #tpu.memory_space<vmem>>, vector<32x256xbf16>
    %c32_258 = arith.constant 32 : index
    %c512_259 = arith.constant 512 : index
    %253 = vector.load %arg6[%c32_258, %c512_259] : memref<288x1024xbf16, #tpu.memory_space<vmem>>, vector<32x256xbf16>
    tpu.vector_store %arg6[%c32_258, %c512_259], %252 {strides = array<i32>} : memref<288x1024xbf16, #tpu.memory_space<vmem>>, vector<32x256xbf16>,
    %c0_260 = arith.constant 0 : index
    %c113_261 = arith.constant 113 : index
    %254 = vector.load %arg5[%c0_260, %c113_261] : memref<32x512xbf16, #tpu.memory_space<vmem>>, vector<32x256xbf16>
    %255 = vector.broadcast %26 : vector<1x256xbf16> to vector<32x256xbf16>
    %256 = arith.mulf %254, %255 : vector<32x256xbf16>
    %c64_262 = arith.constant 64 : index
    %c512_263 = arith.constant 512 : index
    %257 = vector.load %arg6[%c64_262, %c512_263] : memref<288x1024xbf16, #tpu.memory_space<vmem>>, vector<32x256xbf16>
    tpu.vector_store %arg6[%c64_262, %c512_263], %256 {strides = array<i32>} : memref<288x1024xbf16, #tpu.memory_space<vmem>>, vector<32x256xbf16>,
    %c0_264 = arith.constant 0 : index
    %c127_265 = arith.constant 127 : index
    %258 = vector.load %arg5[%c0_264, %c127_265] : memref<32x512xbf16, #tpu.memory_space<vmem>>, vector<32x256xbf16>
    %259 = vector.broadcast %21 : vector<1x256xbf16> to vector<32x256xbf16>
    %260 = arith.mulf %258, %259 : vector<32x256xbf16>
    %c96_266 = arith.constant 96 : index
    %c512_267 = arith.constant 512 : index
    %261 = vector.load %arg6[%c96_266, %c512_267] : memref<288x1024xbf16, #tpu.memory_space<vmem>>, vector<32x256xbf16>
    tpu.vector_store %arg6[%c96_266, %c512_267], %260 {strides = array<i32>} : memref<288x1024xbf16, #tpu.memory_space<vmem>>, vector<32x256xbf16>,
    %c0_268 = arith.constant 0 : index
    %c128_269 = arith.constant 128 : index
    %262 = vector.load %arg5[%c0_268, %c128_269] : memref<32x512xbf16, #tpu.memory_space<vmem>>, vector<32x256xbf16>
    %c128_270 = arith.constant 128 : index
    %c512_271 = arith.constant 512 : index
    %263 = vector.load %arg6[%c128_270, %c512_271] : memref<288x1024xbf16, #tpu.memory_space<vmem>>, vector<32x256xbf16>
    tpu.vector_store %arg6[%c128_270, %c512_271], %262 {strides = array<i32>} : memref<288x1024xbf16, #tpu.memory_space<vmem>>, vector<32x256xbf16>,
    %c0_272 = arith.constant 0 : index
    %c129_273 = arith.constant 129 : index
    %264 = vector.load %arg5[%c0_272, %c129_273] : memref<32x512xbf16, #tpu.memory_space<vmem>>, vector<32x256xbf16>
    %265 = vector.broadcast %26 : vector<1x256xbf16> to vector<32x256xbf16>
    %266 = arith.mulf %264, %265 : vector<32x256xbf16>
    %c160_274 = arith.constant 160 : index
    %c512_275 = arith.constant 512 : index
    %267 = vector.load %arg6[%c160_274, %c512_275] : memref<288x1024xbf16, #tpu.memory_space<vmem>>, vector<32x256xbf16>
    tpu.vector_store %arg6[%c160_274, %c512_275], %266 {strides = array<i32>} : memref<288x1024xbf16, #tpu.memory_space<vmem>>, vector<32x256xbf16>,
    %c0_276 = arith.constant 0 : index
    %c143_277 = arith.constant 143 : index
    %268 = vector.load %arg5[%c0_276, %c143_277] : memref<32x512xbf16, #tpu.memory_space<vmem>>, vector<32x256xbf16>
    %269 = vector.broadcast %21 : vector<1x256xbf16> to vector<32x256xbf16>
    %270 = arith.mulf %268, %269 : vector<32x256xbf16>
    %c192_278 = arith.constant 192 : index
    %c512_279 = arith.constant 512 : index
    %271 = vector.load %arg6[%c192_278, %c512_279] : memref<288x1024xbf16, #tpu.memory_space<vmem>>, vector<32x256xbf16>
    tpu.vector_store %arg6[%c192_278, %c512_279], %270 {strides = array<i32>} : memref<288x1024xbf16, #tpu.memory_space<vmem>>, vector<32x256xbf16>,
    %c0_280 = arith.constant 0 : index
    %c144_281 = arith.constant 144 : index
    %272 = vector.load %arg5[%c0_280, %c144_281] : memref<32x512xbf16, #tpu.memory_space<vmem>>, vector<32x256xbf16>
    %c224_282 = arith.constant 224 : index
    %c512_283 = arith.constant 512 : index
    %273 = vector.load %arg6[%c224_282, %c512_283] : memref<288x1024xbf16, #tpu.memory_space<vmem>>, vector<32x256xbf16>
    tpu.vector_store %arg6[%c224_282, %c512_283], %272 {strides = array<i32>} : memref<288x1024xbf16, #tpu.memory_space<vmem>>, vector<32x256xbf16>,
    %c0_284 = arith.constant 0 : index
    %c145_285 = arith.constant 145 : index
    %274 = vector.load %arg5[%c0_284, %c145_285] : memref<32x512xbf16, #tpu.memory_space<vmem>>, vector<32x256xbf16>
    %275 = vector.broadcast %26 : vector<1x256xbf16> to vector<32x256xbf16>
    %276 = arith.mulf %274, %275 : vector<32x256xbf16>
    %c256_286 = arith.constant 256 : index
    %c512_287 = arith.constant 512 : index
    %277 = vector.load %arg6[%c256_286, %c512_287] : memref<288x1024xbf16, #tpu.memory_space<vmem>>, vector<32x256xbf16>
    tpu.vector_store %arg6[%c256_286, %c512_287], %276 {strides = array<i32>} : memref<288x1024xbf16, #tpu.memory_space<vmem>>, vector<32x256xbf16>,
    %c0_288 = arith.constant 0 : index
    %c768_289 = arith.constant 768 : index
    %278 = vector.load %arg7[%c0_288, %c768_289] : memref<32x1024xbf16, #tpu.memory_space<vmem>>, vector<32x256xbf16>
    %c0_290 = arith.constant 0 : index
    %c128_291 = arith.constant 128 : index
    %279 = vector.load %arg5[%c0_290, %c128_291] : memref<32x512xbf16, #tpu.memory_space<vmem>>, vector<32x256xbf16>
    tpu.vector_store %arg5[%c0_290, %c128_291], %278 {strides = array<i32>} : memref<32x512xbf16, #tpu.memory_space<vmem>>, vector<32x256xbf16>,
    %c0_292 = arith.constant 0 : index
    %c111_293 = arith.constant 111 : index
    %280 = vector.load %arg5[%c0_292, %c111_293] : memref<32x512xbf16, #tpu.memory_space<vmem>>, vector<32x256xbf16>
    %281 = vector.broadcast %21 : vector<1x256xbf16> to vector<32x256xbf16>
    %282 = arith.mulf %280, %281 : vector<32x256xbf16>
    %c0_294 = arith.constant 0 : index
    %c768_295 = arith.constant 768 : index
    %283 = vector.load %arg6[%c0_294, %c768_295] : memref<288x1024xbf16, #tpu.memory_space<vmem>>, vector<32x256xbf16>
    tpu.vector_store %arg6[%c0_294, %c768_295], %282 {strides = array<i32>} : memref<288x1024xbf16, #tpu.memory_space<vmem>>, vector<32x256xbf16>,
    %c0_296 = arith.constant 0 : index
    %c112_297 = arith.constant 112 : index
    %284 = vector.load %arg5[%c0_296, %c112_297] : memref<32x512xbf16, #tpu.memory_space<vmem>>, vector<32x256xbf16>
    %c32_298 = arith.constant 32 : index
    %c768_299 = arith.constant 768 : index
    %285 = vector.load %arg6[%c32_298, %c768_299] : memref<288x1024xbf16, #tpu.memory_space<vmem>>, vector<32x256xbf16>
    tpu.vector_store %arg6[%c32_298, %c768_299], %284 {strides = array<i32>} : memref<288x1024xbf16, #tpu.memory_space<vmem>>, vector<32x256xbf16>,
    %c0_300 = arith.constant 0 : index
    %c113_301 = arith.constant 113 : index
    %286 = vector.load %arg5[%c0_300, %c113_301] : memref<32x512xbf16, #tpu.memory_space<vmem>>, vector<32x256xbf16>
    %287 = vector.broadcast %26 : vector<1x256xbf16> to vector<32x256xbf16>
    %288 = arith.mulf %286, %287 : vector<32x256xbf16>
    %c64_302 = arith.constant 64 : index
    %c768_303 = arith.constant 768 : index
    %289 = vector.load %arg6[%c64_302, %c768_303] : memref<288x1024xbf16, #tpu.memory_space<vmem>>, vector<32x256xbf16>
    tpu.vector_store %arg6[%c64_302, %c768_303], %288 {strides = array<i32>} : memref<288x1024xbf16, #tpu.memory_space<vmem>>, vector<32x256xbf16>,
    %c0_304 = arith.constant 0 : index
    %c127_305 = arith.constant 127 : index
    %290 = vector.load %arg5[%c0_304, %c127_305] : memref<32x512xbf16, #tpu.memory_space<vmem>>, vector<32x256xbf16>
    %291 = vector.broadcast %21 : vector<1x256xbf16> to vector<32x256xbf16>
    %292 = arith.mulf %290, %291 : vector<32x256xbf16>
    %c96_306 = arith.constant 96 : index
    %c768_307 = arith.constant 768 : index
    %293 = vector.load %arg6[%c96_306, %c768_307] : memref<288x1024xbf16, #tpu.memory_space<vmem>>, vector<32x256xbf16>
    tpu.vector_store %arg6[%c96_306, %c768_307], %292 {strides = array<i32>} : memref<288x1024xbf16, #tpu.memory_space<vmem>>, vector<32x256xbf16>,
    %c0_308 = arith.constant 0 : index
    %c128_309 = arith.constant 128 : index
    %294 = vector.load %arg5[%c0_308, %c128_309] : memref<32x512xbf16, #tpu.memory_space<vmem>>, vector<32x256xbf16>
    %c128_310 = arith.constant 128 : index
    %c768_311 = arith.constant 768 : index
    %295 = vector.load %arg6[%c128_310, %c768_311] : memref<288x1024xbf16, #tpu.memory_space<vmem>>, vector<32x256xbf16>
    tpu.vector_store %arg6[%c128_310, %c768_311], %294 {strides = array<i32>} : memref<288x1024xbf16, #tpu.memory_space<vmem>>, vector<32x256xbf16>,
    %c0_312 = arith.constant 0 : index
    %c129_313 = arith.constant 129 : index
    %296 = vector.load %arg5[%c0_312, %c129_313] : memref<32x512xbf16, #tpu.memory_space<vmem>>, vector<32x256xbf16>
    %297 = vector.broadcast %26 : vector<1x256xbf16> to vector<32x256xbf16>
    %298 = arith.mulf %296, %297 : vector<32x256xbf16>
    %c160_314 = arith.constant 160 : index
    %c768_315 = arith.constant 768 : index
    %299 = vector.load %arg6[%c160_314, %c768_315] : memref<288x1024xbf16, #tpu.memory_space<vmem>>, vector<32x256xbf16>
    tpu.vector_store %arg6[%c160_314, %c768_315], %298 {strides = array<i32>} : memref<288x1024xbf16, #tpu.memory_space<vmem>>, vector<32x256xbf16>,
    %c0_316 = arith.constant 0 : index
    %c143_317 = arith.constant 143 : index
    %300 = vector.load %arg5[%c0_316, %c143_317] : memref<32x512xbf16, #tpu.memory_space<vmem>>, vector<32x256xbf16>
    %301 = vector.broadcast %21 : vector<1x256xbf16> to vector<32x256xbf16>
    %302 = arith.mulf %300, %301 : vector<32x256xbf16>
    %c192_318 = arith.constant 192 : index
    %c768_319 = arith.constant 768 : index
    %303 = vector.load %arg6[%c192_318, %c768_319] : memref<288x1024xbf16, #tpu.memory_space<vmem>>, vector<32x256xbf16>
    tpu.vector_store %arg6[%c192_318, %c768_319], %302 {strides = array<i32>} : memref<288x1024xbf16, #tpu.memory_space<vmem>>, vector<32x256xbf16>,
    %c0_320 = arith.constant 0 : index
    %c144_321 = arith.constant 144 : index
    %304 = vector.load %arg5[%c0_320, %c144_321] : memref<32x512xbf16, #tpu.memory_space<vmem>>, vector<32x256xbf16>
    %c224_322 = arith.constant 224 : index
    %c768_323 = arith.constant 768 : index
    %305 = vector.load %arg6[%c224_322, %c768_323] : memref<288x1024xbf16, #tpu.memory_space<vmem>>, vector<32x256xbf16>
    tpu.vector_store %arg6[%c224_322, %c768_323], %304 {strides = array<i32>} : memref<288x1024xbf16, #tpu.memory_space<vmem>>, vector<32x256xbf16>,
    %c0_324 = arith.constant 0 : index
    %c145_325 = arith.constant 145 : index
    %306 = vector.load %arg5[%c0_324, %c145_325] : memref<32x512xbf16, #tpu.memory_space<vmem>>, vector<32x256xbf16>
    %307 = vector.broadcast %26 : vector<1x256xbf16> to vector<32x256xbf16>
    %308 = arith.mulf %306, %307 : vector<32x256xbf16>
    %c256_326 = arith.constant 256 : index
    %c768_327 = arith.constant 768 : index
    %309 = vector.load %arg6[%c256_326, %c768_327] : memref<288x1024xbf16, #tpu.memory_space<vmem>>, vector<32x256xbf16>
    tpu.vector_store %arg6[%c256_326, %c768_327], %308 {strides = array<i32>} : memref<288x1024xbf16, #tpu.memory_space<vmem>>, vector<32x256xbf16>,
    %c32_328 = arith.constant 32 : index
    %c0_329 = arith.constant 0 : index
    %310 = vector.load %arg2[%c32_328, %c0_329] : memref<64x288xbf16, #tpu.memory_space<vmem>>, vector<32x288xbf16>
    %c0_330 = arith.constant 0 : index
    %c0_331 = arith.constant 0 : index
    %311 = vector.load %arg6[%c0_330, %c0_331] : memref<288x1024xbf16, #tpu.memory_space<vmem>>, vector<288x1024xbf16>
    %cst_332 = arith.constant dense<0.000000e+00> : vector<32x1024xf32>
    %312 = tpu.matmul %310, %311, %cst_332 {dimension_numbers = #tpu.dot_dimension_numbers<[1], [0], [0], [1], [0, 0, 1, 1], [], []>} : vector<32x288xbf16>, vector<288x1024xbf16>, vector<32x1024xf32> -> vector<32x1024xf32>
    %313 = vector.broadcast %28 : vector<32x1xf32> to vector<32x1024xf32>
    %314 = arith.addf %312, %313 : vector<32x1024xf32>
    %c0_333 = arith.constant 0 : index
    %c0_334 = arith.constant 0 : index
    %315 = vector.load %arg8[%c0_333, %c0_334] : memref<32x1024xf32, #tpu.memory_space<vmem>>, vector<32x1024xf32>
    tpu.vector_store %arg8[%c0_333, %c0_334], %314 {strides = array<i32>} : memref<32x1024xf32, #tpu.memory_space<vmem>>, vector<32x1024xf32>,
    %c0_335 = arith.constant 0 : index
    %c0_336 = arith.constant 0 : index
    %316 = vector.load %arg8[%c0_335, %c0_336] : memref<32x1024xf32, #tpu.memory_space<vmem>>, vector<32x256xf32>
    %cst_337 = arith.constant dense<0.000000e+00> : vector<32xf32>
    %317 = vector.multi_reduction <add>, %316, %cst_337 [1] : vector<32x256xf32> to vector<32xf32>
    %318 = vector.shape_cast %317 : vector<32xf32> to vector<32x1xf32>
    %cst_338 = arith.constant 2.560000e+02 : f32
    %319 = vector.broadcast %cst_338 : f32 to vector<32x1xf32>
    %320 = arith.divf %318, %319 : vector<32x1xf32>
    %321 = vector.broadcast %320 : vector<32x1xf32> to vector<32x2xf32>
    %322 = arith.mulf %30, %321 : vector<32x2xf32>
    %cst_339 = arith.constant dense<0.000000e+00> : vector<2xf32>
    %323 = vector.multi_reduction <add>, %322, %cst_339 [0] : vector<32x2xf32> to vector<2xf32>
    %324 = vector.shape_cast %323 : vector<2xf32> to vector<1x2xf32>
    %325 = arith.addf %324, %32 : vector<1x2xf32>
    %cst_340 = arith.constant 0.000000e+00 : f32
    %326 = vector.broadcast %cst_340 : f32 to vector<1x2xf32>
    %327 = arith.maximumf %325, %326 : vector<1x2xf32>
    %328 = vector.broadcast %327 : vector<1x2xf32> to vector<32x2xf32>
    %329 = arith.mulf %31, %328 : vector<32x2xf32>
    %cst_341 = arith.constant dense<0.000000e+00> : vector<32xf32>
    %330 = vector.multi_reduction <add>, %329, %cst_341 [1] : vector<32x2xf32> to vector<32xf32>
    %331 = vector.shape_cast %330 : vector<32xf32> to vector<32x1xf32>
    %332 = arith.addf %331, %29 : vector<32x1xf32>
    %333 = arith.negf %332 : vector<32x1xf32>
    %334 = math.exp %333 : vector<32x1xf32>
    %cst_342 = arith.constant 1.000000e+00 : f32
    %335 = vector.broadcast %cst_342 : f32 to vector<32x1xf32>
    %336 = arith.addf %335, %334 : vector<32x1xf32>
    %337 = arith.divf %335, %336 : vector<32x1xf32>
    %338 = vector.broadcast %337 : vector<32x1xf32> to vector<32x256xf32>
    %339 = arith.mulf %316, %338 : vector<32x256xf32>
    %c0_343 = arith.constant 0 : index
    %c0_344 = arith.constant 0 : index
    %c0_345 = arith.constant 0 : index
    %340 = vector.load %arg1[%c0_343, %c0_344, %c0_345] : memref<4x32x256xf32, #tpu.memory_space<vmem>>, vector<1x32x256xf32>
    %341 = vector.shape_cast %340 : vector<1x32x256xf32> to vector<32x256xf32>
    %342 = arith.addf %339, %341 : vector<32x256xf32>
    %c0_346 = arith.constant 0 : index
    %c0_347 = arith.constant 0 : index
    %c0_348 = arith.constant 0 : index
    %343 = vector.load %arg4[%c0_346, %c0_347, %c0_348] : memref<4x32x256xf32, #tpu.memory_space<vmem>>, vector<1x32x256xf32>
    %344 = vector.shape_cast %343 : vector<1x32x256xf32> to vector<32x256xf32>
    %345 = vector.shape_cast %342 : vector<32x256xf32> to vector<1x32x256xf32>
    tpu.vector_store %arg4[%c0_346, %c0_347, %c0_348], %345 {strides = array<i32>} : memref<4x32x256xf32, #tpu.memory_space<vmem>>, vector<1x32x256xf32>,
    %c0_349 = arith.constant 0 : index
    %c256_350 = arith.constant 256 : index
    %346 = vector.load %arg8[%c0_349, %c256_350] : memref<32x1024xf32, #tpu.memory_space<vmem>>, vector<32x256xf32>
    %cst_351 = arith.constant dense<0.000000e+00> : vector<32xf32>
    %347 = vector.multi_reduction <add>, %346, %cst_351 [1] : vector<32x256xf32> to vector<32xf32>
    %348 = vector.shape_cast %347 : vector<32xf32> to vector<32x1xf32>
    %cst_352 = arith.constant 2.560000e+02 : f32
    %349 = vector.broadcast %cst_352 : f32 to vector<32x1xf32>
    %350 = arith.divf %348, %349 : vector<32x1xf32>
    %351 = vector.broadcast %350 : vector<32x1xf32> to vector<32x2xf32>
    %352 = arith.mulf %30, %351 : vector<32x2xf32>
    %cst_353 = arith.constant dense<0.000000e+00> : vector<2xf32>
    %353 = vector.multi_reduction <add>, %352, %cst_353 [0] : vector<32x2xf32> to vector<2xf32>
    %354 = vector.shape_cast %353 : vector<2xf32> to vector<1x2xf32>
    %355 = arith.addf %354, %32 : vector<1x2xf32>
    %cst_354 = arith.constant 0.000000e+00 : f32
    %356 = vector.broadcast %cst_354 : f32 to vector<1x2xf32>
    %357 = arith.maximumf %355, %356 : vector<1x2xf32>
    %358 = vector.broadcast %357 : vector<1x2xf32> to vector<32x2xf32>
    %359 = arith.mulf %31, %358 : vector<32x2xf32>
    %cst_355 = arith.constant dense<0.000000e+00> : vector<32xf32>
    %360 = vector.multi_reduction <add>, %359, %cst_355 [1] : vector<32x2xf32> to vector<32xf32>
    %361 = vector.shape_cast %360 : vector<32xf32> to vector<32x1xf32>
    %362 = arith.addf %361, %29 : vector<32x1xf32>
    %363 = arith.negf %362 : vector<32x1xf32>
    %364 = math.exp %363 : vector<32x1xf32>
    %cst_356 = arith.constant 1.000000e+00 : f32
    %365 = vector.broadcast %cst_356 : f32 to vector<32x1xf32>
    %366 = arith.addf %365, %364 : vector<32x1xf32>
    %367 = arith.divf %365, %366 : vector<32x1xf32>
    %368 = vector.broadcast %367 : vector<32x1xf32> to vector<32x256xf32>
    %369 = arith.mulf %346, %368 : vector<32x256xf32>
    %c1_357 = arith.constant 1 : index
    %c0_358 = arith.constant 0 : index
    %c0_359 = arith.constant 0 : index
    %370 = vector.load %arg1[%c1_357, %c0_358, %c0_359] : memref<4x32x256xf32, #tpu.memory_space<vmem>>, vector<1x32x256xf32>
    %371 = vector.shape_cast %370 : vector<1x32x256xf32> to vector<32x256xf32>
    %372 = arith.addf %369, %371 : vector<32x256xf32>
    %c1_360 = arith.constant 1 : index
    %c0_361 = arith.constant 0 : index
    %c0_362 = arith.constant 0 : index
    %373 = vector.load %arg4[%c1_360, %c0_361, %c0_362] : memref<4x32x256xf32, #tpu.memory_space<vmem>>, vector<1x32x256xf32>
    %374 = vector.shape_cast %373 : vector<1x32x256xf32> to vector<32x256xf32>
    %375 = vector.shape_cast %372 : vector<32x256xf32> to vector<1x32x256xf32>
    tpu.vector_store %arg4[%c1_360, %c0_361, %c0_362], %375 {strides = array<i32>} : memref<4x32x256xf32, #tpu.memory_space<vmem>>, vector<1x32x256xf32>,
    %c0_363 = arith.constant 0 : index
    %c512_364 = arith.constant 512 : index
    %376 = vector.load %arg8[%c0_363, %c512_364] : memref<32x1024xf32, #tpu.memory_space<vmem>>, vector<32x256xf32>
    %cst_365 = arith.constant dense<0.000000e+00> : vector<32xf32>
    %377 = vector.multi_reduction <add>, %376, %cst_365 [1] : vector<32x256xf32> to vector<32xf32>
    %378 = vector.shape_cast %377 : vector<32xf32> to vector<32x1xf32>
    %cst_366 = arith.constant 2.560000e+02 : f32
    %379 = vector.broadcast %cst_366 : f32 to vector<32x1xf32>
    %380 = arith.divf %378, %379 : vector<32x1xf32>
    %381 = vector.broadcast %380 : vector<32x1xf32> to vector<32x2xf32>
    %382 = arith.mulf %30, %381 : vector<32x2xf32>
    %cst_367 = arith.constant dense<0.000000e+00> : vector<2xf32>
    %383 = vector.multi_reduction <add>, %382, %cst_367 [0] : vector<32x2xf32> to vector<2xf32>
    %384 = vector.shape_cast %383 : vector<2xf32> to vector<1x2xf32>
    %385 = arith.addf %384, %32 : vector<1x2xf32>
    %cst_368 = arith.constant 0.000000e+00 : f32
    %386 = vector.broadcast %cst_368 : f32 to vector<1x2xf32>
    %387 = arith.maximumf %385, %386 : vector<1x2xf32>
    %388 = vector.broadcast %387 : vector<1x2xf32> to vector<32x2xf32>
    %389 = arith.mulf %31, %388 : vector<32x2xf32>
    %cst_369 = arith.constant dense<0.000000e+00> : vector<32xf32>
    %390 = vector.multi_reduction <add>, %389, %cst_369 [1] : vector<32x2xf32> to vector<32xf32>
    %391 = vector.shape_cast %390 : vector<32xf32> to vector<32x1xf32>
    %392 = arith.addf %391, %29 : vector<32x1xf32>
    %393 = arith.negf %392 : vector<32x1xf32>
    %394 = math.exp %393 : vector<32x1xf32>
    %cst_370 = arith.constant 1.000000e+00 : f32
    %395 = vector.broadcast %cst_370 : f32 to vector<32x1xf32>
    %396 = arith.addf %395, %394 : vector<32x1xf32>
    %397 = arith.divf %395, %396 : vector<32x1xf32>
    %398 = vector.broadcast %397 : vector<32x1xf32> to vector<32x256xf32>
    %399 = arith.mulf %376, %398 : vector<32x256xf32>
    %c2_371 = arith.constant 2 : index
    %c0_372 = arith.constant 0 : index
    %c0_373 = arith.constant 0 : index
    %400 = vector.load %arg1[%c2_371, %c0_372, %c0_373] : memref<4x32x256xf32, #tpu.memory_space<vmem>>, vector<1x32x256xf32>
    %401 = vector.shape_cast %400 : vector<1x32x256xf32> to vector<32x256xf32>
    %402 = arith.addf %399, %401 : vector<32x256xf32>
    %c2_374 = arith.constant 2 : index
    %c0_375 = arith.constant 0 : index
    %c0_376 = arith.constant 0 : index
    %403 = vector.load %arg4[%c2_374, %c0_375, %c0_376] : memref<4x32x256xf32, #tpu.memory_space<vmem>>, vector<1x32x256xf32>
    %404 = vector.shape_cast %403 : vector<1x32x256xf32> to vector<32x256xf32>
    %405 = vector.shape_cast %402 : vector<32x256xf32> to vector<1x32x256xf32>
    tpu.vector_store %arg4[%c2_374, %c0_375, %c0_376], %405 {strides = array<i32>} : memref<4x32x256xf32, #tpu.memory_space<vmem>>, vector<1x32x256xf32>,
    %c0_377 = arith.constant 0 : index
    %c768_378 = arith.constant 768 : index
    %406 = vector.load %arg8[%c0_377, %c768_378] : memref<32x1024xf32, #tpu.memory_space<vmem>>, vector<32x256xf32>
    %cst_379 = arith.constant dense<0.000000e+00> : vector<32xf32>
    %407 = vector.multi_reduction <add>, %406, %cst_379 [1] : vector<32x256xf32> to vector<32xf32>
    %408 = vector.shape_cast %407 : vector<32xf32> to vector<32x1xf32>
    %cst_380 = arith.constant 2.560000e+02 : f32
    %409 = vector.broadcast %cst_380 : f32 to vector<32x1xf32>
    %410 = arith.divf %408, %409 : vector<32x1xf32>
    %411 = vector.broadcast %410 : vector<32x1xf32> to vector<32x2xf32>
    %412 = arith.mulf %30, %411 : vector<32x2xf32>
    %cst_381 = arith.constant dense<0.000000e+00> : vector<2xf32>
    %413 = vector.multi_reduction <add>, %412, %cst_381 [0] : vector<32x2xf32> to vector<2xf32>
    %414 = vector.shape_cast %413 : vector<2xf32> to vector<1x2xf32>
    %415 = arith.addf %414, %32 : vector<1x2xf32>
    %cst_382 = arith.constant 0.000000e+00 : f32
    %416 = vector.broadcast %cst_382 : f32 to vector<1x2xf32>
    %417 = arith.maximumf %415, %416 : vector<1x2xf32>
    %418 = vector.broadcast %417 : vector<1x2xf32> to vector<32x2xf32>
    %419 = arith.mulf %31, %418 : vector<32x2xf32>
    %cst_383 = arith.constant dense<0.000000e+00> : vector<32xf32>
    %420 = vector.multi_reduction <add>, %419, %cst_383 [1] : vector<32x2xf32> to vector<32xf32>
    %421 = vector.shape_cast %420 : vector<32xf32> to vector<32x1xf32>
    %422 = arith.addf %421, %29 : vector<32x1xf32>
    %423 = arith.negf %422 : vector<32x1xf32>
    %424 = math.exp %423 : vector<32x1xf32>
    %cst_384 = arith.constant 1.000000e+00 : f32
    %425 = vector.broadcast %cst_384 : f32 to vector<32x1xf32>
    %426 = arith.addf %425, %424 : vector<32x1xf32>
    %427 = arith.divf %425, %426 : vector<32x1xf32>
    %428 = vector.broadcast %427 : vector<32x1xf32> to vector<32x256xf32>
    %429 = arith.mulf %406, %428 : vector<32x256xf32>
    %c3_385 = arith.constant 3 : index
    %c0_386 = arith.constant 0 : index
    %c0_387 = arith.constant 0 : index
    %430 = vector.load %arg1[%c3_385, %c0_386, %c0_387] : memref<4x32x256xf32, #tpu.memory_space<vmem>>, vector<1x32x256xf32>
    %431 = vector.shape_cast %430 : vector<1x32x256xf32> to vector<32x256xf32>
    %432 = arith.addf %429, %431 : vector<32x256xf32>
    %c3_388 = arith.constant 3 : index
    %c0_389 = arith.constant 0 : index
    %c0_390 = arith.constant 0 : index
    %433 = vector.load %arg4[%c3_388, %c0_389, %c0_390] : memref<4x32x256xf32, #tpu.memory_space<vmem>>, vector<1x32x256xf32>
    %434 = vector.shape_cast %433 : vector<1x32x256xf32> to vector<32x256xf32>
    %435 = vector.shape_cast %432 : vector<32x256xf32> to vector<1x32x256xf32>
    tpu.vector_store %arg4[%c3_388, %c0_389, %c0_390], %435 {strides = array<i32>} : memref<4x32x256xf32, #tpu.memory_space<vmem>>, vector<1x32x256xf32>,
    return
  }
  func.func @transform_0(%arg0: i32) -> (i32, i32, i32) {
    %c0_i32 = arith.constant 0 : i32
    %c0_i32_0 = arith.constant 0 : i32
    %c0_i32_1 = arith.constant 0 : i32
    return %arg0, %c0_i32, %c0_i32_0 : i32, i32, i32
  }
  func.func @transform_1(%arg0: i32) -> (i32, i32) {
    %c0_i32 = arith.constant 0 : i32
    %c0_i32_0 = arith.constant 0 : i32
    %c0_i32_1 = arith.constant 0 : i32
    return %c0_i32, %c0_i32_0 : i32, i32
  }
  func.func @transform_2(%arg0: i32) -> (i32, i32) {
    %c0_i32 = arith.constant 0 : i32
    %c0_i32_0 = arith.constant 0 : i32
    %c0_i32_1 = arith.constant 0 : i32
    return %c0_i32, %c0_i32_0 : i32, i32
  }
  func.func @transform_3(%arg0: i32) -> (i32, i32, i32) {
    %c0_i32 = arith.constant 0 : i32
    %c0_i32_0 = arith.constant 0 : i32
    %c0_i32_1 = arith.constant 0 : i32
    return %arg0, %c0_i32, %c0_i32_0 : i32, i32, i32
  }
}

</mosaic_0001>

<llo_original>
// kernel: tpu_custom_call.1
$region0: #{tpu_custom_call.1}
  #allocation0 [shape = 'u32[]', space=smem, size = 0x4, offset = 0x4, fixed_abs, tag = 'smem constant byte address 0x4 - core index']
  #allocation1 [shape = 'u32[72,128]{1,0:T(1,128)}', space=vmem, size = 0x9000, scoped, tag = 'internal scratch']
  #allocation2 [shape = 'bf16[32,512]{1,0:T(8,128)(2,1)}', space=vmem, size = 0x8000, scoped, tag = 'scratch operand']
  #allocation3 [shape = 'bf16[288,1024]{1,0:T(8,128)(2,1)}', space=vmem, size = 0x90000, scoped, tag = 'scratch operand']
  #allocation4 [shape = 'bf16[32,1024]{1,0:T(8,128)(2,1)}', space=vmem, size = 0x10000, scoped, tag = 'scratch operand']
  #allocation5 [shape = 'f32[32,1024]{1,0:T(8,128)}', space=vmem, size = 0x20000, scoped, tag = 'scratch operand']
  %s0 = inlined_call_operand.hbm [shape: f32[8,32,256], index: 0, kind: input, shape index: {}]
  %s1 = inlined_call_operand.hbm [shape: bf16[64,288], index: 1, kind: input, shape index: {}]
  %s2 = inlined_call_operand.vmem [shape: f32[32,9], index: 2, kind: input, shape index: {}]
  %s3 = inlined_call_operand.hbm [shape: f32[8,32,256], index: 3, kind: output, shape index: {}]
  %s4 = sld [smem:[#allocation0]]
  $region53: #{tpu_custom_call.1} parent=0
    _
  %s6 = ssub.s32 1, %s4
  %s7 = scalar_select 0, %s6, %s4
  $region1: #{tpu_custom_call.1} parent=0
    #allocation6 [shape = 'u8[262144]{0}', space=vmem, size = 0x40000, scoped, tag = 'input window, operand 0']
    #allocation7 [shape = 's32[2]{0}', space=sflag, size = 0x8, scoped, tag = 'scoped memory for tpu_custom_call.1']
    #allocation8 [shape = 's32[2]{0}', space=sflag, size = 0x8, scoped, tag = 'scoped memory for tpu_custom_call.1']
    #allocation9 [shape = 'u8[49152]{0}', space=vmem, size = 0xc000, scoped, tag = 'input window, operand 1, single buffered']
    #allocation10 [shape = 's32[1]{0}', space=sflag, size = 0x4, scoped, tag = 'scoped memory for tpu_custom_call.1']
    #allocation11 [shape = 'u8[262144]{0}', space=vmem, size = 0x40000, scoped, tag = 'output window, operand 0']
    %8 = vsyncpa [#allocation7], 0
    %s9 = scalar_lea.sflag [#allocation7], 1
    %10 = vsyncpa %s9, 0
    %11 = vsyncpa [#allocation10], 0
    %12 = vsyncpa [#allocation8], 0
    %s13 = scalar_lea.sflag [#allocation8], 1
    %14 = vsyncpa %s13, 0
    loop: start=0, step=1, limit=4
    $region2: #{tpu_custom_call.1} parent=1 // loop_pre_header
      _
    $region3: #{tpu_custom_call.1} parent=1 // loop_header
      %s16 = sphi 0, %s20
      %p17 = scmp.ge.s32.totalorder %s16, 4
      %s26 = sphi 0, %s28
      %s29 = sphi 0, %s26
      %s30 = sphi 0, %s29
      %s46 = sphi 0, %s30
      %s50 = sphi 0, %s50
      %s52 = sphi 0, %s50
      %s53 = sphi 0, %s52
      %s67 = sphi 0, %s53
      %s71 = sphi 0, %s71
      %s73 = sphi 0, %s71
      %s74 = sphi 0, %s73
      %s88 = sphi 0, %s74
      %s94 = sphi 0, %s96
      %s97 = sphi 0, %s94
      %s98 = sphi 0, %s97
      %s114 = sphi 0, %s98
    $region4: #{tpu_custom_call.1} parent=1 // loop_header_branch
      %19 = sbr.rel (%p17) target = $region8
    $region5: #{tpu_custom_call.1} parent=1 // loop_body
      %s21 = ssub.s32 %s16, 1
      %s22 = ssub.s32 %s16, 2
      %s23 = sadd.s32 %s16, 1
      %s24 = ssub.s32 %s16, %s23
      %p25 = scmp.eq.s32.totalorder %s24, 0
      %s27 = sadd.s32 %s26, 1
      %s28 = scalar_select %p25, %s26, %s27
      %p31 = pneg %p25
      %p32 = scmp.eq.s32.totalorder %s16, 1
      %p33 = por %p31, %p32
      %p34 = scmp.ne.s32.totalorder %s26, %s29
      %p35 = scmp.eq.s32.totalorder %s16, 0
      %p36 = por %p34, %p35
      %p37 = scmp.ne.s32.totalorder %s26, %s29
      %p38 = scmp.eq.s32.totalorder %s21, 1
      %p39 = por %p37, %p38
      %p40 = scmp.ne.s32.totalorder %s29, %s30
      %p41 = scmp.eq.s32.totalorder %s21, 0
      %p42 = por %p40, %p41
      %p43 = scmp.ne.s32.totalorder %s29, %s30
      %p44 = scmp.eq.s32.totalorder %s22, 1
      %p45 = por %p43, %p44
      %p47 = scmp.ne.s32.totalorder %s30, %s46
      %p48 = scmp.eq.s32.totalorder %s22, 0
      %p49 = por %p47, %p48
      %s51 = sadd.s32 %s50, 1
      %p54 = scmp.eq.s32.totalorder %s16, 1
      %p55 = scmp.ne.s32.totalorder %s50, %s52
      %p56 = scmp.eq.s32.totalorder %s16, 0
      %p57 = por %p55, %p56
      %p58 = scmp.ne.s32.totalorder %s50, %s52
      %p59 = scmp.eq.s32.totalorder %s21, 1
      %p60 = por %p58, %p59
      %p61 = scmp.ne.s32.totalorder %s52, %s53
      %p62 = scmp.eq.s32.totalorder %s21, 0
      %p63 = por %p61, %p62
      %p64 = scmp.ne.s32.totalorder %s52, %s53
      %p65 = scmp.eq.s32.totalorder %s22, 1
      %p66 = por %p64, %p65
      %p68 = scmp.ne.s32.totalorder %s53, %s67
      %p69 = scmp.eq.s32.totalorder %s22, 0
      %p70 = por %p68, %p69
      %s72 = sadd.s32 %s71, 1
      %p75 = scmp.eq.s32.totalorder %s16, 1
      %p76 = scmp.ne.s32.totalorder %s71, %s73
      %p77 = scmp.eq.s32.totalorder %s16, 0
      %p78 = por %p76, %p77
      %p79 = scmp.ne.s32.totalorder %s71, %s73
      %p80 = scmp.eq.s32.totalorder %s21, 1
      %p81 = por %p79, %p80
      %p82 = scmp.ne.s32.totalorder %s73, %s74
      %p83 = scmp.eq.s32.totalorder %s21, 0
      %p84 = por %p82, %p83
      %p85 = scmp.ne.s32.totalorder %s73, %s74
      %p86 = scmp.eq.s32.totalorder %s22, 1
      %p87 = por %p85, %p86
      %p89 = scmp.ne.s32.totalorder %s74, %s88
      %p90 = scmp.eq.s32.totalorder %s22, 0
      %p91 = por %p89, %p90
      %s92 = ssub.s32 %s16, %s23
      %p93 = scmp.eq.s32.totalorder %s92, 0
      %s95 = sadd.s32 %s94, 1
      %s96 = scalar_select %p93, %s94, %s95
      %p99 = pneg %p93
      %p100 = scmp.eq.s32.totalorder %s16, 1
      %p101 = por %p99, %p100
      %p102 = scmp.ne.s32.totalorder %s94, %s97
      %p103 = scmp.eq.s32.totalorder %s16, 0
      %p104 = por %p102, %p103
      %p105 = scmp.ne.s32.totalorder %s94, %s97
      %p106 = scmp.eq.s32.totalorder %s21, 1
      %p107 = por %p105, %p106
      %p108 = scmp.ne.s32.totalorder %s97, %s98
      %p109 = scmp.eq.s32.totalorder %s21, 0
      %p110 = por %p108, %p109
      %p111 = scmp.ne.s32.totalorder %s97, %s98
      %p112 = scmp.eq.s32.totalorder %s22, 1
      %p113 = por %p111, %p112
      %p115 = scmp.ne.s32.totalorder %s98, %s114
      %p116 = scmp.eq.s32.totalorder %s22, 0
      %p117 = por %p115, %p116
      %p118 = scmp.le.s32.totalorder 1, %s16
      %p119 = scmp.lt.s32.totalorder %s16, 3
      %p120 = pnand %p118, %p119
      %p121 = pneg %p120
      // Predicated region
      $region9: #{tpu_custom_call.1} parent=5 // pred_check
        _
      $region10: #{tpu_custom_call.1} parent=5 // pred_check_branch
        %123 = sbr.rel (%p120) target = $region12
      $region11: #{tpu_custom_call.1} parent=5 // pred_region
        %s124 = ssub.s32 %s16, 1
        // Predicated region
        $region13: #{tpu_custom_call.1} parent=11 // pred_check
          %p125 = pneg %p63
        $region14: #{tpu_custom_call.1} parent=11 // pred_check_branch
          %127 = sbr.rel (%p125) target = $region16
        $region15: #{tpu_custom_call.1} parent=11 // pred_region
          %129 = vsyncadd [#allocation10], 0
          %s130 = sshll.u32 %s1, 4
          %s131 = int_to_ptr.hbm [resolvable:$true] %s130
          %s132 = sshll.u32 [#allocation9], 4
          %s133 = int_to_ptr.vmem [resolvable:$true] %s132
          %138 = dma.hbm_to_vmem [thread:$0]  %s131, 1536, %s133, [#allocation10], 192, 192, 12
        $region16: #{tpu_custom_call.1} parent=11 // pred_fallthru
          _
        // Predicated region
        $region17: #{tpu_custom_call.1} parent=11 // pred_check
          %p139 = pneg %p84
        $region18: #{tpu_custom_call.1} parent=11 // pred_check_branch
          %141 = sbr.rel (%p139) target = $region20
        $region19: #{tpu_custom_call.1} parent=11 // pred_region
          _
        $region20: #{tpu_custom_call.1} parent=11 // pred_fallthru
          _
      $region12: #{tpu_custom_call.1} parent=5 // pred_fallthru
        _
      %p142 = scmp.lt.s32.totalorder %s16, 2
      // Predicated region
      $region21: #{tpu_custom_call.1} parent=5 // pred_check
        %p143 = pneg %p142
      $region22: #{tpu_custom_call.1} parent=5 // pred_check_branch
        %145 = sbr.rel (%p143) target = $region24
      $region23: #{tpu_custom_call.1} parent=5 // pred_region
        // Predicated region
        $region25: #{tpu_custom_call.1} parent=23 // pred_check
          %p146 = pneg %p36
        $region26: #{tpu_custom_call.1} parent=23 // pred_check_branch
          %148 = sbr.rel (%p146) target = $region28
        $region27: #{tpu_custom_call.1} parent=23 // pred_region
          %s149 = sand.u32 %s26, 1
          %s150 = scalar_lea.sflag [#allocation7], %s149
          %s151 = sand.u32 %s26, 1
          %s152 = smul.addr %s151, 256
          %s153 = scalar_lea.vmem [#allocation6], %s152
          %s154 = smul.u32 4, %s16
          %156 = vsyncadd %s150, 0
          %s157 = smul.addr %s154, 8
          %s158 = smul.addr %s157, 8
          %s159 = scalar_lea.hbm %s0, %s158
          %s160 = sshll.u32 %s159, 4
          %s161 = int_to_ptr.hbm [resolvable:$true] %s160
          %s162 = sshll.u32 %s153, 4
          %s163 = int_to_ptr.vmem [resolvable:$true] %s162
          %168 = dma.hbm_to_vmem [thread:$0]  %s161, 4096, %s163, %s150, 256, 256, 16
        $region28: #{tpu_custom_call.1} parent=23 // pred_fallthru
          _
      $region24: #{tpu_custom_call.1} parent=5 // pred_fallthru
        _
      %p169 = scmp.le.s32.totalorder 1, %s16
      %p170 = scmp.lt.s32.totalorder %s16, 3
      %p171 = pnand %p169, %p170
      %p172 = pneg %p171
      // Predicated region
      $region29: #{tpu_custom_call.1} parent=5 // pred_check
        _
      $region30: #{tpu_custom_call.1} parent=5 // pred_check_branch
        %174 = sbr.rel (%p171) target = $region32
      $region31: #{tpu_custom_call.1} parent=5 // pred_region
        %s175 = ssub.s32 %s16, 1
        %s176 = sand.u32 %s29, 1
        %s177 = scalar_lea.sflag [#allocation7], %s176
        %s178 = sand.u32 %s29, 1
        %s179 = smul.addr %s178, 256
        %s180 = scalar_lea.vmem [#allocation6], %s179
        // Predicated region
        $region33: #{tpu_custom_call.1} parent=31 // pred_check
          %p181 = pneg %p42
        $region34: #{tpu_custom_call.1} parent=31 // pred_check_branch
          %183 = sbr.rel (%p181) target = $region36
        $region35: #{tpu_custom_call.1} parent=31 // pred_region
          %185 = dma.done %s177, 4096
        $region36: #{tpu_custom_call.1} parent=31 // pred_fallthru
          _
        // Predicated region
        $region37: #{tpu_custom_call.1} parent=31 // pred_check
          %p186 = pneg %p63
        $region38: #{tpu_custom_call.1} parent=31 // pred_check_branch
          %188 = sbr.rel (%p186) target = $region40
        $region39: #{tpu_custom_call.1} parent=31 // pred_region
          %190 = dma.done [#allocation10], 1536
        $region40: #{tpu_custom_call.1} parent=31 // pred_fallthru
          _
        %s191 = sand.u32 %s29, 1
        %s192 = scalar_lea.sflag [#allocation7], %s191
        %s193 = sand.u32 %s29, 1
        %s194 = smul.addr %s193, 256
        %s195 = scalar_lea.vmem [#allocation6], %s194
        %p196 = pneg %p42
        %p197 = pneg %p39
        %p198 = pneg %p63
        %p199 = pneg %p60
        %p200 = pneg %p84
        %p201 = pneg %p81
        %p202 = pneg %p110
        %p203 = pneg %p107
        %s204 = sand.u32 %s97, 1
        %s205 = scalar_lea.sflag [#allocation8], %s204
        %s206 = sand.u32 %s97, 1
        %s207 = smul.addr %s206, 256
        %s208 = scalar_lea.vmem [#allocation11], %s207
        %s209 = smul.u32 4, %s21
        %s210 = smul.u32 4, %s21
        %v212 = vlaneseq
        %v213 = vand.u32 %v212, 127
        %v214 = vadd.s32 %v213, 128
        %vm215 = vcmp.lt.s32.totalorder %v213, 0
        %v216 = vsub.s32 0, %v213
        %v217 = vsel %vm215, %v216, %v213
        %v218 = vshrl.u32 %v217, 4
        %v219 = vand.u32 %v217, 15
        %v220 = vsub.s32 0, %v219
        %v221 = vsel %vm215, %v220, %v219
        %vm222 = vcmp.lt.s32.totalorder %v214, 0
        %v223 = vsub.s32 0, %v214
        %v224 = vsel %vm222, %v223, %v214
        %v225 = vshrl.u32 %v224, 4
        %v226 = vand.u32 %v224, 15
        %v227 = vsub.s32 0, %v226
        %v228 = vsel %vm222, %v227, %v226
        %vm229 = vcmp.ne.s32.totalorder %v221, 0
        %vm230 = vcmp.ne.s32.totalorder %v228, 0
        %vm231 = vcmp.lt.s32.totalorder %v221, 0
        %vm232 = vcmp.lt.s32.totalorder %v228, 0
        %vm233 = vmand %vm231, %vm229
        %vm234 = vmand %vm232, %vm230
        %v235 = vadd.s32 %v221, 16
        %v236 = vadd.s32 %v228, 16
        %v237 = vsel %vm233, %v235, %v221
        %v238 = vsel %vm234, %v236, %v228
        %vm239 = vcmp.ne.s32.totalorder %v237, 0
        %vm240 = vcmp.ne.s32.totalorder %v238, 0
        %v241 = vsel %vm239, 1, 0
        %v242 = vsel %vm240, 1, 0
        %v243 = vcvt.s32.f32 %v241
        %v244 = vcvt.s32.f32 %v242
        %v245 = vpack.c.bf16 %v244, %v243
        %vm246 = vcmp.ne.s32.totalorder %v237, 15
        %vm247 = vcmp.ne.s32.totalorder %v238, 15
        %v248 = vsel %vm246, 1, 0
        %v249 = vsel %vm247, 1, 0
        %v250 = vcvt.s32.f32 %v248
        %v251 = vcvt.s32.f32 %v249
        %v252 = vpack.c.bf16 %v251, %v250
        %v253 = vld [vmem:[%s2] sm:$0xff]
        %v254 = vld [vmem:[%s2 + $0x8] sm:$0xff]
        %v255 = vld [vmem:[%s2 + $0x10] sm:$0xff]
        %v256 = vld [vmem:[%s2 + $0x18] sm:$0xff]
        %v257 = vld [vmem:[%s2] sm:$0x1]
        %258 = vst [vmem:[#allocation2] sm:$0xf] 0
        %259 = vst [vmem:[#allocation2 + $0x10] sm:$0xf] 0
        %260 = vst [vmem:[#allocation2 + $0x20] sm:$0xf] 0
        %261 = vst [vmem:[#allocation2 + $0x30] sm:$0xf] 0
        %262 = vst [vmem:[#allocation2 + $0xc] sm:$0xf] 0
        %263 = vst [vmem:[#allocation2 + $0x1c] sm:$0xf] 0
        %264 = vst [vmem:[#allocation2 + $0x2c] sm:$0xf] 0
        %265 = vst [vmem:[#allocation2 + $0x3c] sm:$0xf] 0
        %v266 = vld [vmem:[%s180] sm:$0xff]
        %v267 = vld [vmem:[%s180 + $0x8] sm:$0xff]
        %v268 = vld [vmem:[%s180 + $0x10] sm:$0xff]
        %v269 = vld [vmem:[%s180 + $0x18] sm:$0xff]
        %v270 = vld [vmem:[%s180 + $0x20] sm:$0xff]
        %v271 = vld [vmem:[%s180 + $0x28] sm:$0xff]
        %v272 = vld [vmem:[%s180 + $0x30] sm:$0xff]
        %v273 = vld [vmem:[%s180 + $0x38] sm:$0xff]
        %v274 = vpack.c.bf16 %v267, %v266
        %v275 = vpack.c.bf16 %v269, %v268
        %v276 = vpack.c.bf16 %v271, %v270
        %v277 = vpack.c.bf16 %v273, %v272
        %278 = vst [vmem:[#allocation2 + $0x4] sm:$0xff] %v274
        %279 = vst [vmem:[#allocation2 + $0x14] sm:$0xff] %v275
        %280 = vst [vmem:[#allocation2 + $0x24] sm:$0xff] %v276
        %281 = vst [vmem:[#allocation2 + $0x34] sm:$0xff] %v277
        %v282 = vld [vmem:[#allocation2] sm:$0xff]
        %v283 = vld [vmem:[#allocation2 + $0x8] sm:$0xf]
        %v284 = vld [vmem:[#allocation2 + $0x10] sm:$0xff]
        %v285 = vld [vmem:[#allocation2 + $0x18] sm:$0xf]
        %v286 = vld [vmem:[#allocation2 + $0x20] sm:$0xff]
        %v287 = vld [vmem:[#allocation2 + $0x28] sm:$0xf]
        %v288 = vld [vmem:[#allocation2 + $0x30] sm:$0xff]
        %v289 = vld [vmem:[#allocation2 + $0x38] sm:$0xf]
        %v290 = vunpack.c.l.bf16 %v282
        %v291 = vunpack.c.h.bf16 %v282
        %v292 = vunpack.c.l.bf16 %v283
        %v293 = vunpack.c.l.bf16 %v284
        %v294 = vunpack.c.h.bf16 %v284
        %v295 = vunpack.c.l.bf16 %v285
        %v296 = vunpack.c.l.bf16 %v286
        %v297 = vunpack.c.h.bf16 %v286
        %v298 = vunpack.c.l.bf16 %v287
        %v299 = vunpack.c.l.bf16 %v288
        %v300 = vunpack.c.h.bf16 %v288
        %v301 = vunpack.c.l.bf16 %v289
        %v302 = vunpack.c.l.bf16 %v245
        %v303 = vunpack.c.h.bf16 %v245
        %306 = vrot.lane.b32.xlu0 %v302, 111
        %v307 = vpop.permute.xlu0 %306
        %308 = vrot.lane.b32.xlu0 %v303, 111
        %v309 = vpop.permute.xlu0 %308
        %vm310 = vcmask 908288
        %v311 = vsel %vm310, %v307, %v309
        %v315 = vmul.f32 %v290, %v307
        %v316 = vmul.f32 %v291, %v311
        %v317 = vmul.f32 %v292, %v309
        %v318 = vmul.f32 %v293, %v307
        %v319 = vmul.f32 %v294, %v311
        %v320 = vmul.f32 %v295, %v309
        %v321 = vmul.f32 %v296, %v307
        %v322 = vmul.f32 %v297, %v311
        %v323 = vmul.f32 %v298, %v309
        %v324 = vmul.f32 %v299, %v307
        %v325 = vmul.f32 %v300, %v311
        %v326 = vmul.f32 %v301, %v309
        %v327 = vpack.c.bf16 %v316, %v315
        %v328 = vpack.c.bf16 %v317, %v317
        %v329 = vpack.c.bf16 %v319, %v318
        %v330 = vpack.c.bf16 %v320, %v320
        %v331 = vpack.c.bf16 %v322, %v321
        %v332 = vpack.c.bf16 %v323, %v323
        %v333 = vpack.c.bf16 %v325, %v324
        %v334 = vpack.c.bf16 %v326, %v326
        %343 = vrot.lane.b32.xlu0 %v327, 17
        %v344 = vpop.permute.xlu0 %343
        %345 = vrot.lane.b32.xlu0 %v328, 17
        %v346 = vpop.permute.xlu0 %345
        %347 = vrot.lane.b32.xlu0 %v329, 17
        %v348 = vpop.permute.xlu0 %347
        %349 = vrot.lane.b32.xlu0 %v330, 17
        %v350 = vpop.permute.xlu0 %349
        %351 = vrot.lane.b32.xlu0 %v331, 17
        %v352 = vpop.permute.xlu0 %351
        %353 = vrot.lane.b32.xlu0 %v332, 17
        %v354 = vpop.permute.xlu0 %353
        %355 = vrot.lane.b32.xlu0 %v333, 17
        %v356 = vpop.permute.xlu0 %355
        %357 = vrot.lane.b32.xlu0 %v334, 17
        %v358 = vpop.permute.xlu0 %357
        %v359 = vrot.slane %v344, 4
        %v360 = vrot.slane %v346, 4
        %v361 = vrot.slane %v348, 4
        %v362 = vrot.slane %v350, 4
        %v363 = vrot.slane %v352, 4
        %v364 = vrot.slane %v354, 4
        %v365 = vrot.slane %v356, 4
        %v366 = vrot.slane %v358, 4
        %vm367 = vcmask 1043456
        %v368 = vsel %vm367, %v359, %v360
        %vm369 = vcmask 138240
        %v370 = vsel %vm369, %v344, %v368
        %v371 = vsel %vm367, %v361, %v362
        %v372 = vsel %vm369, %v348, %v371
        %v373 = vsel %vm367, %v363, %v364
        %v374 = vsel %vm369, %v352, %v373
        %v375 = vsel %vm367, %v365, %v366
        %v376 = vsel %vm369, %v356, %v375
        %381 = vst [vmem:[#allocation3] sm:$0xff] %v370
        %382 = vst [vmem:[#allocation3 + $0x20] sm:$0xff] %v372
        %383 = vst [vmem:[#allocation3 + $0x40] sm:$0xff] %v374
        %384 = vst [vmem:[#allocation3 + $0x60] sm:$0xff] %v376
        %v385 = vld [vmem:[#allocation2] sm:$0xff]
        %v386 = vld [vmem:[#allocation2 + $0x8] sm:$0xf]
        %v387 = vld [vmem:[#allocation2 + $0x10] sm:$0xff]
        %v388 = vld [vmem:[#allocation2 + $0x18] sm:$0xf]
        %v389 = vld [vmem:[#allocation2 + $0x20] sm:$0xff]
        %v390 = vld [vmem:[#allocation2 + $0x28] sm:$0xf]
        %v391 = vld [vmem:[#allocation2 + $0x30] sm:$0xff]
        %v392 = vld [vmem:[#allocation2 + $0x38] sm:$0xf]
        %401 = vrot.lane.b32.xlu0 %v385, 16
        %v402 = vpop.permute.xlu0 %401
        %403 = vrot.lane.b32.xlu0 %v386, 16
        %v404 = vpop.permute.xlu0 %403
        %405 = vrot.lane.b32.xlu0 %v387, 16
        %v406 = vpop.permute.xlu0 %405
        %407 = vrot.lane.b32.xlu0 %v388, 16
        %v408 = vpop.permute.xlu0 %407
        %409 = vrot.lane.b32.xlu0 %v389, 16
        %v410 = vpop.permute.xlu0 %409
        %411 = vrot.lane.b32.xlu0 %v390, 16
        %v412 = vpop.permute.xlu0 %411
        %413 = vrot.lane.b32.xlu0 %v391, 16
        %v414 = vpop.permute.xlu0 %413
        %415 = vrot.lane.b32.xlu0 %v392, 16
        %v416 = vpop.permute.xlu0 %415
        %v417 = vrot.slane %v402, 4
        %v418 = vrot.slane %v404, 4
        %v419 = vrot.slane %v406, 4
        %v420 = vrot.slane %v408, 4
        %v421 = vrot.slane %v410, 4
        %v422 = vrot.slane %v412, 4
        %v423 = vrot.slane %v414, 4
        %v424 = vrot.slane %v416, 4
        %v425 = vsel %vm367, %v417, %v418
        %vm426 = vcmask 130048
        %v427 = vsel %vm426, %v402, %v425
        %v428 = vsel %vm367, %v419, %v420
        %v429 = vsel %vm426, %v406, %v428
        %v430 = vsel %vm367, %v421, %v422
        %v431 = vsel %vm426, %v410, %v430
        %v432 = vsel %vm367, %v423, %v424
        %v433 = vsel %vm426, %v414, %v432
        %438 = vst [vmem:[#allocation3 + $0x80] sm:$0xff] %v427
        %439 = vst [vmem:[#allocation3 + $0xa0] sm:$0xff] %v429
        %440 = vst [vmem:[#allocation3 + $0xc0] sm:$0xff] %v431
        %441 = vst [vmem:[#allocation3 + $0xe0] sm:$0xff] %v433
        %v442 = vld [vmem:[#allocation2] sm:$0xff]
        %v443 = vld [vmem:[#allocation2 + $0x8] sm:$0xf]
        %v444 = vld [vmem:[#allocation2 + $0x10] sm:$0xff]
        %v445 = vld [vmem:[#allocation2 + $0x18] sm:$0xf]
        %v446 = vld [vmem:[#allocation2 + $0x20] sm:$0xff]
        %v447 = vld [vmem:[#allocation2 + $0x28] sm:$0xf]
        %v448 = vld [vmem:[#allocation2 + $0x30] sm:$0xff]
        %v449 = vld [vmem:[#allocation2 + $0x38] sm:$0xf]
        %v450 = vunpack.c.l.bf16 %v442
        %v451 = vunpack.c.h.bf16 %v442
        %v452 = vunpack.c.l.bf16 %v443
        %v453 = vunpack.c.l.bf16 %v444
        %v454 = vunpack.c.h.bf16 %v444
        %v455 = vunpack.c.l.bf16 %v445
        %v456 = vunpack.c.l.bf16 %v446
        %v457 = vunpack.c.h.bf16 %v446
        %v458 = vunpack.c.l.bf16 %v447
        %v459 = vunpack.c.l.bf16 %v448
        %v460 = vunpack.c.h.bf16 %v448
        %v461 = vunpack.c.l.bf16 %v449
        %v462 = vunpack.c.l.bf16 %v252
        %v463 = vunpack.c.h.bf16 %v252
        %466 = vrot.lane.b32.xlu0 %v462, 113
        %v467 = vpop.permute.xlu0 %466
        %468 = vrot.lane.b32.xlu0 %v463, 113
        %v469 = vpop.permute.xlu0 %468
        %vm470 = vcmask 924672
        %v471 = vsel %vm470, %v467, %v469
        %v475 = vmul.f32 %v450, %v467
        %v476 = vmul.f32 %v451, %v471
        %v477 = vmul.f32 %v452, %v469
        %v478 = vmul.f32 %v453, %v467
        %v479 = vmul.f32 %v454, %v471
        %v480 = vmul.f32 %v455, %v469
        %v481 = vmul.f32 %v456, %v467
        %v482 = vmul.f32 %v457, %v471
        %v483 = vmul.f32 %v458, %v469
        %v484 = vmul.f32 %v459, %v467
        %v485 = vmul.f32 %v460, %v471
        %v486 = vmul.f32 %v461, %v469
        %v487 = vpack.c.bf16 %v476, %v475
        %v488 = vpack.c.bf16 %v477, %v477
        %v489 = vpack.c.bf16 %v479, %v478
        %v490 = vpack.c.bf16 %v480, %v480
        %v491 = vpack.c.bf16 %v482, %v481
        %v492 = vpack.c.bf16 %v483, %v483
        %v493 = vpack.c.bf16 %v485, %v484
        %v494 = vpack.c.bf16 %v486, %v486
        %503 = vrot.lane.b32.xlu0 %v487, 15
        %v504 = vpop.permute.xlu0 %503
        %505 = vrot.lane.b32.xlu0 %v488, 15
        %v506 = vpop.permute.xlu0 %505
        %507 = vrot.lane.b32.xlu0 %v489, 15
        %v508 = vpop.permute.xlu0 %507
        %509 = vrot.lane.b32.xlu0 %v490, 15
        %v510 = vpop.permute.xlu0 %509
        %511 = vrot.lane.b32.xlu0 %v491, 15
        %v512 = vpop.permute.xlu0 %511
        %513 = vrot.lane.b32.xlu0 %v492, 15
        %v514 = vpop.permute.xlu0 %513
        %515 = vrot.lane.b32.xlu0 %v493, 15
        %v516 = vpop.permute.xlu0 %515
        %517 = vrot.lane.b32.xlu0 %v494, 15
        %v518 = vpop.permute.xlu0 %517
        %v519 = vrot.slane %v504, 4
        %v520 = vrot.slane %v506, 4
        %v521 = vrot.slane %v508, 4
        %v522 = vrot.slane %v510, 4
        %v523 = vrot.slane %v512, 4
        %v524 = vrot.slane %v514, 4
        %v525 = vrot.slane %v516, 4
        %v526 = vrot.slane %v518, 4
        %v527 = vsel %vm367, %v519, %v520
        %vm528 = vcmask 121856
        %v529 = vsel %vm528, %v504, %v527
        %v530 = vsel %vm367, %v521, %v522
        %v531 = vsel %vm528, %v508, %v530
        %v532 = vsel %vm367, %v523, %v524
        %v533 = vsel %vm528, %v512, %v532
        %v534 = vsel %vm367, %v525, %v526
        %v535 = vsel %vm528, %v516, %v534
        %540 = vst [vmem:[#allocation3 + $0x100] sm:$0xff] %v529
        %541 = vst [vmem:[#allocation3 + $0x120] sm:$0xff] %v531
        %542 = vst [vmem:[#allocation3 + $0x140] sm:$0xff] %v533
        %543 = vst [vmem:[#allocation3 + $0x160] sm:$0xff] %v535
        %v544 = vld [vmem:[#allocation2] sm:$0xff]
        %v545 = vld [vmem:[#allocation2 + $0x8] sm:$0xf]
        %v546 = vld [vmem:[#allocation2 + $0x10] sm:$0xff]
        %v547 = vld [vmem:[#allocation2 + $0x18] sm:$0xf]
        %v548 = vld [vmem:[#allocation2 + $0x20] sm:$0xff]
        %v549 = vld [vmem:[#allocation2 + $0x28] sm:$0xf]
        %v550 = vld [vmem:[#allocation2 + $0x30] sm:$0xff]
        %v551 = vld [vmem:[#allocation2 + $0x38] sm:$0xf]
        %v552 = vunpack.c.l.bf16 %v544
        %v553 = vunpack.c.h.bf16 %v544
        %v554 = vunpack.c.l.bf16 %v545
        %v555 = vunpack.c.l.bf16 %v546
        %v556 = vunpack.c.h.bf16 %v546
        %v557 = vunpack.c.l.bf16 %v547
        %v558 = vunpack.c.l.bf16 %v548
        %v559 = vunpack.c.h.bf16 %v548
        %v560 = vunpack.c.l.bf16 %v549
        %v561 = vunpack.c.l.bf16 %v550
        %v562 = vunpack.c.h.bf16 %v550
        %v563 = vunpack.c.l.bf16 %v551
        %564 = vrot.lane.b32.xlu0 %v302, 127
        %v565 = vpop.permute.xlu0 %564
        %566 = vrot.lane.b32.xlu0 %v303, 127
        %v567 = vpop.permute.xlu0 %566
        %vm568 = vcmask 1039360
        %v569 = vsel %vm568, %v565, %v567
        %v573 = vmul.f32 %v552, %v565
        %v574 = vmul.f32 %v553, %v569
        %v575 = vmul.f32 %v554, %v567
        %v576 = vmul.f32 %v555, %v565
        %v577 = vmul.f32 %v556, %v569
        %v578 = vmul.f32 %v557, %v567
        %v579 = vmul.f32 %v558, %v565
        %v580 = vmul.f32 %v559, %v569
        %v581 = vmul.f32 %v560, %v567
        %v582 = vmul.f32 %v561, %v565
        %v583 = vmul.f32 %v562, %v569
        %v584 = vmul.f32 %v563, %v567
        %v585 = vpack.c.bf16 %v574, %v573
        %v586 = vpack.c.bf16 %v575, %v575
        %v587 = vpack.c.bf16 %v577, %v576
        %v588 = vpack.c.bf16 %v578, %v578
        %v589 = vpack.c.bf16 %v580, %v579
        %v590 = vpack.c.bf16 %v581, %v581
        %v591 = vpack.c.bf16 %v583, %v582
        %v592 = vpack.c.bf16 %v584, %v584
        %601 = vrot.lane.b32.xlu0 %v585, 1
        %v602 = vpop.permute.xlu0 %601
        %603 = vrot.lane.b32.xlu0 %v586, 1
        %v604 = vpop.permute.xlu0 %603
        %605 = vrot.lane.b32.xlu0 %v587, 1
        %v606 = vpop.permute.xlu0 %605
        %607 = vrot.lane.b32.xlu0 %v588, 1
        %v608 = vpop.permute.xlu0 %607
        %609 = vrot.lane.b32.xlu0 %v589, 1
        %v610 = vpop.permute.xlu0 %609
        %611 = vrot.lane.b32.xlu0 %v590, 1
        %v612 = vpop.permute.xlu0 %611
        %613 = vrot.lane.b32.xlu0 %v591, 1
        %v614 = vpop.permute.xlu0 %613
        %615 = vrot.lane.b32.xlu0 %v592, 1
        %v616 = vpop.permute.xlu0 %615
        %v617 = vrot.slane %v602, 4
        %v618 = vrot.slane %v604, 4
        %v619 = vrot.slane %v606, 4
        %v620 = vrot.slane %v608, 4
        %v621 = vrot.slane %v610, 4
        %v622 = vrot.slane %v612, 4
        %v623 = vrot.slane %v614, 4
        %v624 = vrot.slane %v616, 4
        %v625 = vsel %vm367, %v617, %v618
        %vm626 = vcmask 7168
        %v627 = vsel %vm626, %v602, %v625
        %v628 = vsel %vm367, %v619, %v620
        %v629 = vsel %vm626, %v606, %v628
        %v630 = vsel %vm367, %v621, %v622
        %v631 = vsel %vm626, %v610, %v630
        %v632 = vsel %vm367, %v623, %v624
        %v633 = vsel %vm626, %v614, %v632
        %638 = vst [vmem:[#allocation3 + $0x180] sm:$0xff] %v627
        %639 = vst [vmem:[#allocation3 + $0x1a0] sm:$0xff] %v629
        %640 = vst [vmem:[#allocation3 + $0x1c0] sm:$0xff] %v631
        %641 = vst [vmem:[#allocation3 + $0x1e0] sm:$0xff] %v633
        %v642 = vld [vmem:[#allocation2 + $0x4] sm:$0xff]
        %v643 = vld [vmem:[#allocation2 + $0x14] sm:$0xff]
        %v644 = vld [vmem:[#allocation2 + $0x24] sm:$0xff]
        %v645 = vld [vmem:[#allocation2 + $0x34] sm:$0xff]
        %646 = vst [vmem:[#allocation3 + $0x200] sm:$0xff] %v642
        %647 = vst [vmem:[#allocation3 + $0x220] sm:$0xff] %v643
        %648 = vst [vmem:[#allocation3 + $0x240] sm:$0xff] %v644
        %649 = vst [vmem:[#allocation3 + $0x260] sm:$0xff] %v645
        %v650 = vld [vmem:[#allocation2 + $0x4] sm:$0xff]
        %v651 = vld [vmem:[#allocation2 + $0xc] sm:$0xf]
        %v652 = vld [vmem:[#allocation2 + $0x14] sm:$0xff]
        %v653 = vld [vmem:[#allocation2 + $0x1c] sm:$0xf]
        %v654 = vld [vmem:[#allocation2 + $0x24] sm:$0xff]
        %v655 = vld [vmem:[#allocation2 + $0x2c] sm:$0xf]
        %v656 = vld [vmem:[#allocation2 + $0x34] sm:$0xff]
        %v657 = vld [vmem:[#allocation2 + $0x3c] sm:$0xf]
        %v658 = vunpack.c.l.bf16 %v650
        %v659 = vunpack.c.h.bf16 %v650
        %v660 = vunpack.c.l.bf16 %v651
        %v661 = vunpack.c.l.bf16 %v652
        %v662 = vunpack.c.h.bf16 %v652
        %v663 = vunpack.c.l.bf16 %v653
        %v664 = vunpack.c.l.bf16 %v654
        %v665 = vunpack.c.h.bf16 %v654
        %v666 = vunpack.c.l.bf16 %v655
        %v667 = vunpack.c.l.bf16 %v656
        %v668 = vunpack.c.h.bf16 %v656
        %v669 = vunpack.c.l.bf16 %v657
        %670 = vrot.lane.b32.xlu0 %v462, 1
        %v671 = vpop.permute.xlu0 %670
        %672 = vrot.lane.b32.xlu0 %v463, 1
        %v673 = vpop.permute.xlu0 %672
        %vm674 = vcmask 7168
        %v675 = vsel %vm674, %v671, %v673
        %v679 = vmul.f32 %v658, %v671
        %v680 = vmul.f32 %v659, %v675
        %v681 = vmul.f32 %v660, %v673
        %v682 = vmul.f32 %v661, %v671
        %v683 = vmul.f32 %v662, %v675
        %v684 = vmul.f32 %v663, %v673
        %v685 = vmul.f32 %v664, %v671
        %v686 = vmul.f32 %v665, %v675
        %v687 = vmul.f32 %v666, %v673
        %v688 = vmul.f32 %v667, %v671
        %v689 = vmul.f32 %v668, %v675
        %v690 = vmul.f32 %v669, %v673
        %v691 = vpack.c.bf16 %v680, %v679
        %v692 = vpack.c.bf16 %v681, %v681
        %v693 = vpack.c.bf16 %v683, %v682
        %v694 = vpack.c.bf16 %v684, %v684
        %v695 = vpack.c.bf16 %v686, %v685
        %v696 = vpack.c.bf16 %v687, %v687
        %v697 = vpack.c.bf16 %v689, %v688
        %v698 = vpack.c.bf16 %v690, %v690
        %707 = vrot.lane.b32.xlu0 %v691, 127
        %v708 = vpop.permute.xlu0 %707
        %709 = vrot.lane.b32.xlu0 %v692, 127
        %v710 = vpop.permute.xlu0 %709
        %711 = vrot.lane.b32.xlu0 %v693, 127
        %v712 = vpop.permute.xlu0 %711
        %713 = vrot.lane.b32.xlu0 %v694, 127
        %v714 = vpop.permute.xlu0 %713
        %715 = vrot.lane.b32.xlu0 %v695, 127
        %v716 = vpop.permute.xlu0 %715
        %717 = vrot.lane.b32.xlu0 %v696, 127
        %v718 = vpop.permute.xlu0 %717
        %719 = vrot.lane.b32.xlu0 %v697, 127
        %v720 = vpop.permute.xlu0 %719
        %721 = vrot.lane.b32.xlu0 %v698, 127
        %v722 = vpop.permute.xlu0 %721
        %v723 = vrot.slane %v708, 4
        %v724 = vrot.slane %v710, 4
        %v725 = vrot.slane %v712, 4
        %v726 = vrot.slane %v714, 4
        %v727 = vrot.slane %v716, 4
        %v728 = vrot.slane %v718, 4
        %v729 = vrot.slane %v720, 4
        %v730 = vrot.slane %v722, 4
        %v731 = vsel %vm367, %v723, %v724
        %vm732 = vcmask 1039360
        %v733 = vsel %vm732, %v708, %v731
        %v734 = vsel %vm367, %v725, %v726
        %v735 = vsel %vm732, %v712, %v734
        %v736 = vsel %vm367, %v727, %v728
        %v737 = vsel %vm732, %v716, %v736
        %v738 = vsel %vm367, %v729, %v730
        %v739 = vsel %vm732, %v720, %v738
        %744 = vst [vmem:[#allocation3 + $0x280] sm:$0xff] %v733
        %745 = vst [vmem:[#allocation3 + $0x2a0] sm:$0xff] %v735
        %746 = vst [vmem:[#allocation3 + $0x2c0] sm:$0xff] %v737
        %747 = vst [vmem:[#allocation3 + $0x2e0] sm:$0xff] %v739
        %v748 = vld [vmem:[#allocation2 + $0x4] sm:$0xff]
        %v749 = vld [vmem:[#allocation2 + $0xc] sm:$0xf]
        %v750 = vld [vmem:[#allocation2 + $0x14] sm:$0xff]
        %v751 = vld [vmem:[#allocation2 + $0x1c] sm:$0xf]
        %v752 = vld [vmem:[#allocation2 + $0x24] sm:$0xff]
        %v753 = vld [vmem:[#allocation2 + $0x2c] sm:$0xf]
        %v754 = vld [vmem:[#allocation2 + $0x34] sm:$0xff]
        %v755 = vld [vmem:[#allocation2 + $0x3c] sm:$0xf]
        %v756 = vunpack.c.l.bf16 %v748
        %v757 = vunpack.c.h.bf16 %v748
        %v758 = vunpack.c.l.bf16 %v749
        %v759 = vunpack.c.l.bf16 %v750
        %v760 = vunpack.c.h.bf16 %v750
        %v761 = vunpack.c.l.bf16 %v751
        %v762 = vunpack.c.l.bf16 %v752
        %v763 = vunpack.c.h.bf16 %v752
        %v764 = vunpack.c.l.bf16 %v753
        %v765 = vunpack.c.l.bf16 %v754
        %v766 = vunpack.c.h.bf16 %v754
        %v767 = vunpack.c.l.bf16 %v755
        %768 = vrot.lane.b32.xlu0 %v302, 15
        %v769 = vpop.permute.xlu0 %768
        %770 = vrot.lane.b32.xlu0 %v303, 15
        %v771 = vpop.permute.xlu0 %770
        %vm772 = vcmask 121856
        %v773 = vsel %vm772, %v769, %v771
        %v777 = vmul.f32 %v756, %v769
        %v778 = vmul.f32 %v757, %v773
        %v779 = vmul.f32 %v758, %v771
        %v780 = vmul.f32 %v759, %v769
        %v781 = vmul.f32 %v760, %v773
        %v782 = vmul.f32 %v761, %v771
        %v783 = vmul.f32 %v762, %v769
        %v784 = vmul.f32 %v763, %v773
        %v785 = vmul.f32 %v764, %v771
        %v786 = vmul.f32 %v765, %v769
        %v787 = vmul.f32 %v766, %v773
        %v788 = vmul.f32 %v767, %v771
        %v789 = vpack.c.bf16 %v778, %v777
        %v790 = vpack.c.bf16 %v779, %v779
        %v791 = vpack.c.bf16 %v781, %v780
        %v792 = vpack.c.bf16 %v782, %v782
        %v793 = vpack.c.bf16 %v784, %v783
        %v794 = vpack.c.bf16 %v785, %v785
        %v795 = vpack.c.bf16 %v787, %v786
        %v796 = vpack.c.bf16 %v788, %v788
        %805 = vrot.lane.b32.xlu0 %v789, 113
        %v806 = vpop.permute.xlu0 %805
        %807 = vrot.lane.b32.xlu0 %v790, 113
        %v808 = vpop.permute.xlu0 %807
        %809 = vrot.lane.b32.xlu0 %v791, 113
        %v810 = vpop.permute.xlu0 %809
        %811 = vrot.lane.b32.xlu0 %v792, 113
        %v812 = vpop.permute.xlu0 %811
        %813 = vrot.lane.b32.xlu0 %v793, 113
        %v814 = vpop.permute.xlu0 %813
        %815 = vrot.lane.b32.xlu0 %v794, 113
        %v816 = vpop.permute.xlu0 %815
        %817 = vrot.lane.b32.xlu0 %v795, 113
        %v818 = vpop.permute.xlu0 %817
        %819 = vrot.lane.b32.xlu0 %v796, 113
        %v820 = vpop.permute.xlu0 %819
        %v821 = vrot.slane %v806, 4
        %v822 = vrot.slane %v808, 4
        %v823 = vrot.slane %v810, 4
        %v824 = vrot.slane %v812, 4
        %v825 = vrot.slane %v814, 4
        %v826 = vrot.slane %v816, 4
        %v827 = vrot.slane %v818, 4
        %v828 = vrot.slane %v820, 4
        %v829 = vsel %vm367, %v821, %v822
        %vm830 = vcmask 924672
        %v831 = vsel %vm830, %v806, %v829
        %v832 = vsel %vm367, %v823, %v824
        %v833 = vsel %vm830, %v810, %v832
        %v834 = vsel %vm367, %v825, %v826
        %v835 = vsel %vm830, %v814, %v834
        %v836 = vsel %vm367, %v827, %v828
        %v837 = vsel %vm830, %v818, %v836
        %842 = vst [vmem:[#allocation3 + $0x300] sm:$0xff] %v831
        %843 = vst [vmem:[#allocation3 + $0x320] sm:$0xff] %v833
        %844 = vst [vmem:[#allocation3 + $0x340] sm:$0xff] %v835
        %845 = vst [vmem:[#allocation3 + $0x360] sm:$0xff] %v837
        %v846 = vld [vmem:[#allocation2 + $0x4] sm:$0xff]
        %v847 = vld [vmem:[#allocation2 + $0xc] sm:$0xf]
        %v848 = vld [vmem:[#allocation2 + $0x14] sm:$0xff]
        %v849 = vld [vmem:[#allocation2 + $0x1c] sm:$0xf]
        %v850 = vld [vmem:[#allocation2 + $0x24] sm:$0xff]
        %v851 = vld [vmem:[#allocation2 + $0x2c] sm:$0xf]
        %v852 = vld [vmem:[#allocation2 + $0x34] sm:$0xff]
        %v853 = vld [vmem:[#allocation2 + $0x3c] sm:$0xf]
        %862 = vrot.lane.b32.xlu0 %v846, 112
        %v863 = vpop.permute.xlu0 %862
        %864 = vrot.lane.b32.xlu0 %v847, 112
        %v865 = vpop.permute.xlu0 %864
        %866 = vrot.lane.b32.xlu0 %v848, 112
        %v867 = vpop.permute.xlu0 %866
        %868 = vrot.lane.b32.xlu0 %v849, 112
        %v869 = vpop.permute.xlu0 %868
        %870 = vrot.lane.b32.xlu0 %v850, 112
        %v871 = vpop.permute.xlu0 %870
        %872 = vrot.lane.b32.xlu0 %v851, 112
        %v873 = vpop.permute.xlu0 %872
        %874 = vrot.lane.b32.xlu0 %v852, 112
        %v875 = vpop.permute.xlu0 %874
        %876 = vrot.lane.b32.xlu0 %v853, 112
        %v877 = vpop.permute.xlu0 %876
        %v878 = vrot.slane %v863, 4
        %v879 = vrot.slane %v865, 4
        %v880 = vrot.slane %v867, 4
        %v881 = vrot.slane %v869, 4
        %v882 = vrot.slane %v871, 4
        %v883 = vrot.slane %v873, 4
        %v884 = vrot.slane %v875, 4
        %v885 = vrot.slane %v877, 4
        %v886 = vsel %vm367, %v878, %v879
        %vm887 = vcmask 916480
        %v888 = vsel %vm887, %v863, %v886
        %v889 = vsel %vm367, %v880, %v881
        %v890 = vsel %vm887, %v867, %v889
        %v891 = vsel %vm367, %v882, %v883
        %v892 = vsel %vm887, %v871, %v891
        %v893 = vsel %vm367, %v884, %v885
        %v894 = vsel %vm887, %v875, %v893
        %899 = vst [vmem:[#allocation3 + $0x380] sm:$0xff] %v888
        %900 = vst [vmem:[#allocation3 + $0x3a0] sm:$0xff] %v890
        %901 = vst [vmem:[#allocation3 + $0x3c0] sm:$0xff] %v892
        %902 = vst [vmem:[#allocation3 + $0x3e0] sm:$0xff] %v894
        %v903 = vld [vmem:[#allocation2 + $0x4] sm:$0xff]
        %v904 = vld [vmem:[#allocation2 + $0xc] sm:$0xf]
        %v905 = vld [vmem:[#allocation2 + $0x14] sm:$0xff]
        %v906 = vld [vmem:[#allocation2 + $0x1c] sm:$0xf]
        %v907 = vld [vmem:[#allocation2 + $0x24] sm:$0xff]
        %v908 = vld [vmem:[#allocation2 + $0x2c] sm:$0xf]
        %v909 = vld [vmem:[#allocation2 + $0x34] sm:$0xff]
        %v910 = vld [vmem:[#allocation2 + $0x3c] sm:$0xf]
        %v911 = vunpack.c.l.bf16 %v903
        %v912 = vunpack.c.h.bf16 %v903
        %v913 = vunpack.c.l.bf16 %v904
        %v914 = vunpack.c.l.bf16 %v905
        %v915 = vunpack.c.h.bf16 %v905
        %v916 = vunpack.c.l.bf16 %v906
        %v917 = vunpack.c.l.bf16 %v907
        %v918 = vunpack.c.h.bf16 %v907
        %v919 = vunpack.c.l.bf16 %v908
        %v920 = vunpack.c.l.bf16 %v909
        %v921 = vunpack.c.h.bf16 %v909
        %v922 = vunpack.c.l.bf16 %v910
        %923 = vrot.lane.b32.xlu0 %v462, 17
        %v924 = vpop.permute.xlu0 %923
        %925 = vrot.lane.b32.xlu0 %v463, 17
        %v926 = vpop.permute.xlu0 %925
        %vm927 = vcmask 138240
        %v928 = vsel %vm927, %v924, %v926
        %v932 = vmul.f32 %v911, %v924
        %v933 = vmul.f32 %v912, %v928
        %v934 = vmul.f32 %v913, %v926
        %v935 = vmul.f32 %v914, %v924
        %v936 = vmul.f32 %v915, %v928
        %v937 = vmul.f32 %v916, %v926
        %v938 = vmul.f32 %v917, %v924
        %v939 = vmul.f32 %v918, %v928
        %v940 = vmul.f32 %v919, %v926
        %v941 = vmul.f32 %v920, %v924
        %v942 = vmul.f32 %v921, %v928
        %v943 = vmul.f32 %v922, %v926
        %v944 = vpack.c.bf16 %v933, %v932
        %v945 = vpack.c.bf16 %v934, %v934
        %v946 = vpack.c.bf16 %v936, %v935
        %v947 = vpack.c.bf16 %v937, %v937
        %v948 = vpack.c.bf16 %v939, %v938
        %v949 = vpack.c.bf16 %v940, %v940
        %v950 = vpack.c.bf16 %v942, %v941
        %v951 = vpack.c.bf16 %v943, %v943
        %960 = vrot.lane.b32.xlu0 %v944, 111
        %v961 = vpop.permute.xlu0 %960
        %962 = vrot.lane.b32.xlu0 %v945, 111
        %v963 = vpop.permute.xlu0 %962
        %964 = vrot.lane.b32.xlu0 %v946, 111
        %v965 = vpop.permute.xlu0 %964
        %966 = vrot.lane.b32.xlu0 %v947, 111
        %v967 = vpop.permute.xlu0 %966
        %968 = vrot.lane.b32.xlu0 %v948, 111
        %v969 = vpop.permute.xlu0 %968
        %970 = vrot.lane.b32.xlu0 %v949, 111
        %v971 = vpop.permute.xlu0 %970
        %972 = vrot.lane.b32.xlu0 %v950, 111
        %v973 = vpop.permute.xlu0 %972
        %974 = vrot.lane.b32.xlu0 %v951, 111
        %v975 = vpop.permute.xlu0 %974
        %v976 = vrot.slane %v961, 4
        %v977 = vrot.slane %v963, 4
        %v978 = vrot.slane %v965, 4
        %v979 = vrot.slane %v967, 4
        %v980 = vrot.slane %v969, 4
        %v981 = vrot.slane %v971, 4
        %v982 = vrot.slane %v973, 4
        %v983 = vrot.slane %v975, 4
        %v984 = vsel %vm367, %v976, %v977
        %vm985 = vcmask 908288
        %v986 = vsel %vm985, %v961, %v984
        %v987 = vsel %vm367, %v978, %v979
        %v988 = vsel %vm985, %v965, %v987
        %v989 = vsel %vm367, %v980, %v981
        %v990 = vsel %vm985, %v969, %v989
        %v991 = vsel %vm367, %v982, %v983
        %v992 = vsel %vm985, %v973, %v991
        %997 = vst [vmem:[#allocation3 + $0x400] sm:$0xff] %v986
        %998 = vst [vmem:[#allocation3 + $0x420] sm:$0xff] %v988
        %999 = vst [vmem:[#allocation3 + $0x440] sm:$0xff] %v990
        %1000 = vst [vmem:[#allocation3 + $0x460] sm:$0xff] %v992
        %s1001 = scalar_lea.vmem %s180, 64 [#allocation6]
        %v1002 = vld [vmem:[%s1001] sm:$0xff]
        %v1003 = vld [vmem:[%s1001 + $0x8] sm:$0xff]
        %v1004 = vld [vmem:[%s1001 + $0x10] sm:$0xff]
        %v1005 = vld [vmem:[%s1001 + $0x18] sm:$0xff]
        %v1006 = vld [vmem:[%s1001 + $0x20] sm:$0xff]
        %v1007 = vld [vmem:[%s1001 + $0x28] sm:$0xff]
        %v1008 = vld [vmem:[%s1001 + $0x30] sm:$0xff]
        %v1009 = vld [vmem:[%s1001 + $0x38] sm:$0xff]
        %v1010 = vpack.c.bf16 %v1003, %v1002
        %v1011 = vpack.c.bf16 %v1005, %v1004
        %v1012 = vpack.c.bf16 %v1007, %v1006
        %v1013 = vpack.c.bf16 %v1009, %v1008
        %1014 = vst [vmem:[#allocation2 + $0x4] sm:$0xff] %v1010
        %1015 = vst [vmem:[#allocation2 + $0x14] sm:$0xff] %v1011
        %1016 = vst [vmem:[#allocation2 + $0x24] sm:$0xff] %v1012
        %1017 = vst [vmem:[#allocation2 + $0x34] sm:$0xff] %v1013
        %v1018 = vld [vmem:[#allocation2] sm:$0xff]
        %v1019 = vld [vmem:[#allocation2 + $0x8] sm:$0xf]
        %v1020 = vld [vmem:[#allocation2 + $0x10] sm:$0xff]
        %v1021 = vld [vmem:[#allocation2 + $0x18] sm:$0xf]
        %v1022 = vld [vmem:[#allocation2 + $0x20] sm:$0xff]
        %v1023 = vld [vmem:[#allocation2 + $0x28] sm:$0xf]
        %v1024 = vld [vmem:[#allocation2 + $0x30] sm:$0xff]
        %v1025 = vld [vmem:[#allocation2 + $0x38] sm:$0xf]
        %v1026 = vunpack.c.l.bf16 %v1018
        %v1027 = vunpack.c.h.bf16 %v1018
        %v1028 = vunpack.c.l.bf16 %v1019
        %v1029 = vunpack.c.l.bf16 %v1020
        %v1030 = vunpack.c.h.bf16 %v1020
        %v1031 = vunpack.c.l.bf16 %v1021
        %v1032 = vunpack.c.l.bf16 %v1022
        %v1033 = vunpack.c.h.bf16 %v1022
        %v1034 = vunpack.c.l.bf16 %v1023
        %v1035 = vunpack.c.l.bf16 %v1024
        %v1036 = vunpack.c.h.bf16 %v1024
        %v1037 = vunpack.c.l.bf16 %v1025
        %v1038 = vmul.f32 %v1026, %v307
        %v1039 = vmul.f32 %v1027, %v311
        %v1040 = vmul.f32 %v1028, %v309
        %v1041 = vmul.f32 %v1029, %v307
        %v1042 = vmul.f32 %v1030, %v311
        %v1043 = vmul.f32 %v1031, %v309
        %v1044 = vmul.f32 %v1032, %v307
        %v1045 = vmul.f32 %v1033, %v311
        %v1046 = vmul.f32 %v1034, %v309
        %v1047 = vmul.f32 %v1035, %v307
        %v1048 = vmul.f32 %v1036, %v311
        %v1049 = vmul.f32 %v1037, %v309
        %v1050 = vpack.c.bf16 %v1039, %v1038
        %v1051 = vpack.c.bf16 %v1040, %v1040
        %v1052 = vpack.c.bf16 %v1042, %v1041
        %v1053 = vpack.c.bf16 %v1043, %v1043
        %v1054 = vpack.c.bf16 %v1045, %v1044
        %v1055 = vpack.c.bf16 %v1046, %v1046
        %v1056 = vpack.c.bf16 %v1048, %v1047
        %v1057 = vpack.c.bf16 %v1049, %v1049
        %1066 = vrot.lane.b32.xlu0 %v1050, 17
        %v1067 = vpop.permute.xlu0 %1066
        %1068 = vrot.lane.b32.xlu0 %v1051, 17
        %v1069 = vpop.permute.xlu0 %1068
        %1070 = vrot.lane.b32.xlu0 %v1052, 17
        %v1071 = vpop.permute.xlu0 %1070
        %1072 = vrot.lane.b32.xlu0 %v1053, 17
        %v1073 = vpop.permute.xlu0 %1072
        %1074 = vrot.lane.b32.xlu0 %v1054, 17
        %v1075 = vpop.permute.xlu0 %1074
        %1076 = vrot.lane.b32.xlu0 %v1055, 17
        %v1077 = vpop.permute.xlu0 %1076
        %1078 = vrot.lane.b32.xlu0 %v1056, 17
        %v1079 = vpop.permute.xlu0 %1078
        %1080 = vrot.lane.b32.xlu0 %v1057, 17
        %v1081 = vpop.permute.xlu0 %1080
        %v1082 = vrot.slane %v1067, 4
        %v1083 = vrot.slane %v1069, 4
        %v1084 = vrot.slane %v1071, 4
        %v1085 = vrot.slane %v1073, 4
        %v1086 = vrot.slane %v1075, 4
        %v1087 = vrot.slane %v1077, 4
        %v1088 = vrot.slane %v1079, 4
        %v1089 = vrot.slane %v1081, 4
        %v1090 = vsel %vm367, %v1082, %v1083
        %v1091 = vsel %vm369, %v1067, %v1090
        %v1092 = vsel %vm367, %v1084, %v1085
        %v1093 = vsel %vm369, %v1071, %v1092
        %v1094 = vsel %vm367, %v1086, %v1087
        %v1095 = vsel %vm369, %v1075, %v1094
        %v1096 = vsel %vm367, %v1088, %v1089
        %v1097 = vsel %vm369, %v1079, %v1096
        %1102 = vst [vmem:[#allocation3 + $0x8] sm:$0xff] %v1091
        %1103 = vst [vmem:[#allocation3 + $0x28] sm:$0xff] %v1093
        %1104 = vst [vmem:[#allocation3 + $0x48] sm:$0xff] %v1095
        %1105 = vst [vmem:[#allocation3 + $0x68] sm:$0xff] %v1097
        %v1106 = vld [vmem:[#allocation2] sm:$0xff]
        %v1107 = vld [vmem:[#allocation2 + $0x8] sm:$0xf]
        %v1108 = vld [vmem:[#allocation2 + $0x10] sm:$0xff]
        %v1109 = vld [vmem:[#allocation2 + $0x18] sm:$0xf]
        %v1110 = vld [vmem:[#allocation2 + $0x20] sm:$0xff]
        %v1111 = vld [vmem:[#allocation2 + $0x28] sm:$0xf]
        %v1112 = vld [vmem:[#allocation2 + $0x30] sm:$0xff]
        %v1113 = vld [vmem:[#allocation2 + $0x38] sm:$0xf]
        %1122 = vrot.lane.b32.xlu0 %v1106, 16
        %v1123 = vpop.permute.xlu0 %1122
        %1124 = vrot.lane.b32.xlu0 %v1107, 16
        %v1125 = vpop.permute.xlu0 %1124
        %1126 = vrot.lane.b32.xlu0 %v1108, 16
        %v1127 = vpop.permute.xlu0 %1126
        %1128 = vrot.lane.b32.xlu0 %v1109, 16
        %v1129 = vpop.permute.xlu0 %1128
        %1130 = vrot.lane.b32.xlu0 %v1110, 16
        %v1131 = vpop.permute.xlu0 %1130
        %1132 = vrot.lane.b32.xlu0 %v1111, 16
        %v1133 = vpop.permute.xlu0 %1132
        %1134 = vrot.lane.b32.xlu0 %v1112, 16
        %v1135 = vpop.permute.xlu0 %1134
        %1136 = vrot.lane.b32.xlu0 %v1113, 16
        %v1137 = vpop.permute.xlu0 %1136
        %v1138 = vrot.slane %v1123, 4
        %v1139 = vrot.slane %v1125, 4
        %v1140 = vrot.slane %v1127, 4
        %v1141 = vrot.slane %v1129, 4
        %v1142 = vrot.slane %v1131, 4
        %v1143 = vrot.slane %v1133, 4
        %v1144 = vrot.slane %v1135, 4
        %v1145 = vrot.slane %v1137, 4
        %v1146 = vsel %vm367, %v1138, %v1139
        %v1147 = vsel %vm426, %v1123, %v1146
        %v1148 = vsel %vm367, %v1140, %v1141
        %v1149 = vsel %vm426, %v1127, %v1148
        %v1150 = vsel %vm367, %v1142, %v1143
        %v1151 = vsel %vm426, %v1131, %v1150
        %v1152 = vsel %vm367, %v1144, %v1145
        %v1153 = vsel %vm426, %v1135, %v1152
        %1158 = vst [vmem:[#allocation3 + $0x88] sm:$0xff] %v1147
        %1159 = vst [vmem:[#allocation3 + $0xa8] sm:$0xff] %v1149
        %1160 = vst [vmem:[#allocation3 + $0xc8] sm:$0xff] %v1151
        %1161 = vst [vmem:[#allocation3 + $0xe8] sm:$0xff] %v1153
        %v1162 = vld [vmem:[#allocation2] sm:$0xff]
        %v1163 = vld [vmem:[#allocation2 + $0x8] sm:$0xf]
        %v1164 = vld [vmem:[#allocation2 + $0x10] sm:$0xff]
        %v1165 = vld [vmem:[#allocation2 + $0x18] sm:$0xf]
        %v1166 = vld [vmem:[#allocation2 + $0x20] sm:$0xff]
        %v1167 = vld [vmem:[#allocation2 + $0x28] sm:$0xf]
        %v1168 = vld [vmem:[#allocation2 + $0x30] sm:$0xff]
        %v1169 = vld [vmem:[#allocation2 + $0x38] sm:$0xf]
        %v1170 = vunpack.c.l.bf16 %v1162
        %v1171 = vunpack.c.h.bf16 %v1162
        %v1172 = vunpack.c.l.bf16 %v1163
        %v1173 = vunpack.c.l.bf16 %v1164
        %v1174 = vunpack.c.h.bf16 %v1164
        %v1175 = vunpack.c.l.bf16 %v1165
        %v1176 = vunpack.c.l.bf16 %v1166
        %v1177 = vunpack.c.h.bf16 %v1166
        %v1178 = vunpack.c.l.bf16 %v1167
        %v1179 = vunpack.c.l.bf16 %v1168
        %v1180 = vunpack.c.h.bf16 %v1168
        %v1181 = vunpack.c.l.bf16 %v1169
        %v1182 = vmul.f32 %v1170, %v467
        %v1183 = vmul.f32 %v1171, %v471
        %v1184 = vmul.f32 %v1172, %v469
        %v1185 = vmul.f32 %v1173, %v467
        %v1186 = vmul.f32 %v1174, %v471
        %v1187 = vmul.f32 %v1175, %v469
        %v1188 = vmul.f32 %v1176, %v467
        %v1189 = vmul.f32 %v1177, %v471
        %v1190 = vmul.f32 %v1178, %v469
        %v1191 = vmul.f32 %v1179, %v467
        %v1192 = vmul.f32 %v1180, %v471
        %v1193 = vmul.f32 %v1181, %v469
        %v1194 = vpack.c.bf16 %v1183, %v1182
        %v1195 = vpack.c.bf16 %v1184, %v1184
        %v1196 = vpack.c.bf16 %v1186, %v1185
        %v1197 = vpack.c.bf16 %v1187, %v1187
        %v1198 = vpack.c.bf16 %v1189, %v1188
        %v1199 = vpack.c.bf16 %v1190, %v1190
        %v1200 = vpack.c.bf16 %v1192, %v1191
        %v1201 = vpack.c.bf16 %v1193, %v1193
        %1210 = vrot.lane.b32.xlu0 %v1194, 15
        %v1211 = vpop.permute.xlu0 %1210
        %1212 = vrot.lane.b32.xlu0 %v1195, 15
        %v1213 = vpop.permute.xlu0 %1212
        %1214 = vrot.lane.b32.xlu0 %v1196, 15
        %v1215 = vpop.permute.xlu0 %1214
        %1216 = vrot.lane.b32.xlu0 %v1197, 15
        %v1217 = vpop.permute.xlu0 %1216
        %1218 = vrot.lane.b32.xlu0 %v1198, 15
        %v1219 = vpop.permute.xlu0 %1218
        %1220 = vrot.lane.b32.xlu0 %v1199, 15
        %v1221 = vpop.permute.xlu0 %1220
        %1222 = vrot.lane.b32.xlu0 %v1200, 15
        %v1223 = vpop.permute.xlu0 %1222
        %1224 = vrot.lane.b32.xlu0 %v1201, 15
        %v1225 = vpop.permute.xlu0 %1224
        %v1226 = vrot.slane %v1211, 4
        %v1227 = vrot.slane %v1213, 4
        %v1228 = vrot.slane %v1215, 4
        %v1229 = vrot.slane %v1217, 4
        %v1230 = vrot.slane %v1219, 4
        %v1231 = vrot.slane %v1221, 4
        %v1232 = vrot.slane %v1223, 4
        %v1233 = vrot.slane %v1225, 4
        %v1234 = vsel %vm367, %v1226, %v1227
        %v1235 = vsel %vm528, %v1211, %v1234
        %v1236 = vsel %vm367, %v1228, %v1229
        %v1237 = vsel %vm528, %v1215, %v1236
        %v1238 = vsel %vm367, %v1230, %v1231
        %v1239 = vsel %vm528, %v1219, %v1238
        %v1240 = vsel %vm367, %v1232, %v1233
        %v1241 = vsel %vm528, %v1223, %v1240
        %1246 = vst [vmem:[#allocation3 + $0x108] sm:$0xff] %v1235
        %1247 = vst [vmem:[#allocation3 + $0x128] sm:$0xff] %v1237
        %1248 = vst [vmem:[#allocation3 + $0x148] sm:$0xff] %v1239
        %1249 = vst [vmem:[#allocation3 + $0x168] sm:$0xff] %v1241
        %v1250 = vld [vmem:[#allocation2] sm:$0xff]
        %v1251 = vld [vmem:[#allocation2 + $0x8] sm:$0xf]
        %v1252 = vld [vmem:[#allocation2 + $0x10] sm:$0xff]
        %v1253 = vld [vmem:[#allocation2 + $0x18] sm:$0xf]
        %v1254 = vld [vmem:[#allocation2 + $0x20] sm:$0xff]
        %v1255 = vld [vmem:[#allocation2 + $0x28] sm:$0xf]
        %v1256 = vld [vmem:[#allocation2 + $0x30] sm:$0xff]
        %v1257 = vld [vmem:[#allocation2 + $0x38] sm:$0xf]
        %v1258 = vunpack.c.l.bf16 %v1250
        %v1259 = vunpack.c.h.bf16 %v1250
        %v1260 = vunpack.c.l.bf16 %v1251
        %v1261 = vunpack.c.l.bf16 %v1252
        %v1262 = vunpack.c.h.bf16 %v1252
        %v1263 = vunpack.c.l.bf16 %v1253
        %v1264 = vunpack.c.l.bf16 %v1254
        %v1265 = vunpack.c.h.bf16 %v1254
        %v1266 = vunpack.c.l.bf16 %v1255
        %v1267 = vunpack.c.l.bf16 %v1256
        %v1268 = vunpack.c.h.bf16 %v1256
        %v1269 = vunpack.c.l.bf16 %v1257
        %v1270 = vmul.f32 %v1258, %v565
        %v1271 = vmul.f32 %v1259, %v569
        %v1272 = vmul.f32 %v1260, %v567
        %v1273 = vmul.f32 %v1261, %v565
        %v1274 = vmul.f32 %v1262, %v569
        %v1275 = vmul.f32 %v1263, %v567
        %v1276 = vmul.f32 %v1264, %v565
        %v1277 = vmul.f32 %v1265, %v569
        %v1278 = vmul.f32 %v1266, %v567
        %v1279 = vmul.f32 %v1267, %v565
        %v1280 = vmul.f32 %v1268, %v569
        %v1281 = vmul.f32 %v1269, %v567
        %v1282 = vpack.c.bf16 %v1271, %v1270
        %v1283 = vpack.c.bf16 %v1272, %v1272
        %v1284 = vpack.c.bf16 %v1274, %v1273
        %v1285 = vpack.c.bf16 %v1275, %v1275
        %v1286 = vpack.c.bf16 %v1277, %v1276
        %v1287 = vpack.c.bf16 %v1278, %v1278
        %v1288 = vpack.c.bf16 %v1280, %v1279
        %v1289 = vpack.c.bf16 %v1281, %v1281
        %1298 = vrot.lane.b32.xlu0 %v1282, 1
        %v1299 = vpop.permute.xlu0 %1298
        %1300 = vrot.lane.b32.xlu0 %v1283, 1
        %v1301 = vpop.permute.xlu0 %1300
        %1302 = vrot.lane.b32.xlu0 %v1284, 1
        %v1303 = vpop.permute.xlu0 %1302
        %1304 = vrot.lane.b32.xlu0 %v1285, 1
        %v1305 = vpop.permute.xlu0 %1304
        %1306 = vrot.lane.b32.xlu0 %v1286, 1
        %v1307 = vpop.permute.xlu0 %1306
        %1308 = vrot.lane.b32.xlu0 %v1287, 1
        %v1309 = vpop.permute.xlu0 %1308
        %1310 = vrot.lane.b32.xlu0 %v1288, 1
        %v1311 = vpop.permute.xlu0 %1310
        %1312 = vrot.lane.b32.xlu0 %v1289, 1
        %v1313 = vpop.permute.xlu0 %1312
        %v1314 = vrot.slane %v1299, 4
        %v1315 = vrot.slane %v1301, 4
        %v1316 = vrot.slane %v1303, 4
        %v1317 = vrot.slane %v1305, 4
        %v1318 = vrot.slane %v1307, 4
        %v1319 = vrot.slane %v1309, 4
        %v1320 = vrot.slane %v1311, 4
        %v1321 = vrot.slane %v1313, 4
        %v1322 = vsel %vm367, %v1314, %v1315
        %v1323 = vsel %vm626, %v1299, %v1322
        %v1324 = vsel %vm367, %v1316, %v1317
        %v1325 = vsel %vm626, %v1303, %v1324
        %v1326 = vsel %vm367, %v1318, %v1319
        %v1327 = vsel %vm626, %v1307, %v1326
        %v1328 = vsel %vm367, %v1320, %v1321
        %v1329 = vsel %vm626, %v1311, %v1328
        %1334 = vst [vmem:[#allocation3 + $0x188] sm:$0xff] %v1323
        %1335 = vst [vmem:[#allocation3 + $0x1a8] sm:$0xff] %v1325
        %1336 = vst [vmem:[#allocation3 + $0x1c8] sm:$0xff] %v1327
        %1337 = vst [vmem:[#allocation3 + $0x1e8] sm:$0xff] %v1329
        %v1338 = vld [vmem:[#allocation2 + $0x4] sm:$0xff]
        %v1339 = vld [vmem:[#allocation2 + $0x14] sm:$0xff]
        %v1340 = vld [vmem:[#allocation2 + $0x24] sm:$0xff]
        %v1341 = vld [vmem:[#allocation2 + $0x34] sm:$0xff]
        %1342 = vst [vmem:[#allocation3 + $0x208] sm:$0xff] %v1338
        %1343 = vst [vmem:[#allocation3 + $0x228] sm:$0xff] %v1339
        %1344 = vst [vmem:[#allocation3 + $0x248] sm:$0xff] %v1340
        %1345 = vst [vmem:[#allocation3 + $0x268] sm:$0xff] %v1341
        %v1346 = vld [vmem:[#allocation2 + $0x4] sm:$0xff]
        %v1347 = vld [vmem:[#allocation2 + $0xc] sm:$0xf]
        %v1348 = vld [vmem:[#allocation2 + $0x14] sm:$0xff]
        %v1349 = vld [vmem:[#allocation2 + $0x1c] sm:$0xf]
        %v1350 = vld [vmem:[#allocation2 + $0x24] sm:$0xff]
        %v1351 = vld [vmem:[#allocation2 + $0x2c] sm:$0xf]
        %v1352 = vld [vmem:[#allocation2 + $0x34] sm:$0xff]
        %v1353 = vld [vmem:[#allocation2 + $0x3c] sm:$0xf]
        %v1354 = vunpack.c.l.bf16 %v1346
        %v1355 = vunpack.c.h.bf16 %v1346
        %v1356 = vunpack.c.l.bf16 %v1347
        %v1357 = vunpack.c.l.bf16 %v1348
        %v1358 = vunpack.c.h.bf16 %v1348
        %v1359 = vunpack.c.l.bf16 %v1349
        %v1360 = vunpack.c.l.bf16 %v1350
        %v1361 = vunpack.c.h.bf16 %v1350
        %v1362 = vunpack.c.l.bf16 %v1351
        %v1363 = vunpack.c.l.bf16 %v1352
        %v1364 = vunpack.c.h.bf16 %v1352
        %v1365 = vunpack.c.l.bf16 %v1353
        %v1366 = vmul.f32 %v1354, %v671
        %v1367 = vmul.f32 %v1355, %v675
        %v1368 = vmul.f32 %v1356, %v673
        %v1369 = vmul.f32 %v1357, %v671
        %v1370 = vmul.f32 %v1358, %v675
        %v1371 = vmul.f32 %v1359, %v673
        %v1372 = vmul.f32 %v1360, %v671
        %v1373 = vmul.f32 %v1361, %v675
        %v1374 = vmul.f32 %v1362, %v673
        %v1375 = vmul.f32 %v1363, %v671
        %v1376 = vmul.f32 %v1364, %v675
        %v1377 = vmul.f32 %v1365, %v673
        %v1378 = vpack.c.bf16 %v1367, %v1366
        %v1379 = vpack.c.bf16 %v1368, %v1368
        %v1380 = vpack.c.bf16 %v1370, %v1369
        %v1381 = vpack.c.bf16 %v1371, %v1371
        %v1382 = vpack.c.bf16 %v1373, %v1372
        %v1383 = vpack.c.bf16 %v1374, %v1374
        %v1384 = vpack.c.bf16 %v1376, %v1375
        %v1385 = vpack.c.bf16 %v1377, %v1377
        %1394 = vrot.lane.b32.xlu0 %v1378, 127
        %v1395 = vpop.permute.xlu0 %1394
        %1396 = vrot.lane.b32.xlu0 %v1379, 127
        %v1397 = vpop.permute.xlu0 %1396
        %1398 = vrot.lane.b32.xlu0 %v1380, 127
        %v1399 = vpop.permute.xlu0 %1398
        %1400 = vrot.lane.b32.xlu0 %v1381, 127
        %v1401 = vpop.permute.xlu0 %1400
        %1402 = vrot.lane.b32.xlu0 %v1382, 127
        %v1403 = vpop.permute.xlu0 %1402
        %1404 = vrot.lane.b32.xlu0 %v1383, 127
        %v1405 = vpop.permute.xlu0 %1404
        %1406 = vrot.lane.b32.xlu0 %v1384, 127
        %v1407 = vpop.permute.xlu0 %1406
        %1408 = vrot.lane.b32.xlu0 %v1385, 127
        %v1409 = vpop.permute.xlu0 %1408
        %v1410 = vrot.slane %v1395, 4
        %v1411 = vrot.slane %v1397, 4
        %v1412 = vrot.slane %v1399, 4
        %v1413 = vrot.slane %v1401, 4
        %v1414 = vrot.slane %v1403, 4
        %v1415 = vrot.slane %v1405, 4
        %v1416 = vrot.slane %v1407, 4
        %v1417 = vrot.slane %v1409, 4
        %v1418 = vsel %vm367, %v1410, %v1411
        %v1419 = vsel %vm732, %v1395, %v1418
        %v1420 = vsel %vm367, %v1412, %v1413
        %v1421 = vsel %vm732, %v1399, %v1420
        %v1422 = vsel %vm367, %v1414, %v1415
        %v1423 = vsel %vm732, %v1403, %v1422
        %v1424 = vsel %vm367, %v1416, %v1417
        %v1425 = vsel %vm732, %v1407, %v1424
        %1430 = vst [vmem:[#allocation3 + $0x288] sm:$0xff] %v1419
        %1431 = vst [vmem:[#allocation3 + $0x2a8] sm:$0xff] %v1421
        %1432 = vst [vmem:[#allocation3 + $0x2c8] sm:$0xff] %v1423
        %1433 = vst [vmem:[#allocation3 + $0x2e8] sm:$0xff] %v1425
        %v1434 = vld [vmem:[#allocation2 + $0x4] sm:$0xff]
        %v1435 = vld [vmem:[#allocation2 + $0xc] sm:$0xf]
        %v1436 = vld [vmem:[#allocation2 + $0x14] sm:$0xff]
        %v1437 = vld [vmem:[#allocation2 + $0x1c] sm:$0xf]
        %v1438 = vld [vmem:[#allocation2 + $0x24] sm:$0xff]
        %v1439 = vld [vmem:[#allocation2 + $0x2c] sm:$0xf]
        %v1440 = vld [vmem:[#allocation2 + $0x34] sm:$0xff]
        %v1441 = vld [vmem:[#allocation2 + $0x3c] sm:$0xf]
        %v1442 = vunpack.c.l.bf16 %v1434
        %v1443 = vunpack.c.h.bf16 %v1434
        %v1444 = vunpack.c.l.bf16 %v1435
        %v1445 = vunpack.c.l.bf16 %v1436
        %v1446 = vunpack.c.h.bf16 %v1436
        %v1447 = vunpack.c.l.bf16 %v1437
        %v1448 = vunpack.c.l.bf16 %v1438
        %v1449 = vunpack.c.h.bf16 %v1438
        %v1450 = vunpack.c.l.bf16 %v1439
        %v1451 = vunpack.c.l.bf16 %v1440
        %v1452 = vunpack.c.h.bf16 %v1440
        %v1453 = vunpack.c.l.bf16 %v1441
        %v1454 = vmul.f32 %v1442, %v769
        %v1455 = vmul.f32 %v1443, %v773
        %v1456 = vmul.f32 %v1444, %v771
        %v1457 = vmul.f32 %v1445, %v769
        %v1458 = vmul.f32 %v1446, %v773
        %v1459 = vmul.f32 %v1447, %v771
        %v1460 = vmul.f32 %v1448, %v769
        %v1461 = vmul.f32 %v1449, %v773
        %v1462 = vmul.f32 %v1450, %v771
        %v1463 = vmul.f32 %v1451, %v769
        %v1464 = vmul.f32 %v1452, %v773
        %v1465 = vmul.f32 %v1453, %v771
        %v1466 = vpack.c.bf16 %v1455, %v1454
        %v1467 = vpack.c.bf16 %v1456, %v1456
        %v1468 = vpack.c.bf16 %v1458, %v1457
        %v1469 = vpack.c.bf16 %v1459, %v1459
        %v1470 = vpack.c.bf16 %v1461, %v1460
        %v1471 = vpack.c.bf16 %v1462, %v1462
        %v1472 = vpack.c.bf16 %v1464, %v1463
        %v1473 = vpack.c.bf16 %v1465, %v1465
        %1482 = vrot.lane.b32.xlu0 %v1466, 113
        %v1483 = vpop.permute.xlu0 %1482
        %1484 = vrot.lane.b32.xlu0 %v1467, 113
        %v1485 = vpop.permute.xlu0 %1484
        %1486 = vrot.lane.b32.xlu0 %v1468, 113
        %v1487 = vpop.permute.xlu0 %1486
        %1488 = vrot.lane.b32.xlu0 %v1469, 113
        %v1489 = vpop.permute.xlu0 %1488
        %1490 = vrot.lane.b32.xlu0 %v1470, 113
        %v1491 = vpop.permute.xlu0 %1490
        %1492 = vrot.lane.b32.xlu0 %v1471, 113
        %v1493 = vpop.permute.xlu0 %1492
        %1494 = vrot.lane.b32.xlu0 %v1472, 113
        %v1495 = vpop.permute.xlu0 %1494
        %1496 = vrot.lane.b32.xlu0 %v1473, 113
        %v1497 = vpop.permute.xlu0 %1496
        %v1498 = vrot.slane %v1483, 4
        %v1499 = vrot.slane %v1485, 4
        %v1500 = vrot.slane %v1487, 4
        %v1501 = vrot.slane %v1489, 4
        %v1502 = vrot.slane %v1491, 4
        %v1503 = vrot.slane %v1493, 4
        %v1504 = vrot.slane %v1495, 4
        %v1505 = vrot.slane %v1497, 4
        %v1506 = vsel %vm367, %v1498, %v1499
        %v1507 = vsel %vm830, %v1483, %v1506
        %v1508 = vsel %vm367, %v1500, %v1501
        %v1509 = vsel %vm830, %v1487, %v1508
        %v1510 = vsel %vm367, %v1502, %v1503
        %v1511 = vsel %vm830, %v1491, %v1510
        %v1512 = vsel %vm367, %v1504, %v1505
        %v1513 = vsel %vm830, %v1495, %v1512
        %1518 = vst [vmem:[#allocation3 + $0x308] sm:$0xff] %v1507
        %1519 = vst [vmem:[#allocation3 + $0x328] sm:$0xff] %v1509
        %1520 = vst [vmem:[#allocation3 + $0x348] sm:$0xff] %v1511
        %1521 = vst [vmem:[#allocation3 + $0x368] sm:$0xff] %v1513
        %v1522 = vld [vmem:[#allocation2 + $0x4] sm:$0xff]
        %v1523 = vld [vmem:[#allocation2 + $0xc] sm:$0xf]
        %v1524 = vld [vmem:[#allocation2 + $0x14] sm:$0xff]
        %v1525 = vld [vmem:[#allocation2 + $0x1c] sm:$0xf]
        %v1526 = vld [vmem:[#allocation2 + $0x24] sm:$0xff]
        %v1527 = vld [vmem:[#allocation2 + $0x2c] sm:$0xf]
        %v1528 = vld [vmem:[#allocation2 + $0x34] sm:$0xff]
        %v1529 = vld [vmem:[#allocation2 + $0x3c] sm:$0xf]
        %1538 = vrot.lane.b32.xlu0 %v1522, 112
        %v1539 = vpop.permute.xlu0 %1538
        %1540 = vrot.lane.b32.xlu0 %v1523, 112
        %v1541 = vpop.permute.xlu0 %1540
        %1542 = vrot.lane.b32.xlu0 %v1524, 112
        %v1543 = vpop.permute.xlu0 %1542
        %1544 = vrot.lane.b32.xlu0 %v1525, 112
        %v1545 = vpop.permute.xlu0 %1544
        %1546 = vrot.lane.b32.xlu0 %v1526, 112
        %v1547 = vpop.permute.xlu0 %1546
        %1548 = vrot.lane.b32.xlu0 %v1527, 112
        %v1549 = vpop.permute.xlu0 %1548
        %1550 = vrot.lane.b32.xlu0 %v1528, 112
        %v1551 = vpop.permute.xlu0 %1550
        %1552 = vrot.lane.b32.xlu0 %v1529, 112
        %v1553 = vpop.permute.xlu0 %1552
        %v1554 = vrot.slane %v1539, 4
        %v1555 = vrot.slane %v1541, 4
        %v1556 = vrot.slane %v1543, 4
        %v1557 = vrot.slane %v1545, 4
        %v1558 = vrot.slane %v1547, 4
        %v1559 = vrot.slane %v1549, 4
        %v1560 = vrot.slane %v1551, 4
        %v1561 = vrot.slane %v1553, 4
        %v1562 = vsel %vm367, %v1554, %v1555
        %v1563 = vsel %vm887, %v1539, %v1562
        %v1564 = vsel %vm367, %v1556, %v1557
        %v1565 = vsel %vm887, %v1543, %v1564
        %v1566 = vsel %vm367, %v1558, %v1559
        %v1567 = vsel %vm887, %v1547, %v1566
        %v1568 = vsel %vm367, %v1560, %v1561
        %v1569 = vsel %vm887, %v1551, %v1568
        %1574 = vst [vmem:[#allocation3 + $0x388] sm:$0xff] %v1563
        %1575 = vst [vmem:[#allocation3 + $0x3a8] sm:$0xff] %v1565
        %1576 = vst [vmem:[#allocation3 + $0x3c8] sm:$0xff] %v1567
        %1577 = vst [vmem:[#allocation3 + $0x3e8] sm:$0xff] %v1569
        %v1578 = vld [vmem:[#allocation2 + $0x4] sm:$0xff]
        %v1579 = vld [vmem:[#allocation2 + $0xc] sm:$0xf]
        %v1580 = vld [vmem:[#allocation2 + $0x14] sm:$0xff]
        %v1581 = vld [vmem:[#allocation2 + $0x1c] sm:$0xf]
        %v1582 = vld [vmem:[#allocation2 + $0x24] sm:$0xff]
        %v1583 = vld [vmem:[#allocation2 + $0x2c] sm:$0xf]
        %v1584 = vld [vmem:[#allocation2 + $0x34] sm:$0xff]
        %v1585 = vld [vmem:[#allocation2 + $0x3c] sm:$0xf]
        %v1586 = vunpack.c.l.bf16 %v1578
        %v1587 = vunpack.c.h.bf16 %v1578
        %v1588 = vunpack.c.l.bf16 %v1579
        %v1589 = vunpack.c.l.bf16 %v1580
        %v1590 = vunpack.c.h.bf16 %v1580
        %v1591 = vunpack.c.l.bf16 %v1581
        %v1592 = vunpack.c.l.bf16 %v1582
        %v1593 = vunpack.c.h.bf16 %v1582
        %v1594 = vunpack.c.l.bf16 %v1583
        %v1595 = vunpack.c.l.bf16 %v1584
        %v1596 = vunpack.c.h.bf16 %v1584
        %v1597 = vunpack.c.l.bf16 %v1585
        %v1598 = vmul.f32 %v1586, %v924
        %v1599 = vmul.f32 %v1587, %v928
        %v1600 = vmul.f32 %v1588, %v926
        %v1601 = vmul.f32 %v1589, %v924
        %v1602 = vmul.f32 %v1590, %v928
        %v1603 = vmul.f32 %v1591, %v926
        %v1604 = vmul.f32 %v1592, %v924
        %v1605 = vmul.f32 %v1593, %v928
        %v1606 = vmul.f32 %v1594, %v926
        %v1607 = vmul.f32 %v1595, %v924
        %v1608 = vmul.f32 %v1596, %v928
        %v1609 = vmul.f32 %v1597, %v926
        %v1610 = vpack.c.bf16 %v1599, %v1598
        %v1611 = vpack.c.bf16 %v1600, %v1600
        %v1612 = vpack.c.bf16 %v1602, %v1601
        %v1613 = vpack.c.bf16 %v1603, %v1603
        %v1614 = vpack.c.bf16 %v1605, %v1604
        %v1615 = vpack.c.bf16 %v1606, %v1606
        %v1616 = vpack.c.bf16 %v1608, %v1607
        %v1617 = vpack.c.bf16 %v1609, %v1609
        %1626 = vrot.lane.b32.xlu0 %v1610, 111
        %v1627 = vpop.permute.xlu0 %1626
        %1628 = vrot.lane.b32.xlu0 %v1611, 111
        %v1629 = vpop.permute.xlu0 %1628
        %1630 = vrot.lane.b32.xlu0 %v1612, 111
        %v1631 = vpop.permute.xlu0 %1630
        %1632 = vrot.lane.b32.xlu0 %v1613, 111
        %v1633 = vpop.permute.xlu0 %1632
        %1634 = vrot.lane.b32.xlu0 %v1614, 111
        %v1635 = vpop.permute.xlu0 %1634
        %1636 = vrot.lane.b32.xlu0 %v1615, 111
        %v1637 = vpop.permute.xlu0 %1636
        %1638 = vrot.lane.b32.xlu0 %v1616, 111
        %v1639 = vpop.permute.xlu0 %1638
        %1640 = vrot.lane.b32.xlu0 %v1617, 111
        %v1641 = vpop.permute.xlu0 %1640
        %v1642 = vrot.slane %v1627, 4
        %v1643 = vrot.slane %v1629, 4
        %v1644 = vrot.slane %v1631, 4
        %v1645 = vrot.slane %v1633, 4
        %v1646 = vrot.slane %v1635, 4
        %v1647 = vrot.slane %v1637, 4
        %v1648 = vrot.slane %v1639, 4
        %v1649 = vrot.slane %v1641, 4
        %v1650 = vsel %vm367, %v1642, %v1643
        %v1651 = vsel %vm985, %v1627, %v1650
        %v1652 = vsel %vm367, %v1644, %v1645
        %v1653 = vsel %vm985, %v1631, %v1652
        %v1654 = vsel %vm367, %v1646, %v1647
        %v1655 = vsel %vm985, %v1635, %v1654
        %v1656 = vsel %vm367, %v1648, %v1649
        %v1657 = vsel %vm985, %v1639, %v1656
        %1662 = vst [vmem:[#allocation3 + $0x408] sm:$0xff] %v1651
        %1663 = vst [vmem:[#allocation3 + $0x428] sm:$0xff] %v1653
        %1664 = vst [vmem:[#allocation3 + $0x448] sm:$0xff] %v1655
        %1665 = vst [vmem:[#allocation3 + $0x468] sm:$0xff] %v1657
        %s1666 = scalar_lea.vmem %s180, 128 [#allocation6]
        %v1667 = vld [vmem:[%s1666] sm:$0xff]
        %v1668 = vld [vmem:[%s1666 + $0x8] sm:$0xff]
        %v1669 = vld [vmem:[%s1666 + $0x10] sm:$0xff]
        %v1670 = vld [vmem:[%s1666 + $0x18] sm:$0xff]
        %v1671 = vld [vmem:[%s1666 + $0x20] sm:$0xff]
        %v1672 = vld [vmem:[%s1666 + $0x28] sm:$0xff]
        %v1673 = vld [vmem:[%s1666 + $0x30] sm:$0xff]
        %v1674 = vld [vmem:[%s1666 + $0x38] sm:$0xff]
        %v1675 = vpack.c.bf16 %v1668, %v1667
        %v1676 = vpack.c.bf16 %v1670, %v1669
        %v1677 = vpack.c.bf16 %v1672, %v1671
        %v1678 = vpack.c.bf16 %v1674, %v1673
        %1679 = vst [vmem:[#allocation2 + $0x4] sm:$0xff] %v1675
        %1680 = vst [vmem:[#allocation2 + $0x14] sm:$0xff] %v1676
        %1681 = vst [vmem:[#allocation2 + $0x24] sm:$0xff] %v1677
        %1682 = vst [vmem:[#allocation2 + $0x34] sm:$0xff] %v1678
        %v1683 = vld [vmem:[#allocation2] sm:$0xff]
        %v1684 = vld [vmem:[#allocation2 + $0x8] sm:$0xf]
        %v1685 = vld [vmem:[#allocation2 + $0x10] sm:$0xff]
        %v1686 = vld [vmem:[#allocation2 + $0x18] sm:$0xf]
        %v1687 = vld [vmem:[#allocation2 + $0x20] sm:$0xff]
        %v1688 = vld [vmem:[#allocation2 + $0x28] sm:$0xf]
        %v1689 = vld [vmem:[#allocation2 + $0x30] sm:$0xff]
        %v1690 = vld [vmem:[#allocation2 + $0x38] sm:$0xf]
        %v1691 = vunpack.c.l.bf16 %v1683
        %v1692 = vunpack.c.h.bf16 %v1683
        %v1693 = vunpack.c.l.bf16 %v1684
        %v1694 = vunpack.c.l.bf16 %v1685
        %v1695 = vunpack.c.h.bf16 %v1685
        %v1696 = vunpack.c.l.bf16 %v1686
        %v1697 = vunpack.c.l.bf16 %v1687
        %v1698 = vunpack.c.h.bf16 %v1687
        %v1699 = vunpack.c.l.bf16 %v1688
        %v1700 = vunpack.c.l.bf16 %v1689
        %v1701 = vunpack.c.h.bf16 %v1689
        %v1702 = vunpack.c.l.bf16 %v1690
        %v1703 = vmul.f32 %v1691, %v307
        %v1704 = vmul.f32 %v1692, %v311
        %v1705 = vmul.f32 %v1693, %v309
        %v1706 = vmul.f32 %v1694, %v307
        %v1707 = vmul.f32 %v1695, %v311
        %v1708 = vmul.f32 %v1696, %v309
        %v1709 = vmul.f32 %v1697, %v307
        %v1710 = vmul.f32 %v1698, %v311
        %v1711 = vmul.f32 %v1699, %v309
        %v1712 = vmul.f32 %v1700, %v307
        %v1713 = vmul.f32 %v1701, %v311
        %v1714 = vmul.f32 %v1702, %v309
        %v1715 = vpack.c.bf16 %v1704, %v1703
        %v1716 = vpack.c.bf16 %v1705, %v1705
        %v1717 = vpack.c.bf16 %v1707, %v1706
        %v1718 = vpack.c.bf16 %v1708, %v1708
        %v1719 = vpack.c.bf16 %v1710, %v1709
        %v1720 = vpack.c.bf16 %v1711, %v1711
        %v1721 = vpack.c.bf16 %v1713, %v1712
        %v1722 = vpack.c.bf16 %v1714, %v1714
        %1731 = vrot.lane.b32.xlu0 %v1715, 17
        %v1732 = vpop.permute.xlu0 %1731
        %1733 = vrot.lane.b32.xlu0 %v1716, 17
        %v1734 = vpop.permute.xlu0 %1733
        %1735 = vrot.lane.b32.xlu0 %v1717, 17
        %v1736 = vpop.permute.xlu0 %1735
        %1737 = vrot.lane.b32.xlu0 %v1718, 17
        %v1738 = vpop.permute.xlu0 %1737
        %1739 = vrot.lane.b32.xlu0 %v1719, 17
        %v1740 = vpop.permute.xlu0 %1739
        %1741 = vrot.lane.b32.xlu0 %v1720, 17
        %v1742 = vpop.permute.xlu0 %1741
        %1743 = vrot.lane.b32.xlu0 %v1721, 17
        %v1744 = vpop.permute.xlu0 %1743
        %1745 = vrot.lane.b32.xlu0 %v1722, 17
        %v1746 = vpop.permute.xlu0 %1745
        %v1747 = vrot.slane %v1732, 4
        %v1748 = vrot.slane %v1734, 4
        %v1749 = vrot.slane %v1736, 4
        %v1750 = vrot.slane %v1738, 4
        %v1751 = vrot.slane %v1740, 4
        %v1752 = vrot.slane %v1742, 4
        %v1753 = vrot.slane %v1744, 4
        %v1754 = vrot.slane %v1746, 4
        %v1755 = vsel %vm367, %v1747, %v1748
        %v1756 = vsel %vm369, %v1732, %v1755
        %v1757 = vsel %vm367, %v1749, %v1750
        %v1758 = vsel %vm369, %v1736, %v1757
        %v1759 = vsel %vm367, %v1751, %v1752
        %v1760 = vsel %vm369, %v1740, %v1759
        %v1761 = vsel %vm367, %v1753, %v1754
        %v1762 = vsel %vm369, %v1744, %v1761
        %1767 = vst [vmem:[#allocation3 + $0x10] sm:$0xff] %v1756
        %1768 = vst [vmem:[#allocation3 + $0x30] sm:$0xff] %v1758
        %1769 = vst [vmem:[#allocation3 + $0x50] sm:$0xff] %v1760
        %1770 = vst [vmem:[#allocation3 + $0x70] sm:$0xff] %v1762
        %v1771 = vld [vmem:[#allocation2] sm:$0xff]
        %v1772 = vld [vmem:[#allocation2 + $0x8] sm:$0xf]
        %v1773 = vld [vmem:[#allocation2 + $0x10] sm:$0xff]
        %v1774 = vld [vmem:[#allocation2 + $0x18] sm:$0xf]
        %v1775 = vld [vmem:[#allocation2 + $0x20] sm:$0xff]
        %v1776 = vld [vmem:[#allocation2 + $0x28] sm:$0xf]
        %v1777 = vld [vmem:[#allocation2 + $0x30] sm:$0xff]
        %v1778 = vld [vmem:[#allocation2 + $0x38] sm:$0xf]
        %1787 = vrot.lane.b32.xlu0 %v1771, 16
        %v1788 = vpop.permute.xlu0 %1787
        %1789 = vrot.lane.b32.xlu0 %v1772, 16
        %v1790 = vpop.permute.xlu0 %1789
        %1791 = vrot.lane.b32.xlu0 %v1773, 16
        %v1792 = vpop.permute.xlu0 %1791
        %1793 = vrot.lane.b32.xlu0 %v1774, 16
        %v1794 = vpop.permute.xlu0 %1793
        %1795 = vrot.lane.b32.xlu0 %v1775, 16
        %v1796 = vpop.permute.xlu0 %1795
        %1797 = vrot.lane.b32.xlu0 %v1776, 16
        %v1798 = vpop.permute.xlu0 %1797
        %1799 = vrot.lane.b32.xlu0 %v1777, 16
        %v1800 = vpop.permute.xlu0 %1799
        %1801 = vrot.lane.b32.xlu0 %v1778, 16
        %v1802 = vpop.permute.xlu0 %1801
        %v1803 = vrot.slane %v1788, 4
        %v1804 = vrot.slane %v1790, 4
        %v1805 = vrot.slane %v1792, 4
        %v1806 = vrot.slane %v1794, 4
        %v1807 = vrot.slane %v1796, 4
        %v1808 = vrot.slane %v1798, 4
        %v1809 = vrot.slane %v1800, 4
        %v1810 = vrot.slane %v1802, 4
        %v1811 = vsel %vm367, %v1803, %v1804
        %v1812 = vsel %vm426, %v1788, %v1811
        %v1813 = vsel %vm367, %v1805, %v1806
        %v1814 = vsel %vm426, %v1792, %v1813
        %v1815 = vsel %vm367, %v1807, %v1808
        %v1816 = vsel %vm426, %v1796, %v1815
        %v1817 = vsel %vm367, %v1809, %v1810
        %v1818 = vsel %vm426, %v1800, %v1817
        %1823 = vst [vmem:[#allocation3 + $0x90] sm:$0xff] %v1812
        %1824 = vst [vmem:[#allocation3 + $0xb0] sm:$0xff] %v1814
        %1825 = vst [vmem:[#allocation3 + $0xd0] sm:$0xff] %v1816
        %1826 = vst [vmem:[#allocation3 + $0xf0] sm:$0xff] %v1818
        %v1827 = vld [vmem:[#allocation2] sm:$0xff]
        %v1828 = vld [vmem:[#allocation2 + $0x8] sm:$0xf]
        %v1829 = vld [vmem:[#allocation2 + $0x10] sm:$0xff]
        %v1830 = vld [vmem:[#allocation2 + $0x18] sm:$0xf]
        %v1831 = vld [vmem:[#allocation2 + $0x20] sm:$0xff]
        %v1832 = vld [vmem:[#allocation2 + $0x28] sm:$0xf]
        %v1833 = vld [vmem:[#allocation2 + $0x30] sm:$0xff]
        %v1834 = vld [vmem:[#allocation2 + $0x38] sm:$0xf]
        %v1835 = vunpack.c.l.bf16 %v1827
        %v1836 = vunpack.c.h.bf16 %v1827
        %v1837 = vunpack.c.l.bf16 %v1828
        %v1838 = vunpack.c.l.bf16 %v1829
        %v1839 = vunpack.c.h.bf16 %v1829
        %v1840 = vunpack.c.l.bf16 %v1830
        %v1841 = vunpack.c.l.bf16 %v1831
        %v1842 = vunpack.c.h.bf16 %v1831
        %v1843 = vunpack.c.l.bf16 %v1832
        %v1844 = vunpack.c.l.bf16 %v1833
        %v1845 = vunpack.c.h.bf16 %v1833
        %v1846 = vunpack.c.l.bf16 %v1834
        %v1847 = vmul.f32 %v1835, %v467
        %v1848 = vmul.f32 %v1836, %v471
        %v1849 = vmul.f32 %v1837, %v469
        %v1850 = vmul.f32 %v1838, %v467
        %v1851 = vmul.f32 %v1839, %v471
        %v1852 = vmul.f32 %v1840, %v469
        %v1853 = vmul.f32 %v1841, %v467
        %v1854 = vmul.f32 %v1842, %v471
        %v1855 = vmul.f32 %v1843, %v469
        %v1856 = vmul.f32 %v1844, %v467
        %v1857 = vmul.f32 %v1845, %v471
        %v1858 = vmul.f32 %v1846, %v469
        %v1859 = vpack.c.bf16 %v1848, %v1847
        %v1860 = vpack.c.bf16 %v1849, %v1849
        %v1861 = vpack.c.bf16 %v1851, %v1850
        %v1862 = vpack.c.bf16 %v1852, %v1852
        %v1863 = vpack.c.bf16 %v1854, %v1853
        %v1864 = vpack.c.bf16 %v1855, %v1855
        %v1865 = vpack.c.bf16 %v1857, %v1856
        %v1866 = vpack.c.bf16 %v1858, %v1858
        %1875 = vrot.lane.b32.xlu0 %v1859, 15
        %v1876 = vpop.permute.xlu0 %1875
        %1877 = vrot.lane.b32.xlu0 %v1860, 15
        %v1878 = vpop.permute.xlu0 %1877
        %1879 = vrot.lane.b32.xlu0 %v1861, 15
        %v1880 = vpop.permute.xlu0 %1879
        %1881 = vrot.lane.b32.xlu0 %v1862, 15
        %v1882 = vpop.permute.xlu0 %1881
        %1883 = vrot.lane.b32.xlu0 %v1863, 15
        %v1884 = vpop.permute.xlu0 %1883
        %1885 = vrot.lane.b32.xlu0 %v1864, 15
        %v1886 = vpop.permute.xlu0 %1885
        %1887 = vrot.lane.b32.xlu0 %v1865, 15
        %v1888 = vpop.permute.xlu0 %1887
        %1889 = vrot.lane.b32.xlu0 %v1866, 15
        %v1890 = vpop.permute.xlu0 %1889
        %v1891 = vrot.slane %v1876, 4
        %v1892 = vrot.slane %v1878, 4
        %v1893 = vrot.slane %v1880, 4
        %v1894 = vrot.slane %v1882, 4
        %v1895 = vrot.slane %v1884, 4
        %v1896 = vrot.slane %v1886, 4
        %v1897 = vrot.slane %v1888, 4
        %v1898 = vrot.slane %v1890, 4
        %v1899 = vsel %vm367, %v1891, %v1892
        %v1900 = vsel %vm528, %v1876, %v1899
        %v1901 = vsel %vm367, %v1893, %v1894
        %v1902 = vsel %vm528, %v1880, %v1901
        %v1903 = vsel %vm367, %v1895, %v1896
        %v1904 = vsel %vm528, %v1884, %v1903
        %v1905 = vsel %vm367, %v1897, %v1898
        %v1906 = vsel %vm528, %v1888, %v1905
        %1911 = vst [vmem:[#allocation3 + $0x110] sm:$0xff] %v1900
        %1912 = vst [vmem:[#allocation3 + $0x130] sm:$0xff] %v1902
        %1913 = vst [vmem:[#allocation3 + $0x150] sm:$0xff] %v1904
        %1914 = vst [vmem:[#allocation3 + $0x170] sm:$0xff] %v1906
        %v1915 = vld [vmem:[#allocation2] sm:$0xff]
        %v1916 = vld [vmem:[#allocation2 + $0x8] sm:$0xf]
        %v1917 = vld [vmem:[#allocation2 + $0x10] sm:$0xff]
        %v1918 = vld [vmem:[#allocation2 + $0x18] sm:$0xf]
        %v1919 = vld [vmem:[#allocation2 + $0x20] sm:$0xff]
        %v1920 = vld [vmem:[#allocation2 + $0x28] sm:$0xf]
        %v1921 = vld [vmem:[#allocation2 + $0x30] sm:$0xff]
        %v1922 = vld [vmem:[#allocation2 + $0x38] sm:$0xf]
        %v1923 = vunpack.c.l.bf16 %v1915
        %v1924 = vunpack.c.h.bf16 %v1915
        %v1925 = vunpack.c.l.bf16 %v1916
        %v1926 = vunpack.c.l.bf16 %v1917
        %v1927 = vunpack.c.h.bf16 %v1917
        %v1928 = vunpack.c.l.bf16 %v1918
        %v1929 = vunpack.c.l.bf16 %v1919
        %v1930 = vunpack.c.h.bf16 %v1919
        %v1931 = vunpack.c.l.bf16 %v1920
        %v1932 = vunpack.c.l.bf16 %v1921
        %v1933 = vunpack.c.h.bf16 %v1921
        %v1934 = vunpack.c.l.bf16 %v1922
        %v1935 = vmul.f32 %v1923, %v565
        %v1936 = vmul.f32 %v1924, %v569
        %v1937 = vmul.f32 %v1925, %v567
        %v1938 = vmul.f32 %v1926, %v565
        %v1939 = vmul.f32 %v1927, %v569
        %v1940 = vmul.f32 %v1928, %v567
        %v1941 = vmul.f32 %v1929, %v565
        %v1942 = vmul.f32 %v1930, %v569
        %v1943 = vmul.f32 %v1931, %v567
        %v1944 = vmul.f32 %v1932, %v565
        %v1945 = vmul.f32 %v1933, %v569
        %v1946 = vmul.f32 %v1934, %v567
        %v1947 = vpack.c.bf16 %v1936, %v1935
        %v1948 = vpack.c.bf16 %v1937, %v1937
        %v1949 = vpack.c.bf16 %v1939, %v1938
        %v1950 = vpack.c.bf16 %v1940, %v1940
        %v1951 = vpack.c.bf16 %v1942, %v1941
        %v1952 = vpack.c.bf16 %v1943, %v1943
        %v1953 = vpack.c.bf16 %v1945, %v1944
        %v1954 = vpack.c.bf16 %v1946, %v1946
        %1963 = vrot.lane.b32.xlu0 %v1947, 1
        %v1964 = vpop.permute.xlu0 %1963
        %1965 = vrot.lane.b32.xlu0 %v1948, 1
        %v1966 = vpop.permute.xlu0 %1965
        %1967 = vrot.lane.b32.xlu0 %v1949, 1
        %v1968 = vpop.permute.xlu0 %1967
        %1969 = vrot.lane.b32.xlu0 %v1950, 1
        %v1970 = vpop.permute.xlu0 %1969
        %1971 = vrot.lane.b32.xlu0 %v1951, 1
        %v1972 = vpop.permute.xlu0 %1971
        %1973 = vrot.lane.b32.xlu0 %v1952, 1
        %v1974 = vpop.permute.xlu0 %1973
        %1975 = vrot.lane.b32.xlu0 %v1953, 1
        %v1976 = vpop.permute.xlu0 %1975
        %1977 = vrot.lane.b32.xlu0 %v1954, 1
        %v1978 = vpop.permute.xlu0 %1977
        %v1979 = vrot.slane %v1964, 4
        %v1980 = vrot.slane %v1966, 4
        %v1981 = vrot.slane %v1968, 4
        %v1982 = vrot.slane %v1970, 4
        %v1983 = vrot.slane %v1972, 4
        %v1984 = vrot.slane %v1974, 4
        %v1985 = vrot.slane %v1976, 4
        %v1986 = vrot.slane %v1978, 4
        %v1987 = vsel %vm367, %v1979, %v1980
        %v1988 = vsel %vm626, %v1964, %v1987
        %v1989 = vsel %vm367, %v1981, %v1982
        %v1990 = vsel %vm626, %v1968, %v1989
        %v1991 = vsel %vm367, %v1983, %v1984
        %v1992 = vsel %vm626, %v1972, %v1991
        %v1993 = vsel %vm367, %v1985, %v1986
        %v1994 = vsel %vm626, %v1976, %v1993
        %1999 = vst [vmem:[#allocation3 + $0x190] sm:$0xff] %v1988
        %2000 = vst [vmem:[#allocation3 + $0x1b0] sm:$0xff] %v1990
        %2001 = vst [vmem:[#allocation3 + $0x1d0] sm:$0xff] %v1992
        %2002 = vst [vmem:[#allocation3 + $0x1f0] sm:$0xff] %v1994
        %v2003 = vld [vmem:[#allocation2 + $0x4] sm:$0xff]
        %v2004 = vld [vmem:[#allocation2 + $0x14] sm:$0xff]
        %v2005 = vld [vmem:[#allocation2 + $0x24] sm:$0xff]
        %v2006 = vld [vmem:[#allocation2 + $0x34] sm:$0xff]
        %2007 = vst [vmem:[#allocation3 + $0x210] sm:$0xff] %v2003
        %2008 = vst [vmem:[#allocation3 + $0x230] sm:$0xff] %v2004
        %2009 = vst [vmem:[#allocation3 + $0x250] sm:$0xff] %v2005
        %2010 = vst [vmem:[#allocation3 + $0x270] sm:$0xff] %v2006
        %v2011 = vld [vmem:[#allocation2 + $0x4] sm:$0xff]
        %v2012 = vld [vmem:[#allocation2 + $0xc] sm:$0xf]
        %v2013 = vld [vmem:[#allocation2 + $0x14] sm:$0xff]
        %v2014 = vld [vmem:[#allocation2 + $0x1c] sm:$0xf]
        %v2015 = vld [vmem:[#allocation2 + $0x24] sm:$0xff]
        %v2016 = vld [vmem:[#allocation2 + $0x2c] sm:$0xf]
        %v2017 = vld [vmem:[#allocation2 + $0x34] sm:$0xff]
        %v2018 = vld [vmem:[#allocation2 + $0x3c] sm:$0xf]
        %v2019 = vunpack.c.l.bf16 %v2011
        %v2020 = vunpack.c.h.bf16 %v2011
        %v2021 = vunpack.c.l.bf16 %v2012
        %v2022 = vunpack.c.l.bf16 %v2013
        %v2023 = vunpack.c.h.bf16 %v2013
        %v2024 = vunpack.c.l.bf16 %v2014
        %v2025 = vunpack.c.l.bf16 %v2015
        %v2026 = vunpack.c.h.bf16 %v2015
        %v2027 = vunpack.c.l.bf16 %v2016
        %v2028 = vunpack.c.l.bf16 %v2017
        %v2029 = vunpack.c.h.bf16 %v2017
        %v2030 = vunpack.c.l.bf16 %v2018
        %v2031 = vmul.f32 %v2019, %v671
        %v2032 = vmul.f32 %v2020, %v675
        %v2033 = vmul.f32 %v2021, %v673
        %v2034 = vmul.f32 %v2022, %v671
        %v2035 = vmul.f32 %v2023, %v675
        %v2036 = vmul.f32 %v2024, %v673
        %v2037 = vmul.f32 %v2025, %v671
        %v2038 = vmul.f32 %v2026, %v675
        %v2039 = vmul.f32 %v2027, %v673
        %v2040 = vmul.f32 %v2028, %v671
        %v2041 = vmul.f32 %v2029, %v675
        %v2042 = vmul.f32 %v2030, %v673
        %v2043 = vpack.c.bf16 %v2032, %v2031
        %v2044 = vpack.c.bf16 %v2033, %v2033
        %v2045 = vpack.c.bf16 %v2035, %v2034
        %v2046 = vpack.c.bf16 %v2036, %v2036
        %v2047 = vpack.c.bf16 %v2038, %v2037
        %v2048 = vpack.c.bf16 %v2039, %v2039
        %v2049 = vpack.c.bf16 %v2041, %v2040
        %v2050 = vpack.c.bf16 %v2042, %v2042
        %2059 = vrot.lane.b32.xlu0 %v2043, 127
        %v2060 = vpop.permute.xlu0 %2059
        %2061 = vrot.lane.b32.xlu0 %v2044, 127
        %v2062 = vpop.permute.xlu0 %2061
        %2063 = vrot.lane.b32.xlu0 %v2045, 127
        %v2064 = vpop.permute.xlu0 %2063
        %2065 = vrot.lane.b32.xlu0 %v2046, 127
        %v2066 = vpop.permute.xlu0 %2065
        %2067 = vrot.lane.b32.xlu0 %v2047, 127
        %v2068 = vpop.permute.xlu0 %2067
        %2069 = vrot.lane.b32.xlu0 %v2048, 127
        %v2070 = vpop.permute.xlu0 %2069
        %2071 = vrot.lane.b32.xlu0 %v2049, 127
        %v2072 = vpop.permute.xlu0 %2071
        %2073 = vrot.lane.b32.xlu0 %v2050, 127
        %v2074 = vpop.permute.xlu0 %2073
        %v2075 = vrot.slane %v2060, 4
        %v2076 = vrot.slane %v2062, 4
        %v2077 = vrot.slane %v2064, 4
        %v2078 = vrot.slane %v2066, 4
        %v2079 = vrot.slane %v2068, 4
        %v2080 = vrot.slane %v2070, 4
        %v2081 = vrot.slane %v2072, 4
        %v2082 = vrot.slane %v2074, 4
        %v2083 = vsel %vm367, %v2075, %v2076
        %v2084 = vsel %vm732, %v2060, %v2083
        %v2085 = vsel %vm367, %v2077, %v2078
        %v2086 = vsel %vm732, %v2064, %v2085
        %v2087 = vsel %vm367, %v2079, %v2080
        %v2088 = vsel %vm732, %v2068, %v2087
        %v2089 = vsel %vm367, %v2081, %v2082
        %v2090 = vsel %vm732, %v2072, %v2089
        %2095 = vst [vmem:[#allocation3 + $0x290] sm:$0xff] %v2084
        %2096 = vst [vmem:[#allocation3 + $0x2b0] sm:$0xff] %v2086
        %2097 = vst [vmem:[#allocation3 + $0x2d0] sm:$0xff] %v2088
        %2098 = vst [vmem:[#allocation3 + $0x2f0] sm:$0xff] %v2090
        %v2099 = vld [vmem:[#allocation2 + $0x4] sm:$0xff]
        %v2100 = vld [vmem:[#allocation2 + $0xc] sm:$0xf]
        %v2101 = vld [vmem:[#allocation2 + $0x14] sm:$0xff]
        %v2102 = vld [vmem:[#allocation2 + $0x1c] sm:$0xf]
        %v2103 = vld [vmem:[#allocation2 + $0x24] sm:$0xff]
        %v2104 = vld [vmem:[#allocation2 + $0x2c] sm:$0xf]
        %v2105 = vld [vmem:[#allocation2 + $0x34] sm:$0xff]
        %v2106 = vld [vmem:[#allocation2 + $0x3c] sm:$0xf]
        %v2107 = vunpack.c.l.bf16 %v2099
        %v2108 = vunpack.c.h.bf16 %v2099
        %v2109 = vunpack.c.l.bf16 %v2100
        %v2110 = vunpack.c.l.bf16 %v2101
        %v2111 = vunpack.c.h.bf16 %v2101
        %v2112 = vunpack.c.l.bf16 %v2102
        %v2113 = vunpack.c.l.bf16 %v2103
        %v2114 = vunpack.c.h.bf16 %v2103
        %v2115 = vunpack.c.l.bf16 %v2104
        %v2116 = vunpack.c.l.bf16 %v2105
        %v2117 = vunpack.c.h.bf16 %v2105
        %v2118 = vunpack.c.l.bf16 %v2106
        %v2119 = vmul.f32 %v2107, %v769
        %v2120 = vmul.f32 %v2108, %v773
        %v2121 = vmul.f32 %v2109, %v771
        %v2122 = vmul.f32 %v2110, %v769
        %v2123 = vmul.f32 %v2111, %v773
        %v2124 = vmul.f32 %v2112, %v771
        %v2125 = vmul.f32 %v2113, %v769
        %v2126 = vmul.f32 %v2114, %v773
        %v2127 = vmul.f32 %v2115, %v771
        %v2128 = vmul.f32 %v2116, %v769
        %v2129 = vmul.f32 %v2117, %v773
        %v2130 = vmul.f32 %v2118, %v771
        %v2131 = vpack.c.bf16 %v2120, %v2119
        %v2132 = vpack.c.bf16 %v2121, %v2121
        %v2133 = vpack.c.bf16 %v2123, %v2122
        %v2134 = vpack.c.bf16 %v2124, %v2124
        %v2135 = vpack.c.bf16 %v2126, %v2125
        %v2136 = vpack.c.bf16 %v2127, %v2127
        %v2137 = vpack.c.bf16 %v2129, %v2128
        %v2138 = vpack.c.bf16 %v2130, %v2130
        %2147 = vrot.lane.b32.xlu0 %v2131, 113
        %v2148 = vpop.permute.xlu0 %2147
        %2149 = vrot.lane.b32.xlu0 %v2132, 113
        %v2150 = vpop.permute.xlu0 %2149
        %2151 = vrot.lane.b32.xlu0 %v2133, 113
        %v2152 = vpop.permute.xlu0 %2151
        %2153 = vrot.lane.b32.xlu0 %v2134, 113
        %v2154 = vpop.permute.xlu0 %2153
        %2155 = vrot.lane.b32.xlu0 %v2135, 113
        %v2156 = vpop.permute.xlu0 %2155
        %2157 = vrot.lane.b32.xlu0 %v2136, 113
        %v2158 = vpop.permute.xlu0 %2157
        %2159 = vrot.lane.b32.xlu0 %v2137, 113
        %v2160 = vpop.permute.xlu0 %2159
        %2161 = vrot.lane.b32.xlu0 %v2138, 113
        %v2162 = vpop.permute.xlu0 %2161
        %v2163 = vrot.slane %v2148, 4
        %v2164 = vrot.slane %v2150, 4
        %v2165 = vrot.slane %v2152, 4
        %v2166 = vrot.slane %v2154, 4
        %v2167 = vrot.slane %v2156, 4
        %v2168 = vrot.slane %v2158, 4
        %v2169 = vrot.slane %v2160, 4
        %v2170 = vrot.slane %v2162, 4
        %v2171 = vsel %vm367, %v2163, %v2164
        %v2172 = vsel %vm830, %v2148, %v2171
        %v2173 = vsel %vm367, %v2165, %v2166
        %v2174 = vsel %vm830, %v2152, %v2173
        %v2175 = vsel %vm367, %v2167, %v2168
        %v2176 = vsel %vm830, %v2156, %v2175
        %v2177 = vsel %vm367, %v2169, %v2170
        %v2178 = vsel %vm830, %v2160, %v2177
        %2183 = vst [vmem:[#allocation3 + $0x310] sm:$0xff] %v2172
        %2184 = vst [vmem:[#allocation3 + $0x330] sm:$0xff] %v2174
        %2185 = vst [vmem:[#allocation3 + $0x350] sm:$0xff] %v2176
        %2186 = vst [vmem:[#allocation3 + $0x370] sm:$0xff] %v2178
        %v2187 = vld [vmem:[#allocation2 + $0x4] sm:$0xff]
        %v2188 = vld [vmem:[#allocation2 + $0xc] sm:$0xf]
        %v2189 = vld [vmem:[#allocation2 + $0x14] sm:$0xff]
        %v2190 = vld [vmem:[#allocation2 + $0x1c] sm:$0xf]
        %v2191 = vld [vmem:[#allocation2 + $0x24] sm:$0xff]
        %v2192 = vld [vmem:[#allocation2 + $0x2c] sm:$0xf]
        %v2193 = vld [vmem:[#allocation2 + $0x34] sm:$0xff]
        %v2194 = vld [vmem:[#allocation2 + $0x3c] sm:$0xf]
        %2203 = vrot.lane.b32.xlu0 %v2187, 112
        %v2204 = vpop.permute.xlu0 %2203
        %2205 = vrot.lane.b32.xlu0 %v2188, 112
        %v2206 = vpop.permute.xlu0 %2205
        %2207 = vrot.lane.b32.xlu0 %v2189, 112
        %v2208 = vpop.permute.xlu0 %2207
        %2209 = vrot.lane.b32.xlu0 %v2190, 112
        %v2210 = vpop.permute.xlu0 %2209
        %2211 = vrot.lane.b32.xlu0 %v2191, 112
        %v2212 = vpop.permute.xlu0 %2211
        %2213 = vrot.lane.b32.xlu0 %v2192, 112
        %v2214 = vpop.permute.xlu0 %2213
        %2215 = vrot.lane.b32.xlu0 %v2193, 112
        %v2216 = vpop.permute.xlu0 %2215
        %2217 = vrot.lane.b32.xlu0 %v2194, 112
        %v2218 = vpop.permute.xlu0 %2217
        %v2219 = vrot.slane %v2204, 4
        %v2220 = vrot.slane %v2206, 4
        %v2221 = vrot.slane %v2208, 4
        %v2222 = vrot.slane %v2210, 4
        %v2223 = vrot.slane %v2212, 4
        %v2224 = vrot.slane %v2214, 4
        %v2225 = vrot.slane %v2216, 4
        %v2226 = vrot.slane %v2218, 4
        %v2227 = vsel %vm367, %v2219, %v2220
        %v2228 = vsel %vm887, %v2204, %v2227
        %v2229 = vsel %vm367, %v2221, %v2222
        %v2230 = vsel %vm887, %v2208, %v2229
        %v2231 = vsel %vm367, %v2223, %v2224
        %v2232 = vsel %vm887, %v2212, %v2231
        %v2233 = vsel %vm367, %v2225, %v2226
        %v2234 = vsel %vm887, %v2216, %v2233
        %2239 = vst [vmem:[#allocation3 + $0x390] sm:$0xff] %v2228
        %2240 = vst [vmem:[#allocation3 + $0x3b0] sm:$0xff] %v2230
        %2241 = vst [vmem:[#allocation3 + $0x3d0] sm:$0xff] %v2232
        %2242 = vst [vmem:[#allocation3 + $0x3f0] sm:$0xff] %v2234
        %v2243 = vld [vmem:[#allocation2 + $0x4] sm:$0xff]
        %v2244 = vld [vmem:[#allocation2 + $0xc] sm:$0xf]
        %v2245 = vld [vmem:[#allocation2 + $0x14] sm:$0xff]
        %v2246 = vld [vmem:[#allocation2 + $0x1c] sm:$0xf]
        %v2247 = vld [vmem:[#allocation2 + $0x24] sm:$0xff]
        %v2248 = vld [vmem:[#allocation2 + $0x2c] sm:$0xf]
        %v2249 = vld [vmem:[#allocation2 + $0x34] sm:$0xff]
        %v2250 = vld [vmem:[#allocation2 + $0x3c] sm:$0xf]
        %v2251 = vunpack.c.l.bf16 %v2243
        %v2252 = vunpack.c.h.bf16 %v2243
        %v2253 = vunpack.c.l.bf16 %v2244
        %v2254 = vunpack.c.l.bf16 %v2245
        %v2255 = vunpack.c.h.bf16 %v2245
        %v2256 = vunpack.c.l.bf16 %v2246
        %v2257 = vunpack.c.l.bf16 %v2247
        %v2258 = vunpack.c.h.bf16 %v2247
        %v2259 = vunpack.c.l.bf16 %v2248
        %v2260 = vunpack.c.l.bf16 %v2249
        %v2261 = vunpack.c.h.bf16 %v2249
        %v2262 = vunpack.c.l.bf16 %v2250
        %v2263 = vmul.f32 %v2251, %v924
        %v2264 = vmul.f32 %v2252, %v928
        %v2265 = vmul.f32 %v2253, %v926
        %v2266 = vmul.f32 %v2254, %v924
        %v2267 = vmul.f32 %v2255, %v928
        %v2268 = vmul.f32 %v2256, %v926
        %v2269 = vmul.f32 %v2257, %v924
        %v2270 = vmul.f32 %v2258, %v928
        %v2271 = vmul.f32 %v2259, %v926
        %v2272 = vmul.f32 %v2260, %v924
        %v2273 = vmul.f32 %v2261, %v928
        %v2274 = vmul.f32 %v2262, %v926
        %v2275 = vpack.c.bf16 %v2264, %v2263
        %v2276 = vpack.c.bf16 %v2265, %v2265
        %v2277 = vpack.c.bf16 %v2267, %v2266
        %v2278 = vpack.c.bf16 %v2268, %v2268
        %v2279 = vpack.c.bf16 %v2270, %v2269
        %v2280 = vpack.c.bf16 %v2271, %v2271
        %v2281 = vpack.c.bf16 %v2273, %v2272
        %v2282 = vpack.c.bf16 %v2274, %v2274
        %2291 = vrot.lane.b32.xlu0 %v2275, 111
        %v2292 = vpop.permute.xlu0 %2291
        %2293 = vrot.lane.b32.xlu0 %v2276, 111
        %v2294 = vpop.permute.xlu0 %2293
        %2295 = vrot.lane.b32.xlu0 %v2277, 111
        %v2296 = vpop.permute.xlu0 %2295
        %2297 = vrot.lane.b32.xlu0 %v2278, 111
        %v2298 = vpop.permute.xlu0 %2297
        %2299 = vrot.lane.b32.xlu0 %v2279, 111
        %v2300 = vpop.permute.xlu0 %2299
        %2301 = vrot.lane.b32.xlu0 %v2280, 111
        %v2302 = vpop.permute.xlu0 %2301
        %2303 = vrot.lane.b32.xlu0 %v2281, 111
        %v2304 = vpop.permute.xlu0 %2303
        %2305 = vrot.lane.b32.xlu0 %v2282, 111
        %v2306 = vpop.permute.xlu0 %2305
        %v2307 = vrot.slane %v2292, 4
        %v2308 = vrot.slane %v2294, 4
        %v2309 = vrot.slane %v2296, 4
        %v2310 = vrot.slane %v2298, 4
        %v2311 = vrot.slane %v2300, 4
        %v2312 = vrot.slane %v2302, 4
        %v2313 = vrot.slane %v2304, 4
        %v2314 = vrot.slane %v2306, 4
        %v2315 = vsel %vm367, %v2307, %v2308
        %v2316 = vsel %vm985, %v2292, %v2315
        %v2317 = vsel %vm367, %v2309, %v2310
        %v2318 = vsel %vm985, %v2296, %v2317
        %v2319 = vsel %vm367, %v2311, %v2312
        %v2320 = vsel %vm985, %v2300, %v2319
        %v2321 = vsel %vm367, %v2313, %v2314
        %v2322 = vsel %vm985, %v2304, %v2321
        %2327 = vst [vmem:[#allocation3 + $0x410] sm:$0xff] %v2316
        %2328 = vst [vmem:[#allocation3 + $0x430] sm:$0xff] %v2318
        %2329 = vst [vmem:[#allocation3 + $0x450] sm:$0xff] %v2320
        %2330 = vst [vmem:[#allocation3 + $0x470] sm:$0xff] %v2322
        %s2331 = scalar_lea.vmem %s180, 192 [#allocation6]
        %v2332 = vld [vmem:[%s2331] sm:$0xff]
        %v2333 = vld [vmem:[%s2331 + $0x8] sm:$0xff]
        %v2334 = vld [vmem:[%s2331 + $0x10] sm:$0xff]
        %v2335 = vld [vmem:[%s2331 + $0x18] sm:$0xff]
        %v2336 = vld [vmem:[%s2331 + $0x20] sm:$0xff]
        %v2337 = vld [vmem:[%s2331 + $0x28] sm:$0xff]
        %v2338 = vld [vmem:[%s2331 + $0x30] sm:$0xff]
        %v2339 = vld [vmem:[%s2331 + $0x38] sm:$0xff]
        %v2340 = vpack.c.bf16 %v2333, %v2332
        %v2341 = vpack.c.bf16 %v2335, %v2334
        %v2342 = vpack.c.bf16 %v2337, %v2336
        %v2343 = vpack.c.bf16 %v2339, %v2338
        %2344 = vst [vmem:[#allocation2 + $0x4] sm:$0xff] %v2340
        %2345 = vst [vmem:[#allocation2 + $0x14] sm:$0xff] %v2341
        %2346 = vst [vmem:[#allocation2 + $0x24] sm:$0xff] %v2342
        %2347 = vst [vmem:[#allocation2 + $0x34] sm:$0xff] %v2343
        %v2348 = vld [vmem:[#allocation2] sm:$0xff]
        %v2349 = vld [vmem:[#allocation2 + $0x8] sm:$0xf]
        %v2350 = vld [vmem:[#allocation2 + $0x10] sm:$0xff]
        %v2351 = vld [vmem:[#allocation2 + $0x18] sm:$0xf]
        %v2352 = vld [vmem:[#allocation2 + $0x20] sm:$0xff]
        %v2353 = vld [vmem:[#allocation2 + $0x28] sm:$0xf]
        %v2354 = vld [vmem:[#allocation2 + $0x30] sm:$0xff]
        %v2355 = vld [vmem:[#allocation2 + $0x38] sm:$0xf]
        %v2356 = vunpack.c.l.bf16 %v2348
        %v2357 = vunpack.c.h.bf16 %v2348
        %v2358 = vunpack.c.l.bf16 %v2349
        %v2359 = vunpack.c.l.bf16 %v2350
        %v2360 = vunpack.c.h.bf16 %v2350
        %v2361 = vunpack.c.l.bf16 %v2351
        %v2362 = vunpack.c.l.bf16 %v2352
        %v2363 = vunpack.c.h.bf16 %v2352
        %v2364 = vunpack.c.l.bf16 %v2353
        %v2365 = vunpack.c.l.bf16 %v2354
        %v2366 = vunpack.c.h.bf16 %v2354
        %v2367 = vunpack.c.l.bf16 %v2355
        %v2368 = vmul.f32 %v2356, %v307
        %v2369 = vmul.f32 %v2357, %v311
        %v2370 = vmul.f32 %v2358, %v309
        %v2371 = vmul.f32 %v2359, %v307
        %v2372 = vmul.f32 %v2360, %v311
        %v2373 = vmul.f32 %v2361, %v309
        %v2374 = vmul.f32 %v2362, %v307
        %v2375 = vmul.f32 %v2363, %v311
        %v2376 = vmul.f32 %v2364, %v309
        %v2377 = vmul.f32 %v2365, %v307
        %v2378 = vmul.f32 %v2366, %v311
        %v2379 = vmul.f32 %v2367, %v309
        %v2380 = vpack.c.bf16 %v2369, %v2368
        %v2381 = vpack.c.bf16 %v2370, %v2370
        %v2382 = vpack.c.bf16 %v2372, %v2371
        %v2383 = vpack.c.bf16 %v2373, %v2373
        %v2384 = vpack.c.bf16 %v2375, %v2374
        %v2385 = vpack.c.bf16 %v2376, %v2376
        %v2386 = vpack.c.bf16 %v2378, %v2377
        %v2387 = vpack.c.bf16 %v2379, %v2379
        %2396 = vrot.lane.b32.xlu0 %v2380, 17
        %v2397 = vpop.permute.xlu0 %2396
        %2398 = vrot.lane.b32.xlu0 %v2381, 17
        %v2399 = vpop.permute.xlu0 %2398
        %2400 = vrot.lane.b32.xlu0 %v2382, 17
        %v2401 = vpop.permute.xlu0 %2400
        %2402 = vrot.lane.b32.xlu0 %v2383, 17
        %v2403 = vpop.permute.xlu0 %2402
        %2404 = vrot.lane.b32.xlu0 %v2384, 17
        %v2405 = vpop.permute.xlu0 %2404
        %2406 = vrot.lane.b32.xlu0 %v2385, 17
        %v2407 = vpop.permute.xlu0 %2406
        %2408 = vrot.lane.b32.xlu0 %v2386, 17
        %v2409 = vpop.permute.xlu0 %2408
        %2410 = vrot.lane.b32.xlu0 %v2387, 17
        %v2411 = vpop.permute.xlu0 %2410
        %v2412 = vrot.slane %v2397, 4
        %v2413 = vrot.slane %v2399, 4
        %v2414 = vrot.slane %v2401, 4
        %v2415 = vrot.slane %v2403, 4
        %v2416 = vrot.slane %v2405, 4
        %v2417 = vrot.slane %v2407, 4
        %v2418 = vrot.slane %v2409, 4
        %v2419 = vrot.slane %v2411, 4
        %v2420 = vsel %vm367, %v2412, %v2413
        %v2421 = vsel %vm369, %v2397, %v2420
        %v2422 = vsel %vm367, %v2414, %v2415
        %v2423 = vsel %vm369, %v2401, %v2422
        %v2424 = vsel %vm367, %v2416, %v2417
        %v2425 = vsel %vm369, %v2405, %v2424
        %v2426 = vsel %vm367, %v2418, %v2419
        %v2427 = vsel %vm369, %v2409, %v2426
        %2432 = vst [vmem:[#allocation3 + $0x18] sm:$0xff] %v2421
        %2433 = vst [vmem:[#allocation3 + $0x38] sm:$0xff] %v2423
        %2434 = vst [vmem:[#allocation3 + $0x58] sm:$0xff] %v2425
        %2435 = vst [vmem:[#allocation3 + $0x78] sm:$0xff] %v2427
        %v2436 = vld [vmem:[#allocation2] sm:$0xff]
        %v2437 = vld [vmem:[#allocation2 + $0x8] sm:$0xf]
        %v2438 = vld [vmem:[#allocation2 + $0x10] sm:$0xff]
        %v2439 = vld [vmem:[#allocation2 + $0x18] sm:$0xf]
        %v2440 = vld [vmem:[#allocation2 + $0x20] sm:$0xff]
        %v2441 = vld [vmem:[#allocation2 + $0x28] sm:$0xf]
        %v2442 = vld [vmem:[#allocation2 + $0x30] sm:$0xff]
        %v2443 = vld [vmem:[#allocation2 + $0x38] sm:$0xf]
        %2452 = vrot.lane.b32.xlu0 %v2436, 16
        %v2453 = vpop.permute.xlu0 %2452
        %2454 = vrot.lane.b32.xlu0 %v2437, 16
        %v2455 = vpop.permute.xlu0 %2454
        %2456 = vrot.lane.b32.xlu0 %v2438, 16
        %v2457 = vpop.permute.xlu0 %2456
        %2458 = vrot.lane.b32.xlu0 %v2439, 16
        %v2459 = vpop.permute.xlu0 %2458
        %2460 = vrot.lane.b32.xlu0 %v2440, 16
        %v2461 = vpop.permute.xlu0 %2460
        %2462 = vrot.lane.b32.xlu0 %v2441, 16
        %v2463 = vpop.permute.xlu0 %2462
        %2464 = vrot.lane.b32.xlu0 %v2442, 16
        %v2465 = vpop.permute.xlu0 %2464
        %2466 = vrot.lane.b32.xlu0 %v2443, 16
        %v2467 = vpop.permute.xlu0 %2466
        %v2468 = vrot.slane %v2453, 4
        %v2469 = vrot.slane %v2455, 4
        %v2470 = vrot.slane %v2457, 4
        %v2471 = vrot.slane %v2459, 4
        %v2472 = vrot.slane %v2461, 4
        %v2473 = vrot.slane %v2463, 4
        %v2474 = vrot.slane %v2465, 4
        %v2475 = vrot.slane %v2467, 4
        %v2476 = vsel %vm367, %v2468, %v2469
        %v2477 = vsel %vm426, %v2453, %v2476
        %v2478 = vsel %vm367, %v2470, %v2471
        %v2479 = vsel %vm426, %v2457, %v2478
        %v2480 = vsel %vm367, %v2472, %v2473
        %v2481 = vsel %vm426, %v2461, %v2480
        %v2482 = vsel %vm367, %v2474, %v2475
        %v2483 = vsel %vm426, %v2465, %v2482
        %2488 = vst [vmem:[#allocation3 + $0x98] sm:$0xff] %v2477
        %2489 = vst [vmem:[#allocation3 + $0xb8] sm:$0xff] %v2479
        %2490 = vst [vmem:[#allocation3 + $0xd8] sm:$0xff] %v2481
        %2491 = vst [vmem:[#allocation3 + $0xf8] sm:$0xff] %v2483
        %v2492 = vld [vmem:[#allocation2] sm:$0xff]
        %v2493 = vld [vmem:[#allocation2 + $0x8] sm:$0xf]
        %v2494 = vld [vmem:[#allocation2 + $0x10] sm:$0xff]
        %v2495 = vld [vmem:[#allocation2 + $0x18] sm:$0xf]
        %v2496 = vld [vmem:[#allocation2 + $0x20] sm:$0xff]
        %v2497 = vld [vmem:[#allocation2 + $0x28] sm:$0xf]
        %v2498 = vld [vmem:[#allocation2 + $0x30] sm:$0xff]
        %v2499 = vld [vmem:[#allocation2 + $0x38] sm:$0xf]
        %v2500 = vunpack.c.l.bf16 %v2492
        %v2501 = vunpack.c.h.bf16 %v2492
        %v2502 = vunpack.c.l.bf16 %v2493
        %v2503 = vunpack.c.l.bf16 %v2494
        %v2504 = vunpack.c.h.bf16 %v2494
        %v2505 = vunpack.c.l.bf16 %v2495
        %v2506 = vunpack.c.l.bf16 %v2496
        %v2507 = vunpack.c.h.bf16 %v2496
        %v2508 = vunpack.c.l.bf16 %v2497
        %v2509 = vunpack.c.l.bf16 %v2498
        %v2510 = vunpack.c.h.bf16 %v2498
        %v2511 = vunpack.c.l.bf16 %v2499
        %v2512 = vmul.f32 %v2500, %v467
        %v2513 = vmul.f32 %v2501, %v471
        %v2514 = vmul.f32 %v2502, %v469
        %v2515 = vmul.f32 %v2503, %v467
        %v2516 = vmul.f32 %v2504, %v471
        %v2517 = vmul.f32 %v2505, %v469
        %v2518 = vmul.f32 %v2506, %v467
        %v2519 = vmul.f32 %v2507, %v471
        %v2520 = vmul.f32 %v2508, %v469
        %v2521 = vmul.f32 %v2509, %v467
        %v2522 = vmul.f32 %v2510, %v471
        %v2523 = vmul.f32 %v2511, %v469
        %v2524 = vpack.c.bf16 %v2513, %v2512
        %v2525 = vpack.c.bf16 %v2514, %v2514
        %v2526 = vpack.c.bf16 %v2516, %v2515
        %v2527 = vpack.c.bf16 %v2517, %v2517
        %v2528 = vpack.c.bf16 %v2519, %v2518
        %v2529 = vpack.c.bf16 %v2520, %v2520
        %v2530 = vpack.c.bf16 %v2522, %v2521
        %v2531 = vpack.c.bf16 %v2523, %v2523
        %2540 = vrot.lane.b32.xlu0 %v2524, 15
        %v2541 = vpop.permute.xlu0 %2540
        %2542 = vrot.lane.b32.xlu0 %v2525, 15
        %v2543 = vpop.permute.xlu0 %2542
        %2544 = vrot.lane.b32.xlu0 %v2526, 15
        %v2545 = vpop.permute.xlu0 %2544
        %2546 = vrot.lane.b32.xlu0 %v2527, 15
        %v2547 = vpop.permute.xlu0 %2546
        %2548 = vrot.lane.b32.xlu0 %v2528, 15
        %v2549 = vpop.permute.xlu0 %2548
        %2550 = vrot.lane.b32.xlu0 %v2529, 15
        %v2551 = vpop.permute.xlu0 %2550
        %2552 = vrot.lane.b32.xlu0 %v2530, 15
        %v2553 = vpop.permute.xlu0 %2552
        %2554 = vrot.lane.b32.xlu0 %v2531, 15
        %v2555 = vpop.permute.xlu0 %2554
        %v2556 = vrot.slane %v2541, 4
        %v2557 = vrot.slane %v2543, 4
        %v2558 = vrot.slane %v2545, 4
        %v2559 = vrot.slane %v2547, 4
        %v2560 = vrot.slane %v2549, 4
        %v2561 = vrot.slane %v2551, 4
        %v2562 = vrot.slane %v2553, 4
        %v2563 = vrot.slane %v2555, 4
        %v2564 = vsel %vm367, %v2556, %v2557
        %v2565 = vsel %vm528, %v2541, %v2564
        %v2566 = vsel %vm367, %v2558, %v2559
        %v2567 = vsel %vm528, %v2545, %v2566
        %v2568 = vsel %vm367, %v2560, %v2561
        %v2569 = vsel %vm528, %v2549, %v2568
        %v2570 = vsel %vm367, %v2562, %v2563
        %v2571 = vsel %vm528, %v2553, %v2570
        %2576 = vst [vmem:[#allocation3 + $0x118] sm:$0xff] %v2565
        %2577 = vst [vmem:[#allocation3 + $0x138] sm:$0xff] %v2567
        %2578 = vst [vmem:[#allocation3 + $0x158] sm:$0xff] %v2569
        %2579 = vst [vmem:[#allocation3 + $0x178] sm:$0xff] %v2571
        %v2580 = vld [vmem:[#allocation2] sm:$0xff]
        %v2581 = vld [vmem:[#allocation2 + $0x8] sm:$0xf]
        %v2582 = vld [vmem:[#allocation2 + $0x10] sm:$0xff]
        %v2583 = vld [vmem:[#allocation2 + $0x18] sm:$0xf]
        %v2584 = vld [vmem:[#allocation2 + $0x20] sm:$0xff]
        %v2585 = vld [vmem:[#allocation2 + $0x28] sm:$0xf]
        %v2586 = vld [vmem:[#allocation2 + $0x30] sm:$0xff]
        %v2587 = vld [vmem:[#allocation2 + $0x38] sm:$0xf]
        %v2588 = vunpack.c.l.bf16 %v2580
        %v2589 = vunpack.c.h.bf16 %v2580
        %v2590 = vunpack.c.l.bf16 %v2581
        %v2591 = vunpack.c.l.bf16 %v2582
        %v2592 = vunpack.c.h.bf16 %v2582
        %v2593 = vunpack.c.l.bf16 %v2583
        %v2594 = vunpack.c.l.bf16 %v2584
        %v2595 = vunpack.c.h.bf16 %v2584
        %v2596 = vunpack.c.l.bf16 %v2585
        %v2597 = vunpack.c.l.bf16 %v2586
        %v2598 = vunpack.c.h.bf16 %v2586
        %v2599 = vunpack.c.l.bf16 %v2587
        %v2600 = vmul.f32 %v2588, %v565
        %v2601 = vmul.f32 %v2589, %v569
        %v2602 = vmul.f32 %v2590, %v567
        %v2603 = vmul.f32 %v2591, %v565
        %v2604 = vmul.f32 %v2592, %v569
        %v2605 = vmul.f32 %v2593, %v567
        %v2606 = vmul.f32 %v2594, %v565
        %v2607 = vmul.f32 %v2595, %v569
        %v2608 = vmul.f32 %v2596, %v567
        %v2609 = vmul.f32 %v2597, %v565
        %v2610 = vmul.f32 %v2598, %v569
        %v2611 = vmul.f32 %v2599, %v567
        %v2612 = vpack.c.bf16 %v2601, %v2600
        %v2613 = vpack.c.bf16 %v2602, %v2602
        %v2614 = vpack.c.bf16 %v2604, %v2603
        %v2615 = vpack.c.bf16 %v2605, %v2605
        %v2616 = vpack.c.bf16 %v2607, %v2606
        %v2617 = vpack.c.bf16 %v2608, %v2608
        %v2618 = vpack.c.bf16 %v2610, %v2609
        %v2619 = vpack.c.bf16 %v2611, %v2611
        %2628 = vrot.lane.b32.xlu0 %v2612, 1
        %v2629 = vpop.permute.xlu0 %2628
        %2630 = vrot.lane.b32.xlu0 %v2613, 1
        %v2631 = vpop.permute.xlu0 %2630
        %2632 = vrot.lane.b32.xlu0 %v2614, 1
        %v2633 = vpop.permute.xlu0 %2632
        %2634 = vrot.lane.b32.xlu0 %v2615, 1
        %v2635 = vpop.permute.xlu0 %2634
        %2636 = vrot.lane.b32.xlu0 %v2616, 1
        %v2637 = vpop.permute.xlu0 %2636
        %2638 = vrot.lane.b32.xlu0 %v2617, 1
        %v2639 = vpop.permute.xlu0 %2638
        %2640 = vrot.lane.b32.xlu0 %v2618, 1
        %v2641 = vpop.permute.xlu0 %2640
        %2642 = vrot.lane.b32.xlu0 %v2619, 1
        %v2643 = vpop.permute.xlu0 %2642
        %v2644 = vrot.slane %v2629, 4
        %v2645 = vrot.slane %v2631, 4
        %v2646 = vrot.slane %v2633, 4
        %v2647 = vrot.slane %v2635, 4
        %v2648 = vrot.slane %v2637, 4
        %v2649 = vrot.slane %v2639, 4
        %v2650 = vrot.slane %v2641, 4
        %v2651 = vrot.slane %v2643, 4
        %v2652 = vsel %vm367, %v2644, %v2645
        %v2653 = vsel %vm626, %v2629, %v2652
        %v2654 = vsel %vm367, %v2646, %v2647
        %v2655 = vsel %vm626, %v2633, %v2654
        %v2656 = vsel %vm367, %v2648, %v2649
        %v2657 = vsel %vm626, %v2637, %v2656
        %v2658 = vsel %vm367, %v2650, %v2651
        %v2659 = vsel %vm626, %v2641, %v2658
        %2664 = vst [vmem:[#allocation3 + $0x198] sm:$0xff] %v2653
        %2665 = vst [vmem:[#allocation3 + $0x1b8] sm:$0xff] %v2655
        %2666 = vst [vmem:[#allocation3 + $0x1d8] sm:$0xff] %v2657
        %2667 = vst [vmem:[#allocation3 + $0x1f8] sm:$0xff] %v2659
        %v2668 = vld [vmem:[#allocation2 + $0x4] sm:$0xff]
        %v2669 = vld [vmem:[#allocation2 + $0x14] sm:$0xff]
        %v2670 = vld [vmem:[#allocation2 + $0x24] sm:$0xff]
        %v2671 = vld [vmem:[#allocation2 + $0x34] sm:$0xff]
        %2672 = vst [vmem:[#allocation3 + $0x218] sm:$0xff] %v2668
        %2673 = vst [vmem:[#allocation3 + $0x238] sm:$0xff] %v2669
        %2674 = vst [vmem:[#allocation3 + $0x258] sm:$0xff] %v2670
        %2675 = vst [vmem:[#allocation3 + $0x278] sm:$0xff] %v2671
        %v2676 = vld [vmem:[#allocation2 + $0x4] sm:$0xff]
        %v2677 = vld [vmem:[#allocation2 + $0xc] sm:$0xf]
        %v2678 = vld [vmem:[#allocation2 + $0x14] sm:$0xff]
        %v2679 = vld [vmem:[#allocation2 + $0x1c] sm:$0xf]
        %v2680 = vld [vmem:[#allocation2 + $0x24] sm:$0xff]
        %v2681 = vld [vmem:[#allocation2 + $0x2c] sm:$0xf]
        %v2682 = vld [vmem:[#allocation2 + $0x34] sm:$0xff]
        %v2683 = vld [vmem:[#allocation2 + $0x3c] sm:$0xf]
        %v2684 = vunpack.c.l.bf16 %v2676
        %v2685 = vunpack.c.h.bf16 %v2676
        %v2686 = vunpack.c.l.bf16 %v2677
        %v2687 = vunpack.c.l.bf16 %v2678
        %v2688 = vunpack.c.h.bf16 %v2678
        %v2689 = vunpack.c.l.bf16 %v2679
        %v2690 = vunpack.c.l.bf16 %v2680
        %v2691 = vunpack.c.h.bf16 %v2680
        %v2692 = vunpack.c.l.bf16 %v2681
        %v2693 = vunpack.c.l.bf16 %v2682
        %v2694 = vunpack.c.h.bf16 %v2682
        %v2695 = vunpack.c.l.bf16 %v2683
        %v2696 = vmul.f32 %v2684, %v671
        %v2697 = vmul.f32 %v2685, %v675
        %v2698 = vmul.f32 %v2686, %v673
        %v2699 = vmul.f32 %v2687, %v671
        %v2700 = vmul.f32 %v2688, %v675
        %v2701 = vmul.f32 %v2689, %v673
        %v2702 = vmul.f32 %v2690, %v671
        %v2703 = vmul.f32 %v2691, %v675
        %v2704 = vmul.f32 %v2692, %v673
        %v2705 = vmul.f32 %v2693, %v671
        %v2706 = vmul.f32 %v2694, %v675
        %v2707 = vmul.f32 %v2695, %v673
        %v2708 = vpack.c.bf16 %v2697, %v2696
        %v2709 = vpack.c.bf16 %v2698, %v2698
        %v2710 = vpack.c.bf16 %v2700, %v2699
        %v2711 = vpack.c.bf16 %v2701, %v2701
        %v2712 = vpack.c.bf16 %v2703, %v2702
        %v2713 = vpack.c.bf16 %v2704, %v2704
        %v2714 = vpack.c.bf16 %v2706, %v2705
        %v2715 = vpack.c.bf16 %v2707, %v2707
        %2724 = vrot.lane.b32.xlu0 %v2708, 127
        %v2725 = vpop.permute.xlu0 %2724
        %2726 = vrot.lane.b32.xlu0 %v2709, 127
        %v2727 = vpop.permute.xlu0 %2726
        %2728 = vrot.lane.b32.xlu0 %v2710, 127
        %v2729 = vpop.permute.xlu0 %2728
        %2730 = vrot.lane.b32.xlu0 %v2711, 127
        %v2731 = vpop.permute.xlu0 %2730
        %2732 = vrot.lane.b32.xlu0 %v2712, 127
        %v2733 = vpop.permute.xlu0 %2732
        %2734 = vrot.lane.b32.xlu0 %v2713, 127
        %v2735 = vpop.permute.xlu0 %2734
        %2736 = vrot.lane.b32.xlu0 %v2714, 127
        %v2737 = vpop.permute.xlu0 %2736
        %2738 = vrot.lane.b32.xlu0 %v2715, 127
        %v2739 = vpop.permute.xlu0 %2738
        %v2740 = vrot.slane %v2725, 4
        %v2741 = vrot.slane %v2727, 4
        %v2742 = vrot.slane %v2729, 4
        %v2743 = vrot.slane %v2731, 4
        %v2744 = vrot.slane %v2733, 4
        %v2745 = vrot.slane %v2735, 4
        %v2746 = vrot.slane %v2737, 4
        %v2747 = vrot.slane %v2739, 4
        %v2748 = vsel %vm367, %v2740, %v2741
        %v2749 = vsel %vm732, %v2725, %v2748
        %v2750 = vsel %vm367, %v2742, %v2743
        %v2751 = vsel %vm732, %v2729, %v2750
        %v2752 = vsel %vm367, %v2744, %v2745
        %v2753 = vsel %vm732, %v2733, %v2752
        %v2754 = vsel %vm367, %v2746, %v2747
        %v2755 = vsel %vm732, %v2737, %v2754
        %2760 = vst [vmem:[#allocation3 + $0x298] sm:$0xff] %v2749
        %2761 = vst [vmem:[#allocation3 + $0x2b8] sm:$0xff] %v2751
        %2762 = vst [vmem:[#allocation3 + $0x2d8] sm:$0xff] %v2753
        %2763 = vst [vmem:[#allocation3 + $0x2f8] sm:$0xff] %v2755
        %v2764 = vld [vmem:[#allocation2 + $0x4] sm:$0xff]
        %v2765 = vld [vmem:[#allocation2 + $0xc] sm:$0xf]
        %v2766 = vld [vmem:[#allocation2 + $0x14] sm:$0xff]
        %v2767 = vld [vmem:[#allocation2 + $0x1c] sm:$0xf]
        %v2768 = vld [vmem:[#allocation2 + $0x24] sm:$0xff]
        %v2769 = vld [vmem:[#allocation2 + $0x2c] sm:$0xf]
        %v2770 = vld [vmem:[#allocation2 + $0x34] sm:$0xff]
        %v2771 = vld [vmem:[#allocation2 + $0x3c] sm:$0xf]
        %v2772 = vunpack.c.l.bf16 %v2764
        %v2773 = vunpack.c.h.bf16 %v2764
        %v2774 = vunpack.c.l.bf16 %v2765
        %v2775 = vunpack.c.l.bf16 %v2766
        %v2776 = vunpack.c.h.bf16 %v2766
        %v2777 = vunpack.c.l.bf16 %v2767
        %v2778 = vunpack.c.l.bf16 %v2768
        %v2779 = vunpack.c.h.bf16 %v2768
        %v2780 = vunpack.c.l.bf16 %v2769
        %v2781 = vunpack.c.l.bf16 %v2770
        %v2782 = vunpack.c.h.bf16 %v2770
        %v2783 = vunpack.c.l.bf16 %v2771
        %v2784 = vmul.f32 %v2772, %v769
        %v2785 = vmul.f32 %v2773, %v773
        %v2786 = vmul.f32 %v2774, %v771
        %v2787 = vmul.f32 %v2775, %v769
        %v2788 = vmul.f32 %v2776, %v773
        %v2789 = vmul.f32 %v2777, %v771
        %v2790 = vmul.f32 %v2778, %v769
        %v2791 = vmul.f32 %v2779, %v773
        %v2792 = vmul.f32 %v2780, %v771
        %v2793 = vmul.f32 %v2781, %v769
        %v2794 = vmul.f32 %v2782, %v773
        %v2795 = vmul.f32 %v2783, %v771
        %v2796 = vpack.c.bf16 %v2785, %v2784
        %v2797 = vpack.c.bf16 %v2786, %v2786
        %v2798 = vpack.c.bf16 %v2788, %v2787
        %v2799 = vpack.c.bf16 %v2789, %v2789
        %v2800 = vpack.c.bf16 %v2791, %v2790
        %v2801 = vpack.c.bf16 %v2792, %v2792
        %v2802 = vpack.c.bf16 %v2794, %v2793
        %v2803 = vpack.c.bf16 %v2795, %v2795
        %2812 = vrot.lane.b32.xlu0 %v2796, 113
        %v2813 = vpop.permute.xlu0 %2812
        %2814 = vrot.lane.b32.xlu0 %v2797, 113
        %v2815 = vpop.permute.xlu0 %2814
        %2816 = vrot.lane.b32.xlu0 %v2798, 113
        %v2817 = vpop.permute.xlu0 %2816
        %2818 = vrot.lane.b32.xlu0 %v2799, 113
        %v2819 = vpop.permute.xlu0 %2818
        %2820 = vrot.lane.b32.xlu0 %v2800, 113
        %v2821 = vpop.permute.xlu0 %2820
        %2822 = vrot.lane.b32.xlu0 %v2801, 113
        %v2823 = vpop.permute.xlu0 %2822
        %2824 = vrot.lane.b32.xlu0 %v2802, 113
        %v2825 = vpop.permute.xlu0 %2824
        %2826 = vrot.lane.b32.xlu0 %v2803, 113
        %v2827 = vpop.permute.xlu0 %2826
        %v2828 = vrot.slane %v2813, 4
        %v2829 = vrot.slane %v2815, 4
        %v2830 = vrot.slane %v2817, 4
        %v2831 = vrot.slane %v2819, 4
        %v2832 = vrot.slane %v2821, 4
        %v2833 = vrot.slane %v2823, 4
        %v2834 = vrot.slane %v2825, 4
        %v2835 = vrot.slane %v2827, 4
        %v2836 = vsel %vm367, %v2828, %v2829
        %v2837 = vsel %vm830, %v2813, %v2836
        %v2838 = vsel %vm367, %v2830, %v2831
        %v2839 = vsel %vm830, %v2817, %v2838
        %v2840 = vsel %vm367, %v2832, %v2833
        %v2841 = vsel %vm830, %v2821, %v2840
        %v2842 = vsel %vm367, %v2834, %v2835
        %v2843 = vsel %vm830, %v2825, %v2842
        %2848 = vst [vmem:[#allocation3 + $0x318] sm:$0xff] %v2837
        %2849 = vst [vmem:[#allocation3 + $0x338] sm:$0xff] %v2839
        %2850 = vst [vmem:[#allocation3 + $0x358] sm:$0xff] %v2841
        %2851 = vst [vmem:[#allocation3 + $0x378] sm:$0xff] %v2843
        %v2852 = vld [vmem:[#allocation2 + $0x4] sm:$0xff]
        %v2853 = vld [vmem:[#allocation2 + $0xc] sm:$0xf]
        %v2854 = vld [vmem:[#allocation2 + $0x14] sm:$0xff]
        %v2855 = vld [vmem:[#allocation2 + $0x1c] sm:$0xf]
        %v2856 = vld [vmem:[#allocation2 + $0x24] sm:$0xff]
        %v2857 = vld [vmem:[#allocation2 + $0x2c] sm:$0xf]
        %v2858 = vld [vmem:[#allocation2 + $0x34] sm:$0xff]
        %v2859 = vld [vmem:[#allocation2 + $0x3c] sm:$0xf]
        %2868 = vrot.lane.b32.xlu0 %v2852, 112
        %v2869 = vpop.permute.xlu0 %2868
        %2870 = vrot.lane.b32.xlu0 %v2853, 112
        %v2871 = vpop.permute.xlu0 %2870
        %2872 = vrot.lane.b32.xlu0 %v2854, 112
        %v2873 = vpop.permute.xlu0 %2872
        %2874 = vrot.lane.b32.xlu0 %v2855, 112
        %v2875 = vpop.permute.xlu0 %2874
        %2876 = vrot.lane.b32.xlu0 %v2856, 112
        %v2877 = vpop.permute.xlu0 %2876
        %2878 = vrot.lane.b32.xlu0 %v2857, 112
        %v2879 = vpop.permute.xlu0 %2878
        %2880 = vrot.lane.b32.xlu0 %v2858, 112
        %v2881 = vpop.permute.xlu0 %2880
        %2882 = vrot.lane.b32.xlu0 %v2859, 112
        %v2883 = vpop.permute.xlu0 %2882
        %v2884 = vrot.slane %v2869, 4
        %v2885 = vrot.slane %v2871, 4
        %v2886 = vrot.slane %v2873, 4
        %v2887 = vrot.slane %v2875, 4
        %v2888 = vrot.slane %v2877, 4
        %v2889 = vrot.slane %v2879, 4
        %v2890 = vrot.slane %v2881, 4
        %v2891 = vrot.slane %v2883, 4
        %v2892 = vsel %vm367, %v2884, %v2885
        %v2893 = vsel %vm887, %v2869, %v2892
        %v2894 = vsel %vm367, %v2886, %v2887
        %v2895 = vsel %vm887, %v2873, %v2894
        %v2896 = vsel %vm367, %v2888, %v2889
        %v2897 = vsel %vm887, %v2877, %v2896
        %v2898 = vsel %vm367, %v2890, %v2891
        %v2899 = vsel %vm887, %v2881, %v2898
        %2904 = vst [vmem:[#allocation3 + $0x398] sm:$0xff] %v2893
        %2905 = vst [vmem:[#allocation3 + $0x3b8] sm:$0xff] %v2895
        %2906 = vst [vmem:[#allocation3 + $0x3d8] sm:$0xff] %v2897
        %2907 = vst [vmem:[#allocation3 + $0x3f8] sm:$0xff] %v2899
        %v2908 = vld [vmem:[#allocation2 + $0x4] sm:$0xff]
        %v2909 = vld [vmem:[#allocation2 + $0xc] sm:$0xf]
        %v2910 = vld [vmem:[#allocation2 + $0x14] sm:$0xff]
        %v2911 = vld [vmem:[#allocation2 + $0x1c] sm:$0xf]
        %v2912 = vld [vmem:[#allocation2 + $0x24] sm:$0xff]
        %v2913 = vld [vmem:[#allocation2 + $0x2c] sm:$0xf]
        %v2914 = vld [vmem:[#allocation2 + $0x34] sm:$0xff]
        %v2915 = vld [vmem:[#allocation2 + $0x3c] sm:$0xf]
        %v2916 = vunpack.c.l.bf16 %v2908
        %v2917 = vunpack.c.h.bf16 %v2908
        %v2918 = vunpack.c.l.bf16 %v2909
        %v2919 = vunpack.c.l.bf16 %v2910
        %v2920 = vunpack.c.h.bf16 %v2910
        %v2921 = vunpack.c.l.bf16 %v2911
        %v2922 = vunpack.c.l.bf16 %v2912
        %v2923 = vunpack.c.h.bf16 %v2912
        %v2924 = vunpack.c.l.bf16 %v2913
        %v2925 = vunpack.c.l.bf16 %v2914
        %v2926 = vunpack.c.h.bf16 %v2914
        %v2927 = vunpack.c.l.bf16 %v2915
        %v2928 = vmul.f32 %v2916, %v924
        %v2929 = vmul.f32 %v2917, %v928
        %v2930 = vmul.f32 %v2918, %v926
        %v2931 = vmul.f32 %v2919, %v924
        %v2932 = vmul.f32 %v2920, %v928
        %v2933 = vmul.f32 %v2921, %v926
        %v2934 = vmul.f32 %v2922, %v924
        %v2935 = vmul.f32 %v2923, %v928
        %v2936 = vmul.f32 %v2924, %v926
        %v2937 = vmul.f32 %v2925, %v924
        %v2938 = vmul.f32 %v2926, %v928
        %v2939 = vmul.f32 %v2927, %v926
        %v2940 = vpack.c.bf16 %v2929, %v2928
        %v2941 = vpack.c.bf16 %v2930, %v2930
        %v2942 = vpack.c.bf16 %v2932, %v2931
        %v2943 = vpack.c.bf16 %v2933, %v2933
        %v2944 = vpack.c.bf16 %v2935, %v2934
        %v2945 = vpack.c.bf16 %v2936, %v2936
        %v2946 = vpack.c.bf16 %v2938, %v2937
        %v2947 = vpack.c.bf16 %v2939, %v2939
        %2956 = vrot.lane.b32.xlu0 %v2940, 111
        %v2957 = vpop.permute.xlu0 %2956
        %2958 = vrot.lane.b32.xlu0 %v2941, 111
        %v2959 = vpop.permute.xlu0 %2958
        %2960 = vrot.lane.b32.xlu0 %v2942, 111
        %v2961 = vpop.permute.xlu0 %2960
        %2962 = vrot.lane.b32.xlu0 %v2943, 111
        %v2963 = vpop.permute.xlu0 %2962
        %2964 = vrot.lane.b32.xlu0 %v2944, 111
        %v2965 = vpop.permute.xlu0 %2964
        %2966 = vrot.lane.b32.xlu0 %v2945, 111
        %v2967 = vpop.permute.xlu0 %2966
        %2968 = vrot.lane.b32.xlu0 %v2946, 111
        %v2969 = vpop.permute.xlu0 %2968
        %2970 = vrot.lane.b32.xlu0 %v2947, 111
        %v2971 = vpop.permute.xlu0 %2970
        %v2972 = vrot.slane %v2957, 4
        %v2973 = vrot.slane %v2959, 4
        %v2974 = vrot.slane %v2961, 4
        %v2975 = vrot.slane %v2963, 4
        %v2976 = vrot.slane %v2965, 4
        %v2977 = vrot.slane %v2967, 4
        %v2978 = vrot.slane %v2969, 4
        %v2979 = vrot.slane %v2971, 4
        %v2980 = vsel %vm367, %v2972, %v2973
        %v2981 = vsel %vm985, %v2957, %v2980
        %v2982 = vsel %vm367, %v2974, %v2975
        %v2983 = vsel %vm985, %v2961, %v2982
        %v2984 = vsel %vm367, %v2976, %v2977
        %v2985 = vsel %vm985, %v2965, %v2984
        %v2986 = vsel %vm367, %v2978, %v2979
        %v2987 = vsel %vm985, %v2969, %v2986
        %2992 = vst [vmem:[#allocation3 + $0x418] sm:$0xff] %v2981
        %2993 = vst [vmem:[#allocation3 + $0x438] sm:$0xff] %v2983
        %2994 = vst [vmem:[#allocation3 + $0x458] sm:$0xff] %v2985
        %2995 = vst [vmem:[#allocation3 + $0x478] sm:$0xff] %v2987
        %v2996 = vld [vmem:[#allocation9] sm:$0xff]
        %v2997 = vld [vmem:[#allocation9 + $0x8] sm:$0xf]
        %v2998 = vld [vmem:[#allocation9 + $0xc] sm:$0xff]
        %v2999 = vld [vmem:[#allocation9 + $0x14] sm:$0xf]
        %v3000 = vld [vmem:[#allocation9 + $0x18] sm:$0xff]
        %v3001 = vld [vmem:[#allocation9 + $0x20] sm:$0xf]
        %v3002 = vld [vmem:[#allocation9 + $0x24] sm:$0xff]
        %v3003 = vld [vmem:[#allocation9 + $0x2c] sm:$0xf]
        %v3004 = vld [vmem:[#allocation3] sm:$0xff]
        %v3005 = vld [vmem:[#allocation3 + $0x8] sm:$0xff]
        %v3006 = vld [vmem:[#allocation3 + $0x10] sm:$0xff]
        %v3007 = vld [vmem:[#allocation3 + $0x18] sm:$0xff]
        %v3008 = vld [vmem:[#allocation3 + $0x20] sm:$0xff]
        %v3009 = vld [vmem:[#allocation3 + $0x28] sm:$0xff]
        %v3010 = vld [vmem:[#allocation3 + $0x30] sm:$0xff]
        %v3011 = vld [vmem:[#allocation3 + $0x38] sm:$0xff]
        %v3012 = vld [vmem:[#allocation3 + $0x40] sm:$0xff]
        %v3013 = vld [vmem:[#allocation3 + $0x48] sm:$0xff]
        %v3014 = vld [vmem:[#allocation3 + $0x50] sm:$0xff]
        %v3015 = vld [vmem:[#allocation3 + $0x58] sm:$0xff]
        %v3016 = vld [vmem:[#allocation3 + $0x60] sm:$0xff]
        %v3017 = vld [vmem:[#allocation3 + $0x68] sm:$0xff]
        %v3018 = vld [vmem:[#allocation3 + $0x70] sm:$0xff]
        %v3019 = vld [vmem:[#allocation3 + $0x78] sm:$0xff]
        %v3020 = vld [vmem:[#allocation3 + $0x80] sm:$0xff]
        %v3021 = vld [vmem:[#allocation3 + $0x88] sm:$0xff]
        %v3022 = vld [vmem:[#allocation3 + $0x90] sm:$0xff]
        %v3023 = vld [vmem:[#allocation3 + $0x98] sm:$0xff]
        %v3024 = vld [vmem:[#allocation3 + $0xa0] sm:$0xff]
        %v3025 = vld [vmem:[#allocation3 + $0xa8] sm:$0xff]
        %v3026 = vld [vmem:[#allocation3 + $0xb0] sm:$0xff]
        %v3027 = vld [vmem:[#allocation3 + $0xb8] sm:$0xff]
        %v3028 = vld [vmem:[#allocation3 + $0xc0] sm:$0xff]
        %v3029 = vld [vmem:[#allocation3 + $0xc8] sm:$0xff]
        %v3030 = vld [vmem:[#allocation3 + $0xd0] sm:$0xff]
        %v3031 = vld [vmem:[#allocation3 + $0xd8] sm:$0xff]
        %v3032 = vld [vmem:[#allocation3 + $0xe0] sm:$0xff]
        %v3033 = vld [vmem:[#allocation3 + $0xe8] sm:$0xff]
        %v3034 = vld [vmem:[#allocation3 + $0xf0] sm:$0xff]
        %v3035 = vld [vmem:[#allocation3 + $0xf8] sm:$0xff]
        %v3036 = vld [vmem:[#allocation3 + $0x100] sm:$0xff]
        %v3037 = vld [vmem:[#allocation3 + $0x108] sm:$0xff]
        %v3038 = vld [vmem:[#allocation3 + $0x110] sm:$0xff]
        %v3039 = vld [vmem:[#allocation3 + $0x118] sm:$0xff]
        %v3040 = vld [vmem:[#allocation3 + $0x120] sm:$0xff]
        %v3041 = vld [vmem:[#allocation3 + $0x128] sm:$0xff]
        %v3042 = vld [vmem:[#allocation3 + $0x130] sm:$0xff]
        %v3043 = vld [vmem:[#allocation3 + $0x138] sm:$0xff]
        %v3044 = vld [vmem:[#allocation3 + $0x140] sm:$0xff]
        %v3045 = vld [vmem:[#allocation3 + $0x148] sm:$0xff]
        %v3046 = vld [vmem:[#allocation3 + $0x150] sm:$0xff]
        %v3047 = vld [vmem:[#allocation3 + $0x158] sm:$0xff]
        %v3048 = vld [vmem:[#allocation3 + $0x160] sm:$0xff]
        %v3049 = vld [vmem:[#allocation3 + $0x168] sm:$0xff]
        %v3050 = vld [vmem:[#allocation3 + $0x170] sm:$0xff]
        %v3051 = vld [vmem:[#allocation3 + $0x178] sm:$0xff]
        %v3052 = vld [vmem:[#allocation3 + $0x180] sm:$0xff]
        %v3053 = vld [vmem:[#allocation3 + $0x188] sm:$0xff]
        %v3054 = vld [vmem:[#allocation3 + $0x190] sm:$0xff]
        %v3055 = vld [vmem:[#allocation3 + $0x198] sm:$0xff]
        %v3056 = vld [vmem:[#allocation3 + $0x1a0] sm:$0xff]
        %v3057 = vld [vmem:[#allocation3 + $0x1a8] sm:$0xff]
        %v3058 = vld [vmem:[#allocation3 + $0x1b0] sm:$0xff]
        %v3059 = vld [vmem:[#allocation3 + $0x1b8] sm:$0xff]
        %v3060 = vld [vmem:[#allocation3 + $0x1c0] sm:$0xff]
        %v3061 = vld [vmem:[#allocation3 + $0x1c8] sm:$0xff]
        %v3062 = vld [vmem:[#allocation3 + $0x1d0] sm:$0xff]
        %v3063 = vld [vmem:[#allocation3 + $0x1d8] sm:$0xff]
        %v3064 = vld [vmem:[#allocation3 + $0x1e0] sm:$0xff]
        %v3065 = vld [vmem:[#allocation3 + $0x1e8] sm:$0xff]
        %v3066 = vld [vmem:[#allocation3 + $0x1f0] sm:$0xff]
        %v3067 = vld [vmem:[#allocation3 + $0x1f8] sm:$0xff]
        %v3068 = vld [vmem:[#allocation3 + $0x200] sm:$0xff]
        %v3069 = vld [vmem:[#allocation3 + $0x208] sm:$0xff]
        %v3070 = vld [vmem:[#allocation3 + $0x210] sm:$0xff]
        %v3071 = vld [vmem:[#allocation3 + $0x218] sm:$0xff]
        %v3072 = vld [vmem:[#allocation3 + $0x220] sm:$0xff]
        %v3073 = vld [vmem:[#allocation3 + $0x228] sm:$0xff]
        %v3074 = vld [vmem:[#allocation3 + $0x230] sm:$0xff]
        %v3075 = vld [vmem:[#allocation3 + $0x238] sm:$0xff]
        %v3076 = vld [vmem:[#allocation3 + $0x240] sm:$0xff]
        %v3077 = vld [vmem:[#allocation3 + $0x248] sm:$0xff]
        %v3078 = vld [vmem:[#allocation3 + $0x250] sm:$0xff]
        %v3079 = vld [vmem:[#allocation3 + $0x258] sm:$0xff]
        %v3080 = vld [vmem:[#allocation3 + $0x260] sm:$0xff]
        %v3081 = vld [vmem:[#allocation3 + $0x268] sm:$0xff]
        %v3082 = vld [vmem:[#allocation3 + $0x270] sm:$0xff]
        %v3083 = vld [vmem:[#allocation3 + $0x278] sm:$0xff]
        %v3084 = vld [vmem:[#allocation3 + $0x280] sm:$0xff]
        %v3085 = vld [vmem:[#allocation3 + $0x288] sm:$0xff]
        %v3086 = vld [vmem:[#allocation3 + $0x290] sm:$0xff]
        %v3087 = vld [vmem:[#allocation3 + $0x298] sm:$0xff]
        %v3088 = vld [vmem:[#allocation3 + $0x2a0] sm:$0xff]
        %v3089 = vld [vmem:[#allocation3 + $0x2a8] sm:$0xff]
        %v3090 = vld [vmem:[#allocation3 + $0x2b0] sm:$0xff]
        %v3091 = vld [vmem:[#allocation3 + $0x2b8] sm:$0xff]
        %v3092 = vld [vmem:[#allocation3 + $0x2c0] sm:$0xff]
        %v3093 = vld [vmem:[#allocation3 + $0x2c8] sm:$0xff]
        %v3094 = vld [vmem:[#allocation3 + $0x2d0] sm:$0xff]
        %v3095 = vld [vmem:[#allocation3 + $0x2d8] sm:$0xff]
        %v3096 = vld [vmem:[#allocation3 + $0x2e0] sm:$0xff]
        %v3097 = vld [vmem:[#allocation3 + $0x2e8] sm:$0xff]
        %v3098 = vld [vmem:[#allocation3 + $0x2f0] sm:$0xff]
        %v3099 = vld [vmem:[#allocation3 + $0x2f8] sm:$0xff]
        %v3100 = vld [vmem:[#allocation3 + $0x300] sm:$0xff]
        %v3101 = vld [vmem:[#allocation3 + $0x308] sm:$0xff]
        %v3102 = vld [vmem:[#allocation3 + $0x310] sm:$0xff]
        %v3103 = vld [vmem:[#allocation3 + $0x318] sm:$0xff]
        %v3104 = vld [vmem:[#allocation3 + $0x320] sm:$0xff]
        %v3105 = vld [vmem:[#allocation3 + $0x328] sm:$0xff]
        %v3106 = vld [vmem:[#allocation3 + $0x330] sm:$0xff]
        %v3107 = vld [vmem:[#allocation3 + $0x338] sm:$0xff]
        %v3108 = vld [vmem:[#allocation3 + $0x340] sm:$0xff]
        %v3109 = vld [vmem:[#allocation3 + $0x348] sm:$0xff]
        %v3110 = vld [vmem:[#allocation3 + $0x350] sm:$0xff]
        %v3111 = vld [vmem:[#allocation3 + $0x358] sm:$0xff]
        %v3112 = vld [vmem:[#allocation3 + $0x360] sm:$0xff]
        %v3113 = vld [vmem:[#allocation3 + $0x368] sm:$0xff]
        %v3114 = vld [vmem:[#allocation3 + $0x370] sm:$0xff]
        %v3115 = vld [vmem:[#allocation3 + $0x378] sm:$0xff]
        %v3116 = vld [vmem:[#allocation3 + $0x380] sm:$0xff]
        %v3117 = vld [vmem:[#allocation3 + $0x388] sm:$0xff]
        %v3118 = vld [vmem:[#allocation3 + $0x390] sm:$0xff]
        %v3119 = vld [vmem:[#allocation3 + $0x398] sm:$0xff]
        %v3120 = vld [vmem:[#allocation3 + $0x3a0] sm:$0xff]
        %v3121 = vld [vmem:[#allocation3 + $0x3a8] sm:$0xff]
        %v3122 = vld [vmem:[#allocation3 + $0x3b0] sm:$0xff]
        %v3123 = vld [vmem:[#allocation3 + $0x3b8] sm:$0xff]
        %v3124 = vld [vmem:[#allocation3 + $0x3c0] sm:$0xff]
        %v3125 = vld [vmem:[#allocation3 + $0x3c8] sm:$0xff]
        %v3126 = vld [vmem:[#allocation3 + $0x3d0] sm:$0xff]
        %v3127 = vld [vmem:[#allocation3 + $0x3d8] sm:$0xff]
        %v3128 = vld [vmem:[#allocation3 + $0x3e0] sm:$0xff]
        %v3129 = vld [vmem:[#allocation3 + $0x3e8] sm:$0xff]
        %v3130 = vld [vmem:[#allocation3 + $0x3f0] sm:$0xff]
        %v3131 = vld [vmem:[#allocation3 + $0x3f8] sm:$0xff]
        %v3132 = vld [vmem:[#allocation3 + $0x400] sm:$0xff]
        %v3133 = vld [vmem:[#allocation3 + $0x408] sm:$0xff]
        %v3134 = vld [vmem:[#allocation3 + $0x410] sm:$0xff]
        %v3135 = vld [vmem:[#allocation3 + $0x418] sm:$0xff]
        %v3136 = vld [vmem:[#allocation3 + $0x420] sm:$0xff]
        %v3137 = vld [vmem:[#allocation3 + $0x428] sm:$0xff]
        %v3138 = vld [vmem:[#allocation3 + $0x430] sm:$0xff]
        %v3139 = vld [vmem:[#allocation3 + $0x438] sm:$0xff]
        %v3140 = vld [vmem:[#allocation3 + $0x440] sm:$0xff]
        %v3141 = vld [vmem:[#allocation3 + $0x448] sm:$0xff]
        %v3142 = vld [vmem:[#allocation3 + $0x450] sm:$0xff]
        %v3143 = vld [vmem:[#allocation3 + $0x458] sm:$0xff]
        %v3144 = vld [vmem:[#allocation3 + $0x460] sm:$0xff]
        %v3145 = vld [vmem:[#allocation3 + $0x468] sm:$0xff]
        %v3146 = vld [vmem:[#allocation3 + $0x470] sm:$0xff]
        %v3147 = vld [vmem:[#allocation3 + $0x478] sm:$0xff]
        %3149 = vset.pattern.permute.xlu0 0
        %3150 = vperm.xlu0 %3149, %v253
        %v3151 = vpop.permute.xlu0 %3150
        %3154 = vset.pattern.permute.xlu0 0
        %3155 = vperm.xlu0 %3154, %v254
        %v3156 = vpop.permute.xlu0 %3155
        %3159 = vset.pattern.permute.xlu0 0
        %3160 = vperm.xlu0 %3159, %v255
        %v3161 = vpop.permute.xlu0 %3160
        %3164 = vset.pattern.permute.xlu0 0
        %3165 = vperm.xlu0 %3164, %v256
        %v3166 = vpop.permute.xlu0 %3165
        %v3176 = vunpack.c.l.b16 %v2996
        %v3177 = vunpack.c.h.b16 %v2996
        %v3178 = vunpack.c.l.b16 %v2997
        %v3179 = vunpack.c.l.b16 %v2998
        %v3180 = vunpack.c.h.b16 %v2998
        %v3181 = vunpack.c.l.b16 %v2999
        %v3182 = vunpack.c.l.b16 %v3000
        %v3183 = vunpack.c.h.b16 %v3000
        %v3184 = vunpack.c.l.b16 %v3001
        %v3185 = vunpack.c.l.b16 %v3002
        %v3186 = vunpack.c.h.b16 %v3002
        %v3187 = vunpack.c.l.b16 %v3003
        %v3188 = vpack.c.b16 %v3179, %v3176
        %v3189 = vpack.c.b16 %v3180, %v3177
        %v3190 = vpack.c.b16 %v3181, %v3178
        %v3191 = vpack.c.b16 %v3185, %v3182
        %v3192 = vpack.c.b16 %v3186, %v3183
        %v3193 = vpack.c.b16 %v3187, %v3184
        %v3342 = vunpack.c.l.b16 %v3004
        %v3343 = vunpack.c.h.b16 %v3004
        %v3344 = vunpack.c.l.b16 %v3005
        %v3345 = vunpack.c.h.b16 %v3005
        %v3346 = vunpack.c.l.b16 %v3006
        %v3347 = vunpack.c.h.b16 %v3006
        %v3348 = vunpack.c.l.b16 %v3007
        %v3349 = vunpack.c.h.b16 %v3007
        %v3350 = vunpack.c.l.b16 %v3008
        %v3351 = vunpack.c.h.b16 %v3008
        %v3352 = vunpack.c.l.b16 %v3009
        %v3353 = vunpack.c.h.b16 %v3009
        %v3354 = vunpack.c.l.b16 %v3010
        %v3355 = vunpack.c.h.b16 %v3010
        %v3356 = vunpack.c.l.b16 %v3011
        %v3357 = vunpack.c.h.b16 %v3011
        %v3358 = vunpack.c.l.b16 %v3012
        %v3359 = vunpack.c.h.b16 %v3012
        %v3360 = vunpack.c.l.b16 %v3013
        %v3361 = vunpack.c.h.b16 %v3013
        %v3362 = vunpack.c.l.b16 %v3014
        %v3363 = vunpack.c.h.b16 %v3014
        %v3364 = vunpack.c.l.b16 %v3015
        %v3365 = vunpack.c.h.b16 %v3015
        %v3366 = vunpack.c.l.b16 %v3016
        %v3367 = vunpack.c.h.b16 %v3016
        %v3368 = vunpack.c.l.b16 %v3017
        %v3369 = vunpack.c.h.b16 %v3017
        %v3370 = vunpack.c.l.b16 %v3018
        %v3371 = vunpack.c.h.b16 %v3018
        %v3372 = vunpack.c.l.b16 %v3019
        %v3373 = vunpack.c.h.b16 %v3019
        %v3374 = vunpack.c.l.b16 %v3020
        %v3375 = vunpack.c.h.b16 %v3020
        %v3376 = vunpack.c.l.b16 %v3021
        %v3377 = vunpack.c.h.b16 %v3021
        %v3378 = vunpack.c.l.b16 %v3022
        %v3379 = vunpack.c.h.b16 %v3022
        %v3380 = vunpack.c.l.b16 %v3023
        %v3381 = vunpack.c.h.b16 %v3023
        %v3382 = vunpack.c.l.b16 %v3024
        %v3383 = vunpack.c.h.b16 %v3024
        %v3384 = vunpack.c.l.b16 %v3025
        %v3385 = vunpack.c.h.b16 %v3025
        %v3386 = vunpack.c.l.b16 %v3026
        %v3387 = vunpack.c.h.b16 %v3026
        %v3388 = vunpack.c.l.b16 %v3027
        %v3389 = vunpack.c.h.b16 %v3027
        %v3390 = vunpack.c.l.b16 %v3028
        %v3391 = vunpack.c.h.b16 %v3028
        %v3392 = vunpack.c.l.b16 %v3029
        %v3393 = vunpack.c.h.b16 %v3029
        %v3394 = vunpack.c.l.b16 %v3030
        %v3395 = vunpack.c.h.b16 %v3030
        %v3396 = vunpack.c.l.b16 %v3031
        %v3397 = vunpack.c.h.b16 %v3031
        %v3398 = vunpack.c.l.b16 %v3032
        %v3399 = vunpack.c.h.b16 %v3032
        %v3400 = vunpack.c.l.b16 %v3033
        %v3401 = vunpack.c.h.b16 %v3033
        %v3402 = vunpack.c.l.b16 %v3034
        %v3403 = vunpack.c.h.b16 %v3034
        %v3404 = vunpack.c.l.b16 %v3035
        %v3405 = vunpack.c.h.b16 %v3035
        %v3406 = vunpack.c.l.b16 %v3036
        %v3407 = vunpack.c.h.b16 %v3036
        %v3408 = vunpack.c.l.b16 %v3037
        %v3409 = vunpack.c.h.b16 %v3037
        %v3410 = vunpack.c.l.b16 %v3038
        %v3411 = vunpack.c.h.b16 %v3038
        %v3412 = vunpack.c.l.b16 %v3039
        %v3413 = vunpack.c.h.b16 %v3039
        %v3414 = vunpack.c.l.b16 %v3040
        %v3415 = vunpack.c.h.b16 %v3040
        %v3416 = vunpack.c.l.b16 %v3041
        %v3417 = vunpack.c.h.b16 %v3041
        %v3418 = vunpack.c.l.b16 %v3042
        %v3419 = vunpack.c.h.b16 %v3042
        %v3420 = vunpack.c.l.b16 %v3043
        %v3421 = vunpack.c.h.b16 %v3043
        %v3422 = vunpack.c.l.b16 %v3044
        %v3423 = vunpack.c.h.b16 %v3044
        %v3424 = vunpack.c.l.b16 %v3045
        %v3425 = vunpack.c.h.b16 %v3045
        %v3426 = vunpack.c.l.b16 %v3046
        %v3427 = vunpack.c.h.b16 %v3046
        %v3428 = vunpack.c.l.b16 %v3047
        %v3429 = vunpack.c.h.b16 %v3047
        %v3430 = vunpack.c.l.b16 %v3048
        %v3431 = vunpack.c.h.b16 %v3048
        %v3432 = vunpack.c.l.b16 %v3049
        %v3433 = vunpack.c.h.b16 %v3049
        %v3434 = vunpack.c.l.b16 %v3050
        %v3435 = vunpack.c.h.b16 %v3050
        %v3436 = vunpack.c.l.b16 %v3051
        %v3437 = vunpack.c.h.b16 %v3051
        %v3438 = vunpack.c.l.b16 %v3052
        %v3439 = vunpack.c.h.b16 %v3052
        %v3440 = vunpack.c.l.b16 %v3053
        %v3441 = vunpack.c.h.b16 %v3053
        %v3442 = vunpack.c.l.b16 %v3054
        %v3443 = vunpack.c.h.b16 %v3054
        %v3444 = vunpack.c.l.b16 %v3055
        %v3445 = vunpack.c.h.b16 %v3055
        %v3446 = vunpack.c.l.b16 %v3056
        %v3447 = vunpack.c.h.b16 %v3056
        %v3448 = vunpack.c.l.b16 %v3057
        %v3449 = vunpack.c.h.b16 %v3057
        %v3450 = vunpack.c.l.b16 %v3058
        %v3451 = vunpack.c.h.b16 %v3058
        %v3452 = vunpack.c.l.b16 %v3059
        %v3453 = vunpack.c.h.b16 %v3059
        %v3454 = vunpack.c.l.b16 %v3060
        %v3455 = vunpack.c.h.b16 %v3060
        %v3456 = vunpack.c.l.b16 %v3061
        %v3457 = vunpack.c.h.b16 %v3061
        %v3458 = vunpack.c.l.b16 %v3062
        %v3459 = vunpack.c.h.b16 %v3062
        %v3460 = vunpack.c.l.b16 %v3063
        %v3461 = vunpack.c.h.b16 %v3063
        %v3462 = vunpack.c.l.b16 %v3064
        %v3463 = vunpack.c.h.b16 %v3064
        %v3464 = vunpack.c.l.b16 %v3065
        %v3465 = vunpack.c.h.b16 %v3065
        %v3466 = vunpack.c.l.b16 %v3066
        %v3467 = vunpack.c.h.b16 %v3066
        %v3468 = vunpack.c.l.b16 %v3067
        %v3469 = vunpack.c.h.b16 %v3067
        %v3470 = vunpack.c.l.b16 %v3068
        %v3471 = vunpack.c.h.b16 %v3068
        %v3472 = vunpack.c.l.b16 %v3069
        %v3473 = vunpack.c.h.b16 %v3069
        %v3474 = vunpack.c.l.b16 %v3070
        %v3475 = vunpack.c.h.b16 %v3070
        %v3476 = vunpack.c.l.b16 %v3071
        %v3477 = vunpack.c.h.b16 %v3071
        %v3478 = vunpack.c.l.b16 %v3072
        %v3479 = vunpack.c.h.b16 %v3072
        %v3480 = vunpack.c.l.b16 %v3073
        %v3481 = vunpack.c.h.b16 %v3073
        %v3482 = vunpack.c.l.b16 %v3074
        %v3483 = vunpack.c.h.b16 %v3074
        %v3484 = vunpack.c.l.b16 %v3075
        %v3485 = vunpack.c.h.b16 %v3075
        %v3486 = vunpack.c.l.b16 %v3076
        %v3487 = vunpack.c.h.b16 %v3076
        %v3488 = vunpack.c.l.b16 %v3077
        %v3489 = vunpack.c.h.b16 %v3077
        %v3490 = vunpack.c.l.b16 %v3078
        %v3491 = vunpack.c.h.b16 %v3078
        %v3492 = vunpack.c.l.b16 %v3079
        %v3493 = vunpack.c.h.b16 %v3079
        %v3494 = vunpack.c.l.b16 %v3080
        %v3495 = vunpack.c.h.b16 %v3080
        %v3496 = vunpack.c.l.b16 %v3081
        %v3497 = vunpack.c.h.b16 %v3081
        %v3498 = vunpack.c.l.b16 %v3082
        %v3499 = vunpack.c.h.b16 %v3082
        %v3500 = vunpack.c.l.b16 %v3083
        %v3501 = vunpack.c.h.b16 %v3083
        %v3502 = vunpack.c.l.b16 %v3084
        %v3503 = vunpack.c.h.b16 %v3084
        %v3504 = vunpack.c.l.b16 %v3085
        %v3505 = vunpack.c.h.b16 %v3085
        %v3506 = vunpack.c.l.b16 %v3086
        %v3507 = vunpack.c.h.b16 %v3086
        %v3508 = vunpack.c.l.b16 %v3087
        %v3509 = vunpack.c.h.b16 %v3087
        %v3510 = vunpack.c.l.b16 %v3088
        %v3511 = vunpack.c.h.b16 %v3088
        %v3512 = vunpack.c.l.b16 %v3089
        %v3513 = vunpack.c.h.b16 %v3089
        %v3514 = vunpack.c.l.b16 %v3090
        %v3515 = vunpack.c.h.b16 %v3090
        %v3516 = vunpack.c.l.b16 %v3091
        %v3517 = vunpack.c.h.b16 %v3091
        %v3518 = vunpack.c.l.b16 %v3092
        %v3519 = vunpack.c.h.b16 %v3092
        %v3520 = vunpack.c.l.b16 %v3093
        %v3521 = vunpack.c.h.b16 %v3093
        %v3522 = vunpack.c.l.b16 %v3094
        %v3523 = vunpack.c.h.b16 %v3094
        %v3524 = vunpack.c.l.b16 %v3095
        %v3525 = vunpack.c.h.b16 %v3095
        %v3526 = vunpack.c.l.b16 %v3096
        %v3527 = vunpack.c.h.b16 %v3096
        %v3528 = vunpack.c.l.b16 %v3097
        %v3529 = vunpack.c.h.b16 %v3097
        %v3530 = vunpack.c.l.b16 %v3098
        %v3531 = vunpack.c.h.b16 %v3098
        %v3532 = vunpack.c.l.b16 %v3099
        %v3533 = vunpack.c.h.b16 %v3099
        %v3534 = vunpack.c.l.b16 %v3100
        %v3535 = vunpack.c.h.b16 %v3100
        %v3536 = vunpack.c.l.b16 %v3101
        %v3537 = vunpack.c.h.b16 %v3101
        %v3538 = vunpack.c.l.b16 %v3102
        %v3539 = vunpack.c.h.b16 %v3102
        %v3540 = vunpack.c.l.b16 %v3103
        %v3541 = vunpack.c.h.b16 %v3103
        %v3542 = vunpack.c.l.b16 %v3104
        %v3543 = vunpack.c.h.b16 %v3104
        %v3544 = vunpack.c.l.b16 %v3105
        %v3545 = vunpack.c.h.b16 %v3105
        %v3546 = vunpack.c.l.b16 %v3106
        %v3547 = vunpack.c.h.b16 %v3106
        %v3548 = vunpack.c.l.b16 %v3107
        %v3549 = vunpack.c.h.b16 %v3107
        %v3550 = vunpack.c.l.b16 %v3108
        %v3551 = vunpack.c.h.b16 %v3108
        %v3552 = vunpack.c.l.b16 %v3109
        %v3553 = vunpack.c.h.b16 %v3109
        %v3554 = vunpack.c.l.b16 %v3110
        %v3555 = vunpack.c.h.b16 %v3110
        %v3556 = vunpack.c.l.b16 %v3111
        %v3557 = vunpack.c.h.b16 %v3111
        %v3558 = vunpack.c.l.b16 %v3112
        %v3559 = vunpack.c.h.b16 %v3112
        %v3560 = vunpack.c.l.b16 %v3113
        %v3561 = vunpack.c.h.b16 %v3113
        %v3562 = vunpack.c.l.b16 %v3114
        %v3563 = vunpack.c.h.b16 %v3114
        %v3564 = vunpack.c.l.b16 %v3115
        %v3565 = vunpack.c.h.b16 %v3115
        %v3566 = vunpack.c.l.b16 %v3116
        %v3567 = vunpack.c.h.b16 %v3116
        %v3568 = vunpack.c.l.b16 %v3117
        %v3569 = vunpack.c.h.b16 %v3117
        %v3570 = vunpack.c.l.b16 %v3118
        %v3571 = vunpack.c.h.b16 %v3118
        %v3572 = vunpack.c.l.b16 %v3119
        %v3573 = vunpack.c.h.b16 %v3119
        %v3574 = vunpack.c.l.b16 %v3120
        %v3575 = vunpack.c.h.b16 %v3120
        %v3576 = vunpack.c.l.b16 %v3121
        %v3577 = vunpack.c.h.b16 %v3121
        %v3578 = vunpack.c.l.b16 %v3122
        %v3579 = vunpack.c.h.b16 %v3122
        %v3580 = vunpack.c.l.b16 %v3123
        %v3581 = vunpack.c.h.b16 %v3123
        %v3582 = vunpack.c.l.b16 %v3124
        %v3583 = vunpack.c.h.b16 %v3124
        %v3584 = vunpack.c.l.b16 %v3125
        %v3585 = vunpack.c.h.b16 %v3125
        %v3586 = vunpack.c.l.b16 %v3126
        %v3587 = vunpack.c.h.b16 %v3126
        %v3588 = vunpack.c.l.b16 %v3127
        %v3589 = vunpack.c.h.b16 %v3127
        %v3590 = vunpack.c.l.b16 %v3128
        %v3591 = vunpack.c.h.b16 %v3128
        %v3592 = vunpack.c.l.b16 %v3129
        %v3593 = vunpack.c.h.b16 %v3129
        %v3594 = vunpack.c.l.b16 %v3130
        %v3595 = vunpack.c.h.b16 %v3130
        %v3596 = vunpack.c.l.b16 %v3131
        %v3597 = vunpack.c.h.b16 %v3131
        %v3598 = vunpack.c.l.b16 %v3132
        %v3599 = vunpack.c.h.b16 %v3132
        %v3600 = vunpack.c.l.b16 %v3133
        %v3601 = vunpack.c.h.b16 %v3133
        %v3602 = vunpack.c.l.b16 %v3134
        %v3603 = vunpack.c.h.b16 %v3134
        %v3604 = vunpack.c.l.b16 %v3135
        %v3605 = vunpack.c.h.b16 %v3135
        %v3606 = vunpack.c.l.b16 %v3136
        %v3607 = vunpack.c.h.b16 %v3136
        %v3608 = vunpack.c.l.b16 %v3137
        %v3609 = vunpack.c.h.b16 %v3137
        %v3610 = vunpack.c.l.b16 %v3138
        %v3611 = vunpack.c.h.b16 %v3138
        %v3612 = vunpack.c.l.b16 %v3139
        %v3613 = vunpack.c.h.b16 %v3139
        %v3614 = vunpack.c.l.b16 %v3140
        %v3615 = vunpack.c.h.b16 %v3140
        %v3616 = vunpack.c.l.b16 %v3141
        %v3617 = vunpack.c.h.b16 %v3141
        %v3618 = vunpack.c.l.b16 %v3142
        %v3619 = vunpack.c.h.b16 %v3142
        %v3620 = vunpack.c.l.b16 %v3143
        %v3621 = vunpack.c.h.b16 %v3143
        %v3622 = vunpack.c.l.b16 %v3144
        %v3623 = vunpack.c.h.b16 %v3144
        %v3624 = vunpack.c.l.b16 %v3145
        %v3625 = vunpack.c.h.b16 %v3145
        %v3626 = vunpack.c.l.b16 %v3146
        %v3627 = vunpack.c.h.b16 %v3146
        %v3628 = vunpack.c.l.b16 %v3147
        %v3629 = vunpack.c.h.b16 %v3147
        %v3630 = vpack.c.b16 %v3350, %v3342
        %v3631 = vpack.c.b16 %v3351, %v3343
        %v3632 = vpack.c.b16 %v3352, %v3344
        %v3633 = vpack.c.b16 %v3353, %v3345
        %v3634 = vpack.c.b16 %v3354, %v3346
        %v3635 = vpack.c.b16 %v3355, %v3347
        %v3636 = vpack.c.b16 %v3356, %v3348
        %v3637 = vpack.c.b16 %v3357, %v3349
        %v3638 = vpack.c.b16 %v3366, %v3358
        %v3639 = vpack.c.b16 %v3367, %v3359
        %v3640 = vpack.c.b16 %v3368, %v3360
        %v3641 = vpack.c.b16 %v3369, %v3361
        %v3642 = vpack.c.b16 %v3370, %v3362
        %v3643 = vpack.c.b16 %v3371, %v3363
        %v3644 = vpack.c.b16 %v3372, %v3364
        %v3645 = vpack.c.b16 %v3373, %v3365
        %v3646 = vpack.c.b16 %v3382, %v3374
        %v3647 = vpack.c.b16 %v3383, %v3375
        %v3648 = vpack.c.b16 %v3384, %v3376
        %v3649 = vpack.c.b16 %v3385, %v3377
        %v3650 = vpack.c.b16 %v3386, %v3378
        %v3651 = vpack.c.b16 %v3387, %v3379
        %v3652 = vpack.c.b16 %v3388, %v3380
        %v3653 = vpack.c.b16 %v3389, %v3381
        %v3654 = vpack.c.b16 %v3398, %v3390
        %v3655 = vpack.c.b16 %v3399, %v3391
        %v3656 = vpack.c.b16 %v3400, %v3392
        %v3657 = vpack.c.b16 %v3401, %v3393
        %v3658 = vpack.c.b16 %v3402, %v3394
        %v3659 = vpack.c.b16 %v3403, %v3395
        %v3660 = vpack.c.b16 %v3404, %v3396
        %v3661 = vpack.c.b16 %v3405, %v3397
        %v3662 = vpack.c.b16 %v3414, %v3406
        %v3663 = vpack.c.b16 %v3415, %v3407
        %v3664 = vpack.c.b16 %v3416, %v3408
        %v3665 = vpack.c.b16 %v3417, %v3409
        %v3666 = vpack.c.b16 %v3418, %v3410
        %v3667 = vpack.c.b16 %v3419, %v3411
        %v3668 = vpack.c.b16 %v3420, %v3412
        %v3669 = vpack.c.b16 %v3421, %v3413
        %v3670 = vpack.c.b16 %v3430, %v3422
        %v3671 = vpack.c.b16 %v3431, %v3423
        %v3672 = vpack.c.b16 %v3432, %v3424
        %v3673 = vpack.c.b16 %v3433, %v3425
        %v3674 = vpack.c.b16 %v3434, %v3426
        %v3675 = vpack.c.b16 %v3435, %v3427
        %v3676 = vpack.c.b16 %v3436, %v3428
        %v3677 = vpack.c.b16 %v3437, %v3429
        %v3678 = vpack.c.b16 %v3446, %v3438
        %v3679 = vpack.c.b16 %v3447, %v3439
        %v3680 = vpack.c.b16 %v3448, %v3440
        %v3681 = vpack.c.b16 %v3449, %v3441
        %v3682 = vpack.c.b16 %v3450, %v3442
        %v3683 = vpack.c.b16 %v3451, %v3443
        %v3684 = vpack.c.b16 %v3452, %v3444
        %v3685 = vpack.c.b16 %v3453, %v3445
        %v3686 = vpack.c.b16 %v3462, %v3454
        %v3687 = vpack.c.b16 %v3463, %v3455
        %v3688 = vpack.c.b16 %v3464, %v3456
        %v3689 = vpack.c.b16 %v3465, %v3457
        %v3690 = vpack.c.b16 %v3466, %v3458
        %v3691 = vpack.c.b16 %v3467, %v3459
        %v3692 = vpack.c.b16 %v3468, %v3460
        %v3693 = vpack.c.b16 %v3469, %v3461
        %v3694 = vpack.c.b16 %v3478, %v3470
        %v3695 = vpack.c.b16 %v3479, %v3471
        %v3696 = vpack.c.b16 %v3480, %v3472
        %v3697 = vpack.c.b16 %v3481, %v3473
        %v3698 = vpack.c.b16 %v3482, %v3474
        %v3699 = vpack.c.b16 %v3483, %v3475
        %v3700 = vpack.c.b16 %v3484, %v3476
        %v3701 = vpack.c.b16 %v3485, %v3477
        %v3702 = vpack.c.b16 %v3494, %v3486
        %v3703 = vpack.c.b16 %v3495, %v3487
        %v3704 = vpack.c.b16 %v3496, %v3488
        %v3705 = vpack.c.b16 %v3497, %v3489
        %v3706 = vpack.c.b16 %v3498, %v3490
        %v3707 = vpack.c.b16 %v3499, %v3491
        %v3708 = vpack.c.b16 %v3500, %v3492
        %v3709 = vpack.c.b16 %v3501, %v3493
        %v3710 = vpack.c.b16 %v3510, %v3502
        %v3711 = vpack.c.b16 %v3511, %v3503
        %v3712 = vpack.c.b16 %v3512, %v3504
        %v3713 = vpack.c.b16 %v3513, %v3505
        %v3714 = vpack.c.b16 %v3514, %v3506
        %v3715 = vpack.c.b16 %v3515, %v3507
        %v3716 = vpack.c.b16 %v3516, %v3508
        %v3717 = vpack.c.b16 %v3517, %v3509
        %v3718 = vpack.c.b16 %v3526, %v3518
        %v3719 = vpack.c.b16 %v3527, %v3519
        %v3720 = vpack.c.b16 %v3528, %v3520
        %v3721 = vpack.c.b16 %v3529, %v3521
        %v3722 = vpack.c.b16 %v3530, %v3522
        %v3723 = vpack.c.b16 %v3531, %v3523
        %v3724 = vpack.c.b16 %v3532, %v3524
        %v3725 = vpack.c.b16 %v3533, %v3525
        %v3726 = vpack.c.b16 %v3542, %v3534
        %v3727 = vpack.c.b16 %v3543, %v3535
        %v3728 = vpack.c.b16 %v3544, %v3536
        %v3729 = vpack.c.b16 %v3545, %v3537
        %v3730 = vpack.c.b16 %v3546, %v3538
        %v3731 = vpack.c.b16 %v3547, %v3539
        %v3732 = vpack.c.b16 %v3548, %v3540
        %v3733 = vpack.c.b16 %v3549, %v3541
        %v3734 = vpack.c.b16 %v3558, %v3550
        %v3735 = vpack.c.b16 %v3559, %v3551
        %v3736 = vpack.c.b16 %v3560, %v3552
        %v3737 = vpack.c.b16 %v3561, %v3553
        %v3738 = vpack.c.b16 %v3562, %v3554
        %v3739 = vpack.c.b16 %v3563, %v3555
        %v3740 = vpack.c.b16 %v3564, %v3556
        %v3741 = vpack.c.b16 %v3565, %v3557
        %v3742 = vpack.c.b16 %v3574, %v3566
        %v3743 = vpack.c.b16 %v3575, %v3567
        %v3744 = vpack.c.b16 %v3576, %v3568
        %v3745 = vpack.c.b16 %v3577, %v3569
        %v3746 = vpack.c.b16 %v3578, %v3570
        %v3747 = vpack.c.b16 %v3579, %v3571
        %v3748 = vpack.c.b16 %v3580, %v3572
        %v3749 = vpack.c.b16 %v3581, %v3573
        %v3750 = vpack.c.b16 %v3590, %v3582
        %v3751 = vpack.c.b16 %v3591, %v3583
        %v3752 = vpack.c.b16 %v3592, %v3584
        %v3753 = vpack.c.b16 %v3593, %v3585
        %v3754 = vpack.c.b16 %v3594, %v3586
        %v3755 = vpack.c.b16 %v3595, %v3587
        %v3756 = vpack.c.b16 %v3596, %v3588
        %v3757 = vpack.c.b16 %v3597, %v3589
        %v3758 = vpack.c.b16 %v3606, %v3598
        %v3759 = vpack.c.b16 %v3607, %v3599
        %v3760 = vpack.c.b16 %v3608, %v3600
        %v3761 = vpack.c.b16 %v3609, %v3601
        %v3762 = vpack.c.b16 %v3610, %v3602
        %v3763 = vpack.c.b16 %v3611, %v3603
        %v3764 = vpack.c.b16 %v3612, %v3604
        %v3765 = vpack.c.b16 %v3613, %v3605
        %v3766 = vpack.c.b16 %v3622, %v3614
        %v3767 = vpack.c.b16 %v3623, %v3615
        %v3768 = vpack.c.b16 %v3624, %v3616
        %v3769 = vpack.c.b16 %v3625, %v3617
        %v3770 = vpack.c.b16 %v3626, %v3618
        %v3771 = vpack.c.b16 %v3627, %v3619
        %v3772 = vpack.c.b16 %v3628, %v3620
        %v3773 = vpack.c.b16 %v3629, %v3621
        %vm3918 = vcmask 261120
        %v3920 = vsel %vm3918, %v3190, 0
        %v3923 = vsel %vm3918, %v3193, 0
        %3925 = vmatpush.bf16.msra.mxu0 %v3686
        %3926 = vmatpush.bf16.msra.mxu0 %v3678
        %3927 = vmatpush.bf16.msra.mxu0 %v3670
        %3928 = vmatpush.bf16.msra.mxu0 %v3662
        %3929 = vmatpush.bf16.msra.mxu0 %v3654
        %3930 = vmatpush.bf16.msra.mxu0 %v3646
        %3931 = vmatpush.bf16.msra.mxu0 %v3638
        %3932 = vmatpush.bf16.msra.mxu0 %v3630
        %3933 = vmatmul.bf16.gmra.mxu0 %v3188
        %v3934 = vpop.f32.mrf.mxu0
        %v3935 = vadd.f32 %v3151, %v3934
        %v3936 = vpop.f32.mrf.mxu0
        %v3937 = vadd.f32 %v3156, %v3936
        %3938 = vmatmul.bf16.gmra.mxu0 %v3191
        %v3939 = vpop.f32.mrf.mxu0
        %v3940 = vadd.f32 %v3161, %v3939
        %v3941 = vpop.f32.mrf.mxu0
        %v3942 = vadd.f32 %v3166, %v3941
        %3943 = vdwg.mxu0
        %3944 = vmatpush.bf16.msra.mxu0 %v3750
        %3945 = vmatpush.bf16.msra.mxu0 %v3742
        %3946 = vmatpush.bf16.msra.mxu0 %v3734
        %3947 = vmatpush.bf16.msra.mxu0 %v3726
        %3948 = vmatpush.bf16.msra.mxu0 %v3718
        %3949 = vmatpush.bf16.msra.mxu0 %v3710
        %3950 = vmatpush.bf16.msra.mxu0 %v3702
        %3951 = vmatpush.bf16.msra.mxu0 %v3694
        %3952 = vmatmul.bf16.gmra.mxu0 %v3189
        %v3953 = vpop.f32.mrf.mxu0
        %v3954 = vadd.f32 %v3935, %v3953
        %v3955 = vpop.f32.mrf.mxu0
        %v3956 = vadd.f32 %v3937, %v3955
        %3957 = vmatmul.bf16.gmra.mxu0 %v3192
        %v3958 = vpop.f32.mrf.mxu0
        %v3959 = vadd.f32 %v3940, %v3958
        %v3960 = vpop.f32.mrf.mxu0
        %v3961 = vadd.f32 %v3942, %v3960
        %3962 = vdwg.mxu0
        %3963 = vmatpush.bf16.msra.mxu0 0
        %3964 = vmatpush.bf16.msra.mxu0 0
        %3965 = vmatpush.bf16.msra.mxu0 0
        %3966 = vmatpush.bf16.msra.mxu0 0
        %3967 = vmatpush.bf16.msra.mxu0 0
        %3968 = vmatpush.bf16.msra.mxu0 0
        %3969 = vmatpush.bf16.msra.mxu0 %v3766
        %3970 = vmatpush.bf16.msra.mxu0 %v3758
        %3971 = vmatmul.bf16.gmra.mxu0 %v3920
        %v3972 = vpop.f32.mrf.mxu0
        %v3973 = vadd.f32 %v3954, %v3972
        %v3974 = vpop.f32.mrf.mxu0
        %v3975 = vadd.f32 %v3956, %v3974
        %3976 = vmatmul.bf16.gmra.mxu0 %v3923
        %v3977 = vpop.f32.mrf.mxu0
        %v3978 = vadd.f32 %v3959, %v3977
        %v3979 = vpop.f32.mrf.mxu0
        %v3980 = vadd.f32 %v3961, %v3979
        %3981 = vdwg.mxu0
        %3982 = vmatpush.bf16.msra.mxu0 %v3687
        %3983 = vmatpush.bf16.msra.mxu0 %v3679
        %3984 = vmatpush.bf16.msra.mxu0 %v3671
        %3985 = vmatpush.bf16.msra.mxu0 %v3663
        %3986 = vmatpush.bf16.msra.mxu0 %v3655
        %3987 = vmatpush.bf16.msra.mxu0 %v3647
        %3988 = vmatpush.bf16.msra.mxu0 %v3639
        %3989 = vmatpush.bf16.msra.mxu0 %v3631
        %3990 = vmatmul.bf16.gmra.mxu0 %v3188
        %v3991 = vpop.f32.mrf.mxu0
        %v3992 = vadd.f32 %v3151, %v3991
        %v3993 = vpop.f32.mrf.mxu0
        %v3994 = vadd.f32 %v3156, %v3993
        %3995 = vmatmul.bf16.gmra.mxu0 %v3191
        %v3996 = vpop.f32.mrf.mxu0
        %v3997 = vadd.f32 %v3161, %v3996
        %v3998 = vpop.f32.mrf.mxu0
        %v3999 = vadd.f32 %v3166, %v3998
        %4000 = vdwg.mxu0
        %4001 = vmatpush.bf16.msra.mxu0 %v3751
        %4002 = vmatpush.bf16.msra.mxu0 %v3743
        %4003 = vmatpush.bf16.msra.mxu0 %v3735
        %4004 = vmatpush.bf16.msra.mxu0 %v3727
        %4005 = vmatpush.bf16.msra.mxu0 %v3719
        %4006 = vmatpush.bf16.msra.mxu0 %v3711
        %4007 = vmatpush.bf16.msra.mxu0 %v3703
        %4008 = vmatpush.bf16.msra.mxu0 %v3695
        %4009 = vmatmul.bf16.gmra.mxu0 %v3189
        %v4010 = vpop.f32.mrf.mxu0
        %v4011 = vadd.f32 %v3992, %v4010
        %v4012 = vpop.f32.mrf.mxu0
        %v4013 = vadd.f32 %v3994, %v4012
        %4014 = vmatmul.bf16.gmra.mxu0 %v3192
        %v4015 = vpop.f32.mrf.mxu0
        %v4016 = vadd.f32 %v3997, %v4015
        %v4017 = vpop.f32.mrf.mxu0
        %v4018 = vadd.f32 %v3999, %v4017
        %4019 = vdwg.mxu0
        %4020 = vmatpush.bf16.msra.mxu0 0
        %4021 = vmatpush.bf16.msra.mxu0 0
        %4022 = vmatpush.bf16.msra.mxu0 0
        %4023 = vmatpush.bf16.msra.mxu0 0
        %4024 = vmatpush.bf16.msra.mxu0 0
        %4025 = vmatpush.bf16.msra.mxu0 0
        %4026 = vmatpush.bf16.msra.mxu0 %v3767
        %4027 = vmatpush.bf16.msra.mxu0 %v3759
        %4028 = vmatmul.bf16.gmra.mxu0 %v3920
        %v4029 = vpop.f32.mrf.mxu0
        %v4030 = vadd.f32 %v4011, %v4029
        %v4031 = vpop.f32.mrf.mxu0
        %v4032 = vadd.f32 %v4013, %v4031
        %4033 = vmatmul.bf16.gmra.mxu0 %v3923
        %v4034 = vpop.f32.mrf.mxu0
        %v4035 = vadd.f32 %v4016, %v4034
        %v4036 = vpop.f32.mrf.mxu0
        %v4037 = vadd.f32 %v4018, %v4036
        %4038 = vdwg.mxu0
        %4039 = vmatpush.bf16.msra.mxu0 %v3688
        %4040 = vmatpush.bf16.msra.mxu0 %v3680
        %4041 = vmatpush.bf16.msra.mxu0 %v3672
        %4042 = vmatpush.bf16.msra.mxu0 %v3664
        %4043 = vmatpush.bf16.msra.mxu0 %v3656
        %4044 = vmatpush.bf16.msra.mxu0 %v3648
        %4045 = vmatpush.bf16.msra.mxu0 %v3640
        %4046 = vmatpush.bf16.msra.mxu0 %v3632
        %4047 = vmatmul.bf16.gmra.mxu0 %v3188
        %v4048 = vpop.f32.mrf.mxu0
        %v4049 = vadd.f32 %v3151, %v4048
        %v4050 = vpop.f32.mrf.mxu0
        %v4051 = vadd.f32 %v3156, %v4050
        %4052 = vmatmul.bf16.gmra.mxu0 %v3191
        %v4053 = vpop.f32.mrf.mxu0
        %v4054 = vadd.f32 %v3161, %v4053
        %v4055 = vpop.f32.mrf.mxu0
        %v4056 = vadd.f32 %v3166, %v4055
        %4057 = vdwg.mxu0
        %4058 = vmatpush.bf16.msra.mxu0 %v3752
        %4059 = vmatpush.bf16.msra.mxu0 %v3744
        %4060 = vmatpush.bf16.msra.mxu0 %v3736
        %4061 = vmatpush.bf16.msra.mxu0 %v3728
        %4062 = vmatpush.bf16.msra.mxu0 %v3720
        %4063 = vmatpush.bf16.msra.mxu0 %v3712
        %4064 = vmatpush.bf16.msra.mxu0 %v3704
        %4065 = vmatpush.bf16.msra.mxu0 %v3696
        %4066 = vmatmul.bf16.gmra.mxu0 %v3189
        %v4067 = vpop.f32.mrf.mxu0
        %v4068 = vadd.f32 %v4049, %v4067
        %v4069 = vpop.f32.mrf.mxu0
        %v4070 = vadd.f32 %v4051, %v4069
        %4071 = vmatmul.bf16.gmra.mxu0 %v3192
        %v4072 = vpop.f32.mrf.mxu0
        %v4073 = vadd.f32 %v4054, %v4072
        %v4074 = vpop.f32.mrf.mxu0
        %v4075 = vadd.f32 %v4056, %v4074
        %4076 = vdwg.mxu0
        %4077 = vmatpush.bf16.msra.mxu0 0
        %4078 = vmatpush.bf16.msra.mxu0 0
        %4079 = vmatpush.bf16.msra.mxu0 0
        %4080 = vmatpush.bf16.msra.mxu0 0
        %4081 = vmatpush.bf16.msra.mxu0 0
        %4082 = vmatpush.bf16.msra.mxu0 0
        %4083 = vmatpush.bf16.msra.mxu0 %v3768
        %4084 = vmatpush.bf16.msra.mxu0 %v3760
        %4085 = vmatmul.bf16.gmra.mxu0 %v3920
        %v4086 = vpop.f32.mrf.mxu0
        %v4087 = vadd.f32 %v4068, %v4086
        %v4088 = vpop.f32.mrf.mxu0
        %v4089 = vadd.f32 %v4070, %v4088
        %4090 = vmatmul.bf16.gmra.mxu0 %v3923
        %v4091 = vpop.f32.mrf.mxu0
        %v4092 = vadd.f32 %v4073, %v4091
        %v4093 = vpop.f32.mrf.mxu0
        %v4094 = vadd.f32 %v4075, %v4093
        %4095 = vdwg.mxu0
        %4096 = vmatpush.bf16.msra.mxu0 %v3689
        %4097 = vmatpush.bf16.msra.mxu0 %v3681
        %4098 = vmatpush.bf16.msra.mxu0 %v3673
        %4099 = vmatpush.bf16.msra.mxu0 %v3665
        %4100 = vmatpush.bf16.msra.mxu0 %v3657
        %4101 = vmatpush.bf16.msra.mxu0 %v3649
        %4102 = vmatpush.bf16.msra.mxu0 %v3641
        %4103 = vmatpush.bf16.msra.mxu0 %v3633
        %4104 = vmatmul.bf16.gmra.mxu0 %v3188
        %v4105 = vpop.f32.mrf.mxu0
        %v4106 = vadd.f32 %v3151, %v4105
        %v4107 = vpop.f32.mrf.mxu0
        %v4108 = vadd.f32 %v3156, %v4107
        %4109 = vmatmul.bf16.gmra.mxu0 %v3191
        %v4110 = vpop.f32.mrf.mxu0
        %v4111 = vadd.f32 %v3161, %v4110
        %v4112 = vpop.f32.mrf.mxu0
        %v4113 = vadd.f32 %v3166, %v4112
        %4114 = vdwg.mxu0
        %4115 = vmatpush.bf16.msra.mxu0 %v3753
        %4116 = vmatpush.bf16.msra.mxu0 %v3745
        %4117 = vmatpush.bf16.msra.mxu0 %v3737
        %4118 = vmatpush.bf16.msra.mxu0 %v3729
        %4119 = vmatpush.bf16.msra.mxu0 %v3721
        %4120 = vmatpush.bf16.msra.mxu0 %v3713
        %4121 = vmatpush.bf16.msra.mxu0 %v3705
        %4122 = vmatpush.bf16.msra.mxu0 %v3697
        %4123 = vmatmul.bf16.gmra.mxu0 %v3189
        %v4124 = vpop.f32.mrf.mxu0
        %v4125 = vadd.f32 %v4106, %v4124
        %v4126 = vpop.f32.mrf.mxu0
        %v4127 = vadd.f32 %v4108, %v4126
        %4128 = vmatmul.bf16.gmra.mxu0 %v3192
        %v4129 = vpop.f32.mrf.mxu0
        %v4130 = vadd.f32 %v4111, %v4129
        %v4131 = vpop.f32.mrf.mxu0
        %v4132 = vadd.f32 %v4113, %v4131
        %4133 = vdwg.mxu0
        %4134 = vmatpush.bf16.msra.mxu0 0
        %4135 = vmatpush.bf16.msra.mxu0 0
        %4136 = vmatpush.bf16.msra.mxu0 0
        %4137 = vmatpush.bf16.msra.mxu0 0
        %4138 = vmatpush.bf16.msra.mxu0 0
        %4139 = vmatpush.bf16.msra.mxu0 0
        %4140 = vmatpush.bf16.msra.mxu0 %v3769
        %4141 = vmatpush.bf16.msra.mxu0 %v3761
        %4142 = vmatmul.bf16.gmra.mxu0 %v3920
        %v4143 = vpop.f32.mrf.mxu0
        %v4144 = vadd.f32 %v4125, %v4143
        %v4145 = vpop.f32.mrf.mxu0
        %v4146 = vadd.f32 %v4127, %v4145
        %4147 = vmatmul.bf16.gmra.mxu0 %v3923
        %v4148 = vpop.f32.mrf.mxu0
        %v4149 = vadd.f32 %v4130, %v4148
        %v4150 = vpop.f32.mrf.mxu0
        %v4151 = vadd.f32 %v4132, %v4150
        %4152 = vdwg.mxu0
        %4153 = vmatpush.bf16.msra.mxu0 %v3690
        %4154 = vmatpush.bf16.msra.mxu0 %v3682
        %4155 = vmatpush.bf16.msra.mxu0 %v3674
        %4156 = vmatpush.bf16.msra.mxu0 %v3666
        %4157 = vmatpush.bf16.msra.mxu0 %v3658
        %4158 = vmatpush.bf16.msra.mxu0 %v3650
        %4159 = vmatpush.bf16.msra.mxu0 %v3642
        %4160 = vmatpush.bf16.msra.mxu0 %v3634
        %4161 = vmatmul.bf16.gmra.mxu0 %v3188
        %v4162 = vpop.f32.mrf.mxu0
        %v4163 = vadd.f32 %v3151, %v4162
        %v4164 = vpop.f32.mrf.mxu0
        %v4165 = vadd.f32 %v3156, %v4164
        %4166 = vmatmul.bf16.gmra.mxu0 %v3191
        %v4167 = vpop.f32.mrf.mxu0
        %v4168 = vadd.f32 %v3161, %v4167
        %v4169 = vpop.f32.mrf.mxu0
        %v4170 = vadd.f32 %v3166, %v4169
        %4171 = vdwg.mxu0
        %4172 = vmatpush.bf16.msra.mxu0 %v3754
        %4173 = vmatpush.bf16.msra.mxu0 %v3746
        %4174 = vmatpush.bf16.msra.mxu0 %v3738
        %4175 = vmatpush.bf16.msra.mxu0 %v3730
        %4176 = vmatpush.bf16.msra.mxu0 %v3722
        %4177 = vmatpush.bf16.msra.mxu0 %v3714
        %4178 = vmatpush.bf16.msra.mxu0 %v3706
        %4179 = vmatpush.bf16.msra.mxu0 %v3698
        %4180 = vmatmul.bf16.gmra.mxu0 %v3189
        %v4181 = vpop.f32.mrf.mxu0
        %v4182 = vadd.f32 %v4163, %v4181
        %v4183 = vpop.f32.mrf.mxu0
        %v4184 = vadd.f32 %v4165, %v4183
        %4185 = vmatmul.bf16.gmra.mxu0 %v3192
        %v4186 = vpop.f32.mrf.mxu0
        %v4187 = vadd.f32 %v4168, %v4186
        %v4188 = vpop.f32.mrf.mxu0
        %v4189 = vadd.f32 %v4170, %v4188
        %4190 = vdwg.mxu0
        %4191 = vmatpush.bf16.msra.mxu0 0
        %4192 = vmatpush.bf16.msra.mxu0 0
        %4193 = vmatpush.bf16.msra.mxu0 0
        %4194 = vmatpush.bf16.msra.mxu0 0
        %4195 = vmatpush.bf16.msra.mxu0 0
        %4196 = vmatpush.bf16.msra.mxu0 0
        %4197 = vmatpush.bf16.msra.mxu0 %v3770
        %4198 = vmatpush.bf16.msra.mxu0 %v3762
        %4199 = vmatmul.bf16.gmra.mxu0 %v3920
        %v4200 = vpop.f32.mrf.mxu0
        %v4201 = vadd.f32 %v4182, %v4200
        %v4202 = vpop.f32.mrf.mxu0
        %v4203 = vadd.f32 %v4184, %v4202
        %4204 = vmatmul.bf16.gmra.mxu0 %v3923
        %v4205 = vpop.f32.mrf.mxu0
        %v4206 = vadd.f32 %v4187, %v4205
        %v4207 = vpop.f32.mrf.mxu0
        %v4208 = vadd.f32 %v4189, %v4207
        %4209 = vdwg.mxu0
        %4210 = vmatpush.bf16.msra.mxu0 %v3691
        %4211 = vmatpush.bf16.msra.mxu0 %v3683
        %4212 = vmatpush.bf16.msra.mxu0 %v3675
        %4213 = vmatpush.bf16.msra.mxu0 %v3667
        %4214 = vmatpush.bf16.msra.mxu0 %v3659
        %4215 = vmatpush.bf16.msra.mxu0 %v3651
        %4216 = vmatpush.bf16.msra.mxu0 %v3643
        %4217 = vmatpush.bf16.msra.mxu0 %v3635
        %4218 = vmatmul.bf16.gmra.mxu0 %v3188
        %v4219 = vpop.f32.mrf.mxu0
        %v4220 = vadd.f32 %v3151, %v4219
        %v4221 = vpop.f32.mrf.mxu0
        %v4222 = vadd.f32 %v3156, %v4221
        %4223 = vmatmul.bf16.gmra.mxu0 %v3191
        %v4224 = vpop.f32.mrf.mxu0
        %v4225 = vadd.f32 %v3161, %v4224
        %v4226 = vpop.f32.mrf.mxu0
        %v4227 = vadd.f32 %v3166, %v4226
        %4228 = vdwg.mxu0
        %4229 = vmatpush.bf16.msra.mxu0 %v3755
        %4230 = vmatpush.bf16.msra.mxu0 %v3747
        %4231 = vmatpush.bf16.msra.mxu0 %v3739
        %4232 = vmatpush.bf16.msra.mxu0 %v3731
        %4233 = vmatpush.bf16.msra.mxu0 %v3723
        %4234 = vmatpush.bf16.msra.mxu0 %v3715
        %4235 = vmatpush.bf16.msra.mxu0 %v3707
        %4236 = vmatpush.bf16.msra.mxu0 %v3699
        %4237 = vmatmul.bf16.gmra.mxu0 %v3189
        %v4238 = vpop.f32.mrf.mxu0
        %v4239 = vadd.f32 %v4220, %v4238
        %v4240 = vpop.f32.mrf.mxu0
        %v4241 = vadd.f32 %v4222, %v4240
        %4242 = vmatmul.bf16.gmra.mxu0 %v3192
        %v4243 = vpop.f32.mrf.mxu0
        %v4244 = vadd.f32 %v4225, %v4243
        %v4245 = vpop.f32.mrf.mxu0
        %v4246 = vadd.f32 %v4227, %v4245
        %4247 = vdwg.mxu0
        %4248 = vmatpush.bf16.msra.mxu0 0
        %4249 = vmatpush.bf16.msra.mxu0 0
        %4250 = vmatpush.bf16.msra.mxu0 0
        %4251 = vmatpush.bf16.msra.mxu0 0
        %4252 = vmatpush.bf16.msra.mxu0 0
        %4253 = vmatpush.bf16.msra.mxu0 0
        %4254 = vmatpush.bf16.msra.mxu0 %v3771
        %4255 = vmatpush.bf16.msra.mxu0 %v3763
        %4256 = vmatmul.bf16.gmra.mxu0 %v3920
        %v4257 = vpop.f32.mrf.mxu0
        %v4258 = vadd.f32 %v4239, %v4257
        %v4259 = vpop.f32.mrf.mxu0
        %v4260 = vadd.f32 %v4241, %v4259
        %4261 = vmatmul.bf16.gmra.mxu0 %v3923
        %v4262 = vpop.f32.mrf.mxu0
        %v4263 = vadd.f32 %v4244, %v4262
        %v4264 = vpop.f32.mrf.mxu0
        %v4265 = vadd.f32 %v4246, %v4264
        %4266 = vdwg.mxu0
        %4267 = vmatpush.bf16.msra.mxu0 %v3692
        %4268 = vmatpush.bf16.msra.mxu0 %v3684
        %4269 = vmatpush.bf16.msra.mxu0 %v3676
        %4270 = vmatpush.bf16.msra.mxu0 %v3668
        %4271 = vmatpush.bf16.msra.mxu0 %v3660
        %4272 = vmatpush.bf16.msra.mxu0 %v3652
        %4273 = vmatpush.bf16.msra.mxu0 %v3644
        %4274 = vmatpush.bf16.msra.mxu0 %v3636
        %4275 = vmatmul.bf16.gmra.mxu0 %v3188
        %v4276 = vpop.f32.mrf.mxu0
        %v4277 = vadd.f32 %v3151, %v4276
        %v4278 = vpop.f32.mrf.mxu0
        %v4279 = vadd.f32 %v3156, %v4278
        %4280 = vmatmul.bf16.gmra.mxu0 %v3191
        %v4281 = vpop.f32.mrf.mxu0
        %v4282 = vadd.f32 %v3161, %v4281
        %v4283 = vpop.f32.mrf.mxu0
        %v4284 = vadd.f32 %v3166, %v4283
        %4285 = vdwg.mxu0
        %4286 = vmatpush.bf16.msra.mxu0 %v3756
        %4287 = vmatpush.bf16.msra.mxu0 %v3748
        %4288 = vmatpush.bf16.msra.mxu0 %v3740
        %4289 = vmatpush.bf16.msra.mxu0 %v3732
        %4290 = vmatpush.bf16.msra.mxu0 %v3724
        %4291 = vmatpush.bf16.msra.mxu0 %v3716
        %4292 = vmatpush.bf16.msra.mxu0 %v3708
        %4293 = vmatpush.bf16.msra.mxu0 %v3700
        %4294 = vmatmul.bf16.gmra.mxu0 %v3189
        %v4295 = vpop.f32.mrf.mxu0
        %v4296 = vadd.f32 %v4277, %v4295
        %v4297 = vpop.f32.mrf.mxu0
        %v4298 = vadd.f32 %v4279, %v4297
        %4299 = vmatmul.bf16.gmra.mxu0 %v3192
        %v4300 = vpop.f32.mrf.mxu0
        %v4301 = vadd.f32 %v4282, %v4300
        %v4302 = vpop.f32.mrf.mxu0
        %v4303 = vadd.f32 %v4284, %v4302
        %4304 = vdwg.mxu0
        %4305 = vmatpush.bf16.msra.mxu0 0
        %4306 = vmatpush.bf16.msra.mxu0 0
        %4307 = vmatpush.bf16.msra.mxu0 0
        %4308 = vmatpush.bf16.msra.mxu0 0
        %4309 = vmatpush.bf16.msra.mxu0 0
        %4310 = vmatpush.bf16.msra.mxu0 0
        %4311 = vmatpush.bf16.msra.mxu0 %v3772
        %4312 = vmatpush.bf16.msra.mxu0 %v3764
        %4313 = vmatmul.bf16.gmra.mxu0 %v3920
        %v4314 = vpop.f32.mrf.mxu0
        %v4315 = vadd.f32 %v4296, %v4314
        %v4316 = vpop.f32.mrf.mxu0
        %v4317 = vadd.f32 %v4298, %v4316
        %4318 = vmatmul.bf16.gmra.mxu0 %v3923
        %v4319 = vpop.f32.mrf.mxu0
        %v4320 = vadd.f32 %v4301, %v4319
        %v4321 = vpop.f32.mrf.mxu0
        %v4322 = vadd.f32 %v4303, %v4321
        %4323 = vdwg.mxu0
        %4324 = vmatpush.bf16.msra.mxu0 %v3693
        %4325 = vmatpush.bf16.msra.mxu0 %v3685
        %4326 = vmatpush.bf16.msra.mxu0 %v3677
        %4327 = vmatpush.bf16.msra.mxu0 %v3669
        %4328 = vmatpush.bf16.msra.mxu0 %v3661
        %4329 = vmatpush.bf16.msra.mxu0 %v3653
        %4330 = vmatpush.bf16.msra.mxu0 %v3645
        %4331 = vmatpush.bf16.msra.mxu0 %v3637
        %4332 = vmatmul.bf16.gmra.mxu0 %v3188
        %v4333 = vpop.f32.mrf.mxu0
        %v4334 = vadd.f32 %v3151, %v4333
        %v4335 = vpop.f32.mrf.mxu0
        %v4336 = vadd.f32 %v3156, %v4335
        %4337 = vmatmul.bf16.gmra.mxu0 %v3191
        %v4338 = vpop.f32.mrf.mxu0
        %v4339 = vadd.f32 %v3161, %v4338
        %v4340 = vpop.f32.mrf.mxu0
        %v4341 = vadd.f32 %v3166, %v4340
        %4342 = vdwg.mxu0
        %4343 = vmatpush.bf16.msra.mxu0 %v3757
        %4344 = vmatpush.bf16.msra.mxu0 %v3749
        %4345 = vmatpush.bf16.msra.mxu0 %v3741
        %4346 = vmatpush.bf16.msra.mxu0 %v3733
        %4347 = vmatpush.bf16.msra.mxu0 %v3725
        %4348 = vmatpush.bf16.msra.mxu0 %v3717
        %4349 = vmatpush.bf16.msra.mxu0 %v3709
        %4350 = vmatpush.bf16.msra.mxu0 %v3701
        %4351 = vmatmul.bf16.gmra.mxu0 %v3189
        %v4352 = vpop.f32.mrf.mxu0
        %v4353 = vadd.f32 %v4334, %v4352
        %v4354 = vpop.f32.mrf.mxu0
        %v4355 = vadd.f32 %v4336, %v4354
        %4356 = vmatmul.bf16.gmra.mxu0 %v3192
        %v4357 = vpop.f32.mrf.mxu0
        %v4358 = vadd.f32 %v4339, %v4357
        %v4359 = vpop.f32.mrf.mxu0
        %v4360 = vadd.f32 %v4341, %v4359
        %4361 = vdwg.mxu0
        %4362 = vmatpush.bf16.msra.mxu0 0
        %4363 = vmatpush.bf16.msra.mxu0 0
        %4364 = vmatpush.bf16.msra.mxu0 0
        %4365 = vmatpush.bf16.msra.mxu0 0
        %4366 = vmatpush.bf16.msra.mxu0 0
        %4367 = vmatpush.bf16.msra.mxu0 0
        %4368 = vmatpush.bf16.msra.mxu0 %v3773
        %4369 = vmatpush.bf16.msra.mxu0 %v3765
        %4370 = vmatmul.bf16.gmra.mxu0 %v3920
        %v4371 = vpop.f32.mrf.mxu0
        %v4372 = vadd.f32 %v4353, %v4371
        %v4373 = vpop.f32.mrf.mxu0
        %v4374 = vadd.f32 %v4355, %v4373
        %4375 = vmatmul.bf16.gmra.mxu0 %v3923
        %v4376 = vpop.f32.mrf.mxu0
        %v4377 = vadd.f32 %v4358, %v4376
        %v4378 = vpop.f32.mrf.mxu0
        %v4379 = vadd.f32 %v4360, %v4378
        %4380 = vdwg.mxu0
        %v4381 = vmax.f32 %v3973, 0.0
        %v4382 = vmax.f32 %v4030, 0.0
        %v4383 = vmax.f32 %v4087, 0.0
        %v4384 = vmax.f32 %v4144, 0.0
        %v4385 = vmax.f32 %v4201, 0.0
        %v4386 = vmax.f32 %v4258, 0.0
        %v4387 = vmax.f32 %v4315, 0.0
        %v4388 = vmax.f32 %v4372, 0.0
        %v4389 = vmax.f32 %v3975, 0.0
        %v4390 = vmax.f32 %v4032, 0.0
        %v4391 = vmax.f32 %v4089, 0.0
        %v4392 = vmax.f32 %v4146, 0.0
        %v4393 = vmax.f32 %v4203, 0.0
        %v4394 = vmax.f32 %v4260, 0.0
        %v4395 = vmax.f32 %v4317, 0.0
        %v4396 = vmax.f32 %v4374, 0.0
        %v4397 = vmax.f32 %v3978, 0.0
        %v4398 = vmax.f32 %v4035, 0.0
        %v4399 = vmax.f32 %v4092, 0.0
        %v4400 = vmax.f32 %v4149, 0.0
        %v4401 = vmax.f32 %v4206, 0.0
        %v4402 = vmax.f32 %v4263, 0.0
        %v4403 = vmax.f32 %v4320, 0.0
        %v4404 = vmax.f32 %v4377, 0.0
        %v4405 = vmax.f32 %v3980, 0.0
        %v4406 = vmax.f32 %v4037, 0.0
        %v4407 = vmax.f32 %v4094, 0.0
        %v4408 = vmax.f32 %v4151, 0.0
        %v4409 = vmax.f32 %v4208, 0.0
        %v4410 = vmax.f32 %v4265, 0.0
        %v4411 = vmax.f32 %v4322, 0.0
        %v4412 = vmax.f32 %v4379, 0.0
        %v4413 = vpack.c.bf16 %v4382, %v4381
        %v4414 = vpack.c.bf16 %v4384, %v4383
        %v4415 = vpack.c.bf16 %v4386, %v4385
        %v4416 = vpack.c.bf16 %v4388, %v4387
        %v4417 = vpack.c.bf16 %v4390, %v4389
        %v4418 = vpack.c.bf16 %v4392, %v4391
        %v4419 = vpack.c.bf16 %v4394, %v4393
        %v4420 = vpack.c.bf16 %v4396, %v4395
        %v4421 = vpack.c.bf16 %v4398, %v4397
        %v4422 = vpack.c.bf16 %v4400, %v4399
        %v4423 = vpack.c.bf16 %v4402, %v4401
        %v4424 = vpack.c.bf16 %v4404, %v4403
        %v4425 = vpack.c.bf16 %v4406, %v4405
        %v4426 = vpack.c.bf16 %v4408, %v4407
        %v4427 = vpack.c.bf16 %v4410, %v4409
        %v4428 = vpack.c.bf16 %v4412, %v4411
        %4429 = vst [vmem:[#allocation4] sm:$0xff] %v4413
        %4430 = vst [vmem:[#allocation4 + $0x8] sm:$0xff] %v4414
        %4431 = vst [vmem:[#allocation4 + $0x10] sm:$0xff] %v4415
        %4432 = vst [vmem:[#allocation4 + $0x18] sm:$0xff] %v4416
        %4433 = vst [vmem:[#allocation4 + $0x20] sm:$0xff] %v4417
        %4434 = vst [vmem:[#allocation4 + $0x28] sm:$0xff] %v4418
        %4435 = vst [vmem:[#allocation4 + $0x30] sm:$0xff] %v4419
        %4436 = vst [vmem:[#allocation4 + $0x38] sm:$0xff] %v4420
        %4437 = vst [vmem:[#allocation4 + $0x40] sm:$0xff] %v4421
        %4438 = vst [vmem:[#allocation4 + $0x48] sm:$0xff] %v4422
        %4439 = vst [vmem:[#allocation4 + $0x50] sm:$0xff] %v4423
        %4440 = vst [vmem:[#allocation4 + $0x58] sm:$0xff] %v4424
        %4441 = vst [vmem:[#allocation4 + $0x60] sm:$0xff] %v4425
        %4442 = vst [vmem:[#allocation4 + $0x68] sm:$0xff] %v4426
        %4443 = vst [vmem:[#allocation4 + $0x70] sm:$0xff] %v4427
        %4444 = vst [vmem:[#allocation4 + $0x78] sm:$0xff] %v4428
        %v4445 = vld [vmem:[#allocation4] sm:$0xff]
        %v4446 = vld [vmem:[#allocation4 + $0x20] sm:$0xff]
        %v4447 = vld [vmem:[#allocation4 + $0x40] sm:$0xff]
        %v4448 = vld [vmem:[#allocation4 + $0x60] sm:$0xff]
        %4449 = vst [vmem:[#allocation2 + $0x4] sm:$0xff] %v4445
        %4450 = vst [vmem:[#allocation2 + $0x14] sm:$0xff] %v4446
        %4451 = vst [vmem:[#allocation2 + $0x24] sm:$0xff] %v4447
        %4452 = vst [vmem:[#allocation2 + $0x34] sm:$0xff] %v4448
        %v4453 = vld [vmem:[#allocation2] sm:$0xff]
        %v4454 = vld [vmem:[#allocation2 + $0x8] sm:$0xf]
        %v4455 = vld [vmem:[#allocation2 + $0x10] sm:$0xff]
        %v4456 = vld [vmem:[#allocation2 + $0x18] sm:$0xf]
        %v4457 = vld [vmem:[#allocation2 + $0x20] sm:$0xff]
        %v4458 = vld [vmem:[#allocation2 + $0x28] sm:$0xf]
        %v4459 = vld [vmem:[#allocation2 + $0x30] sm:$0xff]
        %v4460 = vld [vmem:[#allocation2 + $0x38] sm:$0xf]
        %v4461 = vunpack.c.l.bf16 %v4453
        %v4462 = vunpack.c.h.bf16 %v4453
        %v4463 = vunpack.c.l.bf16 %v4454
        %v4464 = vunpack.c.l.bf16 %v4455
        %v4465 = vunpack.c.h.bf16 %v4455
        %v4466 = vunpack.c.l.bf16 %v4456
        %v4467 = vunpack.c.l.bf16 %v4457
        %v4468 = vunpack.c.h.bf16 %v4457
        %v4469 = vunpack.c.l.bf16 %v4458
        %v4470 = vunpack.c.l.bf16 %v4459
        %v4471 = vunpack.c.h.bf16 %v4459
        %v4472 = vunpack.c.l.bf16 %v4460
        %v4473 = vmul.f32 %v4461, %v307
        %v4474 = vmul.f32 %v4462, %v311
        %v4475 = vmul.f32 %v4463, %v309
        %v4476 = vmul.f32 %v4464, %v307
        %v4477 = vmul.f32 %v4465, %v311
        %v4478 = vmul.f32 %v4466, %v309
        %v4479 = vmul.f32 %v4467, %v307
        %v4480 = vmul.f32 %v4468, %v311
        %v4481 = vmul.f32 %v4469, %v309
        %v4482 = vmul.f32 %v4470, %v307
        %v4483 = vmul.f32 %v4471, %v311
        %v4484 = vmul.f32 %v4472, %v309
        %v4485 = vpack.c.bf16 %v4474, %v4473
        %v4486 = vpack.c.bf16 %v4475, %v4475
        %v4487 = vpack.c.bf16 %v4477, %v4476
        %v4488 = vpack.c.bf16 %v4478, %v4478
        %v4489 = vpack.c.bf16 %v4480, %v4479
        %v4490 = vpack.c.bf16 %v4481, %v4481
        %v4491 = vpack.c.bf16 %v4483, %v4482
        %v4492 = vpack.c.bf16 %v4484, %v4484
        %4501 = vrot.lane.b32.xlu0 %v4485, 17
        %v4502 = vpop.permute.xlu0 %4501
        %4503 = vrot.lane.b32.xlu0 %v4486, 17
        %v4504 = vpop.permute.xlu0 %4503
        %4505 = vrot.lane.b32.xlu0 %v4487, 17
        %v4506 = vpop.permute.xlu0 %4505
        %4507 = vrot.lane.b32.xlu0 %v4488, 17
        %v4508 = vpop.permute.xlu0 %4507
        %4509 = vrot.lane.b32.xlu0 %v4489, 17
        %v4510 = vpop.permute.xlu0 %4509
        %4511 = vrot.lane.b32.xlu0 %v4490, 17
        %v4512 = vpop.permute.xlu0 %4511
        %4513 = vrot.lane.b32.xlu0 %v4491, 17
        %v4514 = vpop.permute.xlu0 %4513
        %4515 = vrot.lane.b32.xlu0 %v4492, 17
        %v4516 = vpop.permute.xlu0 %4515
        %v4517 = vrot.slane %v4502, 4
        %v4518 = vrot.slane %v4504, 4
        %v4519 = vrot.slane %v4506, 4
        %v4520 = vrot.slane %v4508, 4
        %v4521 = vrot.slane %v4510, 4
        %v4522 = vrot.slane %v4512, 4
        %v4523 = vrot.slane %v4514, 4
        %v4524 = vrot.slane %v4516, 4
        %v4525 = vsel %vm367, %v4517, %v4518
        %v4526 = vsel %vm369, %v4502, %v4525
        %v4527 = vsel %vm367, %v4519, %v4520
        %v4528 = vsel %vm369, %v4506, %v4527
        %v4529 = vsel %vm367, %v4521, %v4522
        %v4530 = vsel %vm369, %v4510, %v4529
        %v4531 = vsel %vm367, %v4523, %v4524
        %v4532 = vsel %vm369, %v4514, %v4531
        %4537 = vst [vmem:[#allocation3] sm:$0xff] %v4526
        %4538 = vst [vmem:[#allocation3 + $0x20] sm:$0xff] %v4528
        %4539 = vst [vmem:[#allocation3 + $0x40] sm:$0xff] %v4530
        %4540 = vst [vmem:[#allocation3 + $0x60] sm:$0xff] %v4532
        %v4541 = vld [vmem:[#allocation2] sm:$0xff]
        %v4542 = vld [vmem:[#allocation2 + $0x8] sm:$0xf]
        %v4543 = vld [vmem:[#allocation2 + $0x10] sm:$0xff]
        %v4544 = vld [vmem:[#allocation2 + $0x18] sm:$0xf]
        %v4545 = vld [vmem:[#allocation2 + $0x20] sm:$0xff]
        %v4546 = vld [vmem:[#allocation2 + $0x28] sm:$0xf]
        %v4547 = vld [vmem:[#allocation2 + $0x30] sm:$0xff]
        %v4548 = vld [vmem:[#allocation2 + $0x38] sm:$0xf]
        %4557 = vrot.lane.b32.xlu0 %v4541, 16
        %v4558 = vpop.permute.xlu0 %4557
        %4559 = vrot.lane.b32.xlu0 %v4542, 16
        %v4560 = vpop.permute.xlu0 %4559
        %4561 = vrot.lane.b32.xlu0 %v4543, 16
        %v4562 = vpop.permute.xlu0 %4561
        %4563 = vrot.lane.b32.xlu0 %v4544, 16
        %v4564 = vpop.permute.xlu0 %4563
        %4565 = vrot.lane.b32.xlu0 %v4545, 16
        %v4566 = vpop.permute.xlu0 %4565
        %4567 = vrot.lane.b32.xlu0 %v4546, 16
        %v4568 = vpop.permute.xlu0 %4567
        %4569 = vrot.lane.b32.xlu0 %v4547, 16
        %v4570 = vpop.permute.xlu0 %4569
        %4571 = vrot.lane.b32.xlu0 %v4548, 16
        %v4572 = vpop.permute.xlu0 %4571
        %v4573 = vrot.slane %v4558, 4
        %v4574 = vrot.slane %v4560, 4
        %v4575 = vrot.slane %v4562, 4
        %v4576 = vrot.slane %v4564, 4
        %v4577 = vrot.slane %v4566, 4
        %v4578 = vrot.slane %v4568, 4
        %v4579 = vrot.slane %v4570, 4
        %v4580 = vrot.slane %v4572, 4
        %v4581 = vsel %vm367, %v4573, %v4574
        %v4582 = vsel %vm426, %v4558, %v4581
        %v4583 = vsel %vm367, %v4575, %v4576
        %v4584 = vsel %vm426, %v4562, %v4583
        %v4585 = vsel %vm367, %v4577, %v4578
        %v4586 = vsel %vm426, %v4566, %v4585
        %v4587 = vsel %vm367, %v4579, %v4580
        %v4588 = vsel %vm426, %v4570, %v4587
        %4593 = vst [vmem:[#allocation3 + $0x80] sm:$0xff] %v4582
        %4594 = vst [vmem:[#allocation3 + $0xa0] sm:$0xff] %v4584
        %4595 = vst [vmem:[#allocation3 + $0xc0] sm:$0xff] %v4586
        %4596 = vst [vmem:[#allocation3 + $0xe0] sm:$0xff] %v4588
        %v4597 = vld [vmem:[#allocation2] sm:$0xff]
        %v4598 = vld [vmem:[#allocation2 + $0x8] sm:$0xf]
        %v4599 = vld [vmem:[#allocation2 + $0x10] sm:$0xff]
        %v4600 = vld [vmem:[#allocation2 + $0x18] sm:$0xf]
        %v4601 = vld [vmem:[#allocation2 + $0x20] sm:$0xff]
        %v4602 = vld [vmem:[#allocation2 + $0x28] sm:$0xf]
        %v4603 = vld [vmem:[#allocation2 + $0x30] sm:$0xff]
        %v4604 = vld [vmem:[#allocation2 + $0x38] sm:$0xf]
        %v4605 = vunpack.c.l.bf16 %v4597
        %v4606 = vunpack.c.h.bf16 %v4597
        %v4607 = vunpack.c.l.bf16 %v4598
        %v4608 = vunpack.c.l.bf16 %v4599
        %v4609 = vunpack.c.h.bf16 %v4599
        %v4610 = vunpack.c.l.bf16 %v4600
        %v4611 = vunpack.c.l.bf16 %v4601
        %v4612 = vunpack.c.h.bf16 %v4601
        %v4613 = vunpack.c.l.bf16 %v4602
        %v4614 = vunpack.c.l.bf16 %v4603
        %v4615 = vunpack.c.h.bf16 %v4603
        %v4616 = vunpack.c.l.bf16 %v4604
        %v4617 = vmul.f32 %v4605, %v467
        %v4618 = vmul.f32 %v4606, %v471
        %v4619 = vmul.f32 %v4607, %v469
        %v4620 = vmul.f32 %v4608, %v467
        %v4621 = vmul.f32 %v4609, %v471
        %v4622 = vmul.f32 %v4610, %v469
        %v4623 = vmul.f32 %v4611, %v467
        %v4624 = vmul.f32 %v4612, %v471
        %v4625 = vmul.f32 %v4613, %v469
        %v4626 = vmul.f32 %v4614, %v467
        %v4627 = vmul.f32 %v4615, %v471
        %v4628 = vmul.f32 %v4616, %v469
        %v4629 = vpack.c.bf16 %v4618, %v4617
        %v4630 = vpack.c.bf16 %v4619, %v4619
        %v4631 = vpack.c.bf16 %v4621, %v4620
        %v4632 = vpack.c.bf16 %v4622, %v4622
        %v4633 = vpack.c.bf16 %v4624, %v4623
        %v4634 = vpack.c.bf16 %v4625, %v4625
        %v4635 = vpack.c.bf16 %v4627, %v4626
        %v4636 = vpack.c.bf16 %v4628, %v4628
        %4645 = vrot.lane.b32.xlu0 %v4629, 15
        %v4646 = vpop.permute.xlu0 %4645
        %4647 = vrot.lane.b32.xlu0 %v4630, 15
        %v4648 = vpop.permute.xlu0 %4647
        %4649 = vrot.lane.b32.xlu0 %v4631, 15
        %v4650 = vpop.permute.xlu0 %4649
        %4651 = vrot.lane.b32.xlu0 %v4632, 15
        %v4652 = vpop.permute.xlu0 %4651
        %4653 = vrot.lane.b32.xlu0 %v4633, 15
        %v4654 = vpop.permute.xlu0 %4653
        %4655 = vrot.lane.b32.xlu0 %v4634, 15
        %v4656 = vpop.permute.xlu0 %4655
        %4657 = vrot.lane.b32.xlu0 %v4635, 15
        %v4658 = vpop.permute.xlu0 %4657
        %4659 = vrot.lane.b32.xlu0 %v4636, 15
        %v4660 = vpop.permute.xlu0 %4659
        %v4661 = vrot.slane %v4646, 4
        %v4662 = vrot.slane %v4648, 4
        %v4663 = vrot.slane %v4650, 4
        %v4664 = vrot.slane %v4652, 4
        %v4665 = vrot.slane %v4654, 4
        %v4666 = vrot.slane %v4656, 4
        %v4667 = vrot.slane %v4658, 4
        %v4668 = vrot.slane %v4660, 4
        %v4669 = vsel %vm367, %v4661, %v4662
        %v4670 = vsel %vm528, %v4646, %v4669
        %v4671 = vsel %vm367, %v4663, %v4664
        %v4672 = vsel %vm528, %v4650, %v4671
        %v4673 = vsel %vm367, %v4665, %v4666
        %v4674 = vsel %vm528, %v4654, %v4673
        %v4675 = vsel %vm367, %v4667, %v4668
        %v4676 = vsel %vm528, %v4658, %v4675
        %4681 = vst [vmem:[#allocation3 + $0x100] sm:$0xff] %v4670
        %4682 = vst [vmem:[#allocation3 + $0x120] sm:$0xff] %v4672
        %4683 = vst [vmem:[#allocation3 + $0x140] sm:$0xff] %v4674
        %4684 = vst [vmem:[#allocation3 + $0x160] sm:$0xff] %v4676
        %v4685 = vld [vmem:[#allocation2] sm:$0xff]
        %v4686 = vld [vmem:[#allocation2 + $0x8] sm:$0xf]
        %v4687 = vld [vmem:[#allocation2 + $0x10] sm:$0xff]
        %v4688 = vld [vmem:[#allocation2 + $0x18] sm:$0xf]
        %v4689 = vld [vmem:[#allocation2 + $0x20] sm:$0xff]
        %v4690 = vld [vmem:[#allocation2 + $0x28] sm:$0xf]
        %v4691 = vld [vmem:[#allocation2 + $0x30] sm:$0xff]
        %v4692 = vld [vmem:[#allocation2 + $0x38] sm:$0xf]
        %v4693 = vunpack.c.l.bf16 %v4685
        %v4694 = vunpack.c.h.bf16 %v4685
        %v4695 = vunpack.c.l.bf16 %v4686
        %v4696 = vunpack.c.l.bf16 %v4687
        %v4697 = vunpack.c.h.bf16 %v4687
        %v4698 = vunpack.c.l.bf16 %v4688
        %v4699 = vunpack.c.l.bf16 %v4689
        %v4700 = vunpack.c.h.bf16 %v4689
        %v4701 = vunpack.c.l.bf16 %v4690
        %v4702 = vunpack.c.l.bf16 %v4691
        %v4703 = vunpack.c.h.bf16 %v4691
        %v4704 = vunpack.c.l.bf16 %v4692
        %v4705 = vmul.f32 %v4693, %v565
        %v4706 = vmul.f32 %v4694, %v569
        %v4707 = vmul.f32 %v4695, %v567
        %v4708 = vmul.f32 %v4696, %v565
        %v4709 = vmul.f32 %v4697, %v569
        %v4710 = vmul.f32 %v4698, %v567
        %v4711 = vmul.f32 %v4699, %v565
        %v4712 = vmul.f32 %v4700, %v569
        %v4713 = vmul.f32 %v4701, %v567
        %v4714 = vmul.f32 %v4702, %v565
        %v4715 = vmul.f32 %v4703, %v569
        %v4716 = vmul.f32 %v4704, %v567
        %v4717 = vpack.c.bf16 %v4706, %v4705
        %v4718 = vpack.c.bf16 %v4707, %v4707
        %v4719 = vpack.c.bf16 %v4709, %v4708
        %v4720 = vpack.c.bf16 %v4710, %v4710
        %v4721 = vpack.c.bf16 %v4712, %v4711
        %v4722 = vpack.c.bf16 %v4713, %v4713
        %v4723 = vpack.c.bf16 %v4715, %v4714
        %v4724 = vpack.c.bf16 %v4716, %v4716
        %4733 = vrot.lane.b32.xlu0 %v4717, 1
        %v4734 = vpop.permute.xlu0 %4733
        %4735 = vrot.lane.b32.xlu0 %v4718, 1
        %v4736 = vpop.permute.xlu0 %4735
        %4737 = vrot.lane.b32.xlu0 %v4719, 1
        %v4738 = vpop.permute.xlu0 %4737
        %4739 = vrot.lane.b32.xlu0 %v4720, 1
        %v4740 = vpop.permute.xlu0 %4739
        %4741 = vrot.lane.b32.xlu0 %v4721, 1
        %v4742 = vpop.permute.xlu0 %4741
        %4743 = vrot.lane.b32.xlu0 %v4722, 1
        %v4744 = vpop.permute.xlu0 %4743
        %4745 = vrot.lane.b32.xlu0 %v4723, 1
        %v4746 = vpop.permute.xlu0 %4745
        %4747 = vrot.lane.b32.xlu0 %v4724, 1
        %v4748 = vpop.permute.xlu0 %4747
        %v4749 = vrot.slane %v4734, 4
        %v4750 = vrot.slane %v4736, 4
        %v4751 = vrot.slane %v4738, 4
        %v4752 = vrot.slane %v4740, 4
        %v4753 = vrot.slane %v4742, 4
        %v4754 = vrot.slane %v4744, 4
        %v4755 = vrot.slane %v4746, 4
        %v4756 = vrot.slane %v4748, 4
        %v4757 = vsel %vm367, %v4749, %v4750
        %v4758 = vsel %vm626, %v4734, %v4757
        %v4759 = vsel %vm367, %v4751, %v4752
        %v4760 = vsel %vm626, %v4738, %v4759
        %v4761 = vsel %vm367, %v4753, %v4754
        %v4762 = vsel %vm626, %v4742, %v4761
        %v4763 = vsel %vm367, %v4755, %v4756
        %v4764 = vsel %vm626, %v4746, %v4763
        %4769 = vst [vmem:[#allocation3 + $0x180] sm:$0xff] %v4758
        %4770 = vst [vmem:[#allocation3 + $0x1a0] sm:$0xff] %v4760
        %4771 = vst [vmem:[#allocation3 + $0x1c0] sm:$0xff] %v4762
        %4772 = vst [vmem:[#allocation3 + $0x1e0] sm:$0xff] %v4764
        %v4773 = vld [vmem:[#allocation2 + $0x4] sm:$0xff]
        %v4774 = vld [vmem:[#allocation2 + $0x14] sm:$0xff]
        %v4775 = vld [vmem:[#allocation2 + $0x24] sm:$0xff]
        %v4776 = vld [vmem:[#allocation2 + $0x34] sm:$0xff]
        %4777 = vst [vmem:[#allocation3 + $0x200] sm:$0xff] %v4773
        %4778 = vst [vmem:[#allocation3 + $0x220] sm:$0xff] %v4774
        %4779 = vst [vmem:[#allocation3 + $0x240] sm:$0xff] %v4775
        %4780 = vst [vmem:[#allocation3 + $0x260] sm:$0xff] %v4776
        %v4781 = vld [vmem:[#allocation2 + $0x4] sm:$0xff]
        %v4782 = vld [vmem:[#allocation2 + $0xc] sm:$0xf]
        %v4783 = vld [vmem:[#allocation2 + $0x14] sm:$0xff]
        %v4784 = vld [vmem:[#allocation2 + $0x1c] sm:$0xf]
        %v4785 = vld [vmem:[#allocation2 + $0x24] sm:$0xff]
        %v4786 = vld [vmem:[#allocation2 + $0x2c] sm:$0xf]
        %v4787 = vld [vmem:[#allocation2 + $0x34] sm:$0xff]
        %v4788 = vld [vmem:[#allocation2 + $0x3c] sm:$0xf]
        %v4789 = vunpack.c.l.bf16 %v4781
        %v4790 = vunpack.c.h.bf16 %v4781
        %v4791 = vunpack.c.l.bf16 %v4782
        %v4792 = vunpack.c.l.bf16 %v4783
        %v4793 = vunpack.c.h.bf16 %v4783
        %v4794 = vunpack.c.l.bf16 %v4784
        %v4795 = vunpack.c.l.bf16 %v4785
        %v4796 = vunpack.c.h.bf16 %v4785
        %v4797 = vunpack.c.l.bf16 %v4786
        %v4798 = vunpack.c.l.bf16 %v4787
        %v4799 = vunpack.c.h.bf16 %v4787
        %v4800 = vunpack.c.l.bf16 %v4788
        %v4801 = vmul.f32 %v4789, %v671
        %v4802 = vmul.f32 %v4790, %v675
        %v4803 = vmul.f32 %v4791, %v673
        %v4804 = vmul.f32 %v4792, %v671
        %v4805 = vmul.f32 %v4793, %v675
        %v4806 = vmul.f32 %v4794, %v673
        %v4807 = vmul.f32 %v4795, %v671
        %v4808 = vmul.f32 %v4796, %v675
        %v4809 = vmul.f32 %v4797, %v673
        %v4810 = vmul.f32 %v4798, %v671
        %v4811 = vmul.f32 %v4799, %v675
        %v4812 = vmul.f32 %v4800, %v673
        %v4813 = vpack.c.bf16 %v4802, %v4801
        %v4814 = vpack.c.bf16 %v4803, %v4803
        %v4815 = vpack.c.bf16 %v4805, %v4804
        %v4816 = vpack.c.bf16 %v4806, %v4806
        %v4817 = vpack.c.bf16 %v4808, %v4807
        %v4818 = vpack.c.bf16 %v4809, %v4809
        %v4819 = vpack.c.bf16 %v4811, %v4810
        %v4820 = vpack.c.bf16 %v4812, %v4812
        %4829 = vrot.lane.b32.xlu0 %v4813, 127
        %v4830 = vpop.permute.xlu0 %4829
        %4831 = vrot.lane.b32.xlu0 %v4814, 127
        %v4832 = vpop.permute.xlu0 %4831
        %4833 = vrot.lane.b32.xlu0 %v4815, 127
        %v4834 = vpop.permute.xlu0 %4833
        %4835 = vrot.lane.b32.xlu0 %v4816, 127
        %v4836 = vpop.permute.xlu0 %4835
        %4837 = vrot.lane.b32.xlu0 %v4817, 127
        %v4838 = vpop.permute.xlu0 %4837
        %4839 = vrot.lane.b32.xlu0 %v4818, 127
        %v4840 = vpop.permute.xlu0 %4839
        %4841 = vrot.lane.b32.xlu0 %v4819, 127
        %v4842 = vpop.permute.xlu0 %4841
        %4843 = vrot.lane.b32.xlu0 %v4820, 127
        %v4844 = vpop.permute.xlu0 %4843
        %v4845 = vrot.slane %v4830, 4
        %v4846 = vrot.slane %v4832, 4
        %v4847 = vrot.slane %v4834, 4
        %v4848 = vrot.slane %v4836, 4
        %v4849 = vrot.slane %v4838, 4
        %v4850 = vrot.slane %v4840, 4
        %v4851 = vrot.slane %v4842, 4
        %v4852 = vrot.slane %v4844, 4
        %v4853 = vsel %vm367, %v4845, %v4846
        %v4854 = vsel %vm732, %v4830, %v4853
        %v4855 = vsel %vm367, %v4847, %v4848
        %v4856 = vsel %vm732, %v4834, %v4855
        %v4857 = vsel %vm367, %v4849, %v4850
        %v4858 = vsel %vm732, %v4838, %v4857
        %v4859 = vsel %vm367, %v4851, %v4852
        %v4860 = vsel %vm732, %v4842, %v4859
        %4865 = vst [vmem:[#allocation3 + $0x280] sm:$0xff] %v4854
        %4866 = vst [vmem:[#allocation3 + $0x2a0] sm:$0xff] %v4856
        %4867 = vst [vmem:[#allocation3 + $0x2c0] sm:$0xff] %v4858
        %4868 = vst [vmem:[#allocation3 + $0x2e0] sm:$0xff] %v4860
        %v4869 = vld [vmem:[#allocation2 + $0x4] sm:$0xff]
        %v4870 = vld [vmem:[#allocation2 + $0xc] sm:$0xf]
        %v4871 = vld [vmem:[#allocation2 + $0x14] sm:$0xff]
        %v4872 = vld [vmem:[#allocation2 + $0x1c] sm:$0xf]
        %v4873 = vld [vmem:[#allocation2 + $0x24] sm:$0xff]
        %v4874 = vld [vmem:[#allocation2 + $0x2c] sm:$0xf]
        %v4875 = vld [vmem:[#allocation2 + $0x34] sm:$0xff]
        %v4876 = vld [vmem:[#allocation2 + $0x3c] sm:$0xf]
        %v4877 = vunpack.c.l.bf16 %v4869
        %v4878 = vunpack.c.h.bf16 %v4869
        %v4879 = vunpack.c.l.bf16 %v4870
        %v4880 = vunpack.c.l.bf16 %v4871
        %v4881 = vunpack.c.h.bf16 %v4871
        %v4882 = vunpack.c.l.bf16 %v4872
        %v4883 = vunpack.c.l.bf16 %v4873
        %v4884 = vunpack.c.h.bf16 %v4873
        %v4885 = vunpack.c.l.bf16 %v4874
        %v4886 = vunpack.c.l.bf16 %v4875
        %v4887 = vunpack.c.h.bf16 %v4875
        %v4888 = vunpack.c.l.bf16 %v4876
        %v4889 = vmul.f32 %v4877, %v769
        %v4890 = vmul.f32 %v4878, %v773
        %v4891 = vmul.f32 %v4879, %v771
        %v4892 = vmul.f32 %v4880, %v769
        %v4893 = vmul.f32 %v4881, %v773
        %v4894 = vmul.f32 %v4882, %v771
        %v4895 = vmul.f32 %v4883, %v769
        %v4896 = vmul.f32 %v4884, %v773
        %v4897 = vmul.f32 %v4885, %v771
        %v4898 = vmul.f32 %v4886, %v769
        %v4899 = vmul.f32 %v4887, %v773
        %v4900 = vmul.f32 %v4888, %v771
        %v4901 = vpack.c.bf16 %v4890, %v4889
        %v4902 = vpack.c.bf16 %v4891, %v4891
        %v4903 = vpack.c.bf16 %v4893, %v4892
        %v4904 = vpack.c.bf16 %v4894, %v4894
        %v4905 = vpack.c.bf16 %v4896, %v4895
        %v4906 = vpack.c.bf16 %v4897, %v4897
        %v4907 = vpack.c.bf16 %v4899, %v4898
        %v4908 = vpack.c.bf16 %v4900, %v4900
        %4917 = vrot.lane.b32.xlu0 %v4901, 113
        %v4918 = vpop.permute.xlu0 %4917
        %4919 = vrot.lane.b32.xlu0 %v4902, 113
        %v4920 = vpop.permute.xlu0 %4919
        %4921 = vrot.lane.b32.xlu0 %v4903, 113
        %v4922 = vpop.permute.xlu0 %4921
        %4923 = vrot.lane.b32.xlu0 %v4904, 113
        %v4924 = vpop.permute.xlu0 %4923
        %4925 = vrot.lane.b32.xlu0 %v4905, 113
        %v4926 = vpop.permute.xlu0 %4925
        %4927 = vrot.lane.b32.xlu0 %v4906, 113
        %v4928 = vpop.permute.xlu0 %4927
        %4929 = vrot.lane.b32.xlu0 %v4907, 113
        %v4930 = vpop.permute.xlu0 %4929
        %4931 = vrot.lane.b32.xlu0 %v4908, 113
        %v4932 = vpop.permute.xlu0 %4931
        %v4933 = vrot.slane %v4918, 4
        %v4934 = vrot.slane %v4920, 4
        %v4935 = vrot.slane %v4922, 4
        %v4936 = vrot.slane %v4924, 4
        %v4937 = vrot.slane %v4926, 4
        %v4938 = vrot.slane %v4928, 4
        %v4939 = vrot.slane %v4930, 4
        %v4940 = vrot.slane %v4932, 4
        %v4941 = vsel %vm367, %v4933, %v4934
        %v4942 = vsel %vm830, %v4918, %v4941
        %v4943 = vsel %vm367, %v4935, %v4936
        %v4944 = vsel %vm830, %v4922, %v4943
        %v4945 = vsel %vm367, %v4937, %v4938
        %v4946 = vsel %vm830, %v4926, %v4945
        %v4947 = vsel %vm367, %v4939, %v4940
        %v4948 = vsel %vm830, %v4930, %v4947
        %4953 = vst [vmem:[#allocation3 + $0x300] sm:$0xff] %v4942
        %4954 = vst [vmem:[#allocation3 + $0x320] sm:$0xff] %v4944
        %4955 = vst [vmem:[#allocation3 + $0x340] sm:$0xff] %v4946
        %4956 = vst [vmem:[#allocation3 + $0x360] sm:$0xff] %v4948
        %v4957 = vld [vmem:[#allocation2 + $0x4] sm:$0xff]
        %v4958 = vld [vmem:[#allocation2 + $0xc] sm:$0xf]
        %v4959 = vld [vmem:[#allocation2 + $0x14] sm:$0xff]
        %v4960 = vld [vmem:[#allocation2 + $0x1c] sm:$0xf]
        %v4961 = vld [vmem:[#allocation2 + $0x24] sm:$0xff]
        %v4962 = vld [vmem:[#allocation2 + $0x2c] sm:$0xf]
        %v4963 = vld [vmem:[#allocation2 + $0x34] sm:$0xff]
        %v4964 = vld [vmem:[#allocation2 + $0x3c] sm:$0xf]
        %4973 = vrot.lane.b32.xlu0 %v4957, 112
        %v4974 = vpop.permute.xlu0 %4973
        %4975 = vrot.lane.b32.xlu0 %v4958, 112
        %v4976 = vpop.permute.xlu0 %4975
        %4977 = vrot.lane.b32.xlu0 %v4959, 112
        %v4978 = vpop.permute.xlu0 %4977
        %4979 = vrot.lane.b32.xlu0 %v4960, 112
        %v4980 = vpop.permute.xlu0 %4979
        %4981 = vrot.lane.b32.xlu0 %v4961, 112
        %v4982 = vpop.permute.xlu0 %4981
        %4983 = vrot.lane.b32.xlu0 %v4962, 112
        %v4984 = vpop.permute.xlu0 %4983
        %4985 = vrot.lane.b32.xlu0 %v4963, 112
        %v4986 = vpop.permute.xlu0 %4985
        %4987 = vrot.lane.b32.xlu0 %v4964, 112
        %v4988 = vpop.permute.xlu0 %4987
        %v4989 = vrot.slane %v4974, 4
        %v4990 = vrot.slane %v4976, 4
        %v4991 = vrot.slane %v4978, 4
        %v4992 = vrot.slane %v4980, 4
        %v4993 = vrot.slane %v4982, 4
        %v4994 = vrot.slane %v4984, 4
        %v4995 = vrot.slane %v4986, 4
        %v4996 = vrot.slane %v4988, 4
        %v4997 = vsel %vm367, %v4989, %v4990
        %v4998 = vsel %vm887, %v4974, %v4997
        %v4999 = vsel %vm367, %v4991, %v4992
        %v5000 = vsel %vm887, %v4978, %v4999
        %v5001 = vsel %vm367, %v4993, %v4994
        %v5002 = vsel %vm887, %v4982, %v5001
        %v5003 = vsel %vm367, %v4995, %v4996
        %v5004 = vsel %vm887, %v4986, %v5003
        %5009 = vst [vmem:[#allocation3 + $0x380] sm:$0xff] %v4998
        %5010 = vst [vmem:[#allocation3 + $0x3a0] sm:$0xff] %v5000
        %5011 = vst [vmem:[#allocation3 + $0x3c0] sm:$0xff] %v5002
        %5012 = vst [vmem:[#allocation3 + $0x3e0] sm:$0xff] %v5004
        %v5013 = vld [vmem:[#allocation2 + $0x4] sm:$0xff]
        %v5014 = vld [vmem:[#allocation2 + $0xc] sm:$0xf]
        %v5015 = vld [vmem:[#allocation2 + $0x14] sm:$0xff]
        %v5016 = vld [vmem:[#allocation2 + $0x1c] sm:$0xf]
        %v5017 = vld [vmem:[#allocation2 + $0x24] sm:$0xff]
        %v5018 = vld [vmem:[#allocation2 + $0x2c] sm:$0xf]
        %v5019 = vld [vmem:[#allocation2 + $0x34] sm:$0xff]
        %v5020 = vld [vmem:[#allocation2 + $0x3c] sm:$0xf]
        %v5021 = vunpack.c.l.bf16 %v5013
        %v5022 = vunpack.c.h.bf16 %v5013
        %v5023 = vunpack.c.l.bf16 %v5014
        %v5024 = vunpack.c.l.bf16 %v5015
        %v5025 = vunpack.c.h.bf16 %v5015
        %v5026 = vunpack.c.l.bf16 %v5016
        %v5027 = vunpack.c.l.bf16 %v5017
        %v5028 = vunpack.c.h.bf16 %v5017
        %v5029 = vunpack.c.l.bf16 %v5018
        %v5030 = vunpack.c.l.bf16 %v5019
        %v5031 = vunpack.c.h.bf16 %v5019
        %v5032 = vunpack.c.l.bf16 %v5020
        %v5033 = vmul.f32 %v5021, %v924
        %v5034 = vmul.f32 %v5022, %v928
        %v5035 = vmul.f32 %v5023, %v926
        %v5036 = vmul.f32 %v5024, %v924
        %v5037 = vmul.f32 %v5025, %v928
        %v5038 = vmul.f32 %v5026, %v926
        %v5039 = vmul.f32 %v5027, %v924
        %v5040 = vmul.f32 %v5028, %v928
        %v5041 = vmul.f32 %v5029, %v926
        %v5042 = vmul.f32 %v5030, %v924
        %v5043 = vmul.f32 %v5031, %v928
        %v5044 = vmul.f32 %v5032, %v926
        %v5045 = vpack.c.bf16 %v5034, %v5033
        %v5046 = vpack.c.bf16 %v5035, %v5035
        %v5047 = vpack.c.bf16 %v5037, %v5036
        %v5048 = vpack.c.bf16 %v5038, %v5038
        %v5049 = vpack.c.bf16 %v5040, %v5039
        %v5050 = vpack.c.bf16 %v5041, %v5041
        %v5051 = vpack.c.bf16 %v5043, %v5042
        %v5052 = vpack.c.bf16 %v5044, %v5044
        %5061 = vrot.lane.b32.xlu0 %v5045, 111
        %v5062 = vpop.permute.xlu0 %5061
        %5063 = vrot.lane.b32.xlu0 %v5046, 111
        %v5064 = vpop.permute.xlu0 %5063
        %5065 = vrot.lane.b32.xlu0 %v5047, 111
        %v5066 = vpop.permute.xlu0 %5065
        %5067 = vrot.lane.b32.xlu0 %v5048, 111
        %v5068 = vpop.permute.xlu0 %5067
        %5069 = vrot.lane.b32.xlu0 %v5049, 111
        %v5070 = vpop.permute.xlu0 %5069
        %5071 = vrot.lane.b32.xlu0 %v5050, 111
        %v5072 = vpop.permute.xlu0 %5071
        %5073 = vrot.lane.b32.xlu0 %v5051, 111
        %v5074 = vpop.permute.xlu0 %5073
        %5075 = vrot.lane.b32.xlu0 %v5052, 111
        %v5076 = vpop.permute.xlu0 %5075
        %v5077 = vrot.slane %v5062, 4
        %v5078 = vrot.slane %v5064, 4
        %v5079 = vrot.slane %v5066, 4
        %v5080 = vrot.slane %v5068, 4
        %v5081 = vrot.slane %v5070, 4
        %v5082 = vrot.slane %v5072, 4
        %v5083 = vrot.slane %v5074, 4
        %v5084 = vrot.slane %v5076, 4
        %v5085 = vsel %vm367, %v5077, %v5078
        %v5086 = vsel %vm985, %v5062, %v5085
        %v5087 = vsel %vm367, %v5079, %v5080
        %v5088 = vsel %vm985, %v5066, %v5087
        %v5089 = vsel %vm367, %v5081, %v5082
        %v5090 = vsel %vm985, %v5070, %v5089
        %v5091 = vsel %vm367, %v5083, %v5084
        %v5092 = vsel %vm985, %v5074, %v5091
        %5097 = vst [vmem:[#allocation3 + $0x400] sm:$0xff] %v5086
        %5098 = vst [vmem:[#allocation3 + $0x420] sm:$0xff] %v5088
        %5099 = vst [vmem:[#allocation3 + $0x440] sm:$0xff] %v5090
        %5100 = vst [vmem:[#allocation3 + $0x460] sm:$0xff] %v5092
        %v5101 = vld [vmem:[#allocation4 + $0x8] sm:$0xff]
        %v5102 = vld [vmem:[#allocation4 + $0x28] sm:$0xff]
        %v5103 = vld [vmem:[#allocation4 + $0x48] sm:$0xff]
        %v5104 = vld [vmem:[#allocation4 + $0x68] sm:$0xff]
        %5105 = vst [vmem:[#allocation2 + $0x4] sm:$0xff] %v5101
        %5106 = vst [vmem:[#allocation2 + $0x14] sm:$0xff] %v5102
        %5107 = vst [vmem:[#allocation2 + $0x24] sm:$0xff] %v5103
        %5108 = vst [vmem:[#allocation2 + $0x34] sm:$0xff] %v5104
        %v5109 = vld [vmem:[#allocation2] sm:$0xff]
        %v5110 = vld [vmem:[#allocation2 + $0x8] sm:$0xf]
        %v5111 = vld [vmem:[#allocation2 + $0x10] sm:$0xff]
        %v5112 = vld [vmem:[#allocation2 + $0x18] sm:$0xf]
        %v5113 = vld [vmem:[#allocation2 + $0x20] sm:$0xff]
        %v5114 = vld [vmem:[#allocation2 + $0x28] sm:$0xf]
        %v5115 = vld [vmem:[#allocation2 + $0x30] sm:$0xff]
        %v5116 = vld [vmem:[#allocation2 + $0x38] sm:$0xf]
        %v5117 = vunpack.c.l.bf16 %v5109
        %v5118 = vunpack.c.h.bf16 %v5109
        %v5119 = vunpack.c.l.bf16 %v5110
        %v5120 = vunpack.c.l.bf16 %v5111
        %v5121 = vunpack.c.h.bf16 %v5111
        %v5122 = vunpack.c.l.bf16 %v5112
        %v5123 = vunpack.c.l.bf16 %v5113
        %v5124 = vunpack.c.h.bf16 %v5113
        %v5125 = vunpack.c.l.bf16 %v5114
        %v5126 = vunpack.c.l.bf16 %v5115
        %v5127 = vunpack.c.h.bf16 %v5115
        %v5128 = vunpack.c.l.bf16 %v5116
        %v5129 = vmul.f32 %v5117, %v307
        %v5130 = vmul.f32 %v5118, %v311
        %v5131 = vmul.f32 %v5119, %v309
        %v5132 = vmul.f32 %v5120, %v307
        %v5133 = vmul.f32 %v5121, %v311
        %v5134 = vmul.f32 %v5122, %v309
        %v5135 = vmul.f32 %v5123, %v307
        %v5136 = vmul.f32 %v5124, %v311
        %v5137 = vmul.f32 %v5125, %v309
        %v5138 = vmul.f32 %v5126, %v307
        %v5139 = vmul.f32 %v5127, %v311
        %v5140 = vmul.f32 %v5128, %v309
        %v5141 = vpack.c.bf16 %v5130, %v5129
        %v5142 = vpack.c.bf16 %v5131, %v5131
        %v5143 = vpack.c.bf16 %v5133, %v5132
        %v5144 = vpack.c.bf16 %v5134, %v5134
        %v5145 = vpack.c.bf16 %v5136, %v5135
        %v5146 = vpack.c.bf16 %v5137, %v5137
        %v5147 = vpack.c.bf16 %v5139, %v5138
        %v5148 = vpack.c.bf16 %v5140, %v5140
        %5157 = vrot.lane.b32.xlu0 %v5141, 17
        %v5158 = vpop.permute.xlu0 %5157
        %5159 = vrot.lane.b32.xlu0 %v5142, 17
        %v5160 = vpop.permute.xlu0 %5159
        %5161 = vrot.lane.b32.xlu0 %v5143, 17
        %v5162 = vpop.permute.xlu0 %5161
        %5163 = vrot.lane.b32.xlu0 %v5144, 17
        %v5164 = vpop.permute.xlu0 %5163
        %5165 = vrot.lane.b32.xlu0 %v5145, 17
        %v5166 = vpop.permute.xlu0 %5165
        %5167 = vrot.lane.b32.xlu0 %v5146, 17
        %v5168 = vpop.permute.xlu0 %5167
        %5169 = vrot.lane.b32.xlu0 %v5147, 17
        %v5170 = vpop.permute.xlu0 %5169
        %5171 = vrot.lane.b32.xlu0 %v5148, 17
        %v5172 = vpop.permute.xlu0 %5171
        %v5173 = vrot.slane %v5158, 4
        %v5174 = vrot.slane %v5160, 4
        %v5175 = vrot.slane %v5162, 4
        %v5176 = vrot.slane %v5164, 4
        %v5177 = vrot.slane %v5166, 4
        %v5178 = vrot.slane %v5168, 4
        %v5179 = vrot.slane %v5170, 4
        %v5180 = vrot.slane %v5172, 4
        %v5181 = vsel %vm367, %v5173, %v5174
        %v5182 = vsel %vm369, %v5158, %v5181
        %v5183 = vsel %vm367, %v5175, %v5176
        %v5184 = vsel %vm369, %v5162, %v5183
        %v5185 = vsel %vm367, %v5177, %v5178
        %v5186 = vsel %vm369, %v5166, %v5185
        %v5187 = vsel %vm367, %v5179, %v5180
        %v5188 = vsel %vm369, %v5170, %v5187
        %5193 = vst [vmem:[#allocation3 + $0x8] sm:$0xff] %v5182
        %5194 = vst [vmem:[#allocation3 + $0x28] sm:$0xff] %v5184
        %5195 = vst [vmem:[#allocation3 + $0x48] sm:$0xff] %v5186
        %5196 = vst [vmem:[#allocation3 + $0x68] sm:$0xff] %v5188
        %v5197 = vld [vmem:[#allocation2] sm:$0xff]
        %v5198 = vld [vmem:[#allocation2 + $0x8] sm:$0xf]
        %v5199 = vld [vmem:[#allocation2 + $0x10] sm:$0xff]
        %v5200 = vld [vmem:[#allocation2 + $0x18] sm:$0xf]
        %v5201 = vld [vmem:[#allocation2 + $0x20] sm:$0xff]
        %v5202 = vld [vmem:[#allocation2 + $0x28] sm:$0xf]
        %v5203 = vld [vmem:[#allocation2 + $0x30] sm:$0xff]
        %v5204 = vld [vmem:[#allocation2 + $0x38] sm:$0xf]
        %5213 = vrot.lane.b32.xlu0 %v5197, 16
        %v5214 = vpop.permute.xlu0 %5213
        %5215 = vrot.lane.b32.xlu0 %v5198, 16
        %v5216 = vpop.permute.xlu0 %5215
        %5217 = vrot.lane.b32.xlu0 %v5199, 16
        %v5218 = vpop.permute.xlu0 %5217
        %5219 = vrot.lane.b32.xlu0 %v5200, 16
        %v5220 = vpop.permute.xlu0 %5219
        %5221 = vrot.lane.b32.xlu0 %v5201, 16
        %v5222 = vpop.permute.xlu0 %5221
        %5223 = vrot.lane.b32.xlu0 %v5202, 16
        %v5224 = vpop.permute.xlu0 %5223
        %5225 = vrot.lane.b32.xlu0 %v5203, 16
        %v5226 = vpop.permute.xlu0 %5225
        %5227 = vrot.lane.b32.xlu0 %v5204, 16
        %v5228 = vpop.permute.xlu0 %5227
        %v5229 = vrot.slane %v5214, 4
        %v5230 = vrot.slane %v5216, 4
        %v5231 = vrot.slane %v5218, 4
        %v5232 = vrot.slane %v5220, 4
        %v5233 = vrot.slane %v5222, 4
        %v5234 = vrot.slane %v5224, 4
        %v5235 = vrot.slane %v5226, 4
        %v5236 = vrot.slane %v5228, 4
        %v5237 = vsel %vm367, %v5229, %v5230
        %v5238 = vsel %vm426, %v5214, %v5237
        %v5239 = vsel %vm367, %v5231, %v5232
        %v5240 = vsel %vm426, %v5218, %v5239
        %v5241 = vsel %vm367, %v5233, %v5234
        %v5242 = vsel %vm426, %v5222, %v5241
        %v5243 = vsel %vm367, %v5235, %v5236
        %v5244 = vsel %vm426, %v5226, %v5243
        %5249 = vst [vmem:[#allocation3 + $0x88] sm:$0xff] %v5238
        %5250 = vst [vmem:[#allocation3 + $0xa8] sm:$0xff] %v5240
        %5251 = vst [vmem:[#allocation3 + $0xc8] sm:$0xff] %v5242
        %5252 = vst [vmem:[#allocation3 + $0xe8] sm:$0xff] %v5244
        %v5253 = vld [vmem:[#allocation2] sm:$0xff]
        %v5254 = vld [vmem:[#allocation2 + $0x8] sm:$0xf]
        %v5255 = vld [vmem:[#allocation2 + $0x10] sm:$0xff]
        %v5256 = vld [vmem:[#allocation2 + $0x18] sm:$0xf]
        %v5257 = vld [vmem:[#allocation2 + $0x20] sm:$0xff]
        %v5258 = vld [vmem:[#allocation2 + $0x28] sm:$0xf]
        %v5259 = vld [vmem:[#allocation2 + $0x30] sm:$0xff]
        %v5260 = vld [vmem:[#allocation2 + $0x38] sm:$0xf]
        %v5261 = vunpack.c.l.bf16 %v5253
        %v5262 = vunpack.c.h.bf16 %v5253
        %v5263 = vunpack.c.l.bf16 %v5254
        %v5264 = vunpack.c.l.bf16 %v5255
        %v5265 = vunpack.c.h.bf16 %v5255
        %v5266 = vunpack.c.l.bf16 %v5256
        %v5267 = vunpack.c.l.bf16 %v5257
        %v5268 = vunpack.c.h.bf16 %v5257
        %v5269 = vunpack.c.l.bf16 %v5258
        %v5270 = vunpack.c.l.bf16 %v5259
        %v5271 = vunpack.c.h.bf16 %v5259
        %v5272 = vunpack.c.l.bf16 %v5260
        %v5273 = vmul.f32 %v5261, %v467
        %v5274 = vmul.f32 %v5262, %v471
        %v5275 = vmul.f32 %v5263, %v469
        %v5276 = vmul.f32 %v5264, %v467
        %v5277 = vmul.f32 %v5265, %v471
        %v5278 = vmul.f32 %v5266, %v469
        %v5279 = vmul.f32 %v5267, %v467
        %v5280 = vmul.f32 %v5268, %v471
        %v5281 = vmul.f32 %v5269, %v469
        %v5282 = vmul.f32 %v5270, %v467
        %v5283 = vmul.f32 %v5271, %v471
        %v5284 = vmul.f32 %v5272, %v469
        %v5285 = vpack.c.bf16 %v5274, %v5273
        %v5286 = vpack.c.bf16 %v5275, %v5275
        %v5287 = vpack.c.bf16 %v5277, %v5276
        %v5288 = vpack.c.bf16 %v5278, %v5278
        %v5289 = vpack.c.bf16 %v5280, %v5279
        %v5290 = vpack.c.bf16 %v5281, %v5281
        %v5291 = vpack.c.bf16 %v5283, %v5282
        %v5292 = vpack.c.bf16 %v5284, %v5284
        %5301 = vrot.lane.b32.xlu0 %v5285, 15
        %v5302 = vpop.permute.xlu0 %5301
        %5303 = vrot.lane.b32.xlu0 %v5286, 15
        %v5304 = vpop.permute.xlu0 %5303
        %5305 = vrot.lane.b32.xlu0 %v5287, 15
        %v5306 = vpop.permute.xlu0 %5305
        %5307 = vrot.lane.b32.xlu0 %v5288, 15
        %v5308 = vpop.permute.xlu0 %5307
        %5309 = vrot.lane.b32.xlu0 %v5289, 15
        %v5310 = vpop.permute.xlu0 %5309
        %5311 = vrot.lane.b32.xlu0 %v5290, 15
        %v5312 = vpop.permute.xlu0 %5311
        %5313 = vrot.lane.b32.xlu0 %v5291, 15
        %v5314 = vpop.permute.xlu0 %5313
        %5315 = vrot.lane.b32.xlu0 %v5292, 15
        %v5316 = vpop.permute.xlu0 %5315
        %v5317 = vrot.slane %v5302, 4
        %v5318 = vrot.slane %v5304, 4
        %v5319 = vrot.slane %v5306, 4
        %v5320 = vrot.slane %v5308, 4
        %v5321 = vrot.slane %v5310, 4
        %v5322 = vrot.slane %v5312, 4
        %v5323 = vrot.slane %v5314, 4
        %v5324 = vrot.slane %v5316, 4
        %v5325 = vsel %vm367, %v5317, %v5318
        %v5326 = vsel %vm528, %v5302, %v5325
        %v5327 = vsel %vm367, %v5319, %v5320
        %v5328 = vsel %vm528, %v5306, %v5327
        %v5329 = vsel %vm367, %v5321, %v5322
        %v5330 = vsel %vm528, %v5310, %v5329
        %v5331 = vsel %vm367, %v5323, %v5324
        %v5332 = vsel %vm528, %v5314, %v5331
        %5337 = vst [vmem:[#allocation3 + $0x108] sm:$0xff] %v5326
        %5338 = vst [vmem:[#allocation3 + $0x128] sm:$0xff] %v5328
        %5339 = vst [vmem:[#allocation3 + $0x148] sm:$0xff] %v5330
        %5340 = vst [vmem:[#allocation3 + $0x168] sm:$0xff] %v5332
        %v5341 = vld [vmem:[#allocation2] sm:$0xff]
        %v5342 = vld [vmem:[#allocation2 + $0x8] sm:$0xf]
        %v5343 = vld [vmem:[#allocation2 + $0x10] sm:$0xff]
        %v5344 = vld [vmem:[#allocation2 + $0x18] sm:$0xf]
        %v5345 = vld [vmem:[#allocation2 + $0x20] sm:$0xff]
        %v5346 = vld [vmem:[#allocation2 + $0x28] sm:$0xf]
        %v5347 = vld [vmem:[#allocation2 + $0x30] sm:$0xff]
        %v5348 = vld [vmem:[#allocation2 + $0x38] sm:$0xf]
        %v5349 = vunpack.c.l.bf16 %v5341
        %v5350 = vunpack.c.h.bf16 %v5341
        %v5351 = vunpack.c.l.bf16 %v5342
        %v5352 = vunpack.c.l.bf16 %v5343
        %v5353 = vunpack.c.h.bf16 %v5343
        %v5354 = vunpack.c.l.bf16 %v5344
        %v5355 = vunpack.c.l.bf16 %v5345
        %v5356 = vunpack.c.h.bf16 %v5345
        %v5357 = vunpack.c.l.bf16 %v5346
        %v5358 = vunpack.c.l.bf16 %v5347
        %v5359 = vunpack.c.h.bf16 %v5347
        %v5360 = vunpack.c.l.bf16 %v5348
        %v5361 = vmul.f32 %v5349, %v565
        %v5362 = vmul.f32 %v5350, %v569
        %v5363 = vmul.f32 %v5351, %v567
        %v5364 = vmul.f32 %v5352, %v565
        %v5365 = vmul.f32 %v5353, %v569
        %v5366 = vmul.f32 %v5354, %v567
        %v5367 = vmul.f32 %v5355, %v565
        %v5368 = vmul.f32 %v5356, %v569
        %v5369 = vmul.f32 %v5357, %v567
        %v5370 = vmul.f32 %v5358, %v565
        %v5371 = vmul.f32 %v5359, %v569
        %v5372 = vmul.f32 %v5360, %v567
        %v5373 = vpack.c.bf16 %v5362, %v5361
        %v5374 = vpack.c.bf16 %v5363, %v5363
        %v5375 = vpack.c.bf16 %v5365, %v5364
        %v5376 = vpack.c.bf16 %v5366, %v5366
        %v5377 = vpack.c.bf16 %v5368, %v5367
        %v5378 = vpack.c.bf16 %v5369, %v5369
        %v5379 = vpack.c.bf16 %v5371, %v5370
        %v5380 = vpack.c.bf16 %v5372, %v5372
        %5389 = vrot.lane.b32.xlu0 %v5373, 1
        %v5390 = vpop.permute.xlu0 %5389
        %5391 = vrot.lane.b32.xlu0 %v5374, 1
        %v5392 = vpop.permute.xlu0 %5391
        %5393 = vrot.lane.b32.xlu0 %v5375, 1
        %v5394 = vpop.permute.xlu0 %5393
        %5395 = vrot.lane.b32.xlu0 %v5376, 1
        %v5396 = vpop.permute.xlu0 %5395
        %5397 = vrot.lane.b32.xlu0 %v5377, 1
        %v5398 = vpop.permute.xlu0 %5397
        %5399 = vrot.lane.b32.xlu0 %v5378, 1
        %v5400 = vpop.permute.xlu0 %5399
        %5401 = vrot.lane.b32.xlu0 %v5379, 1
        %v5402 = vpop.permute.xlu0 %5401
        %5403 = vrot.lane.b32.xlu0 %v5380, 1
        %v5404 = vpop.permute.xlu0 %5403
        %v5405 = vrot.slane %v5390, 4
        %v5406 = vrot.slane %v5392, 4
        %v5407 = vrot.slane %v5394, 4
        %v5408 = vrot.slane %v5396, 4
        %v5409 = vrot.slane %v5398, 4
        %v5410 = vrot.slane %v5400, 4
        %v5411 = vrot.slane %v5402, 4
        %v5412 = vrot.slane %v5404, 4
        %v5413 = vsel %vm367, %v5405, %v5406
        %v5414 = vsel %vm626, %v5390, %v5413
        %v5415 = vsel %vm367, %v5407, %v5408
        %v5416 = vsel %vm626, %v5394, %v5415
        %v5417 = vsel %vm367, %v5409, %v5410
        %v5418 = vsel %vm626, %v5398, %v5417
        %v5419 = vsel %vm367, %v5411, %v5412
        %v5420 = vsel %vm626, %v5402, %v5419
        %5425 = vst [vmem:[#allocation3 + $0x188] sm:$0xff] %v5414
        %5426 = vst [vmem:[#allocation3 + $0x1a8] sm:$0xff] %v5416
        %5427 = vst [vmem:[#allocation3 + $0x1c8] sm:$0xff] %v5418
        %5428 = vst [vmem:[#allocation3 + $0x1e8] sm:$0xff] %v5420
        %v5429 = vld [vmem:[#allocation2 + $0x4] sm:$0xff]
        %v5430 = vld [vmem:[#allocation2 + $0x14] sm:$0xff]
        %v5431 = vld [vmem:[#allocation2 + $0x24] sm:$0xff]
        %v5432 = vld [vmem:[#allocation2 + $0x34] sm:$0xff]
        %5433 = vst [vmem:[#allocation3 + $0x208] sm:$0xff] %v5429
        %5434 = vst [vmem:[#allocation3 + $0x228] sm:$0xff] %v5430
        %5435 = vst [vmem:[#allocation3 + $0x248] sm:$0xff] %v5431
        %5436 = vst [vmem:[#allocation3 + $0x268] sm:$0xff] %v5432
        %v5437 = vld [vmem:[#allocation2 + $0x4] sm:$0xff]
        %v5438 = vld [vmem:[#allocation2 + $0xc] sm:$0xf]
        %v5439 = vld [vmem:[#allocation2 + $0x14] sm:$0xff]
        %v5440 = vld [vmem:[#allocation2 + $0x1c] sm:$0xf]
        %v5441 = vld [vmem:[#allocation2 + $0x24] sm:$0xff]
        %v5442 = vld [vmem:[#allocation2 + $0x2c] sm:$0xf]
        %v5443 = vld [vmem:[#allocation2 + $0x34] sm:$0xff]
        %v5444 = vld [vmem:[#allocation2 + $0x3c] sm:$0xf]
        %v5445 = vunpack.c.l.bf16 %v5437
        %v5446 = vunpack.c.h.bf16 %v5437
        %v5447 = vunpack.c.l.bf16 %v5438
        %v5448 = vunpack.c.l.bf16 %v5439
        %v5449 = vunpack.c.h.bf16 %v5439
        %v5450 = vunpack.c.l.bf16 %v5440
        %v5451 = vunpack.c.l.bf16 %v5441
        %v5452 = vunpack.c.h.bf16 %v5441
        %v5453 = vunpack.c.l.bf16 %v5442
        %v5454 = vunpack.c.l.bf16 %v5443
        %v5455 = vunpack.c.h.bf16 %v5443
        %v5456 = vunpack.c.l.bf16 %v5444
        %v5457 = vmul.f32 %v5445, %v671
        %v5458 = vmul.f32 %v5446, %v675
        %v5459 = vmul.f32 %v5447, %v673
        %v5460 = vmul.f32 %v5448, %v671
        %v5461 = vmul.f32 %v5449, %v675
        %v5462 = vmul.f32 %v5450, %v673
        %v5463 = vmul.f32 %v5451, %v671
        %v5464 = vmul.f32 %v5452, %v675
        %v5465 = vmul.f32 %v5453, %v673
        %v5466 = vmul.f32 %v5454, %v671
        %v5467 = vmul.f32 %v5455, %v675
        %v5468 = vmul.f32 %v5456, %v673
        %v5469 = vpack.c.bf16 %v5458, %v5457
        %v5470 = vpack.c.bf16 %v5459, %v5459
        %v5471 = vpack.c.bf16 %v5461, %v5460
        %v5472 = vpack.c.bf16 %v5462, %v5462
        %v5473 = vpack.c.bf16 %v5464, %v5463
        %v5474 = vpack.c.bf16 %v5465, %v5465
        %v5475 = vpack.c.bf16 %v5467, %v5466
        %v5476 = vpack.c.bf16 %v5468, %v5468
        %5485 = vrot.lane.b32.xlu0 %v5469, 127
        %v5486 = vpop.permute.xlu0 %5485
        %5487 = vrot.lane.b32.xlu0 %v5470, 127
        %v5488 = vpop.permute.xlu0 %5487
        %5489 = vrot.lane.b32.xlu0 %v5471, 127
        %v5490 = vpop.permute.xlu0 %5489
        %5491 = vrot.lane.b32.xlu0 %v5472, 127
        %v5492 = vpop.permute.xlu0 %5491
        %5493 = vrot.lane.b32.xlu0 %v5473, 127
        %v5494 = vpop.permute.xlu0 %5493
        %5495 = vrot.lane.b32.xlu0 %v5474, 127
        %v5496 = vpop.permute.xlu0 %5495
        %5497 = vrot.lane.b32.xlu0 %v5475, 127
        %v5498 = vpop.permute.xlu0 %5497
        %5499 = vrot.lane.b32.xlu0 %v5476, 127
        %v5500 = vpop.permute.xlu0 %5499
        %v5501 = vrot.slane %v5486, 4
        %v5502 = vrot.slane %v5488, 4
        %v5503 = vrot.slane %v5490, 4
        %v5504 = vrot.slane %v5492, 4
        %v5505 = vrot.slane %v5494, 4
        %v5506 = vrot.slane %v5496, 4
        %v5507 = vrot.slane %v5498, 4
        %v5508 = vrot.slane %v5500, 4
        %v5509 = vsel %vm367, %v5501, %v5502
        %v5510 = vsel %vm732, %v5486, %v5509
        %v5511 = vsel %vm367, %v5503, %v5504
        %v5512 = vsel %vm732, %v5490, %v5511
        %v5513 = vsel %vm367, %v5505, %v5506
        %v5514 = vsel %vm732, %v5494, %v5513
        %v5515 = vsel %vm367, %v5507, %v5508
        %v5516 = vsel %vm732, %v5498, %v5515
        %5521 = vst [vmem:[#allocation3 + $0x288] sm:$0xff] %v5510
        %5522 = vst [vmem:[#allocation3 + $0x2a8] sm:$0xff] %v5512
        %5523 = vst [vmem:[#allocation3 + $0x2c8] sm:$0xff] %v5514
        %5524 = vst [vmem:[#allocation3 + $0x2e8] sm:$0xff] %v5516
        %v5525 = vld [vmem:[#allocation2 + $0x4] sm:$0xff]
        %v5526 = vld [vmem:[#allocation2 + $0xc] sm:$0xf]
        %v5527 = vld [vmem:[#allocation2 + $0x14] sm:$0xff]
        %v5528 = vld [vmem:[#allocation2 + $0x1c] sm:$0xf]
        %v5529 = vld [vmem:[#allocation2 + $0x24] sm:$0xff]
        %v5530 = vld [vmem:[#allocation2 + $0x2c] sm:$0xf]
        %v5531 = vld [vmem:[#allocation2 + $0x34] sm:$0xff]
        %v5532 = vld [vmem:[#allocation2 + $0x3c] sm:$0xf]
        %v5533 = vunpack.c.l.bf16 %v5525
        %v5534 = vunpack.c.h.bf16 %v5525
        %v5535 = vunpack.c.l.bf16 %v5526
        %v5536 = vunpack.c.l.bf16 %v5527
        %v5537 = vunpack.c.h.bf16 %v5527
        %v5538 = vunpack.c.l.bf16 %v5528
        %v5539 = vunpack.c.l.bf16 %v5529
        %v5540 = vunpack.c.h.bf16 %v5529
        %v5541 = vunpack.c.l.bf16 %v5530
        %v5542 = vunpack.c.l.bf16 %v5531
        %v5543 = vunpack.c.h.bf16 %v5531
        %v5544 = vunpack.c.l.bf16 %v5532
        %v5545 = vmul.f32 %v5533, %v769
        %v5546 = vmul.f32 %v5534, %v773
        %v5547 = vmul.f32 %v5535, %v771
        %v5548 = vmul.f32 %v5536, %v769
        %v5549 = vmul.f32 %v5537, %v773
        %v5550 = vmul.f32 %v5538, %v771
        %v5551 = vmul.f32 %v5539, %v769
        %v5552 = vmul.f32 %v5540, %v773
        %v5553 = vmul.f32 %v5541, %v771
        %v5554 = vmul.f32 %v5542, %v769
        %v5555 = vmul.f32 %v5543, %v773
        %v5556 = vmul.f32 %v5544, %v771
        %v5557 = vpack.c.bf16 %v5546, %v5545
        %v5558 = vpack.c.bf16 %v5547, %v5547
        %v5559 = vpack.c.bf16 %v5549, %v5548
        %v5560 = vpack.c.bf16 %v5550, %v5550
        %v5561 = vpack.c.bf16 %v5552, %v5551
        %v5562 = vpack.c.bf16 %v5553, %v5553
        %v5563 = vpack.c.bf16 %v5555, %v5554
        %v5564 = vpack.c.bf16 %v5556, %v5556
        %5573 = vrot.lane.b32.xlu0 %v5557, 113
        %v5574 = vpop.permute.xlu0 %5573
        %5575 = vrot.lane.b32.xlu0 %v5558, 113
        %v5576 = vpop.permute.xlu0 %5575
        %5577 = vrot.lane.b32.xlu0 %v5559, 113
        %v5578 = vpop.permute.xlu0 %5577
        %5579 = vrot.lane.b32.xlu0 %v5560, 113
        %v5580 = vpop.permute.xlu0 %5579
        %5581 = vrot.lane.b32.xlu0 %v5561, 113
        %v5582 = vpop.permute.xlu0 %5581
        %5583 = vrot.lane.b32.xlu0 %v5562, 113
        %v5584 = vpop.permute.xlu0 %5583
        %5585 = vrot.lane.b32.xlu0 %v5563, 113
        %v5586 = vpop.permute.xlu0 %5585
        %5587 = vrot.lane.b32.xlu0 %v5564, 113
        %v5588 = vpop.permute.xlu0 %5587
        %v5589 = vrot.slane %v5574, 4
        %v5590 = vrot.slane %v5576, 4
        %v5591 = vrot.slane %v5578, 4
        %v5592 = vrot.slane %v5580, 4
        %v5593 = vrot.slane %v5582, 4
        %v5594 = vrot.slane %v5584, 4
        %v5595 = vrot.slane %v5586, 4
        %v5596 = vrot.slane %v5588, 4
        %v5597 = vsel %vm367, %v5589, %v5590
        %v5598 = vsel %vm830, %v5574, %v5597
        %v5599 = vsel %vm367, %v5591, %v5592
        %v5600 = vsel %vm830, %v5578, %v5599
        %v5601 = vsel %vm367, %v5593, %v5594
        %v5602 = vsel %vm830, %v5582, %v5601
        %v5603 = vsel %vm367, %v5595, %v5596
        %v5604 = vsel %vm830, %v5586, %v5603
        %5609 = vst [vmem:[#allocation3 + $0x308] sm:$0xff] %v5598
        %5610 = vst [vmem:[#allocation3 + $0x328] sm:$0xff] %v5600
        %5611 = vst [vmem:[#allocation3 + $0x348] sm:$0xff] %v5602
        %5612 = vst [vmem:[#allocation3 + $0x368] sm:$0xff] %v5604
        %v5613 = vld [vmem:[#allocation2 + $0x4] sm:$0xff]
        %v5614 = vld [vmem:[#allocation2 + $0xc] sm:$0xf]
        %v5615 = vld [vmem:[#allocation2 + $0x14] sm:$0xff]
        %v5616 = vld [vmem:[#allocation2 + $0x1c] sm:$0xf]
        %v5617 = vld [vmem:[#allocation2 + $0x24] sm:$0xff]
        %v5618 = vld [vmem:[#allocation2 + $0x2c] sm:$0xf]
        %v5619 = vld [vmem:[#allocation2 + $0x34] sm:$0xff]
        %v5620 = vld [vmem:[#allocation2 + $0x3c] sm:$0xf]
        %5629 = vrot.lane.b32.xlu0 %v5613, 112
        %v5630 = vpop.permute.xlu0 %5629
        %5631 = vrot.lane.b32.xlu0 %v5614, 112
        %v5632 = vpop.permute.xlu0 %5631
        %5633 = vrot.lane.b32.xlu0 %v5615, 112
        %v5634 = vpop.permute.xlu0 %5633
        %5635 = vrot.lane.b32.xlu0 %v5616, 112
        %v5636 = vpop.permute.xlu0 %5635
        %5637 = vrot.lane.b32.xlu0 %v5617, 112
        %v5638 = vpop.permute.xlu0 %5637
        %5639 = vrot.lane.b32.xlu0 %v5618, 112
        %v5640 = vpop.permute.xlu0 %5639
        %5641 = vrot.lane.b32.xlu0 %v5619, 112
        %v5642 = vpop.permute.xlu0 %5641
        %5643 = vrot.lane.b32.xlu0 %v5620, 112
        %v5644 = vpop.permute.xlu0 %5643
        %v5645 = vrot.slane %v5630, 4
        %v5646 = vrot.slane %v5632, 4
        %v5647 = vrot.slane %v5634, 4
        %v5648 = vrot.slane %v5636, 4
        %v5649 = vrot.slane %v5638, 4
        %v5650 = vrot.slane %v5640, 4
        %v5651 = vrot.slane %v5642, 4
        %v5652 = vrot.slane %v5644, 4
        %v5653 = vsel %vm367, %v5645, %v5646
        %v5654 = vsel %vm887, %v5630, %v5653
        %v5655 = vsel %vm367, %v5647, %v5648
        %v5656 = vsel %vm887, %v5634, %v5655
        %v5657 = vsel %vm367, %v5649, %v5650
        %v5658 = vsel %vm887, %v5638, %v5657
        %v5659 = vsel %vm367, %v5651, %v5652
        %v5660 = vsel %vm887, %v5642, %v5659
        %5665 = vst [vmem:[#allocation3 + $0x388] sm:$0xff] %v5654
        %5666 = vst [vmem:[#allocation3 + $0x3a8] sm:$0xff] %v5656
        %5667 = vst [vmem:[#allocation3 + $0x3c8] sm:$0xff] %v5658
        %5668 = vst [vmem:[#allocation3 + $0x3e8] sm:$0xff] %v5660
        %v5669 = vld [vmem:[#allocation2 + $0x4] sm:$0xff]
        %v5670 = vld [vmem:[#allocation2 + $0xc] sm:$0xf]
        %v5671 = vld [vmem:[#allocation2 + $0x14] sm:$0xff]
        %v5672 = vld [vmem:[#allocation2 + $0x1c] sm:$0xf]
        %v5673 = vld [vmem:[#allocation2 + $0x24] sm:$0xff]
        %v5674 = vld [vmem:[#allocation2 + $0x2c] sm:$0xf]
        %v5675 = vld [vmem:[#allocation2 + $0x34] sm:$0xff]
        %v5676 = vld [vmem:[#allocation2 + $0x3c] sm:$0xf]
        %v5677 = vunpack.c.l.bf16 %v5669
        %v5678 = vunpack.c.h.bf16 %v5669
        %v5679 = vunpack.c.l.bf16 %v5670
        %v5680 = vunpack.c.l.bf16 %v5671
        %v5681 = vunpack.c.h.bf16 %v5671
        %v5682 = vunpack.c.l.bf16 %v5672
        %v5683 = vunpack.c.l.bf16 %v5673
        %v5684 = vunpack.c.h.bf16 %v5673
        %v5685 = vunpack.c.l.bf16 %v5674
        %v5686 = vunpack.c.l.bf16 %v5675
        %v5687 = vunpack.c.h.bf16 %v5675
        %v5688 = vunpack.c.l.bf16 %v5676
        %v5689 = vmul.f32 %v5677, %v924
        %v5690 = vmul.f32 %v5678, %v928
        %v5691 = vmul.f32 %v5679, %v926
        %v5692 = vmul.f32 %v5680, %v924
        %v5693 = vmul.f32 %v5681, %v928
        %v5694 = vmul.f32 %v5682, %v926
        %v5695 = vmul.f32 %v5683, %v924
        %v5696 = vmul.f32 %v5684, %v928
        %v5697 = vmul.f32 %v5685, %v926
        %v5698 = vmul.f32 %v5686, %v924
        %v5699 = vmul.f32 %v5687, %v928
        %v5700 = vmul.f32 %v5688, %v926
        %v5701 = vpack.c.bf16 %v5690, %v5689
        %v5702 = vpack.c.bf16 %v5691, %v5691
        %v5703 = vpack.c.bf16 %v5693, %v5692
        %v5704 = vpack.c.bf16 %v5694, %v5694
        %v5705 = vpack.c.bf16 %v5696, %v5695
        %v5706 = vpack.c.bf16 %v5697, %v5697
        %v5707 = vpack.c.bf16 %v5699, %v5698
        %v5708 = vpack.c.bf16 %v5700, %v5700
        %5717 = vrot.lane.b32.xlu0 %v5701, 111
        %v5718 = vpop.permute.xlu0 %5717
        %5719 = vrot.lane.b32.xlu0 %v5702, 111
        %v5720 = vpop.permute.xlu0 %5719
        %5721 = vrot.lane.b32.xlu0 %v5703, 111
        %v5722 = vpop.permute.xlu0 %5721
        %5723 = vrot.lane.b32.xlu0 %v5704, 111
        %v5724 = vpop.permute.xlu0 %5723
        %5725 = vrot.lane.b32.xlu0 %v5705, 111
        %v5726 = vpop.permute.xlu0 %5725
        %5727 = vrot.lane.b32.xlu0 %v5706, 111
        %v5728 = vpop.permute.xlu0 %5727
        %5729 = vrot.lane.b32.xlu0 %v5707, 111
        %v5730 = vpop.permute.xlu0 %5729
        %5731 = vrot.lane.b32.xlu0 %v5708, 111
        %v5732 = vpop.permute.xlu0 %5731
        %v5733 = vrot.slane %v5718, 4
        %v5734 = vrot.slane %v5720, 4
        %v5735 = vrot.slane %v5722, 4
        %v5736 = vrot.slane %v5724, 4
        %v5737 = vrot.slane %v5726, 4
        %v5738 = vrot.slane %v5728, 4
        %v5739 = vrot.slane %v5730, 4
        %v5740 = vrot.slane %v5732, 4
        %v5741 = vsel %vm367, %v5733, %v5734
        %v5742 = vsel %vm985, %v5718, %v5741
        %v5743 = vsel %vm367, %v5735, %v5736
        %v5744 = vsel %vm985, %v5722, %v5743
        %v5745 = vsel %vm367, %v5737, %v5738
        %v5746 = vsel %vm985, %v5726, %v5745
        %v5747 = vsel %vm367, %v5739, %v5740
        %v5748 = vsel %vm985, %v5730, %v5747
        %5753 = vst [vmem:[#allocation3 + $0x408] sm:$0xff] %v5742
        %5754 = vst [vmem:[#allocation3 + $0x428] sm:$0xff] %v5744
        %5755 = vst [vmem:[#allocation3 + $0x448] sm:$0xff] %v5746
        %5756 = vst [vmem:[#allocation3 + $0x468] sm:$0xff] %v5748
        %v5757 = vld [vmem:[#allocation4 + $0x10] sm:$0xff]
        %v5758 = vld [vmem:[#allocation4 + $0x30] sm:$0xff]
        %v5759 = vld [vmem:[#allocation4 + $0x50] sm:$0xff]
        %v5760 = vld [vmem:[#allocation4 + $0x70] sm:$0xff]
        %5761 = vst [vmem:[#allocation2 + $0x4] sm:$0xff] %v5757
        %5762 = vst [vmem:[#allocation2 + $0x14] sm:$0xff] %v5758
        %5763 = vst [vmem:[#allocation2 + $0x24] sm:$0xff] %v5759
        %5764 = vst [vmem:[#allocation2 + $0x34] sm:$0xff] %v5760
        %v5765 = vld [vmem:[#allocation2] sm:$0xff]
        %v5766 = vld [vmem:[#allocation2 + $0x8] sm:$0xf]
        %v5767 = vld [vmem:[#allocation2 + $0x10] sm:$0xff]
        %v5768 = vld [vmem:[#allocation2 + $0x18] sm:$0xf]
        %v5769 = vld [vmem:[#allocation2 + $0x20] sm:$0xff]
        %v5770 = vld [vmem:[#allocation2 + $0x28] sm:$0xf]
        %v5771 = vld [vmem:[#allocation2 + $0x30] sm:$0xff]
        %v5772 = vld [vmem:[#allocation2 + $0x38] sm:$0xf]
        %v5773 = vunpack.c.l.bf16 %v5765
        %v5774 = vunpack.c.h.bf16 %v5765
        %v5775 = vunpack.c.l.bf16 %v5766
        %v5776 = vunpack.c.l.bf16 %v5767
        %v5777 = vunpack.c.h.bf16 %v5767
        %v5778 = vunpack.c.l.bf16 %v5768
        %v5779 = vunpack.c.l.bf16 %v5769
        %v5780 = vunpack.c.h.bf16 %v5769
        %v5781 = vunpack.c.l.bf16 %v5770
        %v5782 = vunpack.c.l.bf16 %v5771
        %v5783 = vunpack.c.h.bf16 %v5771
        %v5784 = vunpack.c.l.bf16 %v5772
        %v5785 = vmul.f32 %v5773, %v307
        %v5786 = vmul.f32 %v5774, %v311
        %v5787 = vmul.f32 %v5775, %v309
        %v5788 = vmul.f32 %v5776, %v307
        %v5789 = vmul.f32 %v5777, %v311
        %v5790 = vmul.f32 %v5778, %v309
        %v5791 = vmul.f32 %v5779, %v307
        %v5792 = vmul.f32 %v5780, %v311
        %v5793 = vmul.f32 %v5781, %v309
        %v5794 = vmul.f32 %v5782, %v307
        %v5795 = vmul.f32 %v5783, %v311
        %v5796 = vmul.f32 %v5784, %v309
        %v5797 = vpack.c.bf16 %v5786, %v5785
        %v5798 = vpack.c.bf16 %v5787, %v5787
        %v5799 = vpack.c.bf16 %v5789, %v5788
        %v5800 = vpack.c.bf16 %v5790, %v5790
        %v5801 = vpack.c.bf16 %v5792, %v5791
        %v5802 = vpack.c.bf16 %v5793, %v5793
        %v5803 = vpack.c.bf16 %v5795, %v5794
        %v5804 = vpack.c.bf16 %v5796, %v5796
        %5813 = vrot.lane.b32.xlu0 %v5797, 17
        %v5814 = vpop.permute.xlu0 %5813
        %5815 = vrot.lane.b32.xlu0 %v5798, 17
        %v5816 = vpop.permute.xlu0 %5815
        %5817 = vrot.lane.b32.xlu0 %v5799, 17
        %v5818 = vpop.permute.xlu0 %5817
        %5819 = vrot.lane.b32.xlu0 %v5800, 17
        %v5820 = vpop.permute.xlu0 %5819
        %5821 = vrot.lane.b32.xlu0 %v5801, 17
        %v5822 = vpop.permute.xlu0 %5821
        %5823 = vrot.lane.b32.xlu0 %v5802, 17
        %v5824 = vpop.permute.xlu0 %5823
        %5825 = vrot.lane.b32.xlu0 %v5803, 17
        %v5826 = vpop.permute.xlu0 %5825
        %5827 = vrot.lane.b32.xlu0 %v5804, 17
        %v5828 = vpop.permute.xlu0 %5827
        %v5829 = vrot.slane %v5814, 4
        %v5830 = vrot.slane %v5816, 4
        %v5831 = vrot.slane %v5818, 4
        %v5832 = vrot.slane %v5820, 4
        %v5833 = vrot.slane %v5822, 4
        %v5834 = vrot.slane %v5824, 4
        %v5835 = vrot.slane %v5826, 4
        %v5836 = vrot.slane %v5828, 4
        %v5837 = vsel %vm367, %v5829, %v5830
        %v5838 = vsel %vm369, %v5814, %v5837
        %v5839 = vsel %vm367, %v5831, %v5832
        %v5840 = vsel %vm369, %v5818, %v5839
        %v5841 = vsel %vm367, %v5833, %v5834
        %v5842 = vsel %vm369, %v5822, %v5841
        %v5843 = vsel %vm367, %v5835, %v5836
        %v5844 = vsel %vm369, %v5826, %v5843
        %5849 = vst [vmem:[#allocation3 + $0x10] sm:$0xff] %v5838
        %5850 = vst [vmem:[#allocation3 + $0x30] sm:$0xff] %v5840
        %5851 = vst [vmem:[#allocation3 + $0x50] sm:$0xff] %v5842
        %5852 = vst [vmem:[#allocation3 + $0x70] sm:$0xff] %v5844
        %v5853 = vld [vmem:[#allocation2] sm:$0xff]
        %v5854 = vld [vmem:[#allocation2 + $0x8] sm:$0xf]
        %v5855 = vld [vmem:[#allocation2 + $0x10] sm:$0xff]
        %v5856 = vld [vmem:[#allocation2 + $0x18] sm:$0xf]
        %v5857 = vld [vmem:[#allocation2 + $0x20] sm:$0xff]
        %v5858 = vld [vmem:[#allocation2 + $0x28] sm:$0xf]
        %v5859 = vld [vmem:[#allocation2 + $0x30] sm:$0xff]
        %v5860 = vld [vmem:[#allocation2 + $0x38] sm:$0xf]
        %5869 = vrot.lane.b32.xlu0 %v5853, 16
        %v5870 = vpop.permute.xlu0 %5869
        %5871 = vrot.lane.b32.xlu0 %v5854, 16
        %v5872 = vpop.permute.xlu0 %5871
        %5873 = vrot.lane.b32.xlu0 %v5855, 16
        %v5874 = vpop.permute.xlu0 %5873
        %5875 = vrot.lane.b32.xlu0 %v5856, 16
        %v5876 = vpop.permute.xlu0 %5875
        %5877 = vrot.lane.b32.xlu0 %v5857, 16
        %v5878 = vpop.permute.xlu0 %5877
        %5879 = vrot.lane.b32.xlu0 %v5858, 16
        %v5880 = vpop.permute.xlu0 %5879
        %5881 = vrot.lane.b32.xlu0 %v5859, 16
        %v5882 = vpop.permute.xlu0 %5881
        %5883 = vrot.lane.b32.xlu0 %v5860, 16
        %v5884 = vpop.permute.xlu0 %5883
        %v5885 = vrot.slane %v5870, 4
        %v5886 = vrot.slane %v5872, 4
        %v5887 = vrot.slane %v5874, 4
        %v5888 = vrot.slane %v5876, 4
        %v5889 = vrot.slane %v5878, 4
        %v5890 = vrot.slane %v5880, 4
        %v5891 = vrot.slane %v5882, 4
        %v5892 = vrot.slane %v5884, 4
        %v5893 = vsel %vm367, %v5885, %v5886
        %v5894 = vsel %vm426, %v5870, %v5893
        %v5895 = vsel %vm367, %v5887, %v5888
        %v5896 = vsel %vm426, %v5874, %v5895
        %v5897 = vsel %vm367, %v5889, %v5890
        %v5898 = vsel %vm426, %v5878, %v5897
        %v5899 = vsel %vm367, %v5891, %v5892
        %v5900 = vsel %vm426, %v5882, %v5899
        %5905 = vst [vmem:[#allocation3 + $0x90] sm:$0xff] %v5894
        %5906 = vst [vmem:[#allocation3 + $0xb0] sm:$0xff] %v5896
        %5907 = vst [vmem:[#allocation3 + $0xd0] sm:$0xff] %v5898
        %5908 = vst [vmem:[#allocation3 + $0xf0] sm:$0xff] %v5900
        %v5909 = vld [vmem:[#allocation2] sm:$0xff]
        %v5910 = vld [vmem:[#allocation2 + $0x8] sm:$0xf]
        %v5911 = vld [vmem:[#allocation2 + $0x10] sm:$0xff]
        %v5912 = vld [vmem:[#allocation2 + $0x18] sm:$0xf]
        %v5913 = vld [vmem:[#allocation2 + $0x20] sm:$0xff]
        %v5914 = vld [vmem:[#allocation2 + $0x28] sm:$0xf]
        %v5915 = vld [vmem:[#allocation2 + $0x30] sm:$0xff]
        %v5916 = vld [vmem:[#allocation2 + $0x38] sm:$0xf]
        %v5917 = vunpack.c.l.bf16 %v5909
        %v5918 = vunpack.c.h.bf16 %v5909
        %v5919 = vunpack.c.l.bf16 %v5910
        %v5920 = vunpack.c.l.bf16 %v5911
        %v5921 = vunpack.c.h.bf16 %v5911
        %v5922 = vunpack.c.l.bf16 %v5912
        %v5923 = vunpack.c.l.bf16 %v5913
        %v5924 = vunpack.c.h.bf16 %v5913
        %v5925 = vunpack.c.l.bf16 %v5914
        %v5926 = vunpack.c.l.bf16 %v5915
        %v5927 = vunpack.c.h.bf16 %v5915
        %v5928 = vunpack.c.l.bf16 %v5916
        %v5929 = vmul.f32 %v5917, %v467
        %v5930 = vmul.f32 %v5918, %v471
        %v5931 = vmul.f32 %v5919, %v469
        %v5932 = vmul.f32 %v5920, %v467
        %v5933 = vmul.f32 %v5921, %v471
        %v5934 = vmul.f32 %v5922, %v469
        %v5935 = vmul.f32 %v5923, %v467
        %v5936 = vmul.f32 %v5924, %v471
        %v5937 = vmul.f32 %v5925, %v469
        %v5938 = vmul.f32 %v5926, %v467
        %v5939 = vmul.f32 %v5927, %v471
        %v5940 = vmul.f32 %v5928, %v469
        %v5941 = vpack.c.bf16 %v5930, %v5929
        %v5942 = vpack.c.bf16 %v5931, %v5931
        %v5943 = vpack.c.bf16 %v5933, %v5932
        %v5944 = vpack.c.bf16 %v5934, %v5934
        %v5945 = vpack.c.bf16 %v5936, %v5935
        %v5946 = vpack.c.bf16 %v5937, %v5937
        %v5947 = vpack.c.bf16 %v5939, %v5938
        %v5948 = vpack.c.bf16 %v5940, %v5940
        %5957 = vrot.lane.b32.xlu0 %v5941, 15
        %v5958 = vpop.permute.xlu0 %5957
        %5959 = vrot.lane.b32.xlu0 %v5942, 15
        %v5960 = vpop.permute.xlu0 %5959
        %5961 = vrot.lane.b32.xlu0 %v5943, 15
        %v5962 = vpop.permute.xlu0 %5961
        %5963 = vrot.lane.b32.xlu0 %v5944, 15
        %v5964 = vpop.permute.xlu0 %5963
        %5965 = vrot.lane.b32.xlu0 %v5945, 15
        %v5966 = vpop.permute.xlu0 %5965
        %5967 = vrot.lane.b32.xlu0 %v5946, 15
        %v5968 = vpop.permute.xlu0 %5967
        %5969 = vrot.lane.b32.xlu0 %v5947, 15
        %v5970 = vpop.permute.xlu0 %5969
        %5971 = vrot.lane.b32.xlu0 %v5948, 15
        %v5972 = vpop.permute.xlu0 %5971
        %v5973 = vrot.slane %v5958, 4
        %v5974 = vrot.slane %v5960, 4
        %v5975 = vrot.slane %v5962, 4
        %v5976 = vrot.slane %v5964, 4
        %v5977 = vrot.slane %v5966, 4
        %v5978 = vrot.slane %v5968, 4
        %v5979 = vrot.slane %v5970, 4
        %v5980 = vrot.slane %v5972, 4
        %v5981 = vsel %vm367, %v5973, %v5974
        %v5982 = vsel %vm528, %v5958, %v5981
        %v5983 = vsel %vm367, %v5975, %v5976
        %v5984 = vsel %vm528, %v5962, %v5983
        %v5985 = vsel %vm367, %v5977, %v5978
        %v5986 = vsel %vm528, %v5966, %v5985
        %v5987 = vsel %vm367, %v5979, %v5980
        %v5988 = vsel %vm528, %v5970, %v5987
        %5993 = vst [vmem:[#allocation3 + $0x110] sm:$0xff] %v5982
        %5994 = vst [vmem:[#allocation3 + $0x130] sm:$0xff] %v5984
        %5995 = vst [vmem:[#allocation3 + $0x150] sm:$0xff] %v5986
        %5996 = vst [vmem:[#allocation3 + $0x170] sm:$0xff] %v5988
        %v5997 = vld [vmem:[#allocation2] sm:$0xff]
        %v5998 = vld [vmem:[#allocation2 + $0x8] sm:$0xf]
        %v5999 = vld [vmem:[#allocation2 + $0x10] sm:$0xff]
        %v6000 = vld [vmem:[#allocation2 + $0x18] sm:$0xf]
        %v6001 = vld [vmem:[#allocation2 + $0x20] sm:$0xff]
        %v6002 = vld [vmem:[#allocation2 + $0x28] sm:$0xf]
        %v6003 = vld [vmem:[#allocation2 + $0x30] sm:$0xff]
        %v6004 = vld [vmem:[#allocation2 + $0x38] sm:$0xf]
        %v6005 = vunpack.c.l.bf16 %v5997
        %v6006 = vunpack.c.h.bf16 %v5997
        %v6007 = vunpack.c.l.bf16 %v5998
        %v6008 = vunpack.c.l.bf16 %v5999
        %v6009 = vunpack.c.h.bf16 %v5999
        %v6010 = vunpack.c.l.bf16 %v6000
        %v6011 = vunpack.c.l.bf16 %v6001
        %v6012 = vunpack.c.h.bf16 %v6001
        %v6013 = vunpack.c.l.bf16 %v6002
        %v6014 = vunpack.c.l.bf16 %v6003
        %v6015 = vunpack.c.h.bf16 %v6003
        %v6016 = vunpack.c.l.bf16 %v6004
        %v6017 = vmul.f32 %v6005, %v565
        %v6018 = vmul.f32 %v6006, %v569
        %v6019 = vmul.f32 %v6007, %v567
        %v6020 = vmul.f32 %v6008, %v565
        %v6021 = vmul.f32 %v6009, %v569
        %v6022 = vmul.f32 %v6010, %v567
        %v6023 = vmul.f32 %v6011, %v565
        %v6024 = vmul.f32 %v6012, %v569
        %v6025 = vmul.f32 %v6013, %v567
        %v6026 = vmul.f32 %v6014, %v565
        %v6027 = vmul.f32 %v6015, %v569
        %v6028 = vmul.f32 %v6016, %v567
        %v6029 = vpack.c.bf16 %v6018, %v6017
        %v6030 = vpack.c.bf16 %v6019, %v6019
        %v6031 = vpack.c.bf16 %v6021, %v6020
        %v6032 = vpack.c.bf16 %v6022, %v6022
        %v6033 = vpack.c.bf16 %v6024, %v6023
        %v6034 = vpack.c.bf16 %v6025, %v6025
        %v6035 = vpack.c.bf16 %v6027, %v6026
        %v6036 = vpack.c.bf16 %v6028, %v6028
        %6045 = vrot.lane.b32.xlu0 %v6029, 1
        %v6046 = vpop.permute.xlu0 %6045
        %6047 = vrot.lane.b32.xlu0 %v6030, 1
        %v6048 = vpop.permute.xlu0 %6047
        %6049 = vrot.lane.b32.xlu0 %v6031, 1
        %v6050 = vpop.permute.xlu0 %6049
        %6051 = vrot.lane.b32.xlu0 %v6032, 1
        %v6052 = vpop.permute.xlu0 %6051
        %6053 = vrot.lane.b32.xlu0 %v6033, 1
        %v6054 = vpop.permute.xlu0 %6053
        %6055 = vrot.lane.b32.xlu0 %v6034, 1
        %v6056 = vpop.permute.xlu0 %6055
        %6057 = vrot.lane.b32.xlu0 %v6035, 1
        %v6058 = vpop.permute.xlu0 %6057
        %6059 = vrot.lane.b32.xlu0 %v6036, 1
        %v6060 = vpop.permute.xlu0 %6059
        %v6061 = vrot.slane %v6046, 4
        %v6062 = vrot.slane %v6048, 4
        %v6063 = vrot.slane %v6050, 4
        %v6064 = vrot.slane %v6052, 4
        %v6065 = vrot.slane %v6054, 4
        %v6066 = vrot.slane %v6056, 4
        %v6067 = vrot.slane %v6058, 4
        %v6068 = vrot.slane %v6060, 4
        %v6069 = vsel %vm367, %v6061, %v6062
        %v6070 = vsel %vm626, %v6046, %v6069
        %v6071 = vsel %vm367, %v6063, %v6064
        %v6072 = vsel %vm626, %v6050, %v6071
        %v6073 = vsel %vm367, %v6065, %v6066
        %v6074 = vsel %vm626, %v6054, %v6073
        %v6075 = vsel %vm367, %v6067, %v6068
        %v6076 = vsel %vm626, %v6058, %v6075
        %6081 = vst [vmem:[#allocation3 + $0x190] sm:$0xff] %v6070
        %6082 = vst [vmem:[#allocation3 + $0x1b0] sm:$0xff] %v6072
        %6083 = vst [vmem:[#allocation3 + $0x1d0] sm:$0xff] %v6074
        %6084 = vst [vmem:[#allocation3 + $0x1f0] sm:$0xff] %v6076
        %v6085 = vld [vmem:[#allocation2 + $0x4] sm:$0xff]
        %v6086 = vld [vmem:[#allocation2 + $0x14] sm:$0xff]
        %v6087 = vld [vmem:[#allocation2 + $0x24] sm:$0xff]
        %v6088 = vld [vmem:[#allocation2 + $0x34] sm:$0xff]
        %6089 = vst [vmem:[#allocation3 + $0x210] sm:$0xff] %v6085
        %6090 = vst [vmem:[#allocation3 + $0x230] sm:$0xff] %v6086
        %6091 = vst [vmem:[#allocation3 + $0x250] sm:$0xff] %v6087
        %6092 = vst [vmem:[#allocation3 + $0x270] sm:$0xff] %v6088
        %v6093 = vld [vmem:[#allocation2 + $0x4] sm:$0xff]
        %v6094 = vld [vmem:[#allocation2 + $0xc] sm:$0xf]
        %v6095 = vld [vmem:[#allocation2 + $0x14] sm:$0xff]
        %v6096 = vld [vmem:[#allocation2 + $0x1c] sm:$0xf]
        %v6097 = vld [vmem:[#allocation2 + $0x24] sm:$0xff]
        %v6098 = vld [vmem:[#allocation2 + $0x2c] sm:$0xf]
        %v6099 = vld [vmem:[#allocation2 + $0x34] sm:$0xff]
        %v6100 = vld [vmem:[#allocation2 + $0x3c] sm:$0xf]
        %v6101 = vunpack.c.l.bf16 %v6093
        %v6102 = vunpack.c.h.bf16 %v6093
        %v6103 = vunpack.c.l.bf16 %v6094
        %v6104 = vunpack.c.l.bf16 %v6095
        %v6105 = vunpack.c.h.bf16 %v6095
        %v6106 = vunpack.c.l.bf16 %v6096
        %v6107 = vunpack.c.l.bf16 %v6097
        %v6108 = vunpack.c.h.bf16 %v6097
        %v6109 = vunpack.c.l.bf16 %v6098
        %v6110 = vunpack.c.l.bf16 %v6099
        %v6111 = vunpack.c.h.bf16 %v6099
        %v6112 = vunpack.c.l.bf16 %v6100
        %v6113 = vmul.f32 %v6101, %v671
        %v6114 = vmul.f32 %v6102, %v675
        %v6115 = vmul.f32 %v6103, %v673
        %v6116 = vmul.f32 %v6104, %v671
        %v6117 = vmul.f32 %v6105, %v675
        %v6118 = vmul.f32 %v6106, %v673
        %v6119 = vmul.f32 %v6107, %v671
        %v6120 = vmul.f32 %v6108, %v675
        %v6121 = vmul.f32 %v6109, %v673
        %v6122 = vmul.f32 %v6110, %v671
        %v6123 = vmul.f32 %v6111, %v675
        %v6124 = vmul.f32 %v6112, %v673
        %v6125 = vpack.c.bf16 %v6114, %v6113
        %v6126 = vpack.c.bf16 %v6115, %v6115
        %v6127 = vpack.c.bf16 %v6117, %v6116
        %v6128 = vpack.c.bf16 %v6118, %v6118
        %v6129 = vpack.c.bf16 %v6120, %v6119
        %v6130 = vpack.c.bf16 %v6121, %v6121
        %v6131 = vpack.c.bf16 %v6123, %v6122
        %v6132 = vpack.c.bf16 %v6124, %v6124
        %6141 = vrot.lane.b32.xlu0 %v6125, 127
        %v6142 = vpop.permute.xlu0 %6141
        %6143 = vrot.lane.b32.xlu0 %v6126, 127
        %v6144 = vpop.permute.xlu0 %6143
        %6145 = vrot.lane.b32.xlu0 %v6127, 127
        %v6146 = vpop.permute.xlu0 %6145
        %6147 = vrot.lane.b32.xlu0 %v6128, 127
        %v6148 = vpop.permute.xlu0 %6147
        %6149 = vrot.lane.b32.xlu0 %v6129, 127
        %v6150 = vpop.permute.xlu0 %6149
        %6151 = vrot.lane.b32.xlu0 %v6130, 127
        %v6152 = vpop.permute.xlu0 %6151
        %6153 = vrot.lane.b32.xlu0 %v6131, 127
        %v6154 = vpop.permute.xlu0 %6153
        %6155 = vrot.lane.b32.xlu0 %v6132, 127
        %v6156 = vpop.permute.xlu0 %6155
        %v6157 = vrot.slane %v6142, 4
        %v6158 = vrot.slane %v6144, 4
        %v6159 = vrot.slane %v6146, 4
        %v6160 = vrot.slane %v6148, 4
        %v6161 = vrot.slane %v6150, 4
        %v6162 = vrot.slane %v6152, 4
        %v6163 = vrot.slane %v6154, 4
        %v6164 = vrot.slane %v6156, 4
        %v6165 = vsel %vm367, %v6157, %v6158
        %v6166 = vsel %vm732, %v6142, %v6165
        %v6167 = vsel %vm367, %v6159, %v6160
        %v6168 = vsel %vm732, %v6146, %v6167
        %v6169 = vsel %vm367, %v6161, %v6162
        %v6170 = vsel %vm732, %v6150, %v6169
        %v6171 = vsel %vm367, %v6163, %v6164
        %v6172 = vsel %vm732, %v6154, %v6171
        %6177 = vst [vmem:[#allocation3 + $0x290] sm:$0xff] %v6166
        %6178 = vst [vmem:[#allocation3 + $0x2b0] sm:$0xff] %v6168
        %6179 = vst [vmem:[#allocation3 + $0x2d0] sm:$0xff] %v6170
        %6180 = vst [vmem:[#allocation3 + $0x2f0] sm:$0xff] %v6172
        %v6181 = vld [vmem:[#allocation2 + $0x4] sm:$0xff]
        %v6182 = vld [vmem:[#allocation2 + $0xc] sm:$0xf]
        %v6183 = vld [vmem:[#allocation2 + $0x14] sm:$0xff]
        %v6184 = vld [vmem:[#allocation2 + $0x1c] sm:$0xf]
        %v6185 = vld [vmem:[#allocation2 + $0x24] sm:$0xff]
        %v6186 = vld [vmem:[#allocation2 + $0x2c] sm:$0xf]
        %v6187 = vld [vmem:[#allocation2 + $0x34] sm:$0xff]
        %v6188 = vld [vmem:[#allocation2 + $0x3c] sm:$0xf]
        %v6189 = vunpack.c.l.bf16 %v6181
        %v6190 = vunpack.c.h.bf16 %v6181
        %v6191 = vunpack.c.l.bf16 %v6182
        %v6192 = vunpack.c.l.bf16 %v6183
        %v6193 = vunpack.c.h.bf16 %v6183
        %v6194 = vunpack.c.l.bf16 %v6184
        %v6195 = vunpack.c.l.bf16 %v6185
        %v6196 = vunpack.c.h.bf16 %v6185
        %v6197 = vunpack.c.l.bf16 %v6186
        %v6198 = vunpack.c.l.bf16 %v6187
        %v6199 = vunpack.c.h.bf16 %v6187
        %v6200 = vunpack.c.l.bf16 %v6188
        %v6201 = vmul.f32 %v6189, %v769
        %v6202 = vmul.f32 %v6190, %v773
        %v6203 = vmul.f32 %v6191, %v771
        %v6204 = vmul.f32 %v6192, %v769
        %v6205 = vmul.f32 %v6193, %v773
        %v6206 = vmul.f32 %v6194, %v771
        %v6207 = vmul.f32 %v6195, %v769
        %v6208 = vmul.f32 %v6196, %v773
        %v6209 = vmul.f32 %v6197, %v771
        %v6210 = vmul.f32 %v6198, %v769
        %v6211 = vmul.f32 %v6199, %v773
        %v6212 = vmul.f32 %v6200, %v771
        %v6213 = vpack.c.bf16 %v6202, %v6201
        %v6214 = vpack.c.bf16 %v6203, %v6203
        %v6215 = vpack.c.bf16 %v6205, %v6204
        %v6216 = vpack.c.bf16 %v6206, %v6206
        %v6217 = vpack.c.bf16 %v6208, %v6207
        %v6218 = vpack.c.bf16 %v6209, %v6209
        %v6219 = vpack.c.bf16 %v6211, %v6210
        %v6220 = vpack.c.bf16 %v6212, %v6212
        %6229 = vrot.lane.b32.xlu0 %v6213, 113
        %v6230 = vpop.permute.xlu0 %6229
        %6231 = vrot.lane.b32.xlu0 %v6214, 113
        %v6232 = vpop.permute.xlu0 %6231
        %6233 = vrot.lane.b32.xlu0 %v6215, 113
        %v6234 = vpop.permute.xlu0 %6233
        %6235 = vrot.lane.b32.xlu0 %v6216, 113
        %v6236 = vpop.permute.xlu0 %6235
        %6237 = vrot.lane.b32.xlu0 %v6217, 113
        %v6238 = vpop.permute.xlu0 %6237
        %6239 = vrot.lane.b32.xlu0 %v6218, 113
        %v6240 = vpop.permute.xlu0 %6239
        %6241 = vrot.lane.b32.xlu0 %v6219, 113
        %v6242 = vpop.permute.xlu0 %6241
        %6243 = vrot.lane.b32.xlu0 %v6220, 113
        %v6244 = vpop.permute.xlu0 %6243
        %v6245 = vrot.slane %v6230, 4
        %v6246 = vrot.slane %v6232, 4
        %v6247 = vrot.slane %v6234, 4
        %v6248 = vrot.slane %v6236, 4
        %v6249 = vrot.slane %v6238, 4
        %v6250 = vrot.slane %v6240, 4
        %v6251 = vrot.slane %v6242, 4
        %v6252 = vrot.slane %v6244, 4
        %v6253 = vsel %vm367, %v6245, %v6246
        %v6254 = vsel %vm830, %v6230, %v6253
        %v6255 = vsel %vm367, %v6247, %v6248
        %v6256 = vsel %vm830, %v6234, %v6255
        %v6257 = vsel %vm367, %v6249, %v6250
        %v6258 = vsel %vm830, %v6238, %v6257
        %v6259 = vsel %vm367, %v6251, %v6252
        %v6260 = vsel %vm830, %v6242, %v6259
        %6265 = vst [vmem:[#allocation3 + $0x310] sm:$0xff] %v6254
        %6266 = vst [vmem:[#allocation3 + $0x330] sm:$0xff] %v6256
        %6267 = vst [vmem:[#allocation3 + $0x350] sm:$0xff] %v6258
        %6268 = vst [vmem:[#allocation3 + $0x370] sm:$0xff] %v6260
        %v6269 = vld [vmem:[#allocation2 + $0x4] sm:$0xff]
        %v6270 = vld [vmem:[#allocation2 + $0xc] sm:$0xf]
        %v6271 = vld [vmem:[#allocation2 + $0x14] sm:$0xff]
        %v6272 = vld [vmem:[#allocation2 + $0x1c] sm:$0xf]
        %v6273 = vld [vmem:[#allocation2 + $0x24] sm:$0xff]
        %v6274 = vld [vmem:[#allocation2 + $0x2c] sm:$0xf]
        %v6275 = vld [vmem:[#allocation2 + $0x34] sm:$0xff]
        %v6276 = vld [vmem:[#allocation2 + $0x3c] sm:$0xf]
        %6285 = vrot.lane.b32.xlu0 %v6269, 112
        %v6286 = vpop.permute.xlu0 %6285
        %6287 = vrot.lane.b32.xlu0 %v6270, 112
        %v6288 = vpop.permute.xlu0 %6287
        %6289 = vrot.lane.b32.xlu0 %v6271, 112
        %v6290 = vpop.permute.xlu0 %6289
        %6291 = vrot.lane.b32.xlu0 %v6272, 112
        %v6292 = vpop.permute.xlu0 %6291
        %6293 = vrot.lane.b32.xlu0 %v6273, 112
        %v6294 = vpop.permute.xlu0 %6293
        %6295 = vrot.lane.b32.xlu0 %v6274, 112
        %v6296 = vpop.permute.xlu0 %6295
        %6297 = vrot.lane.b32.xlu0 %v6275, 112
        %v6298 = vpop.permute.xlu0 %6297
        %6299 = vrot.lane.b32.xlu0 %v6276, 112
        %v6300 = vpop.permute.xlu0 %6299
        %v6301 = vrot.slane %v6286, 4
        %v6302 = vrot.slane %v6288, 4
        %v6303 = vrot.slane %v6290, 4
        %v6304 = vrot.slane %v6292, 4
        %v6305 = vrot.slane %v6294, 4
        %v6306 = vrot.slane %v6296, 4
        %v6307 = vrot.slane %v6298, 4
        %v6308 = vrot.slane %v6300, 4
        %v6309 = vsel %vm367, %v6301, %v6302
        %v6310 = vsel %vm887, %v6286, %v6309
        %v6311 = vsel %vm367, %v6303, %v6304
        %v6312 = vsel %vm887, %v6290, %v6311
        %v6313 = vsel %vm367, %v6305, %v6306
        %v6314 = vsel %vm887, %v6294, %v6313
        %v6315 = vsel %vm367, %v6307, %v6308
        %v6316 = vsel %vm887, %v6298, %v6315
        %6321 = vst [vmem:[#allocation3 + $0x390] sm:$0xff] %v6310
        %6322 = vst [vmem:[#allocation3 + $0x3b0] sm:$0xff] %v6312
        %6323 = vst [vmem:[#allocation3 + $0x3d0] sm:$0xff] %v6314
        %6324 = vst [vmem:[#allocation3 + $0x3f0] sm:$0xff] %v6316
        %v6325 = vld [vmem:[#allocation2 + $0x4] sm:$0xff]
        %v6326 = vld [vmem:[#allocation2 + $0xc] sm:$0xf]
        %v6327 = vld [vmem:[#allocation2 + $0x14] sm:$0xff]
        %v6328 = vld [vmem:[#allocation2 + $0x1c] sm:$0xf]
        %v6329 = vld [vmem:[#allocation2 + $0x24] sm:$0xff]
        %v6330 = vld [vmem:[#allocation2 + $0x2c] sm:$0xf]
        %v6331 = vld [vmem:[#allocation2 + $0x34] sm:$0xff]
        %v6332 = vld [vmem:[#allocation2 + $0x3c] sm:$0xf]
        %v6333 = vunpack.c.l.bf16 %v6325
        %v6334 = vunpack.c.h.bf16 %v6325
        %v6335 = vunpack.c.l.bf16 %v6326
        %v6336 = vunpack.c.l.bf16 %v6327
        %v6337 = vunpack.c.h.bf16 %v6327
        %v6338 = vunpack.c.l.bf16 %v6328
        %v6339 = vunpack.c.l.bf16 %v6329
        %v6340 = vunpack.c.h.bf16 %v6329
        %v6341 = vunpack.c.l.bf16 %v6330
        %v6342 = vunpack.c.l.bf16 %v6331
        %v6343 = vunpack.c.h.bf16 %v6331
        %v6344 = vunpack.c.l.bf16 %v6332
        %v6345 = vmul.f32 %v6333, %v924
        %v6346 = vmul.f32 %v6334, %v928
        %v6347 = vmul.f32 %v6335, %v926
        %v6348 = vmul.f32 %v6336, %v924
        %v6349 = vmul.f32 %v6337, %v928
        %v6350 = vmul.f32 %v6338, %v926
        %v6351 = vmul.f32 %v6339, %v924
        %v6352 = vmul.f32 %v6340, %v928
        %v6353 = vmul.f32 %v6341, %v926
        %v6354 = vmul.f32 %v6342, %v924
        %v6355 = vmul.f32 %v6343, %v928
        %v6356 = vmul.f32 %v6344, %v926
        %v6357 = vpack.c.bf16 %v6346, %v6345
        %v6358 = vpack.c.bf16 %v6347, %v6347
        %v6359 = vpack.c.bf16 %v6349, %v6348
        %v6360 = vpack.c.bf16 %v6350, %v6350
        %v6361 = vpack.c.bf16 %v6352, %v6351
        %v6362 = vpack.c.bf16 %v6353, %v6353
        %v6363 = vpack.c.bf16 %v6355, %v6354
        %v6364 = vpack.c.bf16 %v6356, %v6356
        %6373 = vrot.lane.b32.xlu0 %v6357, 111
        %v6374 = vpop.permute.xlu0 %6373
        %6375 = vrot.lane.b32.xlu0 %v6358, 111
        %v6376 = vpop.permute.xlu0 %6375
        %6377 = vrot.lane.b32.xlu0 %v6359, 111
        %v6378 = vpop.permute.xlu0 %6377
        %6379 = vrot.lane.b32.xlu0 %v6360, 111
        %v6380 = vpop.permute.xlu0 %6379
        %6381 = vrot.lane.b32.xlu0 %v6361, 111
        %v6382 = vpop.permute.xlu0 %6381
        %6383 = vrot.lane.b32.xlu0 %v6362, 111
        %v6384 = vpop.permute.xlu0 %6383
        %6385 = vrot.lane.b32.xlu0 %v6363, 111
        %v6386 = vpop.permute.xlu0 %6385
        %6387 = vrot.lane.b32.xlu0 %v6364, 111
        %v6388 = vpop.permute.xlu0 %6387
        %v6389 = vrot.slane %v6374, 4
        %v6390 = vrot.slane %v6376, 4
        %v6391 = vrot.slane %v6378, 4
        %v6392 = vrot.slane %v6380, 4
        %v6393 = vrot.slane %v6382, 4
        %v6394 = vrot.slane %v6384, 4
        %v6395 = vrot.slane %v6386, 4
        %v6396 = vrot.slane %v6388, 4
        %v6397 = vsel %vm367, %v6389, %v6390
        %v6398 = vsel %vm985, %v6374, %v6397
        %v6399 = vsel %vm367, %v6391, %v6392
        %v6400 = vsel %vm985, %v6378, %v6399
        %v6401 = vsel %vm367, %v6393, %v6394
        %v6402 = vsel %vm985, %v6382, %v6401
        %v6403 = vsel %vm367, %v6395, %v6396
        %v6404 = vsel %vm985, %v6386, %v6403
        %6409 = vst [vmem:[#allocation3 + $0x410] sm:$0xff] %v6398
        %6410 = vst [vmem:[#allocation3 + $0x430] sm:$0xff] %v6400
        %6411 = vst [vmem:[#allocation3 + $0x450] sm:$0xff] %v6402
        %6412 = vst [vmem:[#allocation3 + $0x470] sm:$0xff] %v6404
        %v6413 = vld [vmem:[#allocation4 + $0x18] sm:$0xff]
        %v6414 = vld [vmem:[#allocation4 + $0x38] sm:$0xff]
        %v6415 = vld [vmem:[#allocation4 + $0x58] sm:$0xff]
        %v6416 = vld [vmem:[#allocation4 + $0x78] sm:$0xff]
        %6417 = vst [vmem:[#allocation2 + $0x4] sm:$0xff] %v6413
        %6418 = vst [vmem:[#allocation2 + $0x14] sm:$0xff] %v6414
        %6419 = vst [vmem:[#allocation2 + $0x24] sm:$0xff] %v6415
        %6420 = vst [vmem:[#allocation2 + $0x34] sm:$0xff] %v6416
        %v6421 = vld [vmem:[#allocation2] sm:$0xff]
        %v6422 = vld [vmem:[#allocation2 + $0x8] sm:$0xf]
        %v6423 = vld [vmem:[#allocation2 + $0x10] sm:$0xff]
        %v6424 = vld [vmem:[#allocation2 + $0x18] sm:$0xf]
        %v6425 = vld [vmem:[#allocation2 + $0x20] sm:$0xff]
        %v6426 = vld [vmem:[#allocation2 + $0x28] sm:$0xf]
        %v6427 = vld [vmem:[#allocation2 + $0x30] sm:$0xff]
        %v6428 = vld [vmem:[#allocation2 + $0x38] sm:$0xf]
        %v6429 = vunpack.c.l.bf16 %v6421
        %v6430 = vunpack.c.h.bf16 %v6421
        %v6431 = vunpack.c.l.bf16 %v6422
        %v6432 = vunpack.c.l.bf16 %v6423
        %v6433 = vunpack.c.h.bf16 %v6423
        %v6434 = vunpack.c.l.bf16 %v6424
        %v6435 = vunpack.c.l.bf16 %v6425
        %v6436 = vunpack.c.h.bf16 %v6425
        %v6437 = vunpack.c.l.bf16 %v6426
        %v6438 = vunpack.c.l.bf16 %v6427
        %v6439 = vunpack.c.h.bf16 %v6427
        %v6440 = vunpack.c.l.bf16 %v6428
        %v6441 = vmul.f32 %v6429, %v307
        %v6442 = vmul.f32 %v6430, %v311
        %v6443 = vmul.f32 %v6431, %v309
        %v6444 = vmul.f32 %v6432, %v307
        %v6445 = vmul.f32 %v6433, %v311
        %v6446 = vmul.f32 %v6434, %v309
        %v6447 = vmul.f32 %v6435, %v307
        %v6448 = vmul.f32 %v6436, %v311
        %v6449 = vmul.f32 %v6437, %v309
        %v6450 = vmul.f32 %v6438, %v307
        %v6451 = vmul.f32 %v6439, %v311
        %v6452 = vmul.f32 %v6440, %v309
        %v6453 = vpack.c.bf16 %v6442, %v6441
        %v6454 = vpack.c.bf16 %v6443, %v6443
        %v6455 = vpack.c.bf16 %v6445, %v6444
        %v6456 = vpack.c.bf16 %v6446, %v6446
        %v6457 = vpack.c.bf16 %v6448, %v6447
        %v6458 = vpack.c.bf16 %v6449, %v6449
        %v6459 = vpack.c.bf16 %v6451, %v6450
        %v6460 = vpack.c.bf16 %v6452, %v6452
        %6469 = vrot.lane.b32.xlu0 %v6453, 17
        %v6470 = vpop.permute.xlu0 %6469
        %6471 = vrot.lane.b32.xlu0 %v6454, 17
        %v6472 = vpop.permute.xlu0 %6471
        %6473 = vrot.lane.b32.xlu0 %v6455, 17
        %v6474 = vpop.permute.xlu0 %6473
        %6475 = vrot.lane.b32.xlu0 %v6456, 17
        %v6476 = vpop.permute.xlu0 %6475
        %6477 = vrot.lane.b32.xlu0 %v6457, 17
        %v6478 = vpop.permute.xlu0 %6477
        %6479 = vrot.lane.b32.xlu0 %v6458, 17
        %v6480 = vpop.permute.xlu0 %6479
        %6481 = vrot.lane.b32.xlu0 %v6459, 17
        %v6482 = vpop.permute.xlu0 %6481
        %6483 = vrot.lane.b32.xlu0 %v6460, 17
        %v6484 = vpop.permute.xlu0 %6483
        %v6485 = vrot.slane %v6470, 4
        %v6486 = vrot.slane %v6472, 4
        %v6487 = vrot.slane %v6474, 4
        %v6488 = vrot.slane %v6476, 4
        %v6489 = vrot.slane %v6478, 4
        %v6490 = vrot.slane %v6480, 4
        %v6491 = vrot.slane %v6482, 4
        %v6492 = vrot.slane %v6484, 4
        %v6493 = vsel %vm367, %v6485, %v6486
        %v6494 = vsel %vm369, %v6470, %v6493
        %v6495 = vsel %vm367, %v6487, %v6488
        %v6496 = vsel %vm369, %v6474, %v6495
        %v6497 = vsel %vm367, %v6489, %v6490
        %v6498 = vsel %vm369, %v6478, %v6497
        %v6499 = vsel %vm367, %v6491, %v6492
        %v6500 = vsel %vm369, %v6482, %v6499
        %6505 = vst [vmem:[#allocation3 + $0x18] sm:$0xff] %v6494
        %6506 = vst [vmem:[#allocation3 + $0x38] sm:$0xff] %v6496
        %6507 = vst [vmem:[#allocation3 + $0x58] sm:$0xff] %v6498
        %6508 = vst [vmem:[#allocation3 + $0x78] sm:$0xff] %v6500
        %v6509 = vld [vmem:[#allocation2] sm:$0xff]
        %v6510 = vld [vmem:[#allocation2 + $0x8] sm:$0xf]
        %v6511 = vld [vmem:[#allocation2 + $0x10] sm:$0xff]
        %v6512 = vld [vmem:[#allocation2 + $0x18] sm:$0xf]
        %v6513 = vld [vmem:[#allocation2 + $0x20] sm:$0xff]
        %v6514 = vld [vmem:[#allocation2 + $0x28] sm:$0xf]
        %v6515 = vld [vmem:[#allocation2 + $0x30] sm:$0xff]
        %v6516 = vld [vmem:[#allocation2 + $0x38] sm:$0xf]
        %6525 = vrot.lane.b32.xlu0 %v6509, 16
        %v6526 = vpop.permute.xlu0 %6525
        %6527 = vrot.lane.b32.xlu0 %v6510, 16
        %v6528 = vpop.permute.xlu0 %6527
        %6529 = vrot.lane.b32.xlu0 %v6511, 16
        %v6530 = vpop.permute.xlu0 %6529
        %6531 = vrot.lane.b32.xlu0 %v6512, 16
        %v6532 = vpop.permute.xlu0 %6531
        %6533 = vrot.lane.b32.xlu0 %v6513, 16
        %v6534 = vpop.permute.xlu0 %6533
        %6535 = vrot.lane.b32.xlu0 %v6514, 16
        %v6536 = vpop.permute.xlu0 %6535
        %6537 = vrot.lane.b32.xlu0 %v6515, 16
        %v6538 = vpop.permute.xlu0 %6537
        %6539 = vrot.lane.b32.xlu0 %v6516, 16
        %v6540 = vpop.permute.xlu0 %6539
        %v6541 = vrot.slane %v6526, 4
        %v6542 = vrot.slane %v6528, 4
        %v6543 = vrot.slane %v6530, 4
        %v6544 = vrot.slane %v6532, 4
        %v6545 = vrot.slane %v6534, 4
        %v6546 = vrot.slane %v6536, 4
        %v6547 = vrot.slane %v6538, 4
        %v6548 = vrot.slane %v6540, 4
        %v6549 = vsel %vm367, %v6541, %v6542
        %v6550 = vsel %vm426, %v6526, %v6549
        %v6551 = vsel %vm367, %v6543, %v6544
        %v6552 = vsel %vm426, %v6530, %v6551
        %v6553 = vsel %vm367, %v6545, %v6546
        %v6554 = vsel %vm426, %v6534, %v6553
        %v6555 = vsel %vm367, %v6547, %v6548
        %v6556 = vsel %vm426, %v6538, %v6555
        %6561 = vst [vmem:[#allocation3 + $0x98] sm:$0xff] %v6550
        %6562 = vst [vmem:[#allocation3 + $0xb8] sm:$0xff] %v6552
        %6563 = vst [vmem:[#allocation3 + $0xd8] sm:$0xff] %v6554
        %6564 = vst [vmem:[#allocation3 + $0xf8] sm:$0xff] %v6556
        %v6565 = vld [vmem:[#allocation2] sm:$0xff]
        %v6566 = vld [vmem:[#allocation2 + $0x8] sm:$0xf]
        %v6567 = vld [vmem:[#allocation2 + $0x10] sm:$0xff]
        %v6568 = vld [vmem:[#allocation2 + $0x18] sm:$0xf]
        %v6569 = vld [vmem:[#allocation2 + $0x20] sm:$0xff]
        %v6570 = vld [vmem:[#allocation2 + $0x28] sm:$0xf]
        %v6571 = vld [vmem:[#allocation2 + $0x30] sm:$0xff]
        %v6572 = vld [vmem:[#allocation2 + $0x38] sm:$0xf]
        %v6573 = vunpack.c.l.bf16 %v6565
        %v6574 = vunpack.c.h.bf16 %v6565
        %v6575 = vunpack.c.l.bf16 %v6566
        %v6576 = vunpack.c.l.bf16 %v6567
        %v6577 = vunpack.c.h.bf16 %v6567
        %v6578 = vunpack.c.l.bf16 %v6568
        %v6579 = vunpack.c.l.bf16 %v6569
        %v6580 = vunpack.c.h.bf16 %v6569
        %v6581 = vunpack.c.l.bf16 %v6570
        %v6582 = vunpack.c.l.bf16 %v6571
        %v6583 = vunpack.c.h.bf16 %v6571
        %v6584 = vunpack.c.l.bf16 %v6572
        %v6585 = vmul.f32 %v6573, %v467
        %v6586 = vmul.f32 %v6574, %v471
        %v6587 = vmul.f32 %v6575, %v469
        %v6588 = vmul.f32 %v6576, %v467
        %v6589 = vmul.f32 %v6577, %v471
        %v6590 = vmul.f32 %v6578, %v469
        %v6591 = vmul.f32 %v6579, %v467
        %v6592 = vmul.f32 %v6580, %v471
        %v6593 = vmul.f32 %v6581, %v469
        %v6594 = vmul.f32 %v6582, %v467
        %v6595 = vmul.f32 %v6583, %v471
        %v6596 = vmul.f32 %v6584, %v469
        %v6597 = vpack.c.bf16 %v6586, %v6585
        %v6598 = vpack.c.bf16 %v6587, %v6587
        %v6599 = vpack.c.bf16 %v6589, %v6588
        %v6600 = vpack.c.bf16 %v6590, %v6590
        %v6601 = vpack.c.bf16 %v6592, %v6591
        %v6602 = vpack.c.bf16 %v6593, %v6593
        %v6603 = vpack.c.bf16 %v6595, %v6594
        %v6604 = vpack.c.bf16 %v6596, %v6596
        %6613 = vrot.lane.b32.xlu0 %v6597, 15
        %v6614 = vpop.permute.xlu0 %6613
        %6615 = vrot.lane.b32.xlu0 %v6598, 15
        %v6616 = vpop.permute.xlu0 %6615
        %6617 = vrot.lane.b32.xlu0 %v6599, 15
        %v6618 = vpop.permute.xlu0 %6617
        %6619 = vrot.lane.b32.xlu0 %v6600, 15
        %v6620 = vpop.permute.xlu0 %6619
        %6621 = vrot.lane.b32.xlu0 %v6601, 15
        %v6622 = vpop.permute.xlu0 %6621
        %6623 = vrot.lane.b32.xlu0 %v6602, 15
        %v6624 = vpop.permute.xlu0 %6623
        %6625 = vrot.lane.b32.xlu0 %v6603, 15
        %v6626 = vpop.permute.xlu0 %6625
        %6627 = vrot.lane.b32.xlu0 %v6604, 15
        %v6628 = vpop.permute.xlu0 %6627
        %v6629 = vrot.slane %v6614, 4
        %v6630 = vrot.slane %v6616, 4
        %v6631 = vrot.slane %v6618, 4
        %v6632 = vrot.slane %v6620, 4
        %v6633 = vrot.slane %v6622, 4
        %v6634 = vrot.slane %v6624, 4
        %v6635 = vrot.slane %v6626, 4
        %v6636 = vrot.slane %v6628, 4
        %v6637 = vsel %vm367, %v6629, %v6630
        %v6638 = vsel %vm528, %v6614, %v6637
        %v6639 = vsel %vm367, %v6631, %v6632
        %v6640 = vsel %vm528, %v6618, %v6639
        %v6641 = vsel %vm367, %v6633, %v6634
        %v6642 = vsel %vm528, %v6622, %v6641
        %v6643 = vsel %vm367, %v6635, %v6636
        %v6644 = vsel %vm528, %v6626, %v6643
        %6649 = vst [vmem:[#allocation3 + $0x118] sm:$0xff] %v6638
        %6650 = vst [vmem:[#allocation3 + $0x138] sm:$0xff] %v6640
        %6651 = vst [vmem:[#allocation3 + $0x158] sm:$0xff] %v6642
        %6652 = vst [vmem:[#allocation3 + $0x178] sm:$0xff] %v6644
        %v6653 = vld [vmem:[#allocation2] sm:$0xff]
        %v6654 = vld [vmem:[#allocation2 + $0x8] sm:$0xf]
        %v6655 = vld [vmem:[#allocation2 + $0x10] sm:$0xff]
        %v6656 = vld [vmem:[#allocation2 + $0x18] sm:$0xf]
        %v6657 = vld [vmem:[#allocation2 + $0x20] sm:$0xff]
        %v6658 = vld [vmem:[#allocation2 + $0x28] sm:$0xf]
        %v6659 = vld [vmem:[#allocation2 + $0x30] sm:$0xff]
        %v6660 = vld [vmem:[#allocation2 + $0x38] sm:$0xf]
        %v6661 = vunpack.c.l.bf16 %v6653
        %v6662 = vunpack.c.h.bf16 %v6653
        %v6663 = vunpack.c.l.bf16 %v6654
        %v6664 = vunpack.c.l.bf16 %v6655
        %v6665 = vunpack.c.h.bf16 %v6655
        %v6666 = vunpack.c.l.bf16 %v6656
        %v6667 = vunpack.c.l.bf16 %v6657
        %v6668 = vunpack.c.h.bf16 %v6657
        %v6669 = vunpack.c.l.bf16 %v6658
        %v6670 = vunpack.c.l.bf16 %v6659
        %v6671 = vunpack.c.h.bf16 %v6659
        %v6672 = vunpack.c.l.bf16 %v6660
        %v6673 = vmul.f32 %v6661, %v565
        %v6674 = vmul.f32 %v6662, %v569
        %v6675 = vmul.f32 %v6663, %v567
        %v6676 = vmul.f32 %v6664, %v565
        %v6677 = vmul.f32 %v6665, %v569
        %v6678 = vmul.f32 %v6666, %v567
        %v6679 = vmul.f32 %v6667, %v565
        %v6680 = vmul.f32 %v6668, %v569
        %v6681 = vmul.f32 %v6669, %v567
        %v6682 = vmul.f32 %v6670, %v565
        %v6683 = vmul.f32 %v6671, %v569
        %v6684 = vmul.f32 %v6672, %v567
        %v6685 = vpack.c.bf16 %v6674, %v6673
        %v6686 = vpack.c.bf16 %v6675, %v6675
        %v6687 = vpack.c.bf16 %v6677, %v6676
        %v6688 = vpack.c.bf16 %v6678, %v6678
        %v6689 = vpack.c.bf16 %v6680, %v6679
        %v6690 = vpack.c.bf16 %v6681, %v6681
        %v6691 = vpack.c.bf16 %v6683, %v6682
        %v6692 = vpack.c.bf16 %v6684, %v6684
        %6701 = vrot.lane.b32.xlu0 %v6685, 1
        %v6702 = vpop.permute.xlu0 %6701
        %6703 = vrot.lane.b32.xlu0 %v6686, 1
        %v6704 = vpop.permute.xlu0 %6703
        %6705 = vrot.lane.b32.xlu0 %v6687, 1
        %v6706 = vpop.permute.xlu0 %6705
        %6707 = vrot.lane.b32.xlu0 %v6688, 1
        %v6708 = vpop.permute.xlu0 %6707
        %6709 = vrot.lane.b32.xlu0 %v6689, 1
        %v6710 = vpop.permute.xlu0 %6709
        %6711 = vrot.lane.b32.xlu0 %v6690, 1
        %v6712 = vpop.permute.xlu0 %6711
        %6713 = vrot.lane.b32.xlu0 %v6691, 1
        %v6714 = vpop.permute.xlu0 %6713
        %6715 = vrot.lane.b32.xlu0 %v6692, 1
        %v6716 = vpop.permute.xlu0 %6715
        %v6717 = vrot.slane %v6702, 4
        %v6718 = vrot.slane %v6704, 4
        %v6719 = vrot.slane %v6706, 4
        %v6720 = vrot.slane %v6708, 4
        %v6721 = vrot.slane %v6710, 4
        %v6722 = vrot.slane %v6712, 4
        %v6723 = vrot.slane %v6714, 4
        %v6724 = vrot.slane %v6716, 4
        %v6725 = vsel %vm367, %v6717, %v6718
        %v6726 = vsel %vm626, %v6702, %v6725
        %v6727 = vsel %vm367, %v6719, %v6720
        %v6728 = vsel %vm626, %v6706, %v6727
        %v6729 = vsel %vm367, %v6721, %v6722
        %v6730 = vsel %vm626, %v6710, %v6729
        %v6731 = vsel %vm367, %v6723, %v6724
        %v6732 = vsel %vm626, %v6714, %v6731
        %6737 = vst [vmem:[#allocation3 + $0x198] sm:$0xff] %v6726
        %6738 = vst [vmem:[#allocation3 + $0x1b8] sm:$0xff] %v6728
        %6739 = vst [vmem:[#allocation3 + $0x1d8] sm:$0xff] %v6730
        %6740 = vst [vmem:[#allocation3 + $0x1f8] sm:$0xff] %v6732
        %v6741 = vld [vmem:[#allocation2 + $0x4] sm:$0xff]
        %v6742 = vld [vmem:[#allocation2 + $0x14] sm:$0xff]
        %v6743 = vld [vmem:[#allocation2 + $0x24] sm:$0xff]
        %v6744 = vld [vmem:[#allocation2 + $0x34] sm:$0xff]
        %6745 = vst [vmem:[#allocation3 + $0x218] sm:$0xff] %v6741
        %6746 = vst [vmem:[#allocation3 + $0x238] sm:$0xff] %v6742
        %6747 = vst [vmem:[#allocation3 + $0x258] sm:$0xff] %v6743
        %6748 = vst [vmem:[#allocation3 + $0x278] sm:$0xff] %v6744
        %v6749 = vld [vmem:[#allocation2 + $0x4] sm:$0xff]
        %v6750 = vld [vmem:[#allocation2 + $0xc] sm:$0xf]
        %v6751 = vld [vmem:[#allocation2 + $0x14] sm:$0xff]
        %v6752 = vld [vmem:[#allocation2 + $0x1c] sm:$0xf]
        %v6753 = vld [vmem:[#allocation2 + $0x24] sm:$0xff]
        %v6754 = vld [vmem:[#allocation2 + $0x2c] sm:$0xf]
        %v6755 = vld [vmem:[#allocation2 + $0x34] sm:$0xff]
        %v6756 = vld [vmem:[#allocation2 + $0x3c] sm:$0xf]
        %v6757 = vunpack.c.l.bf16 %v6749
        %v6758 = vunpack.c.h.bf16 %v6749
        %v6759 = vunpack.c.l.bf16 %v6750
        %v6760 = vunpack.c.l.bf16 %v6751
        %v6761 = vunpack.c.h.bf16 %v6751
        %v6762 = vunpack.c.l.bf16 %v6752
        %v6763 = vunpack.c.l.bf16 %v6753
        %v6764 = vunpack.c.h.bf16 %v6753
        %v6765 = vunpack.c.l.bf16 %v6754
        %v6766 = vunpack.c.l.bf16 %v6755
        %v6767 = vunpack.c.h.bf16 %v6755
        %v6768 = vunpack.c.l.bf16 %v6756
        %v6769 = vmul.f32 %v6757, %v671
        %v6770 = vmul.f32 %v6758, %v675
        %v6771 = vmul.f32 %v6759, %v673
        %v6772 = vmul.f32 %v6760, %v671
        %v6773 = vmul.f32 %v6761, %v675
        %v6774 = vmul.f32 %v6762, %v673
        %v6775 = vmul.f32 %v6763, %v671
        %v6776 = vmul.f32 %v6764, %v675
        %v6777 = vmul.f32 %v6765, %v673
        %v6778 = vmul.f32 %v6766, %v671
        %v6779 = vmul.f32 %v6767, %v675
        %v6780 = vmul.f32 %v6768, %v673
        %v6781 = vpack.c.bf16 %v6770, %v6769
        %v6782 = vpack.c.bf16 %v6771, %v6771
        %v6783 = vpack.c.bf16 %v6773, %v6772
        %v6784 = vpack.c.bf16 %v6774, %v6774
        %v6785 = vpack.c.bf16 %v6776, %v6775
        %v6786 = vpack.c.bf16 %v6777, %v6777
        %v6787 = vpack.c.bf16 %v6779, %v6778
        %v6788 = vpack.c.bf16 %v6780, %v6780
        %6797 = vrot.lane.b32.xlu0 %v6781, 127
        %v6798 = vpop.permute.xlu0 %6797
        %6799 = vrot.lane.b32.xlu0 %v6782, 127
        %v6800 = vpop.permute.xlu0 %6799
        %6801 = vrot.lane.b32.xlu0 %v6783, 127
        %v6802 = vpop.permute.xlu0 %6801
        %6803 = vrot.lane.b32.xlu0 %v6784, 127
        %v6804 = vpop.permute.xlu0 %6803
        %6805 = vrot.lane.b32.xlu0 %v6785, 127
        %v6806 = vpop.permute.xlu0 %6805
        %6807 = vrot.lane.b32.xlu0 %v6786, 127
        %v6808 = vpop.permute.xlu0 %6807
        %6809 = vrot.lane.b32.xlu0 %v6787, 127
        %v6810 = vpop.permute.xlu0 %6809
        %6811 = vrot.lane.b32.xlu0 %v6788, 127
        %v6812 = vpop.permute.xlu0 %6811
        %v6813 = vrot.slane %v6798, 4
        %v6814 = vrot.slane %v6800, 4
        %v6815 = vrot.slane %v6802, 4
        %v6816 = vrot.slane %v6804, 4
        %v6817 = vrot.slane %v6806, 4
        %v6818 = vrot.slane %v6808, 4
        %v6819 = vrot.slane %v6810, 4
        %v6820 = vrot.slane %v6812, 4
        %v6821 = vsel %vm367, %v6813, %v6814
        %v6822 = vsel %vm732, %v6798, %v6821
        %v6823 = vsel %vm367, %v6815, %v6816
        %v6824 = vsel %vm732, %v6802, %v6823
        %v6825 = vsel %vm367, %v6817, %v6818
        %v6826 = vsel %vm732, %v6806, %v6825
        %v6827 = vsel %vm367, %v6819, %v6820
        %v6828 = vsel %vm732, %v6810, %v6827
        %6833 = vst [vmem:[#allocation3 + $0x298] sm:$0xff] %v6822
        %6834 = vst [vmem:[#allocation3 + $0x2b8] sm:$0xff] %v6824
        %6835 = vst [vmem:[#allocation3 + $0x2d8] sm:$0xff] %v6826
        %6836 = vst [vmem:[#allocation3 + $0x2f8] sm:$0xff] %v6828
        %v6837 = vld [vmem:[#allocation2 + $0x4] sm:$0xff]
        %v6838 = vld [vmem:[#allocation2 + $0xc] sm:$0xf]
        %v6839 = vld [vmem:[#allocation2 + $0x14] sm:$0xff]
        %v6840 = vld [vmem:[#allocation2 + $0x1c] sm:$0xf]
        %v6841 = vld [vmem:[#allocation2 + $0x24] sm:$0xff]
        %v6842 = vld [vmem:[#allocation2 + $0x2c] sm:$0xf]
        %v6843 = vld [vmem:[#allocation2 + $0x34] sm:$0xff]
        %v6844 = vld [vmem:[#allocation2 + $0x3c] sm:$0xf]
        %v6845 = vunpack.c.l.bf16 %v6837
        %v6846 = vunpack.c.h.bf16 %v6837
        %v6847 = vunpack.c.l.bf16 %v6838
        %v6848 = vunpack.c.l.bf16 %v6839
        %v6849 = vunpack.c.h.bf16 %v6839
        %v6850 = vunpack.c.l.bf16 %v6840
        %v6851 = vunpack.c.l.bf16 %v6841
        %v6852 = vunpack.c.h.bf16 %v6841
        %v6853 = vunpack.c.l.bf16 %v6842
        %v6854 = vunpack.c.l.bf16 %v6843
        %v6855 = vunpack.c.h.bf16 %v6843
        %v6856 = vunpack.c.l.bf16 %v6844
        %v6857 = vmul.f32 %v6845, %v769
        %v6858 = vmul.f32 %v6846, %v773
        %v6859 = vmul.f32 %v6847, %v771
        %v6860 = vmul.f32 %v6848, %v769
        %v6861 = vmul.f32 %v6849, %v773
        %v6862 = vmul.f32 %v6850, %v771
        %v6863 = vmul.f32 %v6851, %v769
        %v6864 = vmul.f32 %v6852, %v773
        %v6865 = vmul.f32 %v6853, %v771
        %v6866 = vmul.f32 %v6854, %v769
        %v6867 = vmul.f32 %v6855, %v773
        %v6868 = vmul.f32 %v6856, %v771
        %v6869 = vpack.c.bf16 %v6858, %v6857
        %v6870 = vpack.c.bf16 %v6859, %v6859
        %v6871 = vpack.c.bf16 %v6861, %v6860
        %v6872 = vpack.c.bf16 %v6862, %v6862
        %v6873 = vpack.c.bf16 %v6864, %v6863
        %v6874 = vpack.c.bf16 %v6865, %v6865
        %v6875 = vpack.c.bf16 %v6867, %v6866
        %v6876 = vpack.c.bf16 %v6868, %v6868
        %6885 = vrot.lane.b32.xlu0 %v6869, 113
        %v6886 = vpop.permute.xlu0 %6885
        %6887 = vrot.lane.b32.xlu0 %v6870, 113
        %v6888 = vpop.permute.xlu0 %6887
        %6889 = vrot.lane.b32.xlu0 %v6871, 113
        %v6890 = vpop.permute.xlu0 %6889
        %6891 = vrot.lane.b32.xlu0 %v6872, 113
        %v6892 = vpop.permute.xlu0 %6891
        %6893 = vrot.lane.b32.xlu0 %v6873, 113
        %v6894 = vpop.permute.xlu0 %6893
        %6895 = vrot.lane.b32.xlu0 %v6874, 113
        %v6896 = vpop.permute.xlu0 %6895
        %6897 = vrot.lane.b32.xlu0 %v6875, 113
        %v6898 = vpop.permute.xlu0 %6897
        %6899 = vrot.lane.b32.xlu0 %v6876, 113
        %v6900 = vpop.permute.xlu0 %6899
        %v6901 = vrot.slane %v6886, 4
        %v6902 = vrot.slane %v6888, 4
        %v6903 = vrot.slane %v6890, 4
        %v6904 = vrot.slane %v6892, 4
        %v6905 = vrot.slane %v6894, 4
        %v6906 = vrot.slane %v6896, 4
        %v6907 = vrot.slane %v6898, 4
        %v6908 = vrot.slane %v6900, 4
        %v6909 = vsel %vm367, %v6901, %v6902
        %v6910 = vsel %vm830, %v6886, %v6909
        %v6911 = vsel %vm367, %v6903, %v6904
        %v6912 = vsel %vm830, %v6890, %v6911
        %v6913 = vsel %vm367, %v6905, %v6906
        %v6914 = vsel %vm830, %v6894, %v6913
        %v6915 = vsel %vm367, %v6907, %v6908
        %v6916 = vsel %vm830, %v6898, %v6915
        %6921 = vst [vmem:[#allocation3 + $0x318] sm:$0xff] %v6910
        %6922 = vst [vmem:[#allocation3 + $0x338] sm:$0xff] %v6912
        %6923 = vst [vmem:[#allocation3 + $0x358] sm:$0xff] %v6914
        %6924 = vst [vmem:[#allocation3 + $0x378] sm:$0xff] %v6916
        %v6925 = vld [vmem:[#allocation2 + $0x4] sm:$0xff]
        %v6926 = vld [vmem:[#allocation2 + $0xc] sm:$0xf]
        %v6927 = vld [vmem:[#allocation2 + $0x14] sm:$0xff]
        %v6928 = vld [vmem:[#allocation2 + $0x1c] sm:$0xf]
        %v6929 = vld [vmem:[#allocation2 + $0x24] sm:$0xff]
        %v6930 = vld [vmem:[#allocation2 + $0x2c] sm:$0xf]
        %v6931 = vld [vmem:[#allocation2 + $0x34] sm:$0xff]
        %v6932 = vld [vmem:[#allocation2 + $0x3c] sm:$0xf]
        %6941 = vrot.lane.b32.xlu0 %v6925, 112
        %v6942 = vpop.permute.xlu0 %6941
        %6943 = vrot.lane.b32.xlu0 %v6926, 112
        %v6944 = vpop.permute.xlu0 %6943
        %6945 = vrot.lane.b32.xlu0 %v6927, 112
        %v6946 = vpop.permute.xlu0 %6945
        %6947 = vrot.lane.b32.xlu0 %v6928, 112
        %v6948 = vpop.permute.xlu0 %6947
        %6949 = vrot.lane.b32.xlu0 %v6929, 112
        %v6950 = vpop.permute.xlu0 %6949
        %6951 = vrot.lane.b32.xlu0 %v6930, 112
        %v6952 = vpop.permute.xlu0 %6951
        %6953 = vrot.lane.b32.xlu0 %v6931, 112
        %v6954 = vpop.permute.xlu0 %6953
        %6955 = vrot.lane.b32.xlu0 %v6932, 112
        %v6956 = vpop.permute.xlu0 %6955
        %v6957 = vrot.slane %v6942, 4
        %v6958 = vrot.slane %v6944, 4
        %v6959 = vrot.slane %v6946, 4
        %v6960 = vrot.slane %v6948, 4
        %v6961 = vrot.slane %v6950, 4
        %v6962 = vrot.slane %v6952, 4
        %v6963 = vrot.slane %v6954, 4
        %v6964 = vrot.slane %v6956, 4
        %v6965 = vsel %vm367, %v6957, %v6958
        %v6966 = vsel %vm887, %v6942, %v6965
        %v6967 = vsel %vm367, %v6959, %v6960
        %v6968 = vsel %vm887, %v6946, %v6967
        %v6969 = vsel %vm367, %v6961, %v6962
        %v6970 = vsel %vm887, %v6950, %v6969
        %v6971 = vsel %vm367, %v6963, %v6964
        %v6972 = vsel %vm887, %v6954, %v6971
        %6977 = vst [vmem:[#allocation3 + $0x398] sm:$0xff] %v6966
        %6978 = vst [vmem:[#allocation3 + $0x3b8] sm:$0xff] %v6968
        %6979 = vst [vmem:[#allocation3 + $0x3d8] sm:$0xff] %v6970
        %6980 = vst [vmem:[#allocation3 + $0x3f8] sm:$0xff] %v6972
        %v6981 = vld [vmem:[#allocation2 + $0x4] sm:$0xff]
        %v6982 = vld [vmem:[#allocation2 + $0xc] sm:$0xf]
        %v6983 = vld [vmem:[#allocation2 + $0x14] sm:$0xff]
        %v6984 = vld [vmem:[#allocation2 + $0x1c] sm:$0xf]
        %v6985 = vld [vmem:[#allocation2 + $0x24] sm:$0xff]
        %v6986 = vld [vmem:[#allocation2 + $0x2c] sm:$0xf]
        %v6987 = vld [vmem:[#allocation2 + $0x34] sm:$0xff]
        %v6988 = vld [vmem:[#allocation2 + $0x3c] sm:$0xf]
        %v6989 = vunpack.c.l.bf16 %v6981
        %v6990 = vunpack.c.h.bf16 %v6981
        %v6991 = vunpack.c.l.bf16 %v6982
        %v6992 = vunpack.c.l.bf16 %v6983
        %v6993 = vunpack.c.h.bf16 %v6983
        %v6994 = vunpack.c.l.bf16 %v6984
        %v6995 = vunpack.c.l.bf16 %v6985
        %v6996 = vunpack.c.h.bf16 %v6985
        %v6997 = vunpack.c.l.bf16 %v6986
        %v6998 = vunpack.c.l.bf16 %v6987
        %v6999 = vunpack.c.h.bf16 %v6987
        %v7000 = vunpack.c.l.bf16 %v6988
        %v7001 = vmul.f32 %v6989, %v924
        %v7002 = vmul.f32 %v6990, %v928
        %v7003 = vmul.f32 %v6991, %v926
        %v7004 = vmul.f32 %v6992, %v924
        %v7005 = vmul.f32 %v6993, %v928
        %v7006 = vmul.f32 %v6994, %v926
        %v7007 = vmul.f32 %v6995, %v924
        %v7008 = vmul.f32 %v6996, %v928
        %v7009 = vmul.f32 %v6997, %v926
        %v7010 = vmul.f32 %v6998, %v924
        %v7011 = vmul.f32 %v6999, %v928
        %v7012 = vmul.f32 %v7000, %v926
        %v7013 = vpack.c.bf16 %v7002, %v7001
        %v7014 = vpack.c.bf16 %v7003, %v7003
        %v7015 = vpack.c.bf16 %v7005, %v7004
        %v7016 = vpack.c.bf16 %v7006, %v7006
        %v7017 = vpack.c.bf16 %v7008, %v7007
        %v7018 = vpack.c.bf16 %v7009, %v7009
        %v7019 = vpack.c.bf16 %v7011, %v7010
        %v7020 = vpack.c.bf16 %v7012, %v7012
        %7029 = vrot.lane.b32.xlu0 %v7013, 111
        %v7030 = vpop.permute.xlu0 %7029
        %7031 = vrot.lane.b32.xlu0 %v7014, 111
        %v7032 = vpop.permute.xlu0 %7031
        %7033 = vrot.lane.b32.xlu0 %v7015, 111
        %v7034 = vpop.permute.xlu0 %7033
        %7035 = vrot.lane.b32.xlu0 %v7016, 111
        %v7036 = vpop.permute.xlu0 %7035
        %7037 = vrot.lane.b32.xlu0 %v7017, 111
        %v7038 = vpop.permute.xlu0 %7037
        %7039 = vrot.lane.b32.xlu0 %v7018, 111
        %v7040 = vpop.permute.xlu0 %7039
        %7041 = vrot.lane.b32.xlu0 %v7019, 111
        %v7042 = vpop.permute.xlu0 %7041
        %7043 = vrot.lane.b32.xlu0 %v7020, 111
        %v7044 = vpop.permute.xlu0 %7043
        %v7045 = vrot.slane %v7030, 4
        %v7046 = vrot.slane %v7032, 4
        %v7047 = vrot.slane %v7034, 4
        %v7048 = vrot.slane %v7036, 4
        %v7049 = vrot.slane %v7038, 4
        %v7050 = vrot.slane %v7040, 4
        %v7051 = vrot.slane %v7042, 4
        %v7052 = vrot.slane %v7044, 4
        %v7053 = vsel %vm367, %v7045, %v7046
        %v7054 = vsel %vm985, %v7030, %v7053
        %v7055 = vsel %vm367, %v7047, %v7048
        %v7056 = vsel %vm985, %v7034, %v7055
        %v7057 = vsel %vm367, %v7049, %v7050
        %v7058 = vsel %vm985, %v7038, %v7057
        %v7059 = vsel %vm367, %v7051, %v7052
        %v7060 = vsel %vm985, %v7042, %v7059
        %7065 = vst [vmem:[#allocation3 + $0x418] sm:$0xff] %v7054
        %7066 = vst [vmem:[#allocation3 + $0x438] sm:$0xff] %v7056
        %7067 = vst [vmem:[#allocation3 + $0x458] sm:$0xff] %v7058
        %7068 = vst [vmem:[#allocation3 + $0x478] sm:$0xff] %v7060
        %v7069 = vld [vmem:[#allocation9 + $0x30] sm:$0xff]
        %v7070 = vld [vmem:[#allocation9 + $0x38] sm:$0xf]
        %v7071 = vld [vmem:[#allocation9 + $0x3c] sm:$0xff]
        %v7072 = vld [vmem:[#allocation9 + $0x44] sm:$0xf]
        %v7073 = vld [vmem:[#allocation9 + $0x48] sm:$0xff]
        %v7074 = vld [vmem:[#allocation9 + $0x50] sm:$0xf]
        %v7075 = vld [vmem:[#allocation9 + $0x54] sm:$0xff]
        %v7076 = vld [vmem:[#allocation9 + $0x5c] sm:$0xf]
        %v7077 = vld [vmem:[#allocation3] sm:$0xff]
        %v7078 = vld [vmem:[#allocation3 + $0x8] sm:$0xff]
        %v7079 = vld [vmem:[#allocation3 + $0x10] sm:$0xff]
        %v7080 = vld [vmem:[#allocation3 + $0x18] sm:$0xff]
        %v7081 = vld [vmem:[#allocation3 + $0x20] sm:$0xff]
        %v7082 = vld [vmem:[#allocation3 + $0x28] sm:$0xff]
        %v7083 = vld [vmem:[#allocation3 + $0x30] sm:$0xff]
        %v7084 = vld [vmem:[#allocation3 + $0x38] sm:$0xff]
        %v7085 = vld [vmem:[#allocation3 + $0x40] sm:$0xff]
        %v7086 = vld [vmem:[#allocation3 + $0x48] sm:$0xff]
        %v7087 = vld [vmem:[#allocation3 + $0x50] sm:$0xff]
        %v7088 = vld [vmem:[#allocation3 + $0x58] sm:$0xff]
        %v7089 = vld [vmem:[#allocation3 + $0x60] sm:$0xff]
        %v7090 = vld [vmem:[#allocation3 + $0x68] sm:$0xff]
        %v7091 = vld [vmem:[#allocation3 + $0x70] sm:$0xff]
        %v7092 = vld [vmem:[#allocation3 + $0x78] sm:$0xff]
        %v7093 = vld [vmem:[#allocation3 + $0x80] sm:$0xff]
        %v7094 = vld [vmem:[#allocation3 + $0x88] sm:$0xff]
        %v7095 = vld [vmem:[#allocation3 + $0x90] sm:$0xff]
        %v7096 = vld [vmem:[#allocation3 + $0x98] sm:$0xff]
        %v7097 = vld [vmem:[#allocation3 + $0xa0] sm:$0xff]
        %v7098 = vld [vmem:[#allocation3 + $0xa8] sm:$0xff]
        %v7099 = vld [vmem:[#allocation3 + $0xb0] sm:$0xff]
        %v7100 = vld [vmem:[#allocation3 + $0xb8] sm:$0xff]
        %v7101 = vld [vmem:[#allocation3 + $0xc0] sm:$0xff]
        %v7102 = vld [vmem:[#allocation3 + $0xc8] sm:$0xff]
        %v7103 = vld [vmem:[#allocation3 + $0xd0] sm:$0xff]
        %v7104 = vld [vmem:[#allocation3 + $0xd8] sm:$0xff]
        %v7105 = vld [vmem:[#allocation3 + $0xe0] sm:$0xff]
        %v7106 = vld [vmem:[#allocation3 + $0xe8] sm:$0xff]
        %v7107 = vld [vmem:[#allocation3 + $0xf0] sm:$0xff]
        %v7108 = vld [vmem:[#allocation3 + $0xf8] sm:$0xff]
        %v7109 = vld [vmem:[#allocation3 + $0x100] sm:$0xff]
        %v7110 = vld [vmem:[#allocation3 + $0x108] sm:$0xff]
        %v7111 = vld [vmem:[#allocation3 + $0x110] sm:$0xff]
        %v7112 = vld [vmem:[#allocation3 + $0x118] sm:$0xff]
        %v7113 = vld [vmem:[#allocation3 + $0x120] sm:$0xff]
        %v7114 = vld [vmem:[#allocation3 + $0x128] sm:$0xff]
        %v7115 = vld [vmem:[#allocation3 + $0x130] sm:$0xff]
        %v7116 = vld [vmem:[#allocation3 + $0x138] sm:$0xff]
        %v7117 = vld [vmem:[#allocation3 + $0x140] sm:$0xff]
        %v7118 = vld [vmem:[#allocation3 + $0x148] sm:$0xff]
        %v7119 = vld [vmem:[#allocation3 + $0x150] sm:$0xff]
        %v7120 = vld [vmem:[#allocation3 + $0x158] sm:$0xff]
        %v7121 = vld [vmem:[#allocation3 + $0x160] sm:$0xff]
        %v7122 = vld [vmem:[#allocation3 + $0x168] sm:$0xff]
        %v7123 = vld [vmem:[#allocation3 + $0x170] sm:$0xff]
        %v7124 = vld [vmem:[#allocation3 + $0x178] sm:$0xff]
        %v7125 = vld [vmem:[#allocation3 + $0x180] sm:$0xff]
        %v7126 = vld [vmem:[#allocation3 + $0x188] sm:$0xff]
        %v7127 = vld [vmem:[#allocation3 + $0x190] sm:$0xff]
        %v7128 = vld [vmem:[#allocation3 + $0x198] sm:$0xff]
        %v7129 = vld [vmem:[#allocation3 + $0x1a0] sm:$0xff]
        %v7130 = vld [vmem:[#allocation3 + $0x1a8] sm:$0xff]
        %v7131 = vld [vmem:[#allocation3 + $0x1b0] sm:$0xff]
        %v7132 = vld [vmem:[#allocation3 + $0x1b8] sm:$0xff]
        %v7133 = vld [vmem:[#allocation3 + $0x1c0] sm:$0xff]
        %v7134 = vld [vmem:[#allocation3 + $0x1c8] sm:$0xff]
        %v7135 = vld [vmem:[#allocation3 + $0x1d0] sm:$0xff]
        %v7136 = vld [vmem:[#allocation3 + $0x1d8] sm:$0xff]
        %v7137 = vld [vmem:[#allocation3 + $0x1e0] sm:$0xff]
        %v7138 = vld [vmem:[#allocation3 + $0x1e8] sm:$0xff]
        %v7139 = vld [vmem:[#allocation3 + $0x1f0] sm:$0xff]
        %v7140 = vld [vmem:[#allocation3 + $0x1f8] sm:$0xff]
        %v7141 = vld [vmem:[#allocation3 + $0x200] sm:$0xff]
        %v7142 = vld [vmem:[#allocation3 + $0x208] sm:$0xff]
        %v7143 = vld [vmem:[#allocation3 + $0x210] sm:$0xff]
        %v7144 = vld [vmem:[#allocation3 + $0x218] sm:$0xff]
        %v7145 = vld [vmem:[#allocation3 + $0x220] sm:$0xff]
        %v7146 = vld [vmem:[#allocation3 + $0x228] sm:$0xff]
        %v7147 = vld [vmem:[#allocation3 + $0x230] sm:$0xff]
        %v7148 = vld [vmem:[#allocation3 + $0x238] sm:$0xff]
        %v7149 = vld [vmem:[#allocation3 + $0x240] sm:$0xff]
        %v7150 = vld [vmem:[#allocation3 + $0x248] sm:$0xff]
        %v7151 = vld [vmem:[#allocation3 + $0x250] sm:$0xff]
        %v7152 = vld [vmem:[#allocation3 + $0x258] sm:$0xff]
        %v7153 = vld [vmem:[#allocation3 + $0x260] sm:$0xff]
        %v7154 = vld [vmem:[#allocation3 + $0x268] sm:$0xff]
        %v7155 = vld [vmem:[#allocation3 + $0x270] sm:$0xff]
        %v7156 = vld [vmem:[#allocation3 + $0x278] sm:$0xff]
        %v7157 = vld [vmem:[#allocation3 + $0x280] sm:$0xff]
        %v7158 = vld [vmem:[#allocation3 + $0x288] sm:$0xff]
        %v7159 = vld [vmem:[#allocation3 + $0x290] sm:$0xff]
        %v7160 = vld [vmem:[#allocation3 + $0x298] sm:$0xff]
        %v7161 = vld [vmem:[#allocation3 + $0x2a0] sm:$0xff]
        %v7162 = vld [vmem:[#allocation3 + $0x2a8] sm:$0xff]
        %v7163 = vld [vmem:[#allocation3 + $0x2b0] sm:$0xff]
        %v7164 = vld [vmem:[#allocation3 + $0x2b8] sm:$0xff]
        %v7165 = vld [vmem:[#allocation3 + $0x2c0] sm:$0xff]
        %v7166 = vld [vmem:[#allocation3 + $0x2c8] sm:$0xff]
        %v7167 = vld [vmem:[#allocation3 + $0x2d0] sm:$0xff]
        %v7168 = vld [vmem:[#allocation3 + $0x2d8] sm:$0xff]
        %v7169 = vld [vmem:[#allocation3 + $0x2e0] sm:$0xff]
        %v7170 = vld [vmem:[#allocation3 + $0x2e8] sm:$0xff]
        %v7171 = vld [vmem:[#allocation3 + $0x2f0] sm:$0xff]
        %v7172 = vld [vmem:[#allocation3 + $0x2f8] sm:$0xff]
        %v7173 = vld [vmem:[#allocation3 + $0x300] sm:$0xff]
        %v7174 = vld [vmem:[#allocation3 + $0x308] sm:$0xff]
        %v7175 = vld [vmem:[#allocation3 + $0x310] sm:$0xff]
        %v7176 = vld [vmem:[#allocation3 + $0x318] sm:$0xff]
        %v7177 = vld [vmem:[#allocation3 + $0x320] sm:$0xff]
        %v7178 = vld [vmem:[#allocation3 + $0x328] sm:$0xff]
        %v7179 = vld [vmem:[#allocation3 + $0x330] sm:$0xff]
        %v7180 = vld [vmem:[#allocation3 + $0x338] sm:$0xff]
        %v7181 = vld [vmem:[#allocation3 + $0x340] sm:$0xff]
        %v7182 = vld [vmem:[#allocation3 + $0x348] sm:$0xff]
        %v7183 = vld [vmem:[#allocation3 + $0x350] sm:$0xff]
        %v7184 = vld [vmem:[#allocation3 + $0x358] sm:$0xff]
        %v7185 = vld [vmem:[#allocation3 + $0x360] sm:$0xff]
        %v7186 = vld [vmem:[#allocation3 + $0x368] sm:$0xff]
        %v7187 = vld [vmem:[#allocation3 + $0x370] sm:$0xff]
        %v7188 = vld [vmem:[#allocation3 + $0x378] sm:$0xff]
        %v7189 = vld [vmem:[#allocation3 + $0x380] sm:$0xff]
        %v7190 = vld [vmem:[#allocation3 + $0x388] sm:$0xff]
        %v7191 = vld [vmem:[#allocation3 + $0x390] sm:$0xff]
        %v7192 = vld [vmem:[#allocation3 + $0x398] sm:$0xff]
        %v7193 = vld [vmem:[#allocation3 + $0x3a0] sm:$0xff]
        %v7194 = vld [vmem:[#allocation3 + $0x3a8] sm:$0xff]
        %v7195 = vld [vmem:[#allocation3 + $0x3b0] sm:$0xff]
        %v7196 = vld [vmem:[#allocation3 + $0x3b8] sm:$0xff]
        %v7197 = vld [vmem:[#allocation3 + $0x3c0] sm:$0xff]
        %v7198 = vld [vmem:[#allocation3 + $0x3c8] sm:$0xff]
        %v7199 = vld [vmem:[#allocation3 + $0x3d0] sm:$0xff]
        %v7200 = vld [vmem:[#allocation3 + $0x3d8] sm:$0xff]
        %v7201 = vld [vmem:[#allocation3 + $0x3e0] sm:$0xff]
        %v7202 = vld [vmem:[#allocation3 + $0x3e8] sm:$0xff]
        %v7203 = vld [vmem:[#allocation3 + $0x3f0] sm:$0xff]
        %v7204 = vld [vmem:[#allocation3 + $0x3f8] sm:$0xff]
        %v7205 = vld [vmem:[#allocation3 + $0x400] sm:$0xff]
        %v7206 = vld [vmem:[#allocation3 + $0x408] sm:$0xff]
        %v7207 = vld [vmem:[#allocation3 + $0x410] sm:$0xff]
        %v7208 = vld [vmem:[#allocation3 + $0x418] sm:$0xff]
        %v7209 = vld [vmem:[#allocation3 + $0x420] sm:$0xff]
        %v7210 = vld [vmem:[#allocation3 + $0x428] sm:$0xff]
        %v7211 = vld [vmem:[#allocation3 + $0x430] sm:$0xff]
        %v7212 = vld [vmem:[#allocation3 + $0x438] sm:$0xff]
        %v7213 = vld [vmem:[#allocation3 + $0x440] sm:$0xff]
        %v7214 = vld [vmem:[#allocation3 + $0x448] sm:$0xff]
        %v7215 = vld [vmem:[#allocation3 + $0x450] sm:$0xff]
        %v7216 = vld [vmem:[#allocation3 + $0x458] sm:$0xff]
        %v7217 = vld [vmem:[#allocation3 + $0x460] sm:$0xff]
        %v7218 = vld [vmem:[#allocation3 + $0x468] sm:$0xff]
        %v7219 = vld [vmem:[#allocation3 + $0x470] sm:$0xff]
        %v7220 = vld [vmem:[#allocation3 + $0x478] sm:$0xff]
        %7221 = vset.pattern.permute.xlu0 1
        %7222 = vperm.xlu0 %7221, %v253
        %v7223 = vpop.permute.xlu0 %7222
        %7225 = vset.pattern.permute.xlu0 1
        %7226 = vperm.xlu0 %7225, %v254
        %v7227 = vpop.permute.xlu0 %7226
        %7229 = vset.pattern.permute.xlu0 1
        %7230 = vperm.xlu0 %7229, %v255
        %v7231 = vpop.permute.xlu0 %7230
        %7233 = vset.pattern.permute.xlu0 1
        %7234 = vperm.xlu0 %7233, %v256
        %v7235 = vpop.permute.xlu0 %7234
        %v7245 = vunpack.c.l.b16 %v7069
        %v7246 = vunpack.c.h.b16 %v7069
        %v7247 = vunpack.c.l.b16 %v7070
        %v7248 = vunpack.c.l.b16 %v7071
        %v7249 = vunpack.c.h.b16 %v7071
        %v7250 = vunpack.c.l.b16 %v7072
        %v7251 = vunpack.c.l.b16 %v7073
        %v7252 = vunpack.c.h.b16 %v7073
        %v7253 = vunpack.c.l.b16 %v7074
        %v7254 = vunpack.c.l.b16 %v7075
        %v7255 = vunpack.c.h.b16 %v7075
        %v7256 = vunpack.c.l.b16 %v7076
        %v7257 = vpack.c.b16 %v7248, %v7245
        %v7258 = vpack.c.b16 %v7249, %v7246
        %v7259 = vpack.c.b16 %v7250, %v7247
        %v7260 = vpack.c.b16 %v7254, %v7251
        %v7261 = vpack.c.b16 %v7255, %v7252
        %v7262 = vpack.c.b16 %v7256, %v7253
        %v7411 = vunpack.c.l.b16 %v7077
        %v7412 = vunpack.c.h.b16 %v7077
        %v7413 = vunpack.c.l.b16 %v7078
        %v7414 = vunpack.c.h.b16 %v7078
        %v7415 = vunpack.c.l.b16 %v7079
        %v7416 = vunpack.c.h.b16 %v7079
        %v7417 = vunpack.c.l.b16 %v7080
        %v7418 = vunpack.c.h.b16 %v7080
        %v7419 = vunpack.c.l.b16 %v7081
        %v7420 = vunpack.c.h.b16 %v7081
        %v7421 = vunpack.c.l.b16 %v7082
        %v7422 = vunpack.c.h.b16 %v7082
        %v7423 = vunpack.c.l.b16 %v7083
        %v7424 = vunpack.c.h.b16 %v7083
        %v7425 = vunpack.c.l.b16 %v7084
        %v7426 = vunpack.c.h.b16 %v7084
        %v7427 = vunpack.c.l.b16 %v7085
        %v7428 = vunpack.c.h.b16 %v7085
        %v7429 = vunpack.c.l.b16 %v7086
        %v7430 = vunpack.c.h.b16 %v7086
        %v7431 = vunpack.c.l.b16 %v7087
        %v7432 = vunpack.c.h.b16 %v7087
        %v7433 = vunpack.c.l.b16 %v7088
        %v7434 = vunpack.c.h.b16 %v7088
        %v7435 = vunpack.c.l.b16 %v7089
        %v7436 = vunpack.c.h.b16 %v7089
        %v7437 = vunpack.c.l.b16 %v7090
        %v7438 = vunpack.c.h.b16 %v7090
        %v7439 = vunpack.c.l.b16 %v7091
        %v7440 = vunpack.c.h.b16 %v7091
        %v7441 = vunpack.c.l.b16 %v7092
        %v7442 = vunpack.c.h.b16 %v7092
        %v7443 = vunpack.c.l.b16 %v7093
        %v7444 = vunpack.c.h.b16 %v7093
        %v7445 = vunpack.c.l.b16 %v7094
        %v7446 = vunpack.c.h.b16 %v7094
        %v7447 = vunpack.c.l.b16 %v7095
        %v7448 = vunpack.c.h.b16 %v7095
        %v7449 = vunpack.c.l.b16 %v7096
        %v7450 = vunpack.c.h.b16 %v7096
        %v7451 = vunpack.c.l.b16 %v7097
        %v7452 = vunpack.c.h.b16 %v7097
        %v7453 = vunpack.c.l.b16 %v7098
        %v7454 = vunpack.c.h.b16 %v7098
        %v7455 = vunpack.c.l.b16 %v7099
        %v7456 = vunpack.c.h.b16 %v7099
        %v7457 = vunpack.c.l.b16 %v7100
        %v7458 = vunpack.c.h.b16 %v7100
        %v7459 = vunpack.c.l.b16 %v7101
        %v7460 = vunpack.c.h.b16 %v7101
        %v7461 = vunpack.c.l.b16 %v7102
        %v7462 = vunpack.c.h.b16 %v7102
        %v7463 = vunpack.c.l.b16 %v7103
        %v7464 = vunpack.c.h.b16 %v7103
        %v7465 = vunpack.c.l.b16 %v7104
        %v7466 = vunpack.c.h.b16 %v7104
        %v7467 = vunpack.c.l.b16 %v7105
        %v7468 = vunpack.c.h.b16 %v7105
        %v7469 = vunpack.c.l.b16 %v7106
        %v7470 = vunpack.c.h.b16 %v7106
        %v7471 = vunpack.c.l.b16 %v7107
        %v7472 = vunpack.c.h.b16 %v7107
        %v7473 = vunpack.c.l.b16 %v7108
        %v7474 = vunpack.c.h.b16 %v7108
        %v7475 = vunpack.c.l.b16 %v7109
        %v7476 = vunpack.c.h.b16 %v7109
        %v7477 = vunpack.c.l.b16 %v7110
        %v7478 = vunpack.c.h.b16 %v7110
        %v7479 = vunpack.c.l.b16 %v7111
        %v7480 = vunpack.c.h.b16 %v7111
        %v7481 = vunpack.c.l.b16 %v7112
        %v7482 = vunpack.c.h.b16 %v7112
        %v7483 = vunpack.c.l.b16 %v7113
        %v7484 = vunpack.c.h.b16 %v7113
        %v7485 = vunpack.c.l.b16 %v7114
        %v7486 = vunpack.c.h.b16 %v7114
        %v7487 = vunpack.c.l.b16 %v7115
        %v7488 = vunpack.c.h.b16 %v7115
        %v7489 = vunpack.c.l.b16 %v7116
        %v7490 = vunpack.c.h.b16 %v7116
        %v7491 = vunpack.c.l.b16 %v7117
        %v7492 = vunpack.c.h.b16 %v7117
        %v7493 = vunpack.c.l.b16 %v7118
        %v7494 = vunpack.c.h.b16 %v7118
        %v7495 = vunpack.c.l.b16 %v7119
        %v7496 = vunpack.c.h.b16 %v7119
        %v7497 = vunpack.c.l.b16 %v7120
        %v7498 = vunpack.c.h.b16 %v7120
        %v7499 = vunpack.c.l.b16 %v7121
        %v7500 = vunpack.c.h.b16 %v7121
        %v7501 = vunpack.c.l.b16 %v7122
        %v7502 = vunpack.c.h.b16 %v7122
        %v7503 = vunpack.c.l.b16 %v7123
        %v7504 = vunpack.c.h.b16 %v7123
        %v7505 = vunpack.c.l.b16 %v7124
        %v7506 = vunpack.c.h.b16 %v7124
        %v7507 = vunpack.c.l.b16 %v7125
        %v7508 = vunpack.c.h.b16 %v7125
        %v7509 = vunpack.c.l.b16 %v7126
        %v7510 = vunpack.c.h.b16 %v7126
        %v7511 = vunpack.c.l.b16 %v7127
        %v7512 = vunpack.c.h.b16 %v7127
        %v7513 = vunpack.c.l.b16 %v7128
        %v7514 = vunpack.c.h.b16 %v7128
        %v7515 = vunpack.c.l.b16 %v7129
        %v7516 = vunpack.c.h.b16 %v7129
        %v7517 = vunpack.c.l.b16 %v7130
        %v7518 = vunpack.c.h.b16 %v7130
        %v7519 = vunpack.c.l.b16 %v7131
        %v7520 = vunpack.c.h.b16 %v7131
        %v7521 = vunpack.c.l.b16 %v7132
        %v7522 = vunpack.c.h.b16 %v7132
        %v7523 = vunpack.c.l.b16 %v7133
        %v7524 = vunpack.c.h.b16 %v7133
        %v7525 = vunpack.c.l.b16 %v7134
        %v7526 = vunpack.c.h.b16 %v7134
        %v7527 = vunpack.c.l.b16 %v7135
        %v7528 = vunpack.c.h.b16 %v7135
        %v7529 = vunpack.c.l.b16 %v7136
        %v7530 = vunpack.c.h.b16 %v7136
        %v7531 = vunpack.c.l.b16 %v7137
        %v7532 = vunpack.c.h.b16 %v7137
        %v7533 = vunpack.c.l.b16 %v7138
        %v7534 = vunpack.c.h.b16 %v7138
        %v7535 = vunpack.c.l.b16 %v7139
        %v7536 = vunpack.c.h.b16 %v7139
        %v7537 = vunpack.c.l.b16 %v7140
        %v7538 = vunpack.c.h.b16 %v7140
        %v7539 = vunpack.c.l.b16 %v7141
        %v7540 = vunpack.c.h.b16 %v7141
        %v7541 = vunpack.c.l.b16 %v7142
        %v7542 = vunpack.c.h.b16 %v7142
        %v7543 = vunpack.c.l.b16 %v7143
        %v7544 = vunpack.c.h.b16 %v7143
        %v7545 = vunpack.c.l.b16 %v7144
        %v7546 = vunpack.c.h.b16 %v7144
        %v7547 = vunpack.c.l.b16 %v7145
        %v7548 = vunpack.c.h.b16 %v7145
        %v7549 = vunpack.c.l.b16 %v7146
        %v7550 = vunpack.c.h.b16 %v7146
        %v7551 = vunpack.c.l.b16 %v7147
        %v7552 = vunpack.c.h.b16 %v7147
        %v7553 = vunpack.c.l.b16 %v7148
        %v7554 = vunpack.c.h.b16 %v7148
        %v7555 = vunpack.c.l.b16 %v7149
        %v7556 = vunpack.c.h.b16 %v7149
        %v7557 = vunpack.c.l.b16 %v7150
        %v7558 = vunpack.c.h.b16 %v7150
        %v7559 = vunpack.c.l.b16 %v7151
        %v7560 = vunpack.c.h.b16 %v7151
        %v7561 = vunpack.c.l.b16 %v7152
        %v7562 = vunpack.c.h.b16 %v7152
        %v7563 = vunpack.c.l.b16 %v7153
        %v7564 = vunpack.c.h.b16 %v7153
        %v7565 = vunpack.c.l.b16 %v7154
        %v7566 = vunpack.c.h.b16 %v7154
        %v7567 = vunpack.c.l.b16 %v7155
        %v7568 = vunpack.c.h.b16 %v7155
        %v7569 = vunpack.c.l.b16 %v7156
        %v7570 = vunpack.c.h.b16 %v7156
        %v7571 = vunpack.c.l.b16 %v7157
        %v7572 = vunpack.c.h.b16 %v7157
        %v7573 = vunpack.c.l.b16 %v7158
        %v7574 = vunpack.c.h.b16 %v7158
        %v7575 = vunpack.c.l.b16 %v7159
        %v7576 = vunpack.c.h.b16 %v7159
        %v7577 = vunpack.c.l.b16 %v7160
        %v7578 = vunpack.c.h.b16 %v7160
        %v7579 = vunpack.c.l.b16 %v7161
        %v7580 = vunpack.c.h.b16 %v7161
        %v7581 = vunpack.c.l.b16 %v7162
        %v7582 = vunpack.c.h.b16 %v7162
        %v7583 = vunpack.c.l.b16 %v7163
        %v7584 = vunpack.c.h.b16 %v7163
        %v7585 = vunpack.c.l.b16 %v7164
        %v7586 = vunpack.c.h.b16 %v7164
        %v7587 = vunpack.c.l.b16 %v7165
        %v7588 = vunpack.c.h.b16 %v7165
        %v7589 = vunpack.c.l.b16 %v7166
        %v7590 = vunpack.c.h.b16 %v7166
        %v7591 = vunpack.c.l.b16 %v7167
        %v7592 = vunpack.c.h.b16 %v7167
        %v7593 = vunpack.c.l.b16 %v7168
        %v7594 = vunpack.c.h.b16 %v7168
        %v7595 = vunpack.c.l.b16 %v7169
        %v7596 = vunpack.c.h.b16 %v7169
        %v7597 = vunpack.c.l.b16 %v7170
        %v7598 = vunpack.c.h.b16 %v7170
        %v7599 = vunpack.c.l.b16 %v7171
        %v7600 = vunpack.c.h.b16 %v7171
        %v7601 = vunpack.c.l.b16 %v7172
        %v7602 = vunpack.c.h.b16 %v7172
        %v7603 = vunpack.c.l.b16 %v7173
        %v7604 = vunpack.c.h.b16 %v7173
        %v7605 = vunpack.c.l.b16 %v7174
        %v7606 = vunpack.c.h.b16 %v7174
        %v7607 = vunpack.c.l.b16 %v7175
        %v7608 = vunpack.c.h.b16 %v7175
        %v7609 = vunpack.c.l.b16 %v7176
        %v7610 = vunpack.c.h.b16 %v7176
        %v7611 = vunpack.c.l.b16 %v7177
        %v7612 = vunpack.c.h.b16 %v7177
        %v7613 = vunpack.c.l.b16 %v7178
        %v7614 = vunpack.c.h.b16 %v7178
        %v7615 = vunpack.c.l.b16 %v7179
        %v7616 = vunpack.c.h.b16 %v7179
        %v7617 = vunpack.c.l.b16 %v7180
        %v7618 = vunpack.c.h.b16 %v7180
        %v7619 = vunpack.c.l.b16 %v7181
        %v7620 = vunpack.c.h.b16 %v7181
        %v7621 = vunpack.c.l.b16 %v7182
        %v7622 = vunpack.c.h.b16 %v7182
        %v7623 = vunpack.c.l.b16 %v7183
        %v7624 = vunpack.c.h.b16 %v7183
        %v7625 = vunpack.c.l.b16 %v7184
        %v7626 = vunpack.c.h.b16 %v7184
        %v7627 = vunpack.c.l.b16 %v7185
        %v7628 = vunpack.c.h.b16 %v7185
        %v7629 = vunpack.c.l.b16 %v7186
        %v7630 = vunpack.c.h.b16 %v7186
        %v7631 = vunpack.c.l.b16 %v7187
        %v7632 = vunpack.c.h.b16 %v7187
        %v7633 = vunpack.c.l.b16 %v7188
        %v7634 = vunpack.c.h.b16 %v7188
        %v7635 = vunpack.c.l.b16 %v7189
        %v7636 = vunpack.c.h.b16 %v7189
        %v7637 = vunpack.c.l.b16 %v7190
        %v7638 = vunpack.c.h.b16 %v7190
        %v7639 = vunpack.c.l.b16 %v7191
        %v7640 = vunpack.c.h.b16 %v7191
        %v7641 = vunpack.c.l.b16 %v7192
        %v7642 = vunpack.c.h.b16 %v7192
        %v7643 = vunpack.c.l.b16 %v7193
        %v7644 = vunpack.c.h.b16 %v7193
        %v7645 = vunpack.c.l.b16 %v7194
        %v7646 = vunpack.c.h.b16 %v7194
        %v7647 = vunpack.c.l.b16 %v7195
        %v7648 = vunpack.c.h.b16 %v7195
        %v7649 = vunpack.c.l.b16 %v7196
        %v7650 = vunpack.c.h.b16 %v7196
        %v7651 = vunpack.c.l.b16 %v7197
        %v7652 = vunpack.c.h.b16 %v7197
        %v7653 = vunpack.c.l.b16 %v7198
        %v7654 = vunpack.c.h.b16 %v7198
        %v7655 = vunpack.c.l.b16 %v7199
        %v7656 = vunpack.c.h.b16 %v7199
        %v7657 = vunpack.c.l.b16 %v7200
        %v7658 = vunpack.c.h.b16 %v7200
        %v7659 = vunpack.c.l.b16 %v7201
        %v7660 = vunpack.c.h.b16 %v7201
        %v7661 = vunpack.c.l.b16 %v7202
        %v7662 = vunpack.c.h.b16 %v7202
        %v7663 = vunpack.c.l.b16 %v7203
        %v7664 = vunpack.c.h.b16 %v7203
        %v7665 = vunpack.c.l.b16 %v7204
        %v7666 = vunpack.c.h.b16 %v7204
        %v7667 = vunpack.c.l.b16 %v7205
        %v7668 = vunpack.c.h.b16 %v7205
        %v7669 = vunpack.c.l.b16 %v7206
        %v7670 = vunpack.c.h.b16 %v7206
        %v7671 = vunpack.c.l.b16 %v7207
        %v7672 = vunpack.c.h.b16 %v7207
        %v7673 = vunpack.c.l.b16 %v7208
        %v7674 = vunpack.c.h.b16 %v7208
        %v7675 = vunpack.c.l.b16 %v7209
        %v7676 = vunpack.c.h.b16 %v7209
        %v7677 = vunpack.c.l.b16 %v7210
        %v7678 = vunpack.c.h.b16 %v7210
        %v7679 = vunpack.c.l.b16 %v7211
        %v7680 = vunpack.c.h.b16 %v7211
        %v7681 = vunpack.c.l.b16 %v7212
        %v7682 = vunpack.c.h.b16 %v7212
        %v7683 = vunpack.c.l.b16 %v7213
        %v7684 = vunpack.c.h.b16 %v7213
        %v7685 = vunpack.c.l.b16 %v7214
        %v7686 = vunpack.c.h.b16 %v7214
        %v7687 = vunpack.c.l.b16 %v7215
        %v7688 = vunpack.c.h.b16 %v7215
        %v7689 = vunpack.c.l.b16 %v7216
        %v7690 = vunpack.c.h.b16 %v7216
        %v7691 = vunpack.c.l.b16 %v7217
        %v7692 = vunpack.c.h.b16 %v7217
        %v7693 = vunpack.c.l.b16 %v7218
        %v7694 = vunpack.c.h.b16 %v7218
        %v7695 = vunpack.c.l.b16 %v7219
        %v7696 = vunpack.c.h.b16 %v7219
        %v7697 = vunpack.c.l.b16 %v7220
        %v7698 = vunpack.c.h.b16 %v7220
        %v7699 = vpack.c.b16 %v7419, %v7411
        %v7700 = vpack.c.b16 %v7420, %v7412
        %v7701 = vpack.c.b16 %v7421, %v7413
        %v7702 = vpack.c.b16 %v7422, %v7414
        %v7703 = vpack.c.b16 %v7423, %v7415
        %v7704 = vpack.c.b16 %v7424, %v7416
        %v7705 = vpack.c.b16 %v7425, %v7417
        %v7706 = vpack.c.b16 %v7426, %v7418
        %v7707 = vpack.c.b16 %v7435, %v7427
        %v7708 = vpack.c.b16 %v7436, %v7428
        %v7709 = vpack.c.b16 %v7437, %v7429
        %v7710 = vpack.c.b16 %v7438, %v7430
        %v7711 = vpack.c.b16 %v7439, %v7431
        %v7712 = vpack.c.b16 %v7440, %v7432
        %v7713 = vpack.c.b16 %v7441, %v7433
        %v7714 = vpack.c.b16 %v7442, %v7434
        %v7715 = vpack.c.b16 %v7451, %v7443
        %v7716 = vpack.c.b16 %v7452, %v7444
        %v7717 = vpack.c.b16 %v7453, %v7445
        %v7718 = vpack.c.b16 %v7454, %v7446
        %v7719 = vpack.c.b16 %v7455, %v7447
        %v7720 = vpack.c.b16 %v7456, %v7448
        %v7721 = vpack.c.b16 %v7457, %v7449
        %v7722 = vpack.c.b16 %v7458, %v7450
        %v7723 = vpack.c.b16 %v7467, %v7459
        %v7724 = vpack.c.b16 %v7468, %v7460
        %v7725 = vpack.c.b16 %v7469, %v7461
        %v7726 = vpack.c.b16 %v7470, %v7462
        %v7727 = vpack.c.b16 %v7471, %v7463
        %v7728 = vpack.c.b16 %v7472, %v7464
        %v7729 = vpack.c.b16 %v7473, %v7465
        %v7730 = vpack.c.b16 %v7474, %v7466
        %v7731 = vpack.c.b16 %v7483, %v7475
        %v7732 = vpack.c.b16 %v7484, %v7476
        %v7733 = vpack.c.b16 %v7485, %v7477
        %v7734 = vpack.c.b16 %v7486, %v7478
        %v7735 = vpack.c.b16 %v7487, %v7479
        %v7736 = vpack.c.b16 %v7488, %v7480
        %v7737 = vpack.c.b16 %v7489, %v7481
        %v7738 = vpack.c.b16 %v7490, %v7482
        %v7739 = vpack.c.b16 %v7499, %v7491
        %v7740 = vpack.c.b16 %v7500, %v7492
        %v7741 = vpack.c.b16 %v7501, %v7493
        %v7742 = vpack.c.b16 %v7502, %v7494
        %v7743 = vpack.c.b16 %v7503, %v7495
        %v7744 = vpack.c.b16 %v7504, %v7496
        %v7745 = vpack.c.b16 %v7505, %v7497
        %v7746 = vpack.c.b16 %v7506, %v7498
        %v7747 = vpack.c.b16 %v7515, %v7507
        %v7748 = vpack.c.b16 %v7516, %v7508
        %v7749 = vpack.c.b16 %v7517, %v7509
        %v7750 = vpack.c.b16 %v7518, %v7510
        %v7751 = vpack.c.b16 %v7519, %v7511
        %v7752 = vpack.c.b16 %v7520, %v7512
        %v7753 = vpack.c.b16 %v7521, %v7513
        %v7754 = vpack.c.b16 %v7522, %v7514
        %v7755 = vpack.c.b16 %v7531, %v7523
        %v7756 = vpack.c.b16 %v7532, %v7524
        %v7757 = vpack.c.b16 %v7533, %v7525
        %v7758 = vpack.c.b16 %v7534, %v7526
        %v7759 = vpack.c.b16 %v7535, %v7527
        %v7760 = vpack.c.b16 %v7536, %v7528
        %v7761 = vpack.c.b16 %v7537, %v7529
        %v7762 = vpack.c.b16 %v7538, %v7530
        %v7763 = vpack.c.b16 %v7547, %v7539
        %v7764 = vpack.c.b16 %v7548, %v7540
        %v7765 = vpack.c.b16 %v7549, %v7541
        %v7766 = vpack.c.b16 %v7550, %v7542
        %v7767 = vpack.c.b16 %v7551, %v7543
        %v7768 = vpack.c.b16 %v7552, %v7544
        %v7769 = vpack.c.b16 %v7553, %v7545
        %v7770 = vpack.c.b16 %v7554, %v7546
        %v7771 = vpack.c.b16 %v7563, %v7555
        %v7772 = vpack.c.b16 %v7564, %v7556
        %v7773 = vpack.c.b16 %v7565, %v7557
        %v7774 = vpack.c.b16 %v7566, %v7558
        %v7775 = vpack.c.b16 %v7567, %v7559
        %v7776 = vpack.c.b16 %v7568, %v7560
        %v7777 = vpack.c.b16 %v7569, %v7561
        %v7778 = vpack.c.b16 %v7570, %v7562
        %v7779 = vpack.c.b16 %v7579, %v7571
        %v7780 = vpack.c.b16 %v7580, %v7572
        %v7781 = vpack.c.b16 %v7581, %v7573
        %v7782 = vpack.c.b16 %v7582, %v7574
        %v7783 = vpack.c.b16 %v7583, %v7575
        %v7784 = vpack.c.b16 %v7584, %v7576
        %v7785 = vpack.c.b16 %v7585, %v7577
        %v7786 = vpack.c.b16 %v7586, %v7578
        %v7787 = vpack.c.b16 %v7595, %v7587
        %v7788 = vpack.c.b16 %v7596, %v7588
        %v7789 = vpack.c.b16 %v7597, %v7589
        %v7790 = vpack.c.b16 %v7598, %v7590
        %v7791 = vpack.c.b16 %v7599, %v7591
        %v7792 = vpack.c.b16 %v7600, %v7592
        %v7793 = vpack.c.b16 %v7601, %v7593
        %v7794 = vpack.c.b16 %v7602, %v7594
        %v7795 = vpack.c.b16 %v7611, %v7603
        %v7796 = vpack.c.b16 %v7612, %v7604
        %v7797 = vpack.c.b16 %v7613, %v7605
        %v7798 = vpack.c.b16 %v7614, %v7606
        %v7799 = vpack.c.b16 %v7615, %v7607
        %v7800 = vpack.c.b16 %v7616, %v7608
        %v7801 = vpack.c.b16 %v7617, %v7609
        %v7802 = vpack.c.b16 %v7618, %v7610
        %v7803 = vpack.c.b16 %v7627, %v7619
        %v7804 = vpack.c.b16 %v7628, %v7620
        %v7805 = vpack.c.b16 %v7629, %v7621
        %v7806 = vpack.c.b16 %v7630, %v7622
        %v7807 = vpack.c.b16 %v7631, %v7623
        %v7808 = vpack.c.b16 %v7632, %v7624
        %v7809 = vpack.c.b16 %v7633, %v7625
        %v7810 = vpack.c.b16 %v7634, %v7626
        %v7811 = vpack.c.b16 %v7643, %v7635
        %v7812 = vpack.c.b16 %v7644, %v7636
        %v7813 = vpack.c.b16 %v7645, %v7637
        %v7814 = vpack.c.b16 %v7646, %v7638
        %v7815 = vpack.c.b16 %v7647, %v7639
        %v7816 = vpack.c.b16 %v7648, %v7640
        %v7817 = vpack.c.b16 %v7649, %v7641
        %v7818 = vpack.c.b16 %v7650, %v7642
        %v7819 = vpack.c.b16 %v7659, %v7651
        %v7820 = vpack.c.b16 %v7660, %v7652
        %v7821 = vpack.c.b16 %v7661, %v7653
        %v7822 = vpack.c.b16 %v7662, %v7654
        %v7823 = vpack.c.b16 %v7663, %v7655
        %v7824 = vpack.c.b16 %v7664, %v7656
        %v7825 = vpack.c.b16 %v7665, %v7657
        %v7826 = vpack.c.b16 %v7666, %v7658
        %v7827 = vpack.c.b16 %v7675, %v7667
        %v7828 = vpack.c.b16 %v7676, %v7668
        %v7829 = vpack.c.b16 %v7677, %v7669
        %v7830 = vpack.c.b16 %v7678, %v7670
        %v7831 = vpack.c.b16 %v7679, %v7671
        %v7832 = vpack.c.b16 %v7680, %v7672
        %v7833 = vpack.c.b16 %v7681, %v7673
        %v7834 = vpack.c.b16 %v7682, %v7674
        %v7835 = vpack.c.b16 %v7691, %v7683
        %v7836 = vpack.c.b16 %v7692, %v7684
        %v7837 = vpack.c.b16 %v7693, %v7685
        %v7838 = vpack.c.b16 %v7694, %v7686
        %v7839 = vpack.c.b16 %v7695, %v7687
        %v7840 = vpack.c.b16 %v7696, %v7688
        %v7841 = vpack.c.b16 %v7697, %v7689
        %v7842 = vpack.c.b16 %v7698, %v7690
        %v7988 = vsel %vm3918, %v7259, 0
        %v7991 = vsel %vm3918, %v7262, 0
        %7993 = vmatpush.bf16.msra.mxu0 %v7755
        %7994 = vmatpush.bf16.msra.mxu0 %v7747
        %7995 = vmatpush.bf16.msra.mxu0 %v7739
        %7996 = vmatpush.bf16.msra.mxu0 %v7731
        %7997 = vmatpush.bf16.msra.mxu0 %v7723
        %7998 = vmatpush.bf16.msra.mxu0 %v7715
        %7999 = vmatpush.bf16.msra.mxu0 %v7707
        %8000 = vmatpush.bf16.msra.mxu0 %v7699
        %8001 = vmatmul.bf16.gmra.mxu0 %v7257
        %v8002 = vpop.f32.mrf.mxu0
        %v8003 = vadd.f32 %v7223, %v8002
        %v8004 = vpop.f32.mrf.mxu0
        %v8005 = vadd.f32 %v7227, %v8004
        %8006 = vmatmul.bf16.gmra.mxu0 %v7260
        %v8007 = vpop.f32.mrf.mxu0
        %v8008 = vadd.f32 %v7231, %v8007
        %v8009 = vpop.f32.mrf.mxu0
        %v8010 = vadd.f32 %v7235, %v8009
        %8011 = vdwg.mxu0
        %8012 = vmatpush.bf16.msra.mxu0 %v7819
        %8013 = vmatpush.bf16.msra.mxu0 %v7811
        %8014 = vmatpush.bf16.msra.mxu0 %v7803
        %8015 = vmatpush.bf16.msra.mxu0 %v7795
        %8016 = vmatpush.bf16.msra.mxu0 %v7787
        %8017 = vmatpush.bf16.msra.mxu0 %v7779
        %8018 = vmatpush.bf16.msra.mxu0 %v7771
        %8019 = vmatpush.bf16.msra.mxu0 %v7763
        %8020 = vmatmul.bf16.gmra.mxu0 %v7258
        %v8021 = vpop.f32.mrf.mxu0
        %v8022 = vadd.f32 %v8003, %v8021
        %v8023 = vpop.f32.mrf.mxu0
        %v8024 = vadd.f32 %v8005, %v8023
        %8025 = vmatmul.bf16.gmra.mxu0 %v7261
        %v8026 = vpop.f32.mrf.mxu0
        %v8027 = vadd.f32 %v8008, %v8026
        %v8028 = vpop.f32.mrf.mxu0
        %v8029 = vadd.f32 %v8010, %v8028
        %8030 = vdwg.mxu0
        %8031 = vmatpush.bf16.msra.mxu0 0
        %8032 = vmatpush.bf16.msra.mxu0 0
        %8033 = vmatpush.bf16.msra.mxu0 0
        %8034 = vmatpush.bf16.msra.mxu0 0
        %8035 = vmatpush.bf16.msra.mxu0 0
        %8036 = vmatpush.bf16.msra.mxu0 0
        %8037 = vmatpush.bf16.msra.mxu0 %v7835
        %8038 = vmatpush.bf16.msra.mxu0 %v7827
        %8039 = vmatmul.bf16.gmra.mxu0 %v7988
        %v8040 = vpop.f32.mrf.mxu0
        %v8041 = vadd.f32 %v8022, %v8040
        %v8042 = vpop.f32.mrf.mxu0
        %v8043 = vadd.f32 %v8024, %v8042
        %8044 = vmatmul.bf16.gmra.mxu0 %v7991
        %v8045 = vpop.f32.mrf.mxu0
        %v8046 = vadd.f32 %v8027, %v8045
        %v8047 = vpop.f32.mrf.mxu0
        %v8048 = vadd.f32 %v8029, %v8047
        %8049 = vdwg.mxu0
        %8050 = vmatpush.bf16.msra.mxu0 %v7756
        %8051 = vmatpush.bf16.msra.mxu0 %v7748
        %8052 = vmatpush.bf16.msra.mxu0 %v7740
        %8053 = vmatpush.bf16.msra.mxu0 %v7732
        %8054 = vmatpush.bf16.msra.mxu0 %v7724
        %8055 = vmatpush.bf16.msra.mxu0 %v7716
        %8056 = vmatpush.bf16.msra.mxu0 %v7708
        %8057 = vmatpush.bf16.msra.mxu0 %v7700
        %8058 = vmatmul.bf16.gmra.mxu0 %v7257
        %v8059 = vpop.f32.mrf.mxu0
        %v8060 = vadd.f32 %v7223, %v8059
        %v8061 = vpop.f32.mrf.mxu0
        %v8062 = vadd.f32 %v7227, %v8061
        %8063 = vmatmul.bf16.gmra.mxu0 %v7260
        %v8064 = vpop.f32.mrf.mxu0
        %v8065 = vadd.f32 %v7231, %v8064
        %v8066 = vpop.f32.mrf.mxu0
        %v8067 = vadd.f32 %v7235, %v8066
        %8068 = vdwg.mxu0
        %8069 = vmatpush.bf16.msra.mxu0 %v7820
        %8070 = vmatpush.bf16.msra.mxu0 %v7812
        %8071 = vmatpush.bf16.msra.mxu0 %v7804
        %8072 = vmatpush.bf16.msra.mxu0 %v7796
        %8073 = vmatpush.bf16.msra.mxu0 %v7788
        %8074 = vmatpush.bf16.msra.mxu0 %v7780
        %8075 = vmatpush.bf16.msra.mxu0 %v7772
        %8076 = vmatpush.bf16.msra.mxu0 %v7764
        %8077 = vmatmul.bf16.gmra.mxu0 %v7258
        %v8078 = vpop.f32.mrf.mxu0
        %v8079 = vadd.f32 %v8060, %v8078
        %v8080 = vpop.f32.mrf.mxu0
        %v8081 = vadd.f32 %v8062, %v8080
        %8082 = vmatmul.bf16.gmra.mxu0 %v7261
        %v8083 = vpop.f32.mrf.mxu0
        %v8084 = vadd.f32 %v8065, %v8083
        %v8085 = vpop.f32.mrf.mxu0
        %v8086 = vadd.f32 %v8067, %v8085
        %8087 = vdwg.mxu0
        %8088 = vmatpush.bf16.msra.mxu0 0
        %8089 = vmatpush.bf16.msra.mxu0 0
        %8090 = vmatpush.bf16.msra.mxu0 0
        %8091 = vmatpush.bf16.msra.mxu0 0
        %8092 = vmatpush.bf16.msra.mxu0 0
        %8093 = vmatpush.bf16.msra.mxu0 0
        %8094 = vmatpush.bf16.msra.mxu0 %v7836
        %8095 = vmatpush.bf16.msra.mxu0 %v7828
        %8096 = vmatmul.bf16.gmra.mxu0 %v7988
        %v8097 = vpop.f32.mrf.mxu0
        %v8098 = vadd.f32 %v8079, %v8097
        %v8099 = vpop.f32.mrf.mxu0
        %v8100 = vadd.f32 %v8081, %v8099
        %8101 = vmatmul.bf16.gmra.mxu0 %v7991
        %v8102 = vpop.f32.mrf.mxu0
        %v8103 = vadd.f32 %v8084, %v8102
        %v8104 = vpop.f32.mrf.mxu0
        %v8105 = vadd.f32 %v8086, %v8104
        %8106 = vdwg.mxu0
        %8107 = vmatpush.bf16.msra.mxu0 %v7757
        %8108 = vmatpush.bf16.msra.mxu0 %v7749
        %8109 = vmatpush.bf16.msra.mxu0 %v7741
        %8110 = vmatpush.bf16.msra.mxu0 %v7733
        %8111 = vmatpush.bf16.msra.mxu0 %v7725
        %8112 = vmatpush.bf16.msra.mxu0 %v7717
        %8113 = vmatpush.bf16.msra.mxu0 %v7709
        %8114 = vmatpush.bf16.msra.mxu0 %v7701
        %8115 = vmatmul.bf16.gmra.mxu0 %v7257
        %v8116 = vpop.f32.mrf.mxu0
        %v8117 = vadd.f32 %v7223, %v8116
        %v8118 = vpop.f32.mrf.mxu0
        %v8119 = vadd.f32 %v7227, %v8118
        %8120 = vmatmul.bf16.gmra.mxu0 %v7260
        %v8121 = vpop.f32.mrf.mxu0
        %v8122 = vadd.f32 %v7231, %v8121
        %v8123 = vpop.f32.mrf.mxu0
        %v8124 = vadd.f32 %v7235, %v8123
        %8125 = vdwg.mxu0
        %8126 = vmatpush.bf16.msra.mxu0 %v7821
        %8127 = vmatpush.bf16.msra.mxu0 %v7813
        %8128 = vmatpush.bf16.msra.mxu0 %v7805
        %8129 = vmatpush.bf16.msra.mxu0 %v7797
        %8130 = vmatpush.bf16.msra.mxu0 %v7789
        %8131 = vmatpush.bf16.msra.mxu0 %v7781
        %8132 = vmatpush.bf16.msra.mxu0 %v7773
        %8133 = vmatpush.bf16.msra.mxu0 %v7765
        %8134 = vmatmul.bf16.gmra.mxu0 %v7258
        %v8135 = vpop.f32.mrf.mxu0
        %v8136 = vadd.f32 %v8117, %v8135
        %v8137 = vpop.f32.mrf.mxu0
        %v8138 = vadd.f32 %v8119, %v8137
        %8139 = vmatmul.bf16.gmra.mxu0 %v7261
        %v8140 = vpop.f32.mrf.mxu0
        %v8141 = vadd.f32 %v8122, %v8140
        %v8142 = vpop.f32.mrf.mxu0
        %v8143 = vadd.f32 %v8124, %v8142
        %8144 = vdwg.mxu0
        %8145 = vmatpush.bf16.msra.mxu0 0
        %8146 = vmatpush.bf16.msra.mxu0 0
        %8147 = vmatpush.bf16.msra.mxu0 0
        %8148 = vmatpush.bf16.msra.mxu0 0
        %8149 = vmatpush.bf16.msra.mxu0 0
        %8150 = vmatpush.bf16.msra.mxu0 0
        %8151 = vmatpush.bf16.msra.mxu0 %v7837
        %8152 = vmatpush.bf16.msra.mxu0 %v7829
        %8153 = vmatmul.bf16.gmra.mxu0 %v7988
        %v8154 = vpop.f32.mrf.mxu0
        %v8155 = vadd.f32 %v8136, %v8154
        %v8156 = vpop.f32.mrf.mxu0
        %v8157 = vadd.f32 %v8138, %v8156
        %8158 = vmatmul.bf16.gmra.mxu0 %v7991
        %v8159 = vpop.f32.mrf.mxu0
        %v8160 = vadd.f32 %v8141, %v8159
        %v8161 = vpop.f32.mrf.mxu0
        %v8162 = vadd.f32 %v8143, %v8161
        %8163 = vdwg.mxu0
        %8164 = vmatpush.bf16.msra.mxu0 %v7758
        %8165 = vmatpush.bf16.msra.mxu0 %v7750
        %8166 = vmatpush.bf16.msra.mxu0 %v7742
        %8167 = vmatpush.bf16.msra.mxu0 %v7734
        %8168 = vmatpush.bf16.msra.mxu0 %v7726
        %8169 = vmatpush.bf16.msra.mxu0 %v7718
        %8170 = vmatpush.bf16.msra.mxu0 %v7710
        %8171 = vmatpush.bf16.msra.mxu0 %v7702
        %8172 = vmatmul.bf16.gmra.mxu0 %v7257
        %v8173 = vpop.f32.mrf.mxu0
        %v8174 = vadd.f32 %v7223, %v8173
        %v8175 = vpop.f32.mrf.mxu0
        %v8176 = vadd.f32 %v7227, %v8175
        %8177 = vmatmul.bf16.gmra.mxu0 %v7260
        %v8178 = vpop.f32.mrf.mxu0
        %v8179 = vadd.f32 %v7231, %v8178
        %v8180 = vpop.f32.mrf.mxu0
        %v8181 = vadd.f32 %v7235, %v8180
        %8182 = vdwg.mxu0
        %8183 = vmatpush.bf16.msra.mxu0 %v7822
        %8184 = vmatpush.bf16.msra.mxu0 %v7814
        %8185 = vmatpush.bf16.msra.mxu0 %v7806
        %8186 = vmatpush.bf16.msra.mxu0 %v7798
        %8187 = vmatpush.bf16.msra.mxu0 %v7790
        %8188 = vmatpush.bf16.msra.mxu0 %v7782
        %8189 = vmatpush.bf16.msra.mxu0 %v7774
        %8190 = vmatpush.bf16.msra.mxu0 %v7766
        %8191 = vmatmul.bf16.gmra.mxu0 %v7258
        %v8192 = vpop.f32.mrf.mxu0
        %v8193 = vadd.f32 %v8174, %v8192
        %v8194 = vpop.f32.mrf.mxu0
        %v8195 = vadd.f32 %v8176, %v8194
        %8196 = vmatmul.bf16.gmra.mxu0 %v7261
        %v8197 = vpop.f32.mrf.mxu0
        %v8198 = vadd.f32 %v8179, %v8197
        %v8199 = vpop.f32.mrf.mxu0
        %v8200 = vadd.f32 %v8181, %v8199
        %8201 = vdwg.mxu0
        %8202 = vmatpush.bf16.msra.mxu0 0
        %8203 = vmatpush.bf16.msra.mxu0 0
        %8204 = vmatpush.bf16.msra.mxu0 0
        %8205 = vmatpush.bf16.msra.mxu0 0
        %8206 = vmatpush.bf16.msra.mxu0 0
        %8207 = vmatpush.bf16.msra.mxu0 0
        %8208 = vmatpush.bf16.msra.mxu0 %v7838
        %8209 = vmatpush.bf16.msra.mxu0 %v7830
        %8210 = vmatmul.bf16.gmra.mxu0 %v7988
        %v8211 = vpop.f32.mrf.mxu0
        %v8212 = vadd.f32 %v8193, %v8211
        %v8213 = vpop.f32.mrf.mxu0
        %v8214 = vadd.f32 %v8195, %v8213
        %8215 = vmatmul.bf16.gmra.mxu0 %v7991
        %v8216 = vpop.f32.mrf.mxu0
        %v8217 = vadd.f32 %v8198, %v8216
        %v8218 = vpop.f32.mrf.mxu0
        %v8219 = vadd.f32 %v8200, %v8218
        %8220 = vdwg.mxu0
        %8221 = vmatpush.bf16.msra.mxu0 %v7759
        %8222 = vmatpush.bf16.msra.mxu0 %v7751
        %8223 = vmatpush.bf16.msra.mxu0 %v7743
        %8224 = vmatpush.bf16.msra.mxu0 %v7735
        %8225 = vmatpush.bf16.msra.mxu0 %v7727
        %8226 = vmatpush.bf16.msra.mxu0 %v7719
        %8227 = vmatpush.bf16.msra.mxu0 %v7711
        %8228 = vmatpush.bf16.msra.mxu0 %v7703
        %8229 = vmatmul.bf16.gmra.mxu0 %v7257
        %v8230 = vpop.f32.mrf.mxu0
        %v8231 = vadd.f32 %v7223, %v8230
        %v8232 = vpop.f32.mrf.mxu0
        %v8233 = vadd.f32 %v7227, %v8232
        %8234 = vmatmul.bf16.gmra.mxu0 %v7260
        %v8235 = vpop.f32.mrf.mxu0
        %v8236 = vadd.f32 %v7231, %v8235
        %v8237 = vpop.f32.mrf.mxu0
        %v8238 = vadd.f32 %v7235, %v8237
        %8239 = vdwg.mxu0
        %8240 = vmatpush.bf16.msra.mxu0 %v7823
        %8241 = vmatpush.bf16.msra.mxu0 %v7815
        %8242 = vmatpush.bf16.msra.mxu0 %v7807
        %8243 = vmatpush.bf16.msra.mxu0 %v7799
        %8244 = vmatpush.bf16.msra.mxu0 %v7791
        %8245 = vmatpush.bf16.msra.mxu0 %v7783
        %8246 = vmatpush.bf16.msra.mxu0 %v7775
        %8247 = vmatpush.bf16.msra.mxu0 %v7767
        %8248 = vmatmul.bf16.gmra.mxu0 %v7258
        %v8249 = vpop.f32.mrf.mxu0
        %v8250 = vadd.f32 %v8231, %v8249
        %v8251 = vpop.f32.mrf.mxu0
        %v8252 = vadd.f32 %v8233, %v8251
        %8253 = vmatmul.bf16.gmra.mxu0 %v7261
        %v8254 = vpop.f32.mrf.mxu0
        %v8255 = vadd.f32 %v8236, %v8254
        %v8256 = vpop.f32.mrf.mxu0
        %v8257 = vadd.f32 %v8238, %v8256
        %8258 = vdwg.mxu0
        %8259 = vmatpush.bf16.msra.mxu0 0
        %8260 = vmatpush.bf16.msra.mxu0 0
        %8261 = vmatpush.bf16.msra.mxu0 0
        %8262 = vmatpush.bf16.msra.mxu0 0
        %8263 = vmatpush.bf16.msra.mxu0 0
        %8264 = vmatpush.bf16.msra.mxu0 0
        %8265 = vmatpush.bf16.msra.mxu0 %v7839
        %8266 = vmatpush.bf16.msra.mxu0 %v7831
        %8267 = vmatmul.bf16.gmra.mxu0 %v7988
        %v8268 = vpop.f32.mrf.mxu0
        %v8269 = vadd.f32 %v8250, %v8268
        %v8270 = vpop.f32.mrf.mxu0
        %v8271 = vadd.f32 %v8252, %v8270
        %8272 = vmatmul.bf16.gmra.mxu0 %v7991
        %v8273 = vpop.f32.mrf.mxu0
        %v8274 = vadd.f32 %v8255, %v8273
        %v8275 = vpop.f32.mrf.mxu0
        %v8276 = vadd.f32 %v8257, %v8275
        %8277 = vdwg.mxu0
        %8278 = vmatpush.bf16.msra.mxu0 %v7760
        %8279 = vmatpush.bf16.msra.mxu0 %v7752
        %8280 = vmatpush.bf16.msra.mxu0 %v7744
        %8281 = vmatpush.bf16.msra.mxu0 %v7736
        %8282 = vmatpush.bf16.msra.mxu0 %v7728
        %8283 = vmatpush.bf16.msra.mxu0 %v7720
        %8284 = vmatpush.bf16.msra.mxu0 %v7712
        %8285 = vmatpush.bf16.msra.mxu0 %v7704
        %8286 = vmatmul.bf16.gmra.mxu0 %v7257
        %v8287 = vpop.f32.mrf.mxu0
        %v8288 = vadd.f32 %v7223, %v8287
        %v8289 = vpop.f32.mrf.mxu0
        %v8290 = vadd.f32 %v7227, %v8289
        %8291 = vmatmul.bf16.gmra.mxu0 %v7260
        %v8292 = vpop.f32.mrf.mxu0
        %v8293 = vadd.f32 %v7231, %v8292
        %v8294 = vpop.f32.mrf.mxu0
        %v8295 = vadd.f32 %v7235, %v8294
        %8296 = vdwg.mxu0
        %8297 = vmatpush.bf16.msra.mxu0 %v7824
        %8298 = vmatpush.bf16.msra.mxu0 %v7816
        %8299 = vmatpush.bf16.msra.mxu0 %v7808
        %8300 = vmatpush.bf16.msra.mxu0 %v7800
        %8301 = vmatpush.bf16.msra.mxu0 %v7792
        %8302 = vmatpush.bf16.msra.mxu0 %v7784
        %8303 = vmatpush.bf16.msra.mxu0 %v7776
        %8304 = vmatpush.bf16.msra.mxu0 %v7768
        %8305 = vmatmul.bf16.gmra.mxu0 %v7258
        %v8306 = vpop.f32.mrf.mxu0
        %v8307 = vadd.f32 %v8288, %v8306
        %v8308 = vpop.f32.mrf.mxu0
        %v8309 = vadd.f32 %v8290, %v8308
        %8310 = vmatmul.bf16.gmra.mxu0 %v7261
        %v8311 = vpop.f32.mrf.mxu0
        %v8312 = vadd.f32 %v8293, %v8311
        %v8313 = vpop.f32.mrf.mxu0
        %v8314 = vadd.f32 %v8295, %v8313
        %8315 = vdwg.mxu0
        %8316 = vmatpush.bf16.msra.mxu0 0
        %8317 = vmatpush.bf16.msra.mxu0 0
        %8318 = vmatpush.bf16.msra.mxu0 0
        %8319 = vmatpush.bf16.msra.mxu0 0
        %8320 = vmatpush.bf16.msra.mxu0 0
        %8321 = vmatpush.bf16.msra.mxu0 0
        %8322 = vmatpush.bf16.msra.mxu0 %v7840
        %8323 = vmatpush.bf16.msra.mxu0 %v7832
        %8324 = vmatmul.bf16.gmra.mxu0 %v7988
        %v8325 = vpop.f32.mrf.mxu0
        %v8326 = vadd.f32 %v8307, %v8325
        %v8327 = vpop.f32.mrf.mxu0
        %v8328 = vadd.f32 %v8309, %v8327
        %8329 = vmatmul.bf16.gmra.mxu0 %v7991
        %v8330 = vpop.f32.mrf.mxu0
        %v8331 = vadd.f32 %v8312, %v8330
        %v8332 = vpop.f32.mrf.mxu0
        %v8333 = vadd.f32 %v8314, %v8332
        %8334 = vdwg.mxu0
        %8335 = vmatpush.bf16.msra.mxu0 %v7761
        %8336 = vmatpush.bf16.msra.mxu0 %v7753
        %8337 = vmatpush.bf16.msra.mxu0 %v7745
        %8338 = vmatpush.bf16.msra.mxu0 %v7737
        %8339 = vmatpush.bf16.msra.mxu0 %v7729
        %8340 = vmatpush.bf16.msra.mxu0 %v7721
        %8341 = vmatpush.bf16.msra.mxu0 %v7713
        %8342 = vmatpush.bf16.msra.mxu0 %v7705
        %8343 = vmatmul.bf16.gmra.mxu0 %v7257
        %v8344 = vpop.f32.mrf.mxu0
        %v8345 = vadd.f32 %v7223, %v8344
        %v8346 = vpop.f32.mrf.mxu0
        %v8347 = vadd.f32 %v7227, %v8346
        %8348 = vmatmul.bf16.gmra.mxu0 %v7260
        %v8349 = vpop.f32.mrf.mxu0
        %v8350 = vadd.f32 %v7231, %v8349
        %v8351 = vpop.f32.mrf.mxu0
        %v8352 = vadd.f32 %v7235, %v8351
        %8353 = vdwg.mxu0
        %8354 = vmatpush.bf16.msra.mxu0 %v7825
        %8355 = vmatpush.bf16.msra.mxu0 %v7817
        %8356 = vmatpush.bf16.msra.mxu0 %v7809
        %8357 = vmatpush.bf16.msra.mxu0 %v7801
        %8358 = vmatpush.bf16.msra.mxu0 %v7793
        %8359 = vmatpush.bf16.msra.mxu0 %v7785
        %8360 = vmatpush.bf16.msra.mxu0 %v7777
        %8361 = vmatpush.bf16.msra.mxu0 %v7769
        %8362 = vmatmul.bf16.gmra.mxu0 %v7258
        %v8363 = vpop.f32.mrf.mxu0
        %v8364 = vadd.f32 %v8345, %v8363
        %v8365 = vpop.f32.mrf.mxu0
        %v8366 = vadd.f32 %v8347, %v8365
        %8367 = vmatmul.bf16.gmra.mxu0 %v7261
        %v8368 = vpop.f32.mrf.mxu0
        %v8369 = vadd.f32 %v8350, %v8368
        %v8370 = vpop.f32.mrf.mxu0
        %v8371 = vadd.f32 %v8352, %v8370
        %8372 = vdwg.mxu0
        %8373 = vmatpush.bf16.msra.mxu0 0
        %8374 = vmatpush.bf16.msra.mxu0 0
        %8375 = vmatpush.bf16.msra.mxu0 0
        %8376 = vmatpush.bf16.msra.mxu0 0
        %8377 = vmatpush.bf16.msra.mxu0 0
        %8378 = vmatpush.bf16.msra.mxu0 0
        %8379 = vmatpush.bf16.msra.mxu0 %v7841
        %8380 = vmatpush.bf16.msra.mxu0 %v7833
        %8381 = vmatmul.bf16.gmra.mxu0 %v7988
        %v8382 = vpop.f32.mrf.mxu0
        %v8383 = vadd.f32 %v8364, %v8382
        %v8384 = vpop.f32.mrf.mxu0
        %v8385 = vadd.f32 %v8366, %v8384
        %8386 = vmatmul.bf16.gmra.mxu0 %v7991
        %v8387 = vpop.f32.mrf.mxu0
        %v8388 = vadd.f32 %v8369, %v8387
        %v8389 = vpop.f32.mrf.mxu0
        %v8390 = vadd.f32 %v8371, %v8389
        %8391 = vdwg.mxu0
        %8392 = vmatpush.bf16.msra.mxu0 %v7762
        %8393 = vmatpush.bf16.msra.mxu0 %v7754
        %8394 = vmatpush.bf16.msra.mxu0 %v7746
        %8395 = vmatpush.bf16.msra.mxu0 %v7738
        %8396 = vmatpush.bf16.msra.mxu0 %v7730
        %8397 = vmatpush.bf16.msra.mxu0 %v7722
        %8398 = vmatpush.bf16.msra.mxu0 %v7714
        %8399 = vmatpush.bf16.msra.mxu0 %v7706
        %8400 = vmatmul.bf16.gmra.mxu0 %v7257
        %v8401 = vpop.f32.mrf.mxu0
        %v8402 = vadd.f32 %v7223, %v8401
        %v8403 = vpop.f32.mrf.mxu0
        %v8404 = vadd.f32 %v7227, %v8403
        %8405 = vmatmul.bf16.gmra.mxu0 %v7260
        %v8406 = vpop.f32.mrf.mxu0
        %v8407 = vadd.f32 %v7231, %v8406
        %v8408 = vpop.f32.mrf.mxu0
        %v8409 = vadd.f32 %v7235, %v8408
        %8410 = vdwg.mxu0
        %8411 = vmatpush.bf16.msra.mxu0 %v7826
        %8412 = vmatpush.bf16.msra.mxu0 %v7818
        %8413 = vmatpush.bf16.msra.mxu0 %v7810
        %8414 = vmatpush.bf16.msra.mxu0 %v7802
        %8415 = vmatpush.bf16.msra.mxu0 %v7794
        %8416 = vmatpush.bf16.msra.mxu0 %v7786
        %8417 = vmatpush.bf16.msra.mxu0 %v7778
        %8418 = vmatpush.bf16.msra.mxu0 %v7770
        %8419 = vmatmul.bf16.gmra.mxu0 %v7258
        %v8420 = vpop.f32.mrf.mxu0
        %v8421 = vadd.f32 %v8402, %v8420
        %v8422 = vpop.f32.mrf.mxu0
        %v8423 = vadd.f32 %v8404, %v8422
        %8424 = vmatmul.bf16.gmra.mxu0 %v7261
        %v8425 = vpop.f32.mrf.mxu0
        %v8426 = vadd.f32 %v8407, %v8425
        %v8427 = vpop.f32.mrf.mxu0
        %v8428 = vadd.f32 %v8409, %v8427
        %8429 = vdwg.mxu0
        %8430 = vmatpush.bf16.msra.mxu0 0
        %8431 = vmatpush.bf16.msra.mxu0 0
        %8432 = vmatpush.bf16.msra.mxu0 0
        %8433 = vmatpush.bf16.msra.mxu0 0
        %8434 = vmatpush.bf16.msra.mxu0 0
        %8435 = vmatpush.bf16.msra.mxu0 0
        %8436 = vmatpush.bf16.msra.mxu0 %v7842
        %8437 = vmatpush.bf16.msra.mxu0 %v7834
        %8438 = vmatmul.bf16.gmra.mxu0 %v7988
        %v8439 = vpop.f32.mrf.mxu0
        %v8440 = vadd.f32 %v8421, %v8439
        %v8441 = vpop.f32.mrf.mxu0
        %v8442 = vadd.f32 %v8423, %v8441
        %8443 = vmatmul.bf16.gmra.mxu0 %v7991
        %v8444 = vpop.f32.mrf.mxu0
        %v8445 = vadd.f32 %v8426, %v8444
        %v8446 = vpop.f32.mrf.mxu0
        %v8447 = vadd.f32 %v8428, %v8446
        %8448 = vdwg.mxu0
        %8449 = vst [vmem:[#allocation5] sm:$0xff] %v8041
        %8450 = vst [vmem:[#allocation5 + $0x8] sm:$0xff] %v8098
        %8451 = vst [vmem:[#allocation5 + $0x10] sm:$0xff] %v8155
        %8452 = vst [vmem:[#allocation5 + $0x18] sm:$0xff] %v8212
        %8453 = vst [vmem:[#allocation5 + $0x20] sm:$0xff] %v8269
        %8454 = vst [vmem:[#allocation5 + $0x28] sm:$0xff] %v8326
        %8455 = vst [vmem:[#allocation5 + $0x30] sm:$0xff] %v8383
        %8456 = vst [vmem:[#allocation5 + $0x38] sm:$0xff] %v8440
        %8457 = vst [vmem:[#allocation5 + $0x40] sm:$0xff] %v8043
        %8458 = vst [vmem:[#allocation5 + $0x48] sm:$0xff] %v8100
        %8459 = vst [vmem:[#allocation5 + $0x50] sm:$0xff] %v8157
        %8460 = vst [vmem:[#allocation5 + $0x58] sm:$0xff] %v8214
        %8461 = vst [vmem:[#allocation5 + $0x60] sm:$0xff] %v8271
        %8462 = vst [vmem:[#allocation5 + $0x68] sm:$0xff] %v8328
        %8463 = vst [vmem:[#allocation5 + $0x70] sm:$0xff] %v8385
        %8464 = vst [vmem:[#allocation5 + $0x78] sm:$0xff] %v8442
        %8465 = vst [vmem:[#allocation5 + $0x80] sm:$0xff] %v8046
        %8466 = vst [vmem:[#allocation5 + $0x88] sm:$0xff] %v8103
        %8467 = vst [vmem:[#allocation5 + $0x90] sm:$0xff] %v8160
        %8468 = vst [vmem:[#allocation5 + $0x98] sm:$0xff] %v8217
        %8469 = vst [vmem:[#allocation5 + $0xa0] sm:$0xff] %v8274
        %8470 = vst [vmem:[#allocation5 + $0xa8] sm:$0xff] %v8331
        %8471 = vst [vmem:[#allocation5 + $0xb0] sm:$0xff] %v8388
        %8472 = vst [vmem:[#allocation5 + $0xb8] sm:$0xff] %v8445
        %8473 = vst [vmem:[#allocation5 + $0xc0] sm:$0xff] %v8048
        %8474 = vst [vmem:[#allocation5 + $0xc8] sm:$0xff] %v8105
        %8475 = vst [vmem:[#allocation5 + $0xd0] sm:$0xff] %v8162
        %8476 = vst [vmem:[#allocation5 + $0xd8] sm:$0xff] %v8219
        %8477 = vst [vmem:[#allocation5 + $0xe0] sm:$0xff] %v8276
        %8478 = vst [vmem:[#allocation5 + $0xe8] sm:$0xff] %v8333
        %8479 = vst [vmem:[#allocation5 + $0xf0] sm:$0xff] %v8390
        %8480 = vst [vmem:[#allocation5 + $0xf8] sm:$0xff] %v8447
        %v8481 = vld [vmem:[#allocation5] sm:$0xff]
        %v8482 = vld [vmem:[#allocation5 + $0x8] sm:$0xff]
        %v8483 = vld [vmem:[#allocation5 + $0x40] sm:$0xff]
        %v8484 = vld [vmem:[#allocation5 + $0x48] sm:$0xff]
        %v8485 = vld [vmem:[#allocation5 + $0x80] sm:$0xff]
        %v8486 = vld [vmem:[#allocation5 + $0x88] sm:$0xff]
        %v8487 = vld [vmem:[#allocation5 + $0xc0] sm:$0xff]
        %v8488 = vld [vmem:[#allocation5 + $0xc8] sm:$0xff]
        %v8489 = vadd.f32 %v8481, %v8482
        %8490 = vadd.xlane.f32.xlu0 %v8489
        %v8491 = vpop.xlane.xlu0 %8490
        %v8492 = vadd.f32 %v8483, %v8484
        %8493 = vadd.xlane.f32.xlu0 %v8492
        %v8494 = vpop.xlane.xlu0 %8493
        %v8495 = vadd.f32 %v8485, %v8486
        %8496 = vadd.xlane.f32.xlu0 %v8495
        %v8497 = vpop.xlane.xlu0 %8496
        %v8498 = vadd.f32 %v8487, %v8488
        %8499 = vadd.xlane.f32.xlu0 %v8498
        %v8500 = vpop.xlane.xlu0 %8499
        %v8501 = vrcp.pop 256.0
        %v8502 = vmul.f32 256.0, %v8501
        %v8503 = vsub.f32 1.0, %v8502
        %v8504 = vmul.f32 %v8501, %v8503
        %v8505 = vadd.f32 %v8501, %v8504
        %vm8506 = vweird.f32 %v8501
        %v8507 = vsel %vm8506, %v8501, %v8505
        %v8508 = vmul.f32 %v8491, %v8507
        %v8509 = vmul.f32 %v8494, %v8507
        %v8510 = vmul.f32 %v8497, %v8507
        %v8511 = vmul.f32 %v8500, %v8507
        %v8512 = vmul.f32 %v253, %v8508
        %v8513 = vmul.f32 %v254, %v8509
        %v8514 = vmul.f32 %v255, %v8510
        %v8515 = vmul.f32 %v256, %v8511
        %vm8516 = vcmask 39960
        %v8517 = vsel %vm8516, %v8512, 0.0
        %v8518 = vsel %vm8516, %v8513, 0.0
        %v8519 = vadd.f32 %v8517, %v8518
        %v8520 = vsel %vm8516, %v8514, 0.0
        %v8521 = vadd.f32 %v8519, %v8520
        %v8522 = vsel %vm8516, %v8515, 0.0
        %v8523 = vadd.f32 %v8521, %v8522
        %v8524 = vrot.slane %v8523, 4
        %v8525 = vadd.f32 %v8523, %v8524
        %v8526 = vrot.slane %v8525, 2
        %v8527 = vadd.f32 %v8525, %v8526
        %v8528 = vrot.slane %v8527, 1
        %v8529 = vadd.f32 %v8527, %v8528
        %8531 = vrot.lane.b32.xlu0 %v257, 124
        %v8532 = vpop.permute.xlu0 %8531
        %v8534 = vadd.f32 %v8529, %v8532
        %v8535 = vmax.f32 %v8534, 0.0
        %v8536 = vperm.slane %v8535, 0
        %8538 = vrot.lane.b32.xlu0 %v8536, 2
        %v8539 = vpop.permute.xlu0 %8538
        %v8541 = vmul.f32 %v253, %v8539
        %v8542 = vmul.f32 %v254, %v8539
        %v8543 = vmul.f32 %v255, %v8539
        %v8544 = vmul.f32 %v256, %v8539
        %8549 = vrot.lane.b32.xlu0 %v8541, 123
        %v8550 = vpop.permute.xlu0 %8549
        %8551 = vrot.lane.b32.xlu0 %v8542, 123
        %v8552 = vpop.permute.xlu0 %8551
        %8553 = vrot.lane.b32.xlu0 %v8543, 123
        %v8554 = vpop.permute.xlu0 %8553
        %8555 = vrot.lane.b32.xlu0 %v8544, 123
        %v8556 = vpop.permute.xlu0 %8555
        %vm8561 = vcmask 15360
        %v8562 = vsel %vm8561, %v8550, 0.0
        %8563 = vadd.xlane.f32.xlu0 %v8562
        %v8564 = vpop.xlane.xlu0 %8563
        %v8565 = vsel %vm8561, %v8552, 0.0
        %8566 = vadd.xlane.f32.xlu0 %v8565
        %v8567 = vpop.xlane.xlu0 %8566
        %v8568 = vsel %vm8561, %v8554, 0.0
        %8569 = vadd.xlane.f32.xlu0 %v8568
        %v8570 = vpop.xlane.xlu0 %8569
        %v8571 = vsel %vm8561, %v8556, 0.0
        %8572 = vadd.xlane.f32.xlu0 %v8571
        %v8573 = vpop.xlane.xlu0 %8572
        %v8574 = vadd.f32 %v8564, %v253
        %v8575 = vadd.f32 %v8567, %v254
        %v8576 = vadd.f32 %v8570, %v255
        %v8577 = vadd.f32 %v8573, %v256
        %v8578 = vxor.u32 %v8574, 2147483648
        %v8579 = vxor.u32 %v8575, 2147483648
        %v8580 = vxor.u32 %v8576, 2147483648
        %v8581 = vxor.u32 %v8577, 2147483648
        %v8582 = vmul.f32 %v8578, 1.442695
        %v8583 = vpow.pop %v8582
        %v8584 = vmul.f32 %v8579, 1.442695
        %v8585 = vpow.pop %v8584
        %v8586 = vmul.f32 %v8580, 1.442695
        %v8587 = vpow.pop %v8586
        %v8588 = vmul.f32 %v8581, 1.442695
        %v8589 = vpow.pop %v8588
        %v8590 = vadd.f32 %v8583, 1.0
        %v8591 = vadd.f32 %v8585, 1.0
        %v8592 = vadd.f32 %v8587, 1.0
        %v8593 = vadd.f32 %v8589, 1.0
        %v8594 = vrcp.pop %v8590
        %v8595 = vmul.f32 %v8590, %v8594
        %v8596 = vsub.f32 1.0, %v8595
        %v8597 = vmul.f32 %v8594, %v8596
        %v8598 = vadd.f32 %v8594, %v8597
        %vm8599 = vweird.f32 %v8590
        %vm8600 = vweird.f32 %v8594
        %vm8601 = vmor %vm8599, %vm8600
        %v8602 = vsel %vm8601, %v8594, %v8598
        %v8603 = vand.u32 2147483647, %v8590
        %vm8604 = vcmp.eq.f32.partialorder %v8603, 8.507059e+37
        %v8605 = vand.u32 %v8590, 2147483648
        %v8606 = vor.u32 1.1754944e-38, %v8605
        %v8607 = vsel %vm8604, %v8606, %v8602
        %v8608 = vmul.f32 1.0, %v8607
        %v8609 = vrcp.pop %v8591
        %v8610 = vmul.f32 %v8591, %v8609
        %v8611 = vsub.f32 1.0, %v8610
        %v8612 = vmul.f32 %v8609, %v8611
        %v8613 = vadd.f32 %v8609, %v8612
        %vm8614 = vweird.f32 %v8591
        %vm8615 = vweird.f32 %v8609
        %vm8616 = vmor %vm8614, %vm8615
        %v8617 = vsel %vm8616, %v8609, %v8613
        %v8618 = vand.u32 2147483647, %v8591
        %vm8619 = vcmp.eq.f32.partialorder %v8618, 8.507059e+37
        %v8620 = vand.u32 %v8591, 2147483648
        %v8621 = vor.u32 1.1754944e-38, %v8620
        %v8622 = vsel %vm8619, %v8621, %v8617
        %v8623 = vmul.f32 1.0, %v8622
        %v8624 = vrcp.pop %v8592
        %v8625 = vmul.f32 %v8592, %v8624
        %v8626 = vsub.f32 1.0, %v8625
        %v8627 = vmul.f32 %v8624, %v8626
        %v8628 = vadd.f32 %v8624, %v8627
        %vm8629 = vweird.f32 %v8592
        %vm8630 = vweird.f32 %v8624
        %vm8631 = vmor %vm8629, %vm8630
        %v8632 = vsel %vm8631, %v8624, %v8628
        %v8633 = vand.u32 2147483647, %v8592
        %vm8634 = vcmp.eq.f32.partialorder %v8633, 8.507059e+37
        %v8635 = vand.u32 %v8592, 2147483648
        %v8636 = vor.u32 1.1754944e-38, %v8635
        %v8637 = vsel %vm8634, %v8636, %v8632
        %v8638 = vmul.f32 1.0, %v8637
        %v8639 = vrcp.pop %v8593
        %v8640 = vmul.f32 %v8593, %v8639
        %v8641 = vsub.f32 1.0, %v8640
        %v8642 = vmul.f32 %v8639, %v8641
        %v8643 = vadd.f32 %v8639, %v8642
        %vm8644 = vweird.f32 %v8593
        %vm8645 = vweird.f32 %v8639
        %vm8646 = vmor %vm8644, %vm8645
        %v8647 = vsel %vm8646, %v8639, %v8643
        %v8648 = vand.u32 2147483647, %v8593
        %vm8649 = vcmp.eq.f32.partialorder %v8648, 8.507059e+37
        %v8650 = vand.u32 %v8593, 2147483648
        %v8651 = vor.u32 1.1754944e-38, %v8650
        %v8652 = vsel %vm8649, %v8651, %v8647
        %v8653 = vmul.f32 1.0, %v8652
        %8655 = vset.pattern.permute.xlu0 2
        %8656 = vperm.xlu0 %8655, %v8608
        %v8657 = vpop.permute.xlu0 %8656
        %8660 = vset.pattern.permute.xlu0 2
        %8661 = vperm.xlu0 %8660, %v8623
        %v8662 = vpop.permute.xlu0 %8661
        %8665 = vset.pattern.permute.xlu0 2
        %8666 = vperm.xlu0 %8665, %v8638
        %v8667 = vpop.permute.xlu0 %8666
        %8670 = vset.pattern.permute.xlu0 2
        %8671 = vperm.xlu0 %8670, %v8653
        %v8672 = vpop.permute.xlu0 %8671
        %v8674 = vmul.f32 %v8481, %v8657
        %v8675 = vmul.f32 %v8482, %v8657
        %v8676 = vmul.f32 %v8483, %v8662
        %v8677 = vmul.f32 %v8484, %v8662
        %v8678 = vmul.f32 %v8485, %v8667
        %v8679 = vmul.f32 %v8486, %v8667
        %v8680 = vmul.f32 %v8487, %v8672
        %v8681 = vmul.f32 %v8488, %v8672
        %v8682 = vld [vmem:[%s180] sm:$0xff]
        %v8683 = vld [vmem:[%s180 + $0x8] sm:$0xff]
        %v8684 = vld [vmem:[%s180 + $0x10] sm:$0xff]
        %v8685 = vld [vmem:[%s180 + $0x18] sm:$0xff]
        %v8686 = vld [vmem:[%s180 + $0x20] sm:$0xff]
        %v8687 = vld [vmem:[%s180 + $0x28] sm:$0xff]
        %v8688 = vld [vmem:[%s180 + $0x30] sm:$0xff]
        %v8689 = vld [vmem:[%s180 + $0x38] sm:$0xff]
        %v8690 = vadd.f32 %v8674, %v8682
        %v8691 = vadd.f32 %v8675, %v8683
        %v8692 = vadd.f32 %v8676, %v8684
        %v8693 = vadd.f32 %v8677, %v8685
        %v8694 = vadd.f32 %v8678, %v8686
        %v8695 = vadd.f32 %v8679, %v8687
        %v8696 = vadd.f32 %v8680, %v8688
        %v8697 = vadd.f32 %v8681, %v8689
        %8698 = vst [vmem:[%s208] sm:$0xff] %v8690
        %8699 = vst [vmem:[%s208 + $0x8] sm:$0xff] %v8691
        %8700 = vst [vmem:[%s208 + $0x10] sm:$0xff] %v8692
        %8701 = vst [vmem:[%s208 + $0x18] sm:$0xff] %v8693
        %8702 = vst [vmem:[%s208 + $0x20] sm:$0xff] %v8694
        %8703 = vst [vmem:[%s208 + $0x28] sm:$0xff] %v8695
        %8704 = vst [vmem:[%s208 + $0x30] sm:$0xff] %v8696
        %8705 = vst [vmem:[%s208 + $0x38] sm:$0xff] %v8697
        %v8706 = vld [vmem:[#allocation5 + $0x10] sm:$0xff]
        %v8707 = vld [vmem:[#allocation5 + $0x18] sm:$0xff]
        %v8708 = vld [vmem:[#allocation5 + $0x50] sm:$0xff]
        %v8709 = vld [vmem:[#allocation5 + $0x58] sm:$0xff]
        %v8710 = vld [vmem:[#allocation5 + $0x90] sm:$0xff]
        %v8711 = vld [vmem:[#allocation5 + $0x98] sm:$0xff]
        %v8712 = vld [vmem:[#allocation5 + $0xd0] sm:$0xff]
        %v8713 = vld [vmem:[#allocation5 + $0xd8] sm:$0xff]
        %v8714 = vadd.f32 %v8706, %v8707
        %8715 = vadd.xlane.f32.xlu0 %v8714
        %v8716 = vpop.xlane.xlu0 %8715
        %v8717 = vadd.f32 %v8708, %v8709
        %8718 = vadd.xlane.f32.xlu0 %v8717
        %v8719 = vpop.xlane.xlu0 %8718
        %v8720 = vadd.f32 %v8710, %v8711
        %8721 = vadd.xlane.f32.xlu0 %v8720
        %v8722 = vpop.xlane.xlu0 %8721
        %v8723 = vadd.f32 %v8712, %v8713
        %8724 = vadd.xlane.f32.xlu0 %v8723
        %v8725 = vpop.xlane.xlu0 %8724
        %v8726 = vmul.f32 %v8716, %v8507
        %v8727 = vmul.f32 %v8719, %v8507
        %v8728 = vmul.f32 %v8722, %v8507
        %v8729 = vmul.f32 %v8725, %v8507
        %v8730 = vmul.f32 %v253, %v8726
        %v8731 = vmul.f32 %v254, %v8727
        %v8732 = vmul.f32 %v255, %v8728
        %v8733 = vmul.f32 %v256, %v8729
        %v8734 = vsel %vm8516, %v8730, 0.0
        %v8735 = vsel %vm8516, %v8731, 0.0
        %v8736 = vadd.f32 %v8734, %v8735
        %v8737 = vsel %vm8516, %v8732, 0.0
        %v8738 = vadd.f32 %v8736, %v8737
        %v8739 = vsel %vm8516, %v8733, 0.0
        %v8740 = vadd.f32 %v8738, %v8739
        %v8741 = vrot.slane %v8740, 4
        %v8742 = vadd.f32 %v8740, %v8741
        %v8743 = vrot.slane %v8742, 2
        %v8744 = vadd.f32 %v8742, %v8743
        %v8745 = vrot.slane %v8744, 1
        %v8746 = vadd.f32 %v8744, %v8745
        %v8747 = vadd.f32 %v8746, %v8532
        %v8748 = vmax.f32 %v8747, 0.0
        %v8749 = vperm.slane %v8748, 0
        %8751 = vrot.lane.b32.xlu0 %v8749, 2
        %v8752 = vpop.permute.xlu0 %8751
        %v8754 = vmul.f32 %v253, %v8752
        %v8755 = vmul.f32 %v254, %v8752
        %v8756 = vmul.f32 %v255, %v8752
        %v8757 = vmul.f32 %v256, %v8752
        %8762 = vrot.lane.b32.xlu0 %v8754, 123
        %v8763 = vpop.permute.xlu0 %8762
        %8764 = vrot.lane.b32.xlu0 %v8755, 123
        %v8765 = vpop.permute.xlu0 %8764
        %8766 = vrot.lane.b32.xlu0 %v8756, 123
        %v8767 = vpop.permute.xlu0 %8766
        %8768 = vrot.lane.b32.xlu0 %v8757, 123
        %v8769 = vpop.permute.xlu0 %8768
        %v8774 = vsel %vm8561, %v8763, 0.0
        %8775 = vadd.xlane.f32.xlu0 %v8774
        %v8776 = vpop.xlane.xlu0 %8775
        %v8777 = vsel %vm8561, %v8765, 0.0
        %8778 = vadd.xlane.f32.xlu0 %v8777
        %v8779 = vpop.xlane.xlu0 %8778
        %v8780 = vsel %vm8561, %v8767, 0.0
        %8781 = vadd.xlane.f32.xlu0 %v8780
        %v8782 = vpop.xlane.xlu0 %8781
        %v8783 = vsel %vm8561, %v8769, 0.0
        %8784 = vadd.xlane.f32.xlu0 %v8783
        %v8785 = vpop.xlane.xlu0 %8784
        %v8786 = vadd.f32 %v8776, %v253
        %v8787 = vadd.f32 %v8779, %v254
        %v8788 = vadd.f32 %v8782, %v255
        %v8789 = vadd.f32 %v8785, %v256
        %v8790 = vxor.u32 %v8786, 2147483648
        %v8791 = vxor.u32 %v8787, 2147483648
        %v8792 = vxor.u32 %v8788, 2147483648
        %v8793 = vxor.u32 %v8789, 2147483648
        %v8794 = vmul.f32 %v8790, 1.442695
        %v8795 = vpow.pop %v8794
        %v8796 = vmul.f32 %v8791, 1.442695
        %v8797 = vpow.pop %v8796
        %v8798 = vmul.f32 %v8792, 1.442695
        %v8799 = vpow.pop %v8798
        %v8800 = vmul.f32 %v8793, 1.442695
        %v8801 = vpow.pop %v8800
        %v8802 = vadd.f32 %v8795, 1.0
        %v8803 = vadd.f32 %v8797, 1.0
        %v8804 = vadd.f32 %v8799, 1.0
        %v8805 = vadd.f32 %v8801, 1.0
        %v8806 = vrcp.pop %v8802
        %v8807 = vmul.f32 %v8802, %v8806
        %v8808 = vsub.f32 1.0, %v8807
        %v8809 = vmul.f32 %v8806, %v8808
        %v8810 = vadd.f32 %v8806, %v8809
        %vm8811 = vweird.f32 %v8802
        %vm8812 = vweird.f32 %v8806
        %vm8813 = vmor %vm8811, %vm8812
        %v8814 = vsel %vm8813, %v8806, %v8810
        %v8815 = vand.u32 2147483647, %v8802
        %vm8816 = vcmp.eq.f32.partialorder %v8815, 8.507059e+37
        %v8817 = vand.u32 %v8802, 2147483648
        %v8818 = vor.u32 1.1754944e-38, %v8817
        %v8819 = vsel %vm8816, %v8818, %v8814
        %v8820 = vmul.f32 1.0, %v8819
        %v8821 = vrcp.pop %v8803
        %v8822 = vmul.f32 %v8803, %v8821
        %v8823 = vsub.f32 1.0, %v8822
        %v8824 = vmul.f32 %v8821, %v8823
        %v8825 = vadd.f32 %v8821, %v8824
        %vm8826 = vweird.f32 %v8803
        %vm8827 = vweird.f32 %v8821
        %vm8828 = vmor %vm8826, %vm8827
        %v8829 = vsel %vm8828, %v8821, %v8825
        %v8830 = vand.u32 2147483647, %v8803
        %vm8831 = vcmp.eq.f32.partialorder %v8830, 8.507059e+37
        %v8832 = vand.u32 %v8803, 2147483648
        %v8833 = vor.u32 1.1754944e-38, %v8832
        %v8834 = vsel %vm8831, %v8833, %v8829
        %v8835 = vmul.f32 1.0, %v8834
        %v8836 = vrcp.pop %v8804
        %v8837 = vmul.f32 %v8804, %v8836
        %v8838 = vsub.f32 1.0, %v8837
        %v8839 = vmul.f32 %v8836, %v8838
        %v8840 = vadd.f32 %v8836, %v8839
        %vm8841 = vweird.f32 %v8804
        %vm8842 = vweird.f32 %v8836
        %vm8843 = vmor %vm8841, %vm8842
        %v8844 = vsel %vm8843, %v8836, %v8840
        %v8845 = vand.u32 2147483647, %v8804
        %vm8846 = vcmp.eq.f32.partialorder %v8845, 8.507059e+37
        %v8847 = vand.u32 %v8804, 2147483648
        %v8848 = vor.u32 1.1754944e-38, %v8847
        %v8849 = vsel %vm8846, %v8848, %v8844
        %v8850 = vmul.f32 1.0, %v8849
        %v8851 = vrcp.pop %v8805
        %v8852 = vmul.f32 %v8805, %v8851
        %v8853 = vsub.f32 1.0, %v8852
        %v8854 = vmul.f32 %v8851, %v8853
        %v8855 = vadd.f32 %v8851, %v8854
        %vm8856 = vweird.f32 %v8805
        %vm8857 = vweird.f32 %v8851
        %vm8858 = vmor %vm8856, %vm8857
        %v8859 = vsel %vm8858, %v8851, %v8855
        %v8860 = vand.u32 2147483647, %v8805
        %vm8861 = vcmp.eq.f32.partialorder %v8860, 8.507059e+37
        %v8862 = vand.u32 %v8805, 2147483648
        %v8863 = vor.u32 1.1754944e-38, %v8862
        %v8864 = vsel %vm8861, %v8863, %v8859
        %v8865 = vmul.f32 1.0, %v8864
        %8867 = vset.pattern.permute.xlu0 2
        %8868 = vperm.xlu0 %8867, %v8820
        %v8869 = vpop.permute.xlu0 %8868
        %8872 = vset.pattern.permute.xlu0 2
        %8873 = vperm.xlu0 %8872, %v8835
        %v8874 = vpop.permute.xlu0 %8873
        %8877 = vset.pattern.permute.xlu0 2
        %8878 = vperm.xlu0 %8877, %v8850
        %v8879 = vpop.permute.xlu0 %8878
        %8882 = vset.pattern.permute.xlu0 2
        %8883 = vperm.xlu0 %8882, %v8865
        %v8884 = vpop.permute.xlu0 %8883
        %v8886 = vmul.f32 %v8706, %v8869
        %v8887 = vmul.f32 %v8707, %v8869
        %v8888 = vmul.f32 %v8708, %v8874
        %v8889 = vmul.f32 %v8709, %v8874
        %v8890 = vmul.f32 %v8710, %v8879
        %v8891 = vmul.f32 %v8711, %v8879
        %v8892 = vmul.f32 %v8712, %v8884
        %v8893 = vmul.f32 %v8713, %v8884
        %v8894 = vld [vmem:[%s1001] sm:$0xff]
        %v8895 = vld [vmem:[%s1001 + $0x8] sm:$0xff]
        %v8896 = vld [vmem:[%s1001 + $0x10] sm:$0xff]
        %v8897 = vld [vmem:[%s1001 + $0x18] sm:$0xff]
        %v8898 = vld [vmem:[%s1001 + $0x20] sm:$0xff]
        %v8899 = vld [vmem:[%s1001 + $0x28] sm:$0xff]
        %v8900 = vld [vmem:[%s1001 + $0x30] sm:$0xff]
        %v8901 = vld [vmem:[%s1001 + $0x38] sm:$0xff]
        %v8902 = vadd.f32 %v8886, %v8894
        %v8903 = vadd.f32 %v8887, %v8895
        %v8904 = vadd.f32 %v8888, %v8896
        %v8905 = vadd.f32 %v8889, %v8897
        %v8906 = vadd.f32 %v8890, %v8898
        %v8907 = vadd.f32 %v8891, %v8899
        %v8908 = vadd.f32 %v8892, %v8900
        %v8909 = vadd.f32 %v8893, %v8901
        %s8910 = scalar_lea.vmem %s208, 64 [#allocation11]
        %8911 = vst [vmem:[%s8910] sm:$0xff] %v8902
        %8912 = vst [vmem:[%s8910 + $0x8] sm:$0xff] %v8903
        %8913 = vst [vmem:[%s8910 + $0x10] sm:$0xff] %v8904
        %8914 = vst [vmem:[%s8910 + $0x18] sm:$0xff] %v8905
        %8915 = vst [vmem:[%s8910 + $0x20] sm:$0xff] %v8906
        %8916 = vst [vmem:[%s8910 + $0x28] sm:$0xff] %v8907
        %8917 = vst [vmem:[%s8910 + $0x30] sm:$0xff] %v8908
        %8918 = vst [vmem:[%s8910 + $0x38] sm:$0xff] %v8909
        %v8919 = vld [vmem:[#allocation5 + $0x20] sm:$0xff]
        %v8920 = vld [vmem:[#allocation5 + $0x28] sm:$0xff]
        %v8921 = vld [vmem:[#allocation5 + $0x60] sm:$0xff]
        %v8922 = vld [vmem:[#allocation5 + $0x68] sm:$0xff]
        %v8923 = vld [vmem:[#allocation5 + $0xa0] sm:$0xff]
        %v8924 = vld [vmem:[#allocation5 + $0xa8] sm:$0xff]
        %v8925 = vld [vmem:[#allocation5 + $0xe0] sm:$0xff]
        %v8926 = vld [vmem:[#allocation5 + $0xe8] sm:$0xff]
        %v8927 = vadd.f32 %v8919, %v8920
        %8928 = vadd.xlane.f32.xlu0 %v8927
        %v8929 = vpop.xlane.xlu0 %8928
        %v8930 = vadd.f32 %v8921, %v8922
        %8931 = vadd.xlane.f32.xlu0 %v8930
        %v8932 = vpop.xlane.xlu0 %8931
        %v8933 = vadd.f32 %v8923, %v8924
        %8934 = vadd.xlane.f32.xlu0 %v8933
        %v8935 = vpop.xlane.xlu0 %8934
        %v8936 = vadd.f32 %v8925, %v8926
        %8937 = vadd.xlane.f32.xlu0 %v8936
        %v8938 = vpop.xlane.xlu0 %8937
        %v8939 = vmul.f32 %v8929, %v8507
        %v8940 = vmul.f32 %v8932, %v8507
        %v8941 = vmul.f32 %v8935, %v8507
        %v8942 = vmul.f32 %v8938, %v8507
        %v8943 = vmul.f32 %v253, %v8939
        %v8944 = vmul.f32 %v254, %v8940
        %v8945 = vmul.f32 %v255, %v8941
        %v8946 = vmul.f32 %v256, %v8942
        %v8947 = vsel %vm8516, %v8943, 0.0
        %v8948 = vsel %vm8516, %v8944, 0.0
        %v8949 = vadd.f32 %v8947, %v8948
        %v8950 = vsel %vm8516, %v8945, 0.0
        %v8951 = vadd.f32 %v8949, %v8950
        %v8952 = vsel %vm8516, %v8946, 0.0
        %v8953 = vadd.f32 %v8951, %v8952
        %v8954 = vrot.slane %v8953, 4
        %v8955 = vadd.f32 %v8953, %v8954
        %v8956 = vrot.slane %v8955, 2
        %v8957 = vadd.f32 %v8955, %v8956
        %v8958 = vrot.slane %v8957, 1
        %v8959 = vadd.f32 %v8957, %v8958
        %v8960 = vadd.f32 %v8959, %v8532
        %v8961 = vmax.f32 %v8960, 0.0
        %v8962 = vperm.slane %v8961, 0
        %8964 = vrot.lane.b32.xlu0 %v8962, 2
        %v8965 = vpop.permute.xlu0 %8964
        %v8967 = vmul.f32 %v253, %v8965
        %v8968 = vmul.f32 %v254, %v8965
        %v8969 = vmul.f32 %v255, %v8965
        %v8970 = vmul.f32 %v256, %v8965
        %8975 = vrot.lane.b32.xlu0 %v8967, 123
        %v8976 = vpop.permute.xlu0 %8975
        %8977 = vrot.lane.b32.xlu0 %v8968, 123
        %v8978 = vpop.permute.xlu0 %8977
        %8979 = vrot.lane.b32.xlu0 %v8969, 123
        %v8980 = vpop.permute.xlu0 %8979
        %8981 = vrot.lane.b32.xlu0 %v8970, 123
        %v8982 = vpop.permute.xlu0 %8981
        %v8987 = vsel %vm8561, %v8976, 0.0
        %8988 = vadd.xlane.f32.xlu0 %v8987
        %v8989 = vpop.xlane.xlu0 %8988
        %v8990 = vsel %vm8561, %v8978, 0.0
        %8991 = vadd.xlane.f32.xlu0 %v8990
        %v8992 = vpop.xlane.xlu0 %8991
        %v8993 = vsel %vm8561, %v8980, 0.0
        %8994 = vadd.xlane.f32.xlu0 %v8993
        %v8995 = vpop.xlane.xlu0 %8994
        %v8996 = vsel %vm8561, %v8982, 0.0
        %8997 = vadd.xlane.f32.xlu0 %v8996
        %v8998 = vpop.xlane.xlu0 %8997
        %v8999 = vadd.f32 %v8989, %v253
        %v9000 = vadd.f32 %v8992, %v254
        %v9001 = vadd.f32 %v8995, %v255
        %v9002 = vadd.f32 %v8998, %v256
        %v9003 = vxor.u32 %v8999, 2147483648
        %v9004 = vxor.u32 %v9000, 2147483648
        %v9005 = vxor.u32 %v9001, 2147483648
        %v9006 = vxor.u32 %v9002, 2147483648
        %v9007 = vmul.f32 %v9003, 1.442695
        %v9008 = vpow.pop %v9007
        %v9009 = vmul.f32 %v9004, 1.442695
        %v9010 = vpow.pop %v9009
        %v9011 = vmul.f32 %v9005, 1.442695
        %v9012 = vpow.pop %v9011
        %v9013 = vmul.f32 %v9006, 1.442695
        %v9014 = vpow.pop %v9013
        %v9015 = vadd.f32 %v9008, 1.0
        %v9016 = vadd.f32 %v9010, 1.0
        %v9017 = vadd.f32 %v9012, 1.0
        %v9018 = vadd.f32 %v9014, 1.0
        %v9019 = vrcp.pop %v9015
        %v9020 = vmul.f32 %v9015, %v9019
        %v9021 = vsub.f32 1.0, %v9020
        %v9022 = vmul.f32 %v9019, %v9021
        %v9023 = vadd.f32 %v9019, %v9022
        %vm9024 = vweird.f32 %v9015
        %vm9025 = vweird.f32 %v9019
        %vm9026 = vmor %vm9024, %vm9025
        %v9027 = vsel %vm9026, %v9019, %v9023
        %v9028 = vand.u32 2147483647, %v9015
        %vm9029 = vcmp.eq.f32.partialorder %v9028, 8.507059e+37
        %v9030 = vand.u32 %v9015, 2147483648
        %v9031 = vor.u32 1.1754944e-38, %v9030
        %v9032 = vsel %vm9029, %v9031, %v9027
        %v9033 = vmul.f32 1.0, %v9032
        %v9034 = vrcp.pop %v9016
        %v9035 = vmul.f32 %v9016, %v9034
        %v9036 = vsub.f32 1.0, %v9035
        %v9037 = vmul.f32 %v9034, %v9036
        %v9038 = vadd.f32 %v9034, %v9037
        %vm9039 = vweird.f32 %v9016
        %vm9040 = vweird.f32 %v9034
        %vm9041 = vmor %vm9039, %vm9040
        %v9042 = vsel %vm9041, %v9034, %v9038
        %v9043 = vand.u32 2147483647, %v9016
        %vm9044 = vcmp.eq.f32.partialorder %v9043, 8.507059e+37
        %v9045 = vand.u32 %v9016, 2147483648
        %v9046 = vor.u32 1.1754944e-38, %v9045
        %v9047 = vsel %vm9044, %v9046, %v9042
        %v9048 = vmul.f32 1.0, %v9047
        %v9049 = vrcp.pop %v9017
        %v9050 = vmul.f32 %v9017, %v9049
        %v9051 = vsub.f32 1.0, %v9050
        %v9052 = vmul.f32 %v9049, %v9051
        %v9053 = vadd.f32 %v9049, %v9052
        %vm9054 = vweird.f32 %v9017
        %vm9055 = vweird.f32 %v9049
        %vm9056 = vmor %vm9054, %vm9055
        %v9057 = vsel %vm9056, %v9049, %v9053
        %v9058 = vand.u32 2147483647, %v9017
        %vm9059 = vcmp.eq.f32.partialorder %v9058, 8.507059e+37
        %v9060 = vand.u32 %v9017, 2147483648
        %v9061 = vor.u32 1.1754944e-38, %v9060
        %v9062 = vsel %vm9059, %v9061, %v9057
        %v9063 = vmul.f32 1.0, %v9062
        %v9064 = vrcp.pop %v9018
        %v9065 = vmul.f32 %v9018, %v9064
        %v9066 = vsub.f32 1.0, %v9065
        %v9067 = vmul.f32 %v9064, %v9066
        %v9068 = vadd.f32 %v9064, %v9067
        %vm9069 = vweird.f32 %v9018
        %vm9070 = vweird.f32 %v9064
        %vm9071 = vmor %vm9069, %vm9070
        %v9072 = vsel %vm9071, %v9064, %v9068
        %v9073 = vand.u32 2147483647, %v9018
        %vm9074 = vcmp.eq.f32.partialorder %v9073, 8.507059e+37
        %v9075 = vand.u32 %v9018, 2147483648
        %v9076 = vor.u32 1.1754944e-38, %v9075
        %v9077 = vsel %vm9074, %v9076, %v9072
        %v9078 = vmul.f32 1.0, %v9077
        %9080 = vset.pattern.permute.xlu0 2
        %9081 = vperm.xlu0 %9080, %v9033
        %v9082 = vpop.permute.xlu0 %9081
        %9085 = vset.pattern.permute.xlu0 2
        %9086 = vperm.xlu0 %9085, %v9048
        %v9087 = vpop.permute.xlu0 %9086
        %9090 = vset.pattern.permute.xlu0 2
        %9091 = vperm.xlu0 %9090, %v9063
        %v9092 = vpop.permute.xlu0 %9091
        %9095 = vset.pattern.permute.xlu0 2
        %9096 = vperm.xlu0 %9095, %v9078
        %v9097 = vpop.permute.xlu0 %9096
        %v9099 = vmul.f32 %v8919, %v9082
        %v9100 = vmul.f32 %v8920, %v9082
        %v9101 = vmul.f32 %v8921, %v9087
        %v9102 = vmul.f32 %v8922, %v9087
        %v9103 = vmul.f32 %v8923, %v9092
        %v9104 = vmul.f32 %v8924, %v9092
        %v9105 = vmul.f32 %v8925, %v9097
        %v9106 = vmul.f32 %v8926, %v9097
        %v9107 = vld [vmem:[%s1666] sm:$0xff]
        %v9108 = vld [vmem:[%s1666 + $0x8] sm:$0xff]
        %v9109 = vld [vmem:[%s1666 + $0x10] sm:$0xff]
        %v9110 = vld [vmem:[%s1666 + $0x18] sm:$0xff]
        %v9111 = vld [vmem:[%s1666 + $0x20] sm:$0xff]
        %v9112 = vld [vmem:[%s1666 + $0x28] sm:$0xff]
        %v9113 = vld [vmem:[%s1666 + $0x30] sm:$0xff]
        %v9114 = vld [vmem:[%s1666 + $0x38] sm:$0xff]
        %v9115 = vadd.f32 %v9099, %v9107
        %v9116 = vadd.f32 %v9100, %v9108
        %v9117 = vadd.f32 %v9101, %v9109
        %v9118 = vadd.f32 %v9102, %v9110
        %v9119 = vadd.f32 %v9103, %v9111
        %v9120 = vadd.f32 %v9104, %v9112
        %v9121 = vadd.f32 %v9105, %v9113
        %v9122 = vadd.f32 %v9106, %v9114
        %s9123 = scalar_lea.vmem %s208, 128 [#allocation11]
        %9124 = vst [vmem:[%s9123] sm:$0xff] %v9115
        %9125 = vst [vmem:[%s9123 + $0x8] sm:$0xff] %v9116
        %9126 = vst [vmem:[%s9123 + $0x10] sm:$0xff] %v9117
        %9127 = vst [vmem:[%s9123 + $0x18] sm:$0xff] %v9118
        %9128 = vst [vmem:[%s9123 + $0x20] sm:$0xff] %v9119
        %9129 = vst [vmem:[%s9123 + $0x28] sm:$0xff] %v9120
        %9130 = vst [vmem:[%s9123 + $0x30] sm:$0xff] %v9121
        %9131 = vst [vmem:[%s9123 + $0x38] sm:$0xff] %v9122
        %v9132 = vld [vmem:[#allocation5 + $0x30] sm:$0xff]
        %v9133 = vld [vmem:[#allocation5 + $0x38] sm:$0xff]
        %v9134 = vld [vmem:[#allocation5 + $0x70] sm:$0xff]
        %v9135 = vld [vmem:[#allocation5 + $0x78] sm:$0xff]
        %v9136 = vld [vmem:[#allocation5 + $0xb0] sm:$0xff]
        %v9137 = vld [vmem:[#allocation5 + $0xb8] sm:$0xff]
        %v9138 = vld [vmem:[#allocation5 + $0xf0] sm:$0xff]
        %v9139 = vld [vmem:[#allocation5 + $0xf8] sm:$0xff]
        %v9140 = vadd.f32 %v9132, %v9133
        %9141 = vadd.xlane.f32.xlu0 %v9140
        %v9142 = vpop.xlane.xlu0 %9141
        %v9143 = vadd.f32 %v9134, %v9135
        %9144 = vadd.xlane.f32.xlu0 %v9143
        %v9145 = vpop.xlane.xlu0 %9144
        %v9146 = vadd.f32 %v9136, %v9137
        %9147 = vadd.xlane.f32.xlu0 %v9146
        %v9148 = vpop.xlane.xlu0 %9147
        %v9149 = vadd.f32 %v9138, %v9139
        %9150 = vadd.xlane.f32.xlu0 %v9149
        %v9151 = vpop.xlane.xlu0 %9150
        %v9152 = vmul.f32 %v9142, %v8507
        %v9153 = vmul.f32 %v9145, %v8507
        %v9154 = vmul.f32 %v9148, %v8507
        %v9155 = vmul.f32 %v9151, %v8507
        %v9156 = vmul.f32 %v253, %v9152
        %v9157 = vmul.f32 %v254, %v9153
        %v9158 = vmul.f32 %v255, %v9154
        %v9159 = vmul.f32 %v256, %v9155
        %v9160 = vsel %vm8516, %v9156, 0.0
        %v9161 = vsel %vm8516, %v9157, 0.0
        %v9162 = vadd.f32 %v9160, %v9161
        %v9163 = vsel %vm8516, %v9158, 0.0
        %v9164 = vadd.f32 %v9162, %v9163
        %v9165 = vsel %vm8516, %v9159, 0.0
        %v9166 = vadd.f32 %v9164, %v9165
        %v9167 = vrot.slane %v9166, 4
        %v9168 = vadd.f32 %v9166, %v9167
        %v9169 = vrot.slane %v9168, 2
        %v9170 = vadd.f32 %v9168, %v9169
        %v9171 = vrot.slane %v9170, 1
        %v9172 = vadd.f32 %v9170, %v9171
        %v9173 = vadd.f32 %v9172, %v8532
        %v9174 = vmax.f32 %v9173, 0.0
        %v9175 = vperm.slane %v9174, 0
        %9177 = vrot.lane.b32.xlu0 %v9175, 2
        %v9178 = vpop.permute.xlu0 %9177
        %v9180 = vmul.f32 %v253, %v9178
        %v9181 = vmul.f32 %v254, %v9178
        %v9182 = vmul.f32 %v255, %v9178
        %v9183 = vmul.f32 %v256, %v9178
        %9188 = vrot.lane.b32.xlu0 %v9180, 123
        %v9189 = vpop.permute.xlu0 %9188
        %9190 = vrot.lane.b32.xlu0 %v9181, 123
        %v9191 = vpop.permute.xlu0 %9190
        %9192 = vrot.lane.b32.xlu0 %v9182, 123
        %v9193 = vpop.permute.xlu0 %9192
        %9194 = vrot.lane.b32.xlu0 %v9183, 123
        %v9195 = vpop.permute.xlu0 %9194
        %v9200 = vsel %vm8561, %v9189, 0.0
        %9201 = vadd.xlane.f32.xlu0 %v9200
        %v9202 = vpop.xlane.xlu0 %9201
        %v9203 = vsel %vm8561, %v9191, 0.0
        %9204 = vadd.xlane.f32.xlu0 %v9203
        %v9205 = vpop.xlane.xlu0 %9204
        %v9206 = vsel %vm8561, %v9193, 0.0
        %9207 = vadd.xlane.f32.xlu0 %v9206
        %v9208 = vpop.xlane.xlu0 %9207
        %v9209 = vsel %vm8561, %v9195, 0.0
        %9210 = vadd.xlane.f32.xlu0 %v9209
        %v9211 = vpop.xlane.xlu0 %9210
        %v9212 = vadd.f32 %v9202, %v253
        %v9213 = vadd.f32 %v9205, %v254
        %v9214 = vadd.f32 %v9208, %v255
        %v9215 = vadd.f32 %v9211, %v256
        %v9216 = vxor.u32 %v9212, 2147483648
        %v9217 = vxor.u32 %v9213, 2147483648
        %v9218 = vxor.u32 %v9214, 2147483648
        %v9219 = vxor.u32 %v9215, 2147483648
        %v9220 = vmul.f32 %v9216, 1.442695
        %v9221 = vpow.pop %v9220
        %v9222 = vmul.f32 %v9217, 1.442695
        %v9223 = vpow.pop %v9222
        %v9224 = vmul.f32 %v9218, 1.442695
        %v9225 = vpow.pop %v9224
        %v9226 = vmul.f32 %v9219, 1.442695
        %v9227 = vpow.pop %v9226
        %v9228 = vadd.f32 %v9221, 1.0
        %v9229 = vadd.f32 %v9223, 1.0
        %v9230 = vadd.f32 %v9225, 1.0
        %v9231 = vadd.f32 %v9227, 1.0
        %v9232 = vrcp.pop %v9228
        %v9233 = vmul.f32 %v9228, %v9232
        %v9234 = vsub.f32 1.0, %v9233
        %v9235 = vmul.f32 %v9232, %v9234
        %v9236 = vadd.f32 %v9232, %v9235
        %vm9237 = vweird.f32 %v9228
        %vm9238 = vweird.f32 %v9232
        %vm9239 = vmor %vm9237, %vm9238
        %v9240 = vsel %vm9239, %v9232, %v9236
        %v9241 = vand.u32 2147483647, %v9228
        %vm9242 = vcmp.eq.f32.partialorder %v9241, 8.507059e+37
        %v9243 = vand.u32 %v9228, 2147483648
        %v9244 = vor.u32 1.1754944e-38, %v9243
        %v9245 = vsel %vm9242, %v9244, %v9240
        %v9246 = vmul.f32 1.0, %v9245
        %v9247 = vrcp.pop %v9229
        %v9248 = vmul.f32 %v9229, %v9247
        %v9249 = vsub.f32 1.0, %v9248
        %v9250 = vmul.f32 %v9247, %v9249
        %v9251 = vadd.f32 %v9247, %v9250
        %vm9252 = vweird.f32 %v9229
        %vm9253 = vweird.f32 %v9247
        %vm9254 = vmor %vm9252, %vm9253
        %v9255 = vsel %vm9254, %v9247, %v9251
        %v9256 = vand.u32 2147483647, %v9229
        %vm9257 = vcmp.eq.f32.partialorder %v9256, 8.507059e+37
        %v9258 = vand.u32 %v9229, 2147483648
        %v9259 = vor.u32 1.1754944e-38, %v9258
        %v9260 = vsel %vm9257, %v9259, %v9255
        %v9261 = vmul.f32 1.0, %v9260
        %v9262 = vrcp.pop %v9230
        %v9263 = vmul.f32 %v9230, %v9262
        %v9264 = vsub.f32 1.0, %v9263
        %v9265 = vmul.f32 %v9262, %v9264
        %v9266 = vadd.f32 %v9262, %v9265
        %vm9267 = vweird.f32 %v9230
        %vm9268 = vweird.f32 %v9262
        %vm9269 = vmor %vm9267, %vm9268
        %v9270 = vsel %vm9269, %v9262, %v9266
        %v9271 = vand.u32 2147483647, %v9230
        %vm9272 = vcmp.eq.f32.partialorder %v9271, 8.507059e+37
        %v9273 = vand.u32 %v9230, 2147483648
        %v9274 = vor.u32 1.1754944e-38, %v9273
        %v9275 = vsel %vm9272, %v9274, %v9270
        %v9276 = vmul.f32 1.0, %v9275
        %v9277 = vrcp.pop %v9231
        %v9278 = vmul.f32 %v9231, %v9277
        %v9279 = vsub.f32 1.0, %v9278
        %v9280 = vmul.f32 %v9277, %v9279
        %v9281 = vadd.f32 %v9277, %v9280
        %vm9282 = vweird.f32 %v9231
        %vm9283 = vweird.f32 %v9277
        %vm9284 = vmor %vm9282, %vm9283
        %v9285 = vsel %vm9284, %v9277, %v9281
        %v9286 = vand.u32 2147483647, %v9231
        %vm9287 = vcmp.eq.f32.partialorder %v9286, 8.507059e+37
        %v9288 = vand.u32 %v9231, 2147483648
        %v9289 = vor.u32 1.1754944e-38, %v9288
        %v9290 = vsel %vm9287, %v9289, %v9285
        %v9291 = vmul.f32 1.0, %v9290
        %9293 = vset.pattern.permute.xlu0 2
        %9294 = vperm.xlu0 %9293, %v9246
        %v9295 = vpop.permute.xlu0 %9294
        %9298 = vset.pattern.permute.xlu0 2
        %9299 = vperm.xlu0 %9298, %v9261
        %v9300 = vpop.permute.xlu0 %9299
        %9303 = vset.pattern.permute.xlu0 2
        %9304 = vperm.xlu0 %9303, %v9276
        %v9305 = vpop.permute.xlu0 %9304
        %9308 = vset.pattern.permute.xlu0 2
        %9309 = vperm.xlu0 %9308, %v9291
        %v9310 = vpop.permute.xlu0 %9309
        %v9312 = vmul.f32 %v9132, %v9295
        %v9313 = vmul.f32 %v9133, %v9295
        %v9314 = vmul.f32 %v9134, %v9300
        %v9315 = vmul.f32 %v9135, %v9300
        %v9316 = vmul.f32 %v9136, %v9305
        %v9317 = vmul.f32 %v9137, %v9305
        %v9318 = vmul.f32 %v9138, %v9310
        %v9319 = vmul.f32 %v9139, %v9310
        %v9320 = vld [vmem:[%s2331] sm:$0xff]
        %v9321 = vld [vmem:[%s2331 + $0x8] sm:$0xff]
        %v9322 = vld [vmem:[%s2331 + $0x10] sm:$0xff]
        %v9323 = vld [vmem:[%s2331 + $0x18] sm:$0xff]
        %v9324 = vld [vmem:[%s2331 + $0x20] sm:$0xff]
        %v9325 = vld [vmem:[%s2331 + $0x28] sm:$0xff]
        %v9326 = vld [vmem:[%s2331 + $0x30] sm:$0xff]
        %v9327 = vld [vmem:[%s2331 + $0x38] sm:$0xff]
        %v9328 = vadd.f32 %v9312, %v9320
        %v9329 = vadd.f32 %v9313, %v9321
        %v9330 = vadd.f32 %v9314, %v9322
        %v9331 = vadd.f32 %v9315, %v9323
        %v9332 = vadd.f32 %v9316, %v9324
        %v9333 = vadd.f32 %v9317, %v9325
        %v9334 = vadd.f32 %v9318, %v9326
        %v9335 = vadd.f32 %v9319, %v9327
        %s9336 = scalar_lea.vmem %s208, 192 [#allocation11]
        %9337 = vst [vmem:[%s9336] sm:$0xff] %v9328
        %9338 = vst [vmem:[%s9336 + $0x8] sm:$0xff] %v9329
        %9339 = vst [vmem:[%s9336 + $0x10] sm:$0xff] %v9330
        %9340 = vst [vmem:[%s9336 + $0x18] sm:$0xff] %v9331
        %9341 = vst [vmem:[%s9336 + $0x20] sm:$0xff] %v9332
        %9342 = vst [vmem:[%s9336 + $0x28] sm:$0xff] %v9333
        %9343 = vst [vmem:[%s9336 + $0x30] sm:$0xff] %v9334
        %9344 = vst [vmem:[%s9336 + $0x38] sm:$0xff] %v9335
        %s9345 = sand.u32 %s97, 1
        %s9346 = scalar_lea.sflag [#allocation8], %s9345
        %s9347 = sand.u32 %s97, 1
        %s9348 = smul.addr %s9347, 256
        %s9349 = scalar_lea.vmem [#allocation11], %s9348
        // Predicated region
        $region41: #{tpu_custom_call.1} parent=31 // pred_check
          %p9350 = pneg %p107
        $region42: #{tpu_custom_call.1} parent=31 // pred_check_branch
          %9352 = sbr.rel (%p9350) target = $region44
        $region43: #{tpu_custom_call.1} parent=31 // pred_region
          %s9353 = smul.u32 4, %s21
          %9355 = vsyncadd %s9346, 0
          %s9356 = smul.addr %s9353, 8
          %s9357 = smul.addr %s9356, 8
          %s9358 = scalar_lea.hbm %s3, %s9357
          %s9359 = sshll.u32 %s9349, 4
          %s9360 = int_to_ptr.vmem [resolvable:$true] %s9359
          %s9361 = sshll.u32 %s9358, 4
          %s9362 = int_to_ptr.hbm [resolvable:$true] %s9361
          %9367 = dma.vmem_to_hbm [thread:$0]  %s9360, 4096, %s9362, %s9346, 256, 256, 16
        $region44: #{tpu_custom_call.1} parent=31 // pred_fallthru
          _
      $region32: #{tpu_custom_call.1} parent=5 // pred_fallthru
        _
      %p9368 = scmp.le.s32.totalorder 2, %s16
      // Predicated region
      $region45: #{tpu_custom_call.1} parent=5 // pred_check
        %p9369 = pneg %p9368
      $region46: #{tpu_custom_call.1} parent=5 // pred_check_branch
        %9371 = sbr.rel (%p9369) target = $region48
      $region47: #{tpu_custom_call.1} parent=5 // pred_region
        %s9372 = ssub.s32 %s16, 2
        // Predicated region
        $region49: #{tpu_custom_call.1} parent=47 // pred_check
          %p9373 = pneg %p113
        $region50: #{tpu_custom_call.1} parent=47 // pred_check_branch
          %9375 = sbr.rel (%p9373) target = $region52
        $region51: #{tpu_custom_call.1} parent=47 // pred_region
          %s9376 = sand.u32 %s98, 1
          %s9377 = scalar_lea.sflag [#allocation8], %s9376
          %s9378 = sand.u32 %s98, 1
          %s9379 = smul.addr %s9378, 256
          %s9380 = scalar_lea.vmem [#allocation11], %s9379
          %9382 = dma.done %s9377, 4096
        $region52: #{tpu_custom_call.1} parent=47 // pred_fallthru
          _
      $region48: #{tpu_custom_call.1} parent=5 // pred_fallthru
        _
    $region6: #{tpu_custom_call.1} parent=1 // loop_footer
      %s20 = sadd.s32 1, %s16
    $region7: #{tpu_custom_call.1} parent=1 // loop_footer_branch
      %15 = sbr.rel target = $region3
    $region8: #{tpu_custom_call.1} parent=1 // loop_exit
      _
    %9383 = vsyncpa [#allocation7], 1
    %s9384 = scalar_lea.sflag [#allocation7], 1
    %9385 = vsyncpa %s9384, 1
    %9386 = vsyncpa [#allocation10], 1
    %9387 = vsyncpa [#allocation8], 1
    %s9388 = scalar_lea.sflag [#allocation8], 1
    %9389 = vsyncpa %s9388, 1

</llo_original>
